<compile_context>
chip_gen: v5e
topology: v5e:2x2
jax: 0.10.0
libtpu: 0.0.40
codegen_flags: <defaults>
</compile_context>

<pallas_src>
import numpy as np
import jax
import jax.numpy as jnp
from jax.experimental import pallas as pl
from jax.experimental.pallas import tpu as pltpu


# ----------------------------------------------------------------------------
# Parameter packing: expand weights into the fused / block-diagonal form
# consumed by the kernel (done once, outside the jitted forward).  All matmul
# weights are stored bf16; small elementwise params stay f32.
# ----------------------------------------------------------------------------
def pack_inputs(params, a_hat, num_tiles):
    n = num_tiles
    f32, bf16 = jnp.float32, jnp.bfloat16
    eye_n = jnp.eye(n, dtype=f32)
    d_model = params["block1"]["theta"].shape[0]

    def expand_time_block(tb):
        # Fused temporal-conv weight:
        #   rows = (tap dt, node, cin), cols = (conv index, node, cout)
        k = jnp.concatenate(
            [jnp.concatenate(
                [jnp.kron(eye_n, tb[w][dt]) for w in ("w1", "w2", "w3")],
                axis=1)
             for dt in range(3)], axis=0)
        b = jnp.concatenate(
            [jnp.tile(tb[bn], (1, n)) for bn in ("b1", "b2", "b3")], axis=1)
        return k.astype(bf16), b.astype(f32)

    k1, b1 = expand_time_block(params["block1"]["tb1"])
    k2, b2 = expand_time_block(params["block1"]["tb2"])
    k3, b3 = expand_time_block(params["block2"]["tb1"])
    k4, b4 = expand_time_block(params["block2"]["tb2"])
    k5, b5 = expand_time_block(params["last_temporal"])

    # Graph conv fused:  x @ kron(A^T, I_C) @ kron(I_N, Theta) == x @ kron(A^T, Theta)
    ga1 = jnp.kron(a_hat.astype(f32).T, params["block1"]["theta"]).astype(bf16)
    ga2 = jnp.kron(a_hat.astype(f32).T, params["block2"]["theta"]).astype(bf16)

    # BatchNorm2d(num_nodes) per-node pooling matrix (tiny matmul; kept f32).
    g = jnp.kron(eye_n, jnp.ones((d_model, d_model), f32))

    def expand_bn(v):
        return jnp.repeat(v.astype(f32), d_model).reshape(1, n * d_model)

    g1s = expand_bn(params["block1"]["gamma"])
    g1b = expand_bn(params["block1"]["beta"])
    g2s = expand_bn(params["block2"]["gamma"])
    g2b = expand_bn(params["block2"]["beta"])

    feat = n                                         # last TimeBlock out channels
    mc = jnp.kron(params["last_conv_w"].T.astype(f32),
                  jnp.eye(feat, dtype=f32)).astype(bf16)
    mcb = jnp.repeat(params["last_conv_b"].astype(f32), feat).reshape(1, n * feat)

    return dict(k1=k1, b1=b1, k2=k2, b2=b2, k3=k3, b3=b3, k4=k4, b4=b4,
                k5=k5, b5=b5, ga1=ga1, ga2=ga2, g=g,
                g1s=g1s, g1b=g1b, g2s=g2s, g2b=g2b, mc=mc, mcb=mcb)


# ----------------------------------------------------------------------------
# Single fused Pallas kernel.
# ----------------------------------------------------------------------------
def _fused_crowdnet(x2d, p, batch, t_steps, num_tiles):
    d_model = p["g1s"].shape[1] // num_tiles
    out_rows = batch * (t_steps - 10)
    out_cols = num_tiles * num_tiles

    # Small, early-use operands: DMA'd by the Pallas prologue (~0.4 MB).
    vmem_inputs = (x2d, p["k1"], p["b1"], p["ga1"], p["g"],
                   p["g1s"], p["g1b"], p["g2s"], p["g2b"],
                   p["b2"], p["b3"], p["b4"], p["b5"], p["mc"], p["mcb"])
    # Large, late-use weights: stay in HBM (pl.ANY) and are manually
    # prefetched so their DMA overlaps block1 compute.
    hbm_inputs = (p["k2"], p["k3"], p["k4"], p["k5"], p["ga2"])

    def kernel(x_ref, k1_ref, b1_ref, ga1_ref, g_ref,
               g1s_ref, g1b_ref, g2s_ref, g2b_ref,
               b2_ref, b3_ref, b4_ref, b5_ref, mc_ref, mcb_ref,
               k2_hbm, k3_hbm, k4_hbm, k5_hbm, ga2_hbm,
               o_ref,
               k2_v, k3_v, k4_v, k5_v, ga2_v, sem):

        # Kick off prefetch of the late-stage weights immediately; each wait
        # is placed right before the weight's first use.
        copies = [
            pltpu.make_async_copy(k2_hbm, k2_v, sem.at[0]),
            pltpu.make_async_copy(k3_hbm, k3_v, sem.at[1]),
            pltpu.make_async_copy(k4_hbm, k4_v, sem.at[2]),
            pltpu.make_async_copy(k5_hbm, k5_v, sem.at[3]),
            pltpu.make_async_copy(ga2_hbm, ga2_v, sem.at[4]),
        ]
        for cp in copies:
            cp.start()

        def mm(a, w):
            # bf16 MXU path, f32 accumulation.
            return jnp.dot(a.astype(jnp.bfloat16), w.astype(jnp.bfloat16),
                           preferred_element_type=jnp.float32)

        def time_block(x, t_in, k, bias):
            # Temporal taps as static row slices of the (b, t)-major slab.
            t_out = t_in - 2
            taps = []
            for dt in range(3):
                rows = [x[b * t_in + dt: b * t_in + dt + t_out, :]
                        for b in range(batch)]
                taps.append(rows[0] if batch == 1
                            else jnp.concatenate(rows, axis=0))
            xt = jnp.concatenate(taps, axis=1)          # (B*t_out, 3*width)
            y = mm(xt, k) + bias                        # one fused MXU op
            w = y.shape[1] // 3                         # lane-aligned slices
            c1, c2, c3 = y[:, :w], y[:, w:2 * w], y[:, 2 * w:]
            gate = pl.reciprocal(1.0 + jnp.exp(-c2), approx=True)   # sigmoid
            return jnp.maximum(c1 + gate + c3, 0.0)

        def spatial(x, ga):
            # kron(A_hat^T, Theta): node mixing + channel lift in one matmul.
            return jnp.maximum(mm(x, ga), 0.0)

        def bnorm(x, scale, shift):
            # BatchNorm2d(num_nodes), training-mode batch stats, biased var.
            # Single pooling matmul for both E[x] and E[x^2] (kept f32).
            inv_cnt = 1.0 / (x.shape[0] * d_model)
            rowsum = jnp.sum(x, axis=0, keepdims=True)
            sqsum = jnp.sum(x * x, axis=0, keepdims=True)
            pooled = jnp.dot(jnp.concatenate([rowsum, sqsum], axis=0),
                             g_ref[...], preferred_element_type=jnp.float32)
            mean = pooled[0:1, :] * inv_cnt
            var = pooled[1:2, :] * inv_cnt - mean * mean
            inv = jax.lax.rsqrt(var + 1e-5)
            return (x - mean) * inv * scale + shift

        t = time_block(x_ref[...], t_steps, k1_ref[...], b1_ref[...])
        t = spatial(t, ga1_ref[...])                       # block1 gconv
        copies[0].wait()
        t = time_block(t, t_steps - 2, k2_v[...], b2_ref[...])
        t = bnorm(t, g1s_ref[...], g1b_ref[...])           # block1 BN
        copies[1].wait()
        t = time_block(t, t_steps - 4, k3_v[...], b3_ref[...])
        copies[4].wait()
        t = spatial(t, ga2_v[...])                         # block2 gconv
        copies[2].wait()
        t = time_block(t, t_steps - 6, k4_v[...], b4_ref[...])
        t = bnorm(t, g2s_ref[...], g2b_ref[...])           # block2 BN
        copies[3].wait()
        t = time_block(t, t_steps - 8, k5_v[...], b5_ref[...])
        y = mm(t, mc_ref[...]) + mcb_ref[...]              # last 1x1 node conv
        o_ref[...] = y.astype(o_ref.dtype)

    def full_spec(shape):
        return pl.BlockSpec(shape, lambda i: (0,) * len(shape))

    return pl.pallas_call(
        kernel,
        out_shape=jax.ShapeDtypeStruct((out_rows, out_cols), jnp.float32),
        grid=(1,),
        in_specs=([full_spec(a.shape) for a in vmem_inputs]
                  + [pl.BlockSpec(memory_space=pl.ANY)] * len(hbm_inputs)),
        out_specs=full_spec((out_rows, out_cols)),
        scratch_shapes=[
            pltpu.VMEM(p["k2"].shape, jnp.bfloat16),
            pltpu.VMEM(p["k3"].shape, jnp.bfloat16),
            pltpu.VMEM(p["k4"].shape, jnp.bfloat16),
            pltpu.VMEM(p["k5"].shape, jnp.bfloat16),
            pltpu.VMEM(p["ga2"].shape, jnp.bfloat16),
            pltpu.SemaphoreType.DMA((5,)),
        ],
        compiler_params=pltpu.CompilerParams(
            dimension_semantics=("arbitrary",),
            vmem_limit_bytes=16 * 1024 * 1024),
    )(*vmem_inputs, *hbm_inputs)


@jax.jit
def crowdnet_forward(x, packed):
    # x: (B, T, N, N) — same convention as the PyTorch Model input.
    B, T, N, _ = x.shape
    x2d = x.reshape(B * T, N * N)          # rows=(b,t), cols=(node, feature)
    out2d = _fused_crowdnet(x2d, packed, B, T, N)
    return out2d.reshape(B, T - 10, N, N)  # == out4.permute(0, 2, 1, 3)


# ----------------------------------------------------------------------------
# Pure-JAX reference (same math, HIGHEST precision) for a correctness check.
# ----------------------------------------------------------------------------
_HI = jax.lax.Precision.HIGHEST


def _time_block_ref(x, w1, w2, w3, b1, b2, b3):
    t_out = x.shape[2] - 2

    def conv(w, b):
        acc = 0.0
        for dt in range(3):
            acc = acc + jnp.einsum("bntc,cf->bntf",
                                   x[:, :, dt:dt + t_out, :], w[dt],
                                   precision=_HI)
        return acc + b[0]

    c1, c2, c3 = conv(w1, b1), conv(w2, b2), conv(w3, b3)
    return jnp.maximum(c1 + jax.nn.sigmoid(c2) + c3, 0.0)


def _spatial_ref(x, a, theta):
    y = jnp.einsum("ij,bjtc->bitc", a, x, precision=_HI)
    y = jnp.einsum("bitc,cs->bits", y, theta, precision=_HI)
    return jnp.maximum(y, 0.0)


def _bn_ref(x, gamma, beta):
    mean = jnp.mean(x, axis=(0, 2, 3), keepdims=True)
    var = jnp.mean(jnp.square(x - mean), axis=(0, 2, 3), keepdims=True)
    return ((x - mean) / jnp.sqrt(var + 1e-5) * gamma.reshape(1, -1, 1, 1)
            + beta.reshape(1, -1, 1, 1))


def _ref_forward(x, a_hat, params):
    x = jnp.transpose(x, (0, 2, 1, 3))

    def block(x, p):
        t1 = _time_block_ref(x, **p["tb1"])
        s = _spatial_ref(t1, a_hat, p["theta"])
        t2 = _time_block_ref(s, **p["tb2"])
        return _bn_ref(t2, p["gamma"], p["beta"])

    out1 = block(x, params["block1"])
    out2 = block(out1, params["block2"])
    out3 = _time_block_ref(out2, **params["last_temporal"])
    out4 = jnp.einsum("oc,bctf->botf", params["last_conv_w"], out3,
                      precision=_HI) + params["last_conv_b"].reshape(1, -1, 1, 1)
    return jnp.transpose(out4, (0, 2, 1, 3))


# ----------------------------------------------------------------------------
# Deterministic parameter initialization (shapes follow the module __init__).
# ----------------------------------------------------------------------------
def _init_time_block(key, cin, cout):
    ks = jax.random.split(key, 6)
    bound = 1.0 / np.sqrt(3.0 * cin)
    mk_w = lambda k: jax.random.uniform(k, (3, cin, cout), jnp.float32,
                                        -bound, bound)
    mk_b = lambda k: jax.random.uniform(k, (1, cout), jnp.float32,
                                        -bound, bound)
    return {"w1": mk_w(ks[0]), "w2": mk_w(ks[1]), "w3": mk_w(ks[2]),
            "b1": mk_b(ks[3]), "b2": mk_b(ks[4]), "b3": mk_b(ks[5])}


def _init_stgcn_block(key, cin, cout, spatial, num_nodes):
    k1, k2, k3 = jax.random.split(key, 3)
    stdv = 1.0 / np.sqrt(spatial)
    return {
        "tb1": _init_time_block(k1, cin, cout),
        "theta": jax.random.uniform(k2, (cout, spatial), jnp.float32,
                                    -stdv, stdv),
        "tb2": _init_time_block(k3, spatial, cout),
        "gamma": jnp.ones((num_nodes,), jnp.float32),   # BatchNorm2d default
        "beta": jnp.zeros((num_nodes,), jnp.float32),
    }


def init_params(key, num_tiles, d_model):
    k1, k2, k3, k4, k5 = jax.random.split(key, 5)
    bound = 1.0 / np.sqrt(num_tiles)
    return {
        "block1": _init_stgcn_block(k1, num_tiles, d_model, 4 * d_model,
                                    num_tiles),
        "block2": _init_stgcn_block(k2, d_model, d_model, 4 * d_model,
                                    num_tiles),
        "last_temporal": _init_time_block(k3, d_model, num_tiles),
        "last_conv_w": jax.random.uniform(k4, (num_tiles, num_tiles),
                                          jnp.float32, -bound, bound),
        "last_conv_b": jax.random.uniform(k5, (num_tiles,), jnp.float32,
                                          -bound, bound),
    }


if __name__ == "__main__":
    B, T, N, D = 2, 16, 8, 16          # batch, timesteps, num_tiles, d_model

    root = jax.random.PRNGKey(0)
    kx, ka, kp = jax.random.split(root, 3)

    X = jax.random.normal(kx, (B, T, N, N), jnp.float32)
    A = jax.random.uniform(ka, (N, N), jnp.float32, 0.1, 1.0)
    A_hat = A / jnp.sum(A, axis=1, keepdims=True)          # row-normalized adj

    params = init_params(kp, N, D)
    packed = pack_inputs(params, A_hat, N)

    out = jax.block_until_ready(crowdnet_forward(X, packed))

    assert out.shape == (B, T - 10, N, N), out.shape
    assert bool(jnp.all(jnp.isfinite(out)))

    ref = jax.block_until_ready(_ref_forward(X, A_hat, params))
    # Weights/operands are stored bf16 (f32 accumulation) per the perf review,
    # so the tolerance vs. the HIGHEST-precision f32 reference is widened
    # slightly from 2e-2 to 3e-2.
    assert np.allclose(np.asarray(out), np.asarray(ref), rtol=3e-2, atol=3e-2)

    print("KERNEL_OK")
</pallas_src>

<mosaic_0001>
module attributes {stable_mosaic.version = 11 : i64} {
  func.func @kernel(%arg0: i32, %arg1: memref<32x64xf32, #tpu.memory_space<vmem>>, %arg2: memref<192x384xbf16, #tpu.memory_space<vmem>>, %arg3: memref<1x384xf32, #tpu.memory_space<vmem>>, %arg4: memref<128x512xbf16, #tpu.memory_space<vmem>>, %arg5: memref<128x128xf32, #tpu.memory_space<vmem>>, %arg6: memref<1x128xf32, #tpu.memory_space<vmem>>, %arg7: memref<1x128xf32, #tpu.memory_space<vmem>>, %arg8: memref<1x128xf32, #tpu.memory_space<vmem>>, %arg9: memref<1x128xf32, #tpu.memory_space<vmem>>, %arg10: memref<1x384xf32, #tpu.memory_space<vmem>>, %arg11: memref<1x384xf32, #tpu.memory_space<vmem>>, %arg12: memref<1x384xf32, #tpu.memory_space<vmem>>, %arg13: memref<1x192xf32, #tpu.memory_space<vmem>>, %arg14: memref<64x64xbf16, #tpu.memory_space<vmem>>, %arg15: memref<1x64xf32, #tpu.memory_space<vmem>>, %arg16: memref<1536x384xbf16, #tpu.memory_space<any>>, %arg17: memref<384x384xbf16, #tpu.memory_space<any>>, %arg18: memref<1536x384xbf16, #tpu.memory_space<any>>, %arg19: memref<384x192xbf16, #tpu.memory_space<any>>, %arg20: memref<128x512xbf16, #tpu.memory_space<any>>, %arg21: memref<12x64xf32, #tpu.memory_space<vmem>>, %arg22: memref<1536x384xbf16, #tpu.memory_space<vmem>>, %arg23: memref<384x384xbf16, #tpu.memory_space<vmem>>, %arg24: memref<1536x384xbf16, #tpu.memory_space<vmem>>, %arg25: memref<384x192xbf16, #tpu.memory_space<vmem>>, %arg26: memref<128x512xbf16, #tpu.memory_space<vmem>>, %arg27: memref<5x!tpu.dma_semaphore, #tpu.memory_space<semaphore_mem>>) attributes {dimension_semantics = [#tpu.dimension_semantics<arbitrary>], iteration_bounds = array<i64: 1>, scalar_prefetch = 0 : i64, scratch_operands = 6 : i64, tpu.core_type = #tpu.core_type<tc>, window_params = [{pipeline_mode = #tpu.pipeline_mode<synchronous>, transform_indices = @transform_0, window_bounds = array<i64: 32, 64>}, {pipeline_mode = #tpu.pipeline_mode<synchronous>, transform_indices = @transform_1, window_bounds = array<i64: 192, 384>}, {pipeline_mode = #tpu.pipeline_mode<synchronous>, transform_indices = @transform_2, window_bounds = array<i64: 1, 384>}, {pipeline_mode = #tpu.pipeline_mode<synchronous>, transform_indices = @transform_3, window_bounds = array<i64: 128, 512>}, {pipeline_mode = #tpu.pipeline_mode<synchronous>, transform_indices = @transform_4, window_bounds = array<i64: 128, 128>}, {pipeline_mode = #tpu.pipeline_mode<synchronous>, transform_indices = @transform_5, window_bounds = array<i64: 1, 128>}, {pipeline_mode = #tpu.pipeline_mode<synchronous>, transform_indices = @transform_6, window_bounds = array<i64: 1, 128>}, {pipeline_mode = #tpu.pipeline_mode<synchronous>, transform_indices = @transform_7, window_bounds = array<i64: 1, 128>}, {pipeline_mode = #tpu.pipeline_mode<synchronous>, transform_indices = @transform_8, window_bounds = array<i64: 1, 128>}, {pipeline_mode = #tpu.pipeline_mode<synchronous>, transform_indices = @transform_9, window_bounds = array<i64: 1, 384>}, {pipeline_mode = #tpu.pipeline_mode<synchronous>, transform_indices = @transform_10, window_bounds = array<i64: 1, 384>}, {pipeline_mode = #tpu.pipeline_mode<synchronous>, transform_indices = @transform_11, window_bounds = array<i64: 1, 384>}, {pipeline_mode = #tpu.pipeline_mode<synchronous>, transform_indices = @transform_12, window_bounds = array<i64: 1, 192>}, {pipeline_mode = #tpu.pipeline_mode<synchronous>, transform_indices = @transform_13, window_bounds = array<i64: 64, 64>}, {pipeline_mode = #tpu.pipeline_mode<synchronous>, transform_indices = @transform_14, window_bounds = array<i64: 1, 64>}, {}, {}, {}, {}, {}, {pipeline_mode = #tpu.pipeline_mode<synchronous>, transform_indices = @transform_20, window_bounds = array<i64: 12, 64>}]} {
    %c0_i32 = arith.constant 0 : i32
    %0 = tpu.memref_slice %arg27[%c0_i32] : memref<5x!tpu.dma_semaphore, #tpu.memory_space<semaphore_mem>> -> memref<1x!tpu.dma_semaphore, #tpu.memory_space<semaphore_mem>>
    %1 = tpu.memref_squeeze %0 : memref<1x!tpu.dma_semaphore, #tpu.memory_space<semaphore_mem>> -> memref<!tpu.dma_semaphore, #tpu.memory_space<semaphore_mem>>
    tpu.enqueue_dma source(%arg16 : memref<1536x384xbf16, #tpu.memory_space<any>>) target(%arg22 : memref<1536x384xbf16, #tpu.memory_space<vmem>>) target_semaphore(%1 : memref<!tpu.dma_semaphore, #tpu.memory_space<semaphore_mem>>)
    %c1_i32 = arith.constant 1 : i32
    %2 = tpu.memref_slice %arg27[%c1_i32] : memref<5x!tpu.dma_semaphore, #tpu.memory_space<semaphore_mem>> -> memref<1x!tpu.dma_semaphore, #tpu.memory_space<semaphore_mem>>
    %3 = tpu.memref_squeeze %2 : memref<1x!tpu.dma_semaphore, #tpu.memory_space<semaphore_mem>> -> memref<!tpu.dma_semaphore, #tpu.memory_space<semaphore_mem>>
    tpu.enqueue_dma source(%arg17 : memref<384x384xbf16, #tpu.memory_space<any>>) target(%arg23 : memref<384x384xbf16, #tpu.memory_space<vmem>>) target_semaphore(%3 : memref<!tpu.dma_semaphore, #tpu.memory_space<semaphore_mem>>)
    %c2_i32 = arith.constant 2 : i32
    %4 = tpu.memref_slice %arg27[%c2_i32] : memref<5x!tpu.dma_semaphore, #tpu.memory_space<semaphore_mem>> -> memref<1x!tpu.dma_semaphore, #tpu.memory_space<semaphore_mem>>
    %5 = tpu.memref_squeeze %4 : memref<1x!tpu.dma_semaphore, #tpu.memory_space<semaphore_mem>> -> memref<!tpu.dma_semaphore, #tpu.memory_space<semaphore_mem>>
    tpu.enqueue_dma source(%arg18 : memref<1536x384xbf16, #tpu.memory_space<any>>) target(%arg24 : memref<1536x384xbf16, #tpu.memory_space<vmem>>) target_semaphore(%5 : memref<!tpu.dma_semaphore, #tpu.memory_space<semaphore_mem>>)
    %c3_i32 = arith.constant 3 : i32
    %6 = tpu.memref_slice %arg27[%c3_i32] : memref<5x!tpu.dma_semaphore, #tpu.memory_space<semaphore_mem>> -> memref<1x!tpu.dma_semaphore, #tpu.memory_space<semaphore_mem>>
    %7 = tpu.memref_squeeze %6 : memref<1x!tpu.dma_semaphore, #tpu.memory_space<semaphore_mem>> -> memref<!tpu.dma_semaphore, #tpu.memory_space<semaphore_mem>>
    tpu.enqueue_dma source(%arg19 : memref<384x192xbf16, #tpu.memory_space<any>>) target(%arg25 : memref<384x192xbf16, #tpu.memory_space<vmem>>) target_semaphore(%7 : memref<!tpu.dma_semaphore, #tpu.memory_space<semaphore_mem>>)
    %c4_i32 = arith.constant 4 : i32
    %8 = tpu.memref_slice %arg27[%c4_i32] : memref<5x!tpu.dma_semaphore, #tpu.memory_space<semaphore_mem>> -> memref<1x!tpu.dma_semaphore, #tpu.memory_space<semaphore_mem>>
    %9 = tpu.memref_squeeze %8 : memref<1x!tpu.dma_semaphore, #tpu.memory_space<semaphore_mem>> -> memref<!tpu.dma_semaphore, #tpu.memory_space<semaphore_mem>>
    tpu.enqueue_dma source(%arg20 : memref<128x512xbf16, #tpu.memory_space<any>>) target(%arg26 : memref<128x512xbf16, #tpu.memory_space<vmem>>) target_semaphore(%9 : memref<!tpu.dma_semaphore, #tpu.memory_space<semaphore_mem>>)
    %c0 = arith.constant 0 : index
    %c0_0 = arith.constant 0 : index
    %10 = vector.load %arg1[%c0, %c0_0] : memref<32x64xf32, #tpu.memory_space<vmem>>, vector<32x64xf32>
    %c0_1 = arith.constant 0 : index
    %c0_2 = arith.constant 0 : index
    %11 = vector.load %arg2[%c0_1, %c0_2] : memref<192x384xbf16, #tpu.memory_space<vmem>>, vector<192x384xbf16>
    %c0_3 = arith.constant 0 : index
    %c0_4 = arith.constant 0 : index
    %12 = vector.load %arg3[%c0_3, %c0_4] : memref<1x384xf32, #tpu.memory_space<vmem>>, vector<1x384xf32>
    %13 = vector.extract_strided_slice %10 {offsets = [0, 0], sizes = [14, 64], strides = [1, 1]} : vector<32x64xf32> to vector<14x64xf32>
    %14 = vector.extract_strided_slice %10 {offsets = [16, 0], sizes = [14, 64], strides = [1, 1]} : vector<32x64xf32> to vector<14x64xf32>
    %15 = tpu.concatenate %13, %14 in 0 : vector<14x64xf32>, vector<14x64xf32> -> vector<28x64xf32>
    %16 = vector.extract_strided_slice %10 {offsets = [1, 0], sizes = [14, 64], strides = [1, 1]} : vector<32x64xf32> to vector<14x64xf32>
    %17 = vector.extract_strided_slice %10 {offsets = [17, 0], sizes = [14, 64], strides = [1, 1]} : vector<32x64xf32> to vector<14x64xf32>
    %18 = tpu.concatenate %16, %17 in 0 : vector<14x64xf32>, vector<14x64xf32> -> vector<28x64xf32>
    %19 = vector.extract_strided_slice %10 {offsets = [2, 0], sizes = [14, 64], strides = [1, 1]} : vector<32x64xf32> to vector<14x64xf32>
    %20 = vector.extract_strided_slice %10 {offsets = [18, 0], sizes = [14, 64], strides = [1, 1]} : vector<32x64xf32> to vector<14x64xf32>
    %21 = tpu.concatenate %19, %20 in 0 : vector<14x64xf32>, vector<14x64xf32> -> vector<28x64xf32>
    %22 = tpu.concatenate %15, %18, %21 in 1 : vector<28x64xf32>, vector<28x64xf32>, vector<28x64xf32> -> vector<28x192xf32>
    %23 = arith.truncf %22 : vector<28x192xf32> to vector<28x192xbf16>
    %cst = arith.constant dense<0.000000e+00> : vector<28x384xf32>
    %24 = tpu.matmul %23, %11, %cst {dimension_numbers = #tpu.dot_dimension_numbers<[1], [0], [0], [1], [0, 0, 1, 1], [], []>} : vector<28x192xbf16>, vector<192x384xbf16>, vector<28x384xf32> -> vector<28x384xf32>
    %25 = vector.broadcast %12 : vector<1x384xf32> to vector<28x384xf32>
    %26 = arith.addf %24, %25 : vector<28x384xf32>
    %27 = vector.extract_strided_slice %26 {offsets = [0, 0], sizes = [28, 128], strides = [1, 1]} : vector<28x384xf32> to vector<28x128xf32>
    %28 = vector.extract_strided_slice %26 {offsets = [0, 128], sizes = [28, 128], strides = [1, 1]} : vector<28x384xf32> to vector<28x128xf32>
    %29 = vector.extract_strided_slice %26 {offsets = [0, 256], sizes = [28, 128], strides = [1, 1]} : vector<28x384xf32> to vector<28x128xf32>
    %cst_5 = arith.constant 0.000000e+00 : f32
    %30 = vector.broadcast %cst_5 : f32 to vector<28x128xf32>
    %31 = arith.subf %30, %28 : vector<28x128xf32>
    %32 = math.exp %31 : vector<28x128xf32>
    %cst_6 = arith.constant 1.000000e+00 : f32
    %33 = vector.broadcast %cst_6 : f32 to vector<28x128xf32>
    %34 = arith.addf %33, %32 : vector<28x128xf32>
    %35 = tpu.reciprocal %34 {approx = true} : vector<28x128xf32> -> vector<28x128xf32>
    %36 = arith.addf %27, %35 : vector<28x128xf32>
    %37 = arith.addf %36, %29 : vector<28x128xf32>
    %cst_7 = arith.constant 0.000000e+00 : f32
    %38 = vector.broadcast %cst_7 : f32 to vector<28x128xf32>
    %39 = arith.maximumf %37, %38 : vector<28x128xf32>
    %c0_8 = arith.constant 0 : index
    %c0_9 = arith.constant 0 : index
    %40 = vector.load %arg4[%c0_8, %c0_9] : memref<128x512xbf16, #tpu.memory_space<vmem>>, vector<128x512xbf16>
    %41 = arith.truncf %39 : vector<28x128xf32> to vector<28x128xbf16>
    %cst_10 = arith.constant dense<0.000000e+00> : vector<28x512xf32>
    %42 = tpu.matmul %41, %40, %cst_10 {dimension_numbers = #tpu.dot_dimension_numbers<[1], [0], [0], [1], [0, 0, 1, 1], [], []>} : vector<28x128xbf16>, vector<128x512xbf16>, vector<28x512xf32> -> vector<28x512xf32>
    %cst_11 = arith.constant 0.000000e+00 : f32
    %43 = vector.broadcast %cst_11 : f32 to vector<28x512xf32>
    %44 = arith.maximumf %42, %43 : vector<28x512xf32>
    %c0_i32_12 = arith.constant 0 : i32
    %45 = tpu.memref_slice %arg27[%c0_i32_12] : memref<5x!tpu.dma_semaphore, #tpu.memory_space<semaphore_mem>> -> memref<1x!tpu.dma_semaphore, #tpu.memory_space<semaphore_mem>>
    %46 = tpu.memref_squeeze %45 : memref<1x!tpu.dma_semaphore, #tpu.memory_space<semaphore_mem>> -> memref<!tpu.dma_semaphore, #tpu.memory_space<semaphore_mem>>
    tpu.wait_dma2 semaphore(%46 : memref<!tpu.dma_semaphore, #tpu.memory_space<semaphore_mem>>) src(%arg16 : memref<1536x384xbf16, #tpu.memory_space<any>>) dst(%arg22 : memref<1536x384xbf16, #tpu.memory_space<vmem>>)
    %c0_13 = arith.constant 0 : index
    %c0_14 = arith.constant 0 : index
    %47 = vector.load %arg22[%c0_13, %c0_14] : memref<1536x384xbf16, #tpu.memory_space<vmem>>, vector<1536x384xbf16>
    %c0_15 = arith.constant 0 : index
    %c0_16 = arith.constant 0 : index
    %48 = vector.load %arg10[%c0_15, %c0_16] : memref<1x384xf32, #tpu.memory_space<vmem>>, vector<1x384xf32>
    %49 = vector.extract_strided_slice %44 {offsets = [0, 0], sizes = [12, 512], strides = [1, 1]} : vector<28x512xf32> to vector<12x512xf32>
    %50 = vector.extract_strided_slice %44 {offsets = [14, 0], sizes = [12, 512], strides = [1, 1]} : vector<28x512xf32> to vector<12x512xf32>
    %51 = tpu.concatenate %49, %50 in 0 : vector<12x512xf32>, vector<12x512xf32> -> vector<24x512xf32>
    %52 = vector.extract_strided_slice %44 {offsets = [1, 0], sizes = [12, 512], strides = [1, 1]} : vector<28x512xf32> to vector<12x512xf32>
    %53 = vector.extract_strided_slice %44 {offsets = [15, 0], sizes = [12, 512], strides = [1, 1]} : vector<28x512xf32> to vector<12x512xf32>
    %54 = tpu.concatenate %52, %53 in 0 : vector<12x512xf32>, vector<12x512xf32> -> vector<24x512xf32>
    %55 = vector.extract_strided_slice %44 {offsets = [2, 0], sizes = [12, 512], strides = [1, 1]} : vector<28x512xf32> to vector<12x512xf32>
    %56 = vector.extract_strided_slice %44 {offsets = [16, 0], sizes = [12, 512], strides = [1, 1]} : vector<28x512xf32> to vector<12x512xf32>
    %57 = tpu.concatenate %55, %56 in 0 : vector<12x512xf32>, vector<12x512xf32> -> vector<24x512xf32>
    %58 = tpu.concatenate %51, %54, %57 in 1 : vector<24x512xf32>, vector<24x512xf32>, vector<24x512xf32> -> vector<24x1536xf32>
    %59 = arith.truncf %58 : vector<24x1536xf32> to vector<24x1536xbf16>
    %cst_17 = arith.constant dense<0.000000e+00> : vector<24x384xf32>
    %60 = tpu.matmul %59, %47, %cst_17 {dimension_numbers = #tpu.dot_dimension_numbers<[1], [0], [0], [1], [0, 0, 1, 1], [], []>} : vector<24x1536xbf16>, vector<1536x384xbf16>, vector<24x384xf32> -> vector<24x384xf32>
    %61 = vector.broadcast %48 : vector<1x384xf32> to vector<24x384xf32>
    %62 = arith.addf %60, %61 : vector<24x384xf32>
    %63 = vector.extract_strided_slice %62 {offsets = [0, 0], sizes = [24, 128], strides = [1, 1]} : vector<24x384xf32> to vector<24x128xf32>
    %64 = vector.extract_strided_slice %62 {offsets = [0, 128], sizes = [24, 128], strides = [1, 1]} : vector<24x384xf32> to vector<24x128xf32>
    %65 = vector.extract_strided_slice %62 {offsets = [0, 256], sizes = [24, 128], strides = [1, 1]} : vector<24x384xf32> to vector<24x128xf32>
    %cst_18 = arith.constant 0.000000e+00 : f32
    %66 = vector.broadcast %cst_18 : f32 to vector<24x128xf32>
    %67 = arith.subf %66, %64 : vector<24x128xf32>
    %68 = math.exp %67 : vector<24x128xf32>
    %cst_19 = arith.constant 1.000000e+00 : f32
    %69 = vector.broadcast %cst_19 : f32 to vector<24x128xf32>
    %70 = arith.addf %69, %68 : vector<24x128xf32>
    %71 = tpu.reciprocal %70 {approx = true} : vector<24x128xf32> -> vector<24x128xf32>
    %72 = arith.addf %63, %71 : vector<24x128xf32>
    %73 = arith.addf %72, %65 : vector<24x128xf32>
    %cst_20 = arith.constant 0.000000e+00 : f32
    %74 = vector.broadcast %cst_20 : f32 to vector<24x128xf32>
    %75 = arith.maximumf %73, %74 : vector<24x128xf32>
    %c0_21 = arith.constant 0 : index
    %c0_22 = arith.constant 0 : index
    %76 = vector.load %arg6[%c0_21, %c0_22] : memref<1x128xf32, #tpu.memory_space<vmem>>, vector<1x128xf32>
    %c0_23 = arith.constant 0 : index
    %c0_24 = arith.constant 0 : index
    %77 = vector.load %arg7[%c0_23, %c0_24] : memref<1x128xf32, #tpu.memory_space<vmem>>, vector<1x128xf32>
    %cst_25 = arith.constant dense<0.000000e+00> : vector<128xf32>
    %78 = vector.multi_reduction <add>, %75, %cst_25 [0] : vector<24x128xf32> to vector<128xf32>
    %79 = vector.shape_cast %78 : vector<128xf32> to vector<1x128xf32>
    %80 = arith.mulf %75, %75 : vector<24x128xf32>
    %cst_26 = arith.constant dense<0.000000e+00> : vector<128xf32>
    %81 = vector.multi_reduction <add>, %80, %cst_26 [0] : vector<24x128xf32> to vector<128xf32>
    %82 = vector.shape_cast %81 : vector<128xf32> to vector<1x128xf32>
    %83 = tpu.concatenate %79, %82 in 0 : vector<1x128xf32>, vector<1x128xf32> -> vector<2x128xf32>
    %c0_27 = arith.constant 0 : index
    %c0_28 = arith.constant 0 : index
    %84 = vector.load %arg5[%c0_27, %c0_28] : memref<128x128xf32, #tpu.memory_space<vmem>>, vector<128x128xf32>
    %cst_29 = arith.constant dense<0.000000e+00> : vector<2x128xf32>
    %85 = tpu.matmul %83, %84, %cst_29 {dimension_numbers = #tpu.dot_dimension_numbers<[1], [0], [0], [1], [0, 0, 1, 1], [], []>} : vector<2x128xf32>, vector<128x128xf32>, vector<2x128xf32> -> vector<2x128xf32>
    %86 = vector.extract_strided_slice %85 {offsets = [0, 0], sizes = [1, 128], strides = [1, 1]} : vector<2x128xf32> to vector<1x128xf32>
    %cst_30 = arith.constant 0.00260416674 : f32
    %87 = vector.broadcast %cst_30 : f32 to vector<1x128xf32>
    %88 = arith.mulf %86, %87 : vector<1x128xf32>
    %89 = vector.extract_strided_slice %85 {offsets = [1, 0], sizes = [1, 128], strides = [1, 1]} : vector<2x128xf32> to vector<1x128xf32>
    %cst_31 = arith.constant 0.00260416674 : f32
    %90 = vector.broadcast %cst_31 : f32 to vector<1x128xf32>
    %91 = arith.mulf %89, %90 : vector<1x128xf32>
    %92 = arith.mulf %88, %88 : vector<1x128xf32>
    %93 = arith.subf %91, %92 : vector<1x128xf32>
    %cst_32 = arith.constant 9.99999974E-6 : f32
    %94 = vector.broadcast %cst_32 : f32 to vector<1x128xf32>
    %95 = arith.addf %93, %94 : vector<1x128xf32>
    %96 = math.rsqrt %95 : vector<1x128xf32>
    %97 = vector.broadcast %88 : vector<1x128xf32> to vector<24x128xf32>
    %98 = arith.subf %75, %97 : vector<24x128xf32>
    %99 = vector.broadcast %96 : vector<1x128xf32> to vector<24x128xf32>
    %100 = arith.mulf %98, %99 : vector<24x128xf32>
    %101 = vector.broadcast %76 : vector<1x128xf32> to vector<24x128xf32>
    %102 = arith.mulf %100, %101 : vector<24x128xf32>
    %103 = vector.broadcast %77 : vector<1x128xf32> to vector<24x128xf32>
    %104 = arith.addf %102, %103 : vector<24x128xf32>
    %c1_i32_33 = arith.constant 1 : i32
    %105 = tpu.memref_slice %arg27[%c1_i32_33] : memref<5x!tpu.dma_semaphore, #tpu.memory_space<semaphore_mem>> -> memref<1x!tpu.dma_semaphore, #tpu.memory_space<semaphore_mem>>
    %106 = tpu.memref_squeeze %105 : memref<1x!tpu.dma_semaphore, #tpu.memory_space<semaphore_mem>> -> memref<!tpu.dma_semaphore, #tpu.memory_space<semaphore_mem>>
    tpu.wait_dma2 semaphore(%106 : memref<!tpu.dma_semaphore, #tpu.memory_space<semaphore_mem>>) src(%arg17 : memref<384x384xbf16, #tpu.memory_space<any>>) dst(%arg23 : memref<384x384xbf16, #tpu.memory_space<vmem>>)
    %c0_34 = arith.constant 0 : index
    %c0_35 = arith.constant 0 : index
    %107 = vector.load %arg23[%c0_34, %c0_35] : memref<384x384xbf16, #tpu.memory_space<vmem>>, vector<384x384xbf16>
    %c0_36 = arith.constant 0 : index
    %c0_37 = arith.constant 0 : index
    %108 = vector.load %arg11[%c0_36, %c0_37] : memref<1x384xf32, #tpu.memory_space<vmem>>, vector<1x384xf32>
    %109 = vector.extract_strided_slice %104 {offsets = [0, 0], sizes = [10, 128], strides = [1, 1]} : vector<24x128xf32> to vector<10x128xf32>
    %110 = vector.extract_strided_slice %104 {offsets = [12, 0], sizes = [10, 128], strides = [1, 1]} : vector<24x128xf32> to vector<10x128xf32>
    %111 = tpu.concatenate %109, %110 in 0 : vector<10x128xf32>, vector<10x128xf32> -> vector<20x128xf32>
    %112 = vector.extract_strided_slice %104 {offsets = [1, 0], sizes = [10, 128], strides = [1, 1]} : vector<24x128xf32> to vector<10x128xf32>
    %113 = vector.extract_strided_slice %104 {offsets = [13, 0], sizes = [10, 128], strides = [1, 1]} : vector<24x128xf32> to vector<10x128xf32>
    %114 = tpu.concatenate %112, %113 in 0 : vector<10x128xf32>, vector<10x128xf32> -> vector<20x128xf32>
    %115 = vector.extract_strided_slice %104 {offsets = [2, 0], sizes = [10, 128], strides = [1, 1]} : vector<24x128xf32> to vector<10x128xf32>
    %116 = vector.extract_strided_slice %104 {offsets = [14, 0], sizes = [10, 128], strides = [1, 1]} : vector<24x128xf32> to vector<10x128xf32>
    %117 = tpu.concatenate %115, %116 in 0 : vector<10x128xf32>, vector<10x128xf32> -> vector<20x128xf32>
    %118 = tpu.concatenate %111, %114, %117 in 1 : vector<20x128xf32>, vector<20x128xf32>, vector<20x128xf32> -> vector<20x384xf32>
    %119 = arith.truncf %118 : vector<20x384xf32> to vector<20x384xbf16>
    %cst_38 = arith.constant dense<0.000000e+00> : vector<20x384xf32>
    %120 = tpu.matmul %119, %107, %cst_38 {dimension_numbers = #tpu.dot_dimension_numbers<[1], [0], [0], [1], [0, 0, 1, 1], [], []>} : vector<20x384xbf16>, vector<384x384xbf16>, vector<20x384xf32> -> vector<20x384xf32>
    %121 = vector.broadcast %108 : vector<1x384xf32> to vector<20x384xf32>
    %122 = arith.addf %120, %121 : vector<20x384xf32>
    %123 = vector.extract_strided_slice %122 {offsets = [0, 0], sizes = [20, 128], strides = [1, 1]} : vector<20x384xf32> to vector<20x128xf32>
    %124 = vector.extract_strided_slice %122 {offsets = [0, 128], sizes = [20, 128], strides = [1, 1]} : vector<20x384xf32> to vector<20x128xf32>
    %125 = vector.extract_strided_slice %122 {offsets = [0, 256], sizes = [20, 128], strides = [1, 1]} : vector<20x384xf32> to vector<20x128xf32>
    %cst_39 = arith.constant 0.000000e+00 : f32
    %126 = vector.broadcast %cst_39 : f32 to vector<20x128xf32>
    %127 = arith.subf %126, %124 : vector<20x128xf32>
    %128 = math.exp %127 : vector<20x128xf32>
    %cst_40 = arith.constant 1.000000e+00 : f32
    %129 = vector.broadcast %cst_40 : f32 to vector<20x128xf32>
    %130 = arith.addf %129, %128 : vector<20x128xf32>
    %131 = tpu.reciprocal %130 {approx = true} : vector<20x128xf32> -> vector<20x128xf32>
    %132 = arith.addf %123, %131 : vector<20x128xf32>
    %133 = arith.addf %132, %125 : vector<20x128xf32>
    %cst_41 = arith.constant 0.000000e+00 : f32
    %134 = vector.broadcast %cst_41 : f32 to vector<20x128xf32>
    %135 = arith.maximumf %133, %134 : vector<20x128xf32>
    %c4_i32_42 = arith.constant 4 : i32
    %136 = tpu.memref_slice %arg27[%c4_i32_42] : memref<5x!tpu.dma_semaphore, #tpu.memory_space<semaphore_mem>> -> memref<1x!tpu.dma_semaphore, #tpu.memory_space<semaphore_mem>>
    %137 = tpu.memref_squeeze %136 : memref<1x!tpu.dma_semaphore, #tpu.memory_space<semaphore_mem>> -> memref<!tpu.dma_semaphore, #tpu.memory_space<semaphore_mem>>
    tpu.wait_dma2 semaphore(%137 : memref<!tpu.dma_semaphore, #tpu.memory_space<semaphore_mem>>) src(%arg20 : memref<128x512xbf16, #tpu.memory_space<any>>) dst(%arg26 : memref<128x512xbf16, #tpu.memory_space<vmem>>)
    %c0_43 = arith.constant 0 : index
    %c0_44 = arith.constant 0 : index
    %138 = vector.load %arg26[%c0_43, %c0_44] : memref<128x512xbf16, #tpu.memory_space<vmem>>, vector<128x512xbf16>
    %139 = arith.truncf %135 : vector<20x128xf32> to vector<20x128xbf16>
    %cst_45 = arith.constant dense<0.000000e+00> : vector<20x512xf32>
    %140 = tpu.matmul %139, %138, %cst_45 {dimension_numbers = #tpu.dot_dimension_numbers<[1], [0], [0], [1], [0, 0, 1, 1], [], []>} : vector<20x128xbf16>, vector<128x512xbf16>, vector<20x512xf32> -> vector<20x512xf32>
    %cst_46 = arith.constant 0.000000e+00 : f32
    %141 = vector.broadcast %cst_46 : f32 to vector<20x512xf32>
    %142 = arith.maximumf %140, %141 : vector<20x512xf32>
    %c2_i32_47 = arith.constant 2 : i32
    %143 = tpu.memref_slice %arg27[%c2_i32_47] : memref<5x!tpu.dma_semaphore, #tpu.memory_space<semaphore_mem>> -> memref<1x!tpu.dma_semaphore, #tpu.memory_space<semaphore_mem>>
    %144 = tpu.memref_squeeze %143 : memref<1x!tpu.dma_semaphore, #tpu.memory_space<semaphore_mem>> -> memref<!tpu.dma_semaphore, #tpu.memory_space<semaphore_mem>>
    tpu.wait_dma2 semaphore(%144 : memref<!tpu.dma_semaphore, #tpu.memory_space<semaphore_mem>>) src(%arg18 : memref<1536x384xbf16, #tpu.memory_space<any>>) dst(%arg24 : memref<1536x384xbf16, #tpu.memory_space<vmem>>)
    %c0_48 = arith.constant 0 : index
    %c0_49 = arith.constant 0 : index
    %145 = vector.load %arg24[%c0_48, %c0_49] : memref<1536x384xbf16, #tpu.memory_space<vmem>>, vector<1536x384xbf16>
    %c0_50 = arith.constant 0 : index
    %c0_51 = arith.constant 0 : index
    %146 = vector.load %arg12[%c0_50, %c0_51] : memref<1x384xf32, #tpu.memory_space<vmem>>, vector<1x384xf32>
    %147 = vector.extract_strided_slice %142 {offsets = [0, 0], sizes = [8, 512], strides = [1, 1]} : vector<20x512xf32> to vector<8x512xf32>
    %148 = vector.extract_strided_slice %142 {offsets = [10, 0], sizes = [8, 512], strides = [1, 1]} : vector<20x512xf32> to vector<8x512xf32>
    %149 = tpu.concatenate %147, %148 in 0 : vector<8x512xf32>, vector<8x512xf32> -> vector<16x512xf32>
    %150 = vector.extract_strided_slice %142 {offsets = [1, 0], sizes = [8, 512], strides = [1, 1]} : vector<20x512xf32> to vector<8x512xf32>
    %151 = vector.extract_strided_slice %142 {offsets = [11, 0], sizes = [8, 512], strides = [1, 1]} : vector<20x512xf32> to vector<8x512xf32>
    %152 = tpu.concatenate %150, %151 in 0 : vector<8x512xf32>, vector<8x512xf32> -> vector<16x512xf32>
    %153 = vector.extract_strided_slice %142 {offsets = [2, 0], sizes = [8, 512], strides = [1, 1]} : vector<20x512xf32> to vector<8x512xf32>
    %154 = vector.extract_strided_slice %142 {offsets = [12, 0], sizes = [8, 512], strides = [1, 1]} : vector<20x512xf32> to vector<8x512xf32>
    %155 = tpu.concatenate %153, %154 in 0 : vector<8x512xf32>, vector<8x512xf32> -> vector<16x512xf32>
    %156 = tpu.concatenate %149, %152, %155 in 1 : vector<16x512xf32>, vector<16x512xf32>, vector<16x512xf32> -> vector<16x1536xf32>
    %157 = arith.truncf %156 : vector<16x1536xf32> to vector<16x1536xbf16>
    %cst_52 = arith.constant dense<0.000000e+00> : vector<16x384xf32>
    %158 = tpu.matmul %157, %145, %cst_52 {dimension_numbers = #tpu.dot_dimension_numbers<[1], [0], [0], [1], [0, 0, 1, 1], [], []>} : vector<16x1536xbf16>, vector<1536x384xbf16>, vector<16x384xf32> -> vector<16x384xf32>
    %159 = vector.broadcast %146 : vector<1x384xf32> to vector<16x384xf32>
    %160 = arith.addf %158, %159 : vector<16x384xf32>
    %161 = vector.extract_strided_slice %160 {offsets = [0, 0], sizes = [16, 128], strides = [1, 1]} : vector<16x384xf32> to vector<16x128xf32>
    %162 = vector.extract_strided_slice %160 {offsets = [0, 128], sizes = [16, 128], strides = [1, 1]} : vector<16x384xf32> to vector<16x128xf32>
    %163 = vector.extract_strided_slice %160 {offsets = [0, 256], sizes = [16, 128], strides = [1, 1]} : vector<16x384xf32> to vector<16x128xf32>
    %cst_53 = arith.constant 0.000000e+00 : f32
    %164 = vector.broadcast %cst_53 : f32 to vector<16x128xf32>
    %165 = arith.subf %164, %162 : vector<16x128xf32>
    %166 = math.exp %165 : vector<16x128xf32>
    %cst_54 = arith.constant 1.000000e+00 : f32
    %167 = vector.broadcast %cst_54 : f32 to vector<16x128xf32>
    %168 = arith.addf %167, %166 : vector<16x128xf32>
    %169 = tpu.reciprocal %168 {approx = true} : vector<16x128xf32> -> vector<16x128xf32>
    %170 = arith.addf %161, %169 : vector<16x128xf32>
    %171 = arith.addf %170, %163 : vector<16x128xf32>
    %cst_55 = arith.constant 0.000000e+00 : f32
    %172 = vector.broadcast %cst_55 : f32 to vector<16x128xf32>
    %173 = arith.maximumf %171, %172 : vector<16x128xf32>
    %c0_56 = arith.constant 0 : index
    %c0_57 = arith.constant 0 : index
    %174 = vector.load %arg8[%c0_56, %c0_57] : memref<1x128xf32, #tpu.memory_space<vmem>>, vector<1x128xf32>
    %c0_58 = arith.constant 0 : index
    %c0_59 = arith.constant 0 : index
    %175 = vector.load %arg9[%c0_58, %c0_59] : memref<1x128xf32, #tpu.memory_space<vmem>>, vector<1x128xf32>
    %cst_60 = arith.constant dense<0.000000e+00> : vector<128xf32>
    %176 = vector.multi_reduction <add>, %173, %cst_60 [0] : vector<16x128xf32> to vector<128xf32>
    %177 = vector.shape_cast %176 : vector<128xf32> to vector<1x128xf32>
    %178 = arith.mulf %173, %173 : vector<16x128xf32>
    %cst_61 = arith.constant dense<0.000000e+00> : vector<128xf32>
    %179 = vector.multi_reduction <add>, %178, %cst_61 [0] : vector<16x128xf32> to vector<128xf32>
    %180 = vector.shape_cast %179 : vector<128xf32> to vector<1x128xf32>
    %181 = tpu.concatenate %177, %180 in 0 : vector<1x128xf32>, vector<1x128xf32> -> vector<2x128xf32>
    %c0_62 = arith.constant 0 : index
    %c0_63 = arith.constant 0 : index
    %182 = vector.load %arg5[%c0_62, %c0_63] : memref<128x128xf32, #tpu.memory_space<vmem>>, vector<128x128xf32>
    %cst_64 = arith.constant dense<0.000000e+00> : vector<2x128xf32>
    %183 = tpu.matmul %181, %182, %cst_64 {dimension_numbers = #tpu.dot_dimension_numbers<[1], [0], [0], [1], [0, 0, 1, 1], [], []>} : vector<2x128xf32>, vector<128x128xf32>, vector<2x128xf32> -> vector<2x128xf32>
    %184 = vector.extract_strided_slice %183 {offsets = [0, 0], sizes = [1, 128], strides = [1, 1]} : vector<2x128xf32> to vector<1x128xf32>
    %cst_65 = arith.constant 3.906250e-03 : f32
    %185 = vector.broadcast %cst_65 : f32 to vector<1x128xf32>
    %186 = arith.mulf %184, %185 : vector<1x128xf32>
    %187 = vector.extract_strided_slice %183 {offsets = [1, 0], sizes = [1, 128], strides = [1, 1]} : vector<2x128xf32> to vector<1x128xf32>
    %cst_66 = arith.constant 3.906250e-03 : f32
    %188 = vector.broadcast %cst_66 : f32 to vector<1x128xf32>
    %189 = arith.mulf %187, %188 : vector<1x128xf32>
    %190 = arith.mulf %186, %186 : vector<1x128xf32>
    %191 = arith.subf %189, %190 : vector<1x128xf32>
    %cst_67 = arith.constant 9.99999974E-6 : f32
    %192 = vector.broadcast %cst_67 : f32 to vector<1x128xf32>
    %193 = arith.addf %191, %192 : vector<1x128xf32>
    %194 = math.rsqrt %193 : vector<1x128xf32>
    %195 = vector.broadcast %186 : vector<1x128xf32> to vector<16x128xf32>
    %196 = arith.subf %173, %195 : vector<16x128xf32>
    %197 = vector.broadcast %194 : vector<1x128xf32> to vector<16x128xf32>
    %198 = arith.mulf %196, %197 : vector<16x128xf32>
    %199 = vector.broadcast %174 : vector<1x128xf32> to vector<16x128xf32>
    %200 = arith.mulf %198, %199 : vector<16x128xf32>
    %201 = vector.broadcast %175 : vector<1x128xf32> to vector<16x128xf32>
    %202 = arith.addf %200, %201 : vector<16x128xf32>
    %c3_i32_68 = arith.constant 3 : i32
    %203 = tpu.memref_slice %arg27[%c3_i32_68] : memref<5x!tpu.dma_semaphore, #tpu.memory_space<semaphore_mem>> -> memref<1x!tpu.dma_semaphore, #tpu.memory_space<semaphore_mem>>
    %204 = tpu.memref_squeeze %203 : memref<1x!tpu.dma_semaphore, #tpu.memory_space<semaphore_mem>> -> memref<!tpu.dma_semaphore, #tpu.memory_space<semaphore_mem>>
    tpu.wait_dma2 semaphore(%204 : memref<!tpu.dma_semaphore, #tpu.memory_space<semaphore_mem>>) src(%arg19 : memref<384x192xbf16, #tpu.memory_space<any>>) dst(%arg25 : memref<384x192xbf16, #tpu.memory_space<vmem>>)
    %c0_69 = arith.constant 0 : index
    %c0_70 = arith.constant 0 : index
    %205 = vector.load %arg25[%c0_69, %c0_70] : memref<384x192xbf16, #tpu.memory_space<vmem>>, vector<384x192xbf16>
    %c0_71 = arith.constant 0 : index
    %c0_72 = arith.constant 0 : index
    %206 = vector.load %arg13[%c0_71, %c0_72] : memref<1x192xf32, #tpu.memory_space<vmem>>, vector<1x192xf32>
    %207 = vector.extract_strided_slice %202 {offsets = [0, 0], sizes = [6, 128], strides = [1, 1]} : vector<16x128xf32> to vector<6x128xf32>
    %208 = vector.extract_strided_slice %202 {offsets = [8, 0], sizes = [6, 128], strides = [1, 1]} : vector<16x128xf32> to vector<6x128xf32>
    %209 = tpu.concatenate %207, %208 in 0 : vector<6x128xf32>, vector<6x128xf32> -> vector<12x128xf32>
    %210 = vector.extract_strided_slice %202 {offsets = [1, 0], sizes = [6, 128], strides = [1, 1]} : vector<16x128xf32> to vector<6x128xf32>
    %211 = vector.extract_strided_slice %202 {offsets = [9, 0], sizes = [6, 128], strides = [1, 1]} : vector<16x128xf32> to vector<6x128xf32>
    %212 = tpu.concatenate %210, %211 in 0 : vector<6x128xf32>, vector<6x128xf32> -> vector<12x128xf32>
    %213 = vector.extract_strided_slice %202 {offsets = [2, 0], sizes = [6, 128], strides = [1, 1]} : vector<16x128xf32> to vector<6x128xf32>
    %214 = vector.extract_strided_slice %202 {offsets = [10, 0], sizes = [6, 128], strides = [1, 1]} : vector<16x128xf32> to vector<6x128xf32>
    %215 = tpu.concatenate %213, %214 in 0 : vector<6x128xf32>, vector<6x128xf32> -> vector<12x128xf32>
    %216 = tpu.concatenate %209, %212, %215 in 1 : vector<12x128xf32>, vector<12x128xf32>, vector<12x128xf32> -> vector<12x384xf32>
    %217 = arith.truncf %216 : vector<12x384xf32> to vector<12x384xbf16>
    %cst_73 = arith.constant dense<0.000000e+00> : vector<12x192xf32>
    %218 = tpu.matmul %217, %205, %cst_73 {dimension_numbers = #tpu.dot_dimension_numbers<[1], [0], [0], [1], [0, 0, 1, 1], [], []>} : vector<12x384xbf16>, vector<384x192xbf16>, vector<12x192xf32> -> vector<12x192xf32>
    %219 = vector.broadcast %206 : vector<1x192xf32> to vector<12x192xf32>
    %220 = arith.addf %218, %219 : vector<12x192xf32>
    %221 = vector.extract_strided_slice %220 {offsets = [0, 0], sizes = [12, 64], strides = [1, 1]} : vector<12x192xf32> to vector<12x64xf32>
    %222 = vector.extract_strided_slice %220 {offsets = [0, 64], sizes = [12, 64], strides = [1, 1]} : vector<12x192xf32> to vector<12x64xf32>
    %223 = vector.extract_strided_slice %220 {offsets = [0, 128], sizes = [12, 64], strides = [1, 1]} : vector<12x192xf32> to vector<12x64xf32>
    %cst_74 = arith.constant 0.000000e+00 : f32
    %224 = vector.broadcast %cst_74 : f32 to vector<12x64xf32>
    %225 = arith.subf %224, %222 : vector<12x64xf32>
    %226 = math.exp %225 : vector<12x64xf32>
    %cst_75 = arith.constant 1.000000e+00 : f32
    %227 = vector.broadcast %cst_75 : f32 to vector<12x64xf32>
    %228 = arith.addf %227, %226 : vector<12x64xf32>
    %229 = tpu.reciprocal %228 {approx = true} : vector<12x64xf32> -> vector<12x64xf32>
    %230 = arith.addf %221, %229 : vector<12x64xf32>
    %231 = arith.addf %230, %223 : vector<12x64xf32>
    %cst_76 = arith.constant 0.000000e+00 : f32
    %232 = vector.broadcast %cst_76 : f32 to vector<12x64xf32>
    %233 = arith.maximumf %231, %232 : vector<12x64xf32>
    %c0_77 = arith.constant 0 : index
    %c0_78 = arith.constant 0 : index
    %234 = vector.load %arg14[%c0_77, %c0_78] : memref<64x64xbf16, #tpu.memory_space<vmem>>, vector<64x64xbf16>
    %235 = arith.truncf %233 : vector<12x64xf32> to vector<12x64xbf16>
    %cst_79 = arith.constant dense<0.000000e+00> : vector<12x64xf32>
    %236 = tpu.matmul %235, %234, %cst_79 {dimension_numbers = #tpu.dot_dimension_numbers<[1], [0], [0], [1], [0, 0, 1, 1], [], []>} : vector<12x64xbf16>, vector<64x64xbf16>, vector<12x64xf32> -> vector<12x64xf32>
    %c0_80 = arith.constant 0 : index
    %c0_81 = arith.constant 0 : index
    %237 = vector.load %arg15[%c0_80, %c0_81] : memref<1x64xf32, #tpu.memory_space<vmem>>, vector<1x64xf32>
    %238 = vector.broadcast %237 : vector<1x64xf32> to vector<12x64xf32>
    %239 = arith.addf %236, %238 : vector<12x64xf32>
    %c0_82 = arith.constant 0 : index
    %c0_83 = arith.constant 0 : index
    %240 = vector.load %arg21[%c0_82, %c0_83] : memref<12x64xf32, #tpu.memory_space<vmem>>, vector<12x64xf32>
    tpu.vector_store %arg21[%c0_82, %c0_83], %239 {strides = array<i32>} : memref<12x64xf32, #tpu.memory_space<vmem>>, vector<12x64xf32>,
    return
  }
  func.func @transform_0(%arg0: i32) -> (i32, i32) {
    %c0_i32 = arith.constant 0 : i32
    %c0_i32_0 = arith.constant 0 : i32
    %c0_i32_1 = arith.constant 0 : i32
    return %c0_i32, %c0_i32_0 : i32, i32
  }
  func.func @transform_1(%arg0: i32) -> (i32, i32) {
    %c0_i32 = arith.constant 0 : i32
    %c0_i32_0 = arith.constant 0 : i32
    %c0_i32_1 = arith.constant 0 : i32
    return %c0_i32, %c0_i32_0 : i32, i32
  }
  func.func @transform_2(%arg0: i32) -> (i32, i32) {
    %c0_i32 = arith.constant 0 : i32
    %c0_i32_0 = arith.constant 0 : i32
    %c0_i32_1 = arith.constant 0 : i32
    return %c0_i32, %c0_i32_0 : i32, i32
  }
  func.func @transform_3(%arg0: i32) -> (i32, i32) {
    %c0_i32 = arith.constant 0 : i32
    %c0_i32_0 = arith.constant 0 : i32
    %c0_i32_1 = arith.constant 0 : i32
    return %c0_i32, %c0_i32_0 : i32, i32
  }
  func.func @transform_4(%arg0: i32) -> (i32, i32) {
    %c0_i32 = arith.constant 0 : i32
    %c0_i32_0 = arith.constant 0 : i32
    %c0_i32_1 = arith.constant 0 : i32
    return %c0_i32, %c0_i32_0 : i32, i32
  }
  func.func @transform_5(%arg0: i32) -> (i32, i32) {
    %c0_i32 = arith.constant 0 : i32
    %c0_i32_0 = arith.constant 0 : i32
    %c0_i32_1 = arith.constant 0 : i32
    return %c0_i32, %c0_i32_0 : i32, i32
  }
  func.func @transform_6(%arg0: i32) -> (i32, i32) {
    %c0_i32 = arith.constant 0 : i32
    %c0_i32_0 = arith.constant 0 : i32
    %c0_i32_1 = arith.constant 0 : i32
    return %c0_i32, %c0_i32_0 : i32, i32
  }
  func.func @transform_7(%arg0: i32) -> (i32, i32) {
    %c0_i32 = arith.constant 0 : i32
    %c0_i32_0 = arith.constant 0 : i32
    %c0_i32_1 = arith.constant 0 : i32
    return %c0_i32, %c0_i32_0 : i32, i32
  }
  func.func @transform_8(%arg0: i32) -> (i32, i32) {
    %c0_i32 = arith.constant 0 : i32
    %c0_i32_0 = arith.constant 0 : i32
    %c0_i32_1 = arith.constant 0 : i32
    return %c0_i32, %c0_i32_0 : i32, i32
  }
  func.func @transform_9(%arg0: i32) -> (i32, i32) {
    %c0_i32 = arith.constant 0 : i32
    %c0_i32_0 = arith.constant 0 : i32
    %c0_i32_1 = arith.constant 0 : i32
    return %c0_i32, %c0_i32_0 : i32, i32
  }
  func.func @transform_10(%arg0: i32) -> (i32, i32) {
    %c0_i32 = arith.constant 0 : i32
    %c0_i32_0 = arith.constant 0 : i32
    %c0_i32_1 = arith.constant 0 : i32
    return %c0_i32, %c0_i32_0 : i32, i32
  }
  func.func @transform_11(%arg0: i32) -> (i32, i32) {
    %c0_i32 = arith.constant 0 : i32
    %c0_i32_0 = arith.constant 0 : i32
    %c0_i32_1 = arith.constant 0 : i32
    return %c0_i32, %c0_i32_0 : i32, i32
  }
  func.func @transform_12(%arg0: i32) -> (i32, i32) {
    %c0_i32 = arith.constant 0 : i32
    %c0_i32_0 = arith.constant 0 : i32
    %c0_i32_1 = arith.constant 0 : i32
    return %c0_i32, %c0_i32_0 : i32, i32
  }
  func.func @transform_13(%arg0: i32) -> (i32, i32) {
    %c0_i32 = arith.constant 0 : i32
    %c0_i32_0 = arith.constant 0 : i32
    %c0_i32_1 = arith.constant 0 : i32
    return %c0_i32, %c0_i32_0 : i32, i32
  }
  func.func @transform_14(%arg0: i32) -> (i32, i32) {
    %c0_i32 = arith.constant 0 : i32
    %c0_i32_0 = arith.constant 0 : i32
    %c0_i32_1 = arith.constant 0 : i32
    return %c0_i32, %c0_i32_0 : i32, i32
  }
  func.func @transform_20(%arg0: i32) -> (i32, i32) {
    %c0_i32 = arith.constant 0 : i32
    %c0_i32_0 = arith.constant 0 : i32
    %c0_i32_1 = arith.constant 0 : i32
    return %c0_i32, %c0_i32_0 : i32, i32
  }
}

</mosaic_0001>

<llo_original>
// kernel: crowdnet_forward.1
$region0: #{crowdnet_forward.1}
  #allocation0 [shape = 'u32[]', space=smem, size = 0x4, offset = 0x4, fixed_abs, tag = 'smem constant byte address 0x4 - core index']
  #allocation1 [shape = 'u32[72,128]{1,0:T(1,128)}', space=vmem, size = 0x9000, scoped, tag = 'internal scratch']
  #allocation2 [shape = 'bf16[1536,384]{1,0:T(8,128)(2,1)}', space=vmem, size = 0x120000, scoped, tag = 'scratch operand']
  #allocation3 [shape = 'bf16[384,384]{1,0:T(8,128)(2,1)}', space=vmem, size = 0x48000, scoped, tag = 'scratch operand']
  #allocation4 [shape = 'bf16[1536,384]{1,0:T(8,128)(2,1)}', space=vmem, size = 0x120000, scoped, tag = 'scratch operand']
  #allocation5 [shape = 'bf16[384,192]{1,0:T(8,128)(2,1)}', space=vmem, size = 0x30000, scoped, tag = 'scratch operand']
  #allocation6 [shape = 'bf16[128,512]{1,0:T(8,128)(2,1)}', space=vmem, size = 0x20000, scoped, tag = 'scratch operand']
  #allocation7 [shape = 's32[5]{0}', space=sflag, size = 0x14, scoped, tag = 'scratch operand']
  #allocation30 [shape = 's32[]', space=sflag, size = 0x4, offset = 0, fixed_abs, tag = 'sflag constant byte address 0x0 - dummy sync flag']
  #allocation31 [shape = 's32[]', space=sflag, size = 0x4, offset = 0, fixed_abs, tag = 'sflag constant byte address 0x0 - dummy sync flag']
  #allocation32 [shape = 'u32[]', space=smem, size = 0x4, offset = 0x44, fixed_abs, tag = 'smem constant byte address 0x44 - assertion arg 0']
  #allocation33 [shape = 'u32[]', space=smem, size = 0x4, offset = 0x48, fixed_abs, tag = 'smem constant byte address 0x48 - assertion arg 1']
  #allocation34 [shape = 's32[]', space=sflag, size = 0x4, offset = 0, fixed_abs, tag = 'sflag constant byte address 0x0 - dummy sync flag']
  #allocation35 [shape = 's32[]', space=sflag, size = 0x4, offset = 0, fixed_abs, tag = 'sflag constant byte address 0x0 - dummy sync flag']
  #allocation36 [shape = 's32[]', space=sflag, size = 0x4, offset = 0, fixed_abs, tag = 'sflag constant byte address 0x0 - dummy sync flag']
  #allocation37 [shape = 's32[]', space=sflag, size = 0x4, offset = 0, fixed_abs, tag = 'sflag constant byte address 0x0 - dummy sync flag']
  #allocation38 [shape = 's32[]', space=sflag, size = 0x4, offset = 0, fixed_abs, tag = 'sflag constant byte address 0x0 - dummy sync flag']
  #allocation39 [shape = 's32[]', space=sflag, size = 0x4, offset = 0, fixed_abs, tag = 'sflag constant byte address 0x0 - dummy sync flag']
  #allocation40 [shape = 's32[]', space=sflag, size = 0x4, offset = 0, fixed_abs, tag = 'sflag constant byte address 0x0 - dummy sync flag']
  %s0 = inlined_call_operand.vmem [shape: f32[32,64], index: 0, kind: input, shape index: {}]
  %s1 = inlined_call_operand.hbm [shape: bf16[192,384], index: 1, kind: input, shape index: {}]
  %s2 = inlined_call_operand.hbm [shape: f32[1,384], index: 2, kind: input, shape index: {}]
  %s3 = inlined_call_operand.hbm [shape: bf16[128,512], index: 3, kind: input, shape index: {}]
  %s4 = inlined_call_operand.hbm [shape: f32[128,128], index: 4, kind: input, shape index: {}]
  %s5 = inlined_call_operand.hbm [shape: f32[1,128], index: 5, kind: input, shape index: {}]
  %s6 = inlined_call_operand.hbm [shape: f32[1,128], index: 6, kind: input, shape index: {}]
  %s7 = inlined_call_operand.hbm [shape: f32[1,128], index: 7, kind: input, shape index: {}]
  %s8 = inlined_call_operand.hbm [shape: f32[1,128], index: 8, kind: input, shape index: {}]
  %s9 = inlined_call_operand.hbm [shape: f32[1,384], index: 9, kind: input, shape index: {}]
  %s10 = inlined_call_operand.hbm [shape: f32[1,384], index: 10, kind: input, shape index: {}]
  %s11 = inlined_call_operand.hbm [shape: f32[1,384], index: 11, kind: input, shape index: {}]
  %s12 = inlined_call_operand.hbm [shape: f32[1,192], index: 12, kind: input, shape index: {}]
  %s13 = inlined_call_operand.hbm [shape: bf16[64,64], index: 13, kind: input, shape index: {}]
  %s14 = inlined_call_operand.hbm [shape: f32[1,64], index: 14, kind: input, shape index: {}]
  %s15 = inlined_call_operand.hbm [shape: bf16[1536,384], index: 15, kind: input, shape index: {}]
  %s16 = inlined_call_operand.hbm [shape: bf16[384,384], index: 16, kind: input, shape index: {}]
  %s17 = inlined_call_operand.hbm [shape: bf16[1536,384], index: 17, kind: input, shape index: {}]
  %s18 = inlined_call_operand.vmem [shape: bf16[384,192], index: 18, kind: input, shape index: {}]
  %s19 = inlined_call_operand.hbm [shape: bf16[128,512], index: 19, kind: input, shape index: {}]
  %s20 = inlined_call_operand.vmem [shape: f32[12,64], index: 20, kind: output, shape index: {}]
  %s21 = sld [smem:[#allocation0]]
  $region161: #{crowdnet_forward.1} parent=0
    _
  %s23 = ssub.s32 1, %s21
  %s24 = scalar_select 0, %s23, %s21
  $region1: #{crowdnet_forward.1} parent=0
    #allocation8 [shape = 'u8[147456]{0}', space=vmem, size = 0x24000, scoped, tag = 'input window, operand 1, single buffered']
    #allocation9 [shape = 's32[1]{0}', space=sflag, size = 0x4, scoped, tag = 'scoped memory for crowdnet_forward.1']
    #allocation10 [shape = 'u8[1536]{0}', space=vmem, size = 0x800, scoped, tag = 'input window, operand 2, single buffered']
    #allocation11 [shape = 's32[1]{0}', space=sflag, size = 0x4, scoped, tag = 'scoped memory for crowdnet_forward.1']
    #allocation12 [shape = 'u8[131072]{0}', space=vmem, size = 0x20000, scoped, tag = 'input window, operand 3, single buffered']
    #allocation13 [shape = 'u8[65536]{0}', space=vmem, size = 0x10000, scoped, tag = 'input window, operand 4, single buffered']
    #allocation14 [shape = 's32[1]{0}', space=sflag, size = 0x4, scoped, tag = 'scoped memory for crowdnet_forward.1']
    #allocation15 [shape = 'u8[512]{0}', space=vmem, size = 0x400, scoped, tag = 'input window, operand 5, single buffered']
    #allocation16 [shape = 'u8[512]{0}', space=vmem, size = 0x400, scoped, tag = 'input window, operand 6, single buffered']
    #allocation17 [shape = 's32[1]{0}', space=sflag, size = 0x4, scoped, tag = 'scoped memory for crowdnet_forward.1']
    #allocation18 [shape = 'u8[512]{0}', space=vmem, size = 0x400, scoped, tag = 'input window, operand 7, single buffered']
    #allocation19 [shape = 'u8[512]{0}', space=vmem, size = 0x400, scoped, tag = 'input window, operand 8, single buffered']
    #allocation20 [shape = 's32[1]{0}', space=sflag, size = 0x4, scoped, tag = 'scoped memory for crowdnet_forward.1']
    #allocation21 [shape = 'u8[1536]{0}', space=vmem, size = 0x800, scoped, tag = 'input window, operand 9, single buffered']
    #allocation22 [shape = 'u8[1536]{0}', space=vmem, size = 0x800, scoped, tag = 'input window, operand 10, single buffered']
    #allocation23 [shape = 's32[1]{0}', space=sflag, size = 0x4, scoped, tag = 'scoped memory for crowdnet_forward.1']
    #allocation24 [shape = 'u8[1536]{0}', space=vmem, size = 0x800, scoped, tag = 'input window, operand 11, single buffered']
    #allocation25 [shape = 'u8[1024]{0}', space=vmem, size = 0x400, scoped, tag = 'input window, operand 12, single buffered']
    #allocation26 [shape = 's32[1]{0}', space=sflag, size = 0x4, scoped, tag = 'scoped memory for crowdnet_forward.1']
    #allocation27 [shape = 'u8[16384]{0}', space=vmem, size = 0x4000, scoped, tag = 'input window, operand 13, single buffered']
    #allocation28 [shape = 'u8[512]{0}', space=vmem, size = 0x400, scoped, tag = 'input window, operand 14, single buffered']
    #allocation29 [shape = 's32[1]{0}', space=sflag, size = 0x4, scoped, tag = 'scoped memory for crowdnet_forward.1']
    %25 = vsyncpa [#allocation9], 0
    %26 = vsyncpa [#allocation11], 0
    %27 = vsyncpa [#allocation14], 0
    %28 = vsyncpa [#allocation17], 0
    %29 = vsyncpa [#allocation20], 0
    %30 = vsyncpa [#allocation23], 0
    %31 = vsyncpa [#allocation26], 0
    %32 = vsyncpa [#allocation29], 0
    // Predicated region
    $region2: #{crowdnet_forward.1} parent=1 // pred_check
      _
    $region3: #{crowdnet_forward.1} parent=1 // pred_check_branch
      %34 = sbr.rel (0) target = $region5
    $region4: #{crowdnet_forward.1} parent=1 // pred_region
      _
    $region5: #{crowdnet_forward.1} parent=1 // pred_fallthru
      _
    // Predicated region
    $region6: #{crowdnet_forward.1} parent=1 // pred_check
      _
    $region7: #{crowdnet_forward.1} parent=1 // pred_check_branch
      %36 = sbr.rel (0) target = $region9
    $region8: #{crowdnet_forward.1} parent=1 // pred_region
      %38 = vsyncadd [#allocation9], 0
      %s39 = sshll.u32 %s1, 4
      %s40 = int_to_ptr.hbm [resolvable:$true] %s39
      %s41 = sshll.u32 [#allocation8], 4
      %s42 = int_to_ptr.vmem [resolvable:$true] %s41
      %47 = dma.hbm_to_vmem [thread:$0]  %s40, 4608, %s42, [#allocation9], 192, 192, 12
    $region9: #{crowdnet_forward.1} parent=1 // pred_fallthru
      _
    // Predicated region
    $region10: #{crowdnet_forward.1} parent=1 // pred_check
      _
    $region11: #{crowdnet_forward.1} parent=1 // pred_check_branch
      %49 = sbr.rel (0) target = $region13
    $region12: #{crowdnet_forward.1} parent=1 // pred_region
      %51 = vsyncadd [#allocation11], 0
      %s53 = sshll.u32 %s2, 4
      %s54 = int_to_ptr.hbm [resolvable:$true] %s53
      %s55 = sshll.u32 [#allocation10], 4
      %s56 = int_to_ptr.vmem [resolvable:$true] %s55
      %58 = dma.hbm_to_vmem [thread:$0]  %s54, 48, %s56, [#allocation11]
    $region13: #{crowdnet_forward.1} parent=1 // pred_fallthru
      _
    // Predicated region
    $region14: #{crowdnet_forward.1} parent=1 // pred_check
      _
    $region15: #{crowdnet_forward.1} parent=1 // pred_check_branch
      %60 = sbr.rel (0) target = $region17
    $region16: #{crowdnet_forward.1} parent=1 // pred_region
      %62 = vsyncadd [#allocation11], 0
      %s63 = sshll.u32 %s3, 4
      %s64 = int_to_ptr.hbm [resolvable:$true] %s63
      %s65 = sshll.u32 [#allocation12], 4
      %s66 = int_to_ptr.vmem [resolvable:$true] %s65
      %71 = dma.hbm_to_vmem [thread:$0]  %s64, 4096, %s66, [#allocation11], 256, 256, 16
    $region17: #{crowdnet_forward.1} parent=1 // pred_fallthru
      _
    // Predicated region
    $region18: #{crowdnet_forward.1} parent=1 // pred_check
      _
    $region19: #{crowdnet_forward.1} parent=1 // pred_check_branch
      %73 = sbr.rel (0) target = $region21
    $region20: #{crowdnet_forward.1} parent=1 // pred_region
      %75 = vsyncadd [#allocation14], 0
      %s76 = sshll.u32 %s4, 4
      %s77 = int_to_ptr.hbm [resolvable:$true] %s76
      %s78 = sshll.u32 [#allocation13], 4
      %s79 = int_to_ptr.vmem [resolvable:$true] %s78
      %84 = dma.hbm_to_vmem [thread:$0]  %s77, 2048, %s79, [#allocation14], 128, 128, 8
    $region21: #{crowdnet_forward.1} parent=1 // pred_fallthru
      _
    // Predicated region
    $region22: #{crowdnet_forward.1} parent=1 // pred_check
      _
    $region23: #{crowdnet_forward.1} parent=1 // pred_check_branch
      %86 = sbr.rel (0) target = $region25
    $region24: #{crowdnet_forward.1} parent=1 // pred_region
      %88 = vsyncadd [#allocation14], 0
      %s90 = sshll.u32 %s5, 4
      %s91 = int_to_ptr.hbm [resolvable:$true] %s90
      %s92 = sshll.u32 [#allocation15], 4
      %s93 = int_to_ptr.vmem [resolvable:$true] %s92
      %95 = dma.hbm_to_vmem [thread:$0]  %s91, 16, %s93, [#allocation14]
    $region25: #{crowdnet_forward.1} parent=1 // pred_fallthru
      _
    // Predicated region
    $region26: #{crowdnet_forward.1} parent=1 // pred_check
      _
    $region27: #{crowdnet_forward.1} parent=1 // pred_check_branch
      %97 = sbr.rel (0) target = $region29
    $region28: #{crowdnet_forward.1} parent=1 // pred_region
      %99 = vsyncadd [#allocation17], 0
      %s101 = sshll.u32 %s6, 4
      %s102 = int_to_ptr.hbm [resolvable:$true] %s101
      %s103 = sshll.u32 [#allocation16], 4
      %s104 = int_to_ptr.vmem [resolvable:$true] %s103
      %106 = dma.hbm_to_vmem [thread:$0]  %s102, 16, %s104, [#allocation17]
    $region29: #{crowdnet_forward.1} parent=1 // pred_fallthru
      _
    // Predicated region
    $region30: #{crowdnet_forward.1} parent=1 // pred_check
      _
    $region31: #{crowdnet_forward.1} parent=1 // pred_check_branch
      %108 = sbr.rel (0) target = $region33
    $region32: #{crowdnet_forward.1} parent=1 // pred_region
      %110 = vsyncadd [#allocation17], 0
      %s112 = sshll.u32 %s7, 4
      %s113 = int_to_ptr.hbm [resolvable:$true] %s112
      %s114 = sshll.u32 [#allocation18], 4
      %s115 = int_to_ptr.vmem [resolvable:$true] %s114
      %117 = dma.hbm_to_vmem [thread:$0]  %s113, 16, %s115, [#allocation17]
    $region33: #{crowdnet_forward.1} parent=1 // pred_fallthru
      _
    // Predicated region
    $region34: #{crowdnet_forward.1} parent=1 // pred_check
      _
    $region35: #{crowdnet_forward.1} parent=1 // pred_check_branch
      %119 = sbr.rel (0) target = $region37
    $region36: #{crowdnet_forward.1} parent=1 // pred_region
      %121 = vsyncadd [#allocation20], 0
      %s123 = sshll.u32 %s8, 4
      %s124 = int_to_ptr.hbm [resolvable:$true] %s123
      %s125 = sshll.u32 [#allocation19], 4
      %s126 = int_to_ptr.vmem [resolvable:$true] %s125
      %128 = dma.hbm_to_vmem [thread:$0]  %s124, 16, %s126, [#allocation20]
    $region37: #{crowdnet_forward.1} parent=1 // pred_fallthru
      _
    // Predicated region
    $region38: #{crowdnet_forward.1} parent=1 // pred_check
      _
    $region39: #{crowdnet_forward.1} parent=1 // pred_check_branch
      %130 = sbr.rel (0) target = $region41
    $region40: #{crowdnet_forward.1} parent=1 // pred_region
      %132 = vsyncadd [#allocation20], 0
      %s134 = sshll.u32 %s9, 4
      %s135 = int_to_ptr.hbm [resolvable:$true] %s134
      %s136 = sshll.u32 [#allocation21], 4
      %s137 = int_to_ptr.vmem [resolvable:$true] %s136
      %139 = dma.hbm_to_vmem [thread:$0]  %s135, 48, %s137, [#allocation20]
    $region41: #{crowdnet_forward.1} parent=1 // pred_fallthru
      _
    // Predicated region
    $region42: #{crowdnet_forward.1} parent=1 // pred_check
      _
    $region43: #{crowdnet_forward.1} parent=1 // pred_check_branch
      %141 = sbr.rel (0) target = $region45
    $region44: #{crowdnet_forward.1} parent=1 // pred_region
      %143 = vsyncadd [#allocation23], 0
      %s145 = sshll.u32 %s10, 4
      %s146 = int_to_ptr.hbm [resolvable:$true] %s145
      %s147 = sshll.u32 [#allocation22], 4
      %s148 = int_to_ptr.vmem [resolvable:$true] %s147
      %150 = dma.hbm_to_vmem [thread:$0]  %s146, 48, %s148, [#allocation23]
    $region45: #{crowdnet_forward.1} parent=1 // pred_fallthru
      _
    // Predicated region
    $region46: #{crowdnet_forward.1} parent=1 // pred_check
      _
    $region47: #{crowdnet_forward.1} parent=1 // pred_check_branch
      %152 = sbr.rel (0) target = $region49
    $region48: #{crowdnet_forward.1} parent=1 // pred_region
      %154 = vsyncadd [#allocation23], 0
      %s156 = sshll.u32 %s11, 4
      %s157 = int_to_ptr.hbm [resolvable:$true] %s156
      %s158 = sshll.u32 [#allocation24], 4
      %s159 = int_to_ptr.vmem [resolvable:$true] %s158
      %161 = dma.hbm_to_vmem [thread:$0]  %s157, 48, %s159, [#allocation23]
    $region49: #{crowdnet_forward.1} parent=1 // pred_fallthru
      _
    // Predicated region
    $region50: #{crowdnet_forward.1} parent=1 // pred_check
      _
    $region51: #{crowdnet_forward.1} parent=1 // pred_check_branch
      %163 = sbr.rel (0) target = $region53
    $region52: #{crowdnet_forward.1} parent=1 // pred_region
      %165 = vsyncadd [#allocation26], 0
      %s167 = sshll.u32 %s12, 4
      %s168 = int_to_ptr.hbm [resolvable:$true] %s167
      %s169 = sshll.u32 [#allocation25], 4
      %s170 = int_to_ptr.vmem [resolvable:$true] %s169
      %172 = dma.hbm_to_vmem [thread:$0]  %s168, 32, %s170, [#allocation26]
    $region53: #{crowdnet_forward.1} parent=1 // pred_fallthru
      _
    // Predicated region
    $region54: #{crowdnet_forward.1} parent=1 // pred_check
      _
    $region55: #{crowdnet_forward.1} parent=1 // pred_check_branch
      %174 = sbr.rel (0) target = $region57
    $region56: #{crowdnet_forward.1} parent=1 // pred_region
      %176 = vsyncadd [#allocation26], 0
      %s177 = sshll.u32 %s13, 4
      %s178 = int_to_ptr.hbm [resolvable:$true] %s177
      %s179 = sshll.u32 [#allocation27], 4
      %s180 = int_to_ptr.vmem [resolvable:$true] %s179
      %185 = dma.hbm_to_vmem [thread:$0]  %s178, 512, %s180, [#allocation26], 64, 64, 4
    $region57: #{crowdnet_forward.1} parent=1 // pred_fallthru
      _
    // Predicated region
    $region58: #{crowdnet_forward.1} parent=1 // pred_check
      _
    $region59: #{crowdnet_forward.1} parent=1 // pred_check_branch
      %187 = sbr.rel (0) target = $region61
    $region60: #{crowdnet_forward.1} parent=1 // pred_region
      %189 = vsyncadd [#allocation29], 0
      %s191 = sshll.u32 %s14, 4
      %s192 = int_to_ptr.hbm [resolvable:$true] %s191
      %s193 = sshll.u32 [#allocation28], 4
      %s194 = int_to_ptr.vmem [resolvable:$true] %s193
      %196 = dma.hbm_to_vmem [thread:$0]  %s192, 16, %s194, [#allocation29]
    $region61: #{crowdnet_forward.1} parent=1 // pred_fallthru
      _
    // Predicated region
    $region62: #{crowdnet_forward.1} parent=1 // pred_check
      _
    $region63: #{crowdnet_forward.1} parent=1 // pred_check_branch
      %198 = sbr.rel (0) target = $region65
    $region64: #{crowdnet_forward.1} parent=1 // pred_region
      %200 = dma.done [#allocation9], 4608
    $region65: #{crowdnet_forward.1} parent=1 // pred_fallthru
      _
    // Predicated region
    $region66: #{crowdnet_forward.1} parent=1 // pred_check
      _
    $region67: #{crowdnet_forward.1} parent=1 // pred_check_branch
      %202 = sbr.rel (0) target = $region69
    $region68: #{crowdnet_forward.1} parent=1 // pred_region
      %204 = dma.done [#allocation11], 48
    $region69: #{crowdnet_forward.1} parent=1 // pred_fallthru
      _
    // Predicated region
    $region70: #{crowdnet_forward.1} parent=1 // pred_check
      _
    $region71: #{crowdnet_forward.1} parent=1 // pred_check_branch
      %206 = sbr.rel (0) target = $region73
    $region72: #{crowdnet_forward.1} parent=1 // pred_region
      %208 = dma.done [#allocation11], 4096
    $region73: #{crowdnet_forward.1} parent=1 // pred_fallthru
      _
    // Predicated region
    $region74: #{crowdnet_forward.1} parent=1 // pred_check
      _
    $region75: #{crowdnet_forward.1} parent=1 // pred_check_branch
      %210 = sbr.rel (0) target = $region77
    $region76: #{crowdnet_forward.1} parent=1 // pred_region
      %212 = dma.done [#allocation14], 2048
    $region77: #{crowdnet_forward.1} parent=1 // pred_fallthru
      _
    // Predicated region
    $region78: #{crowdnet_forward.1} parent=1 // pred_check
      _
    $region79: #{crowdnet_forward.1} parent=1 // pred_check_branch
      %214 = sbr.rel (0) target = $region81
    $region80: #{crowdnet_forward.1} parent=1 // pred_region
      %216 = dma.done [#allocation14], 16
    $region81: #{crowdnet_forward.1} parent=1 // pred_fallthru
      _
    // Predicated region
    $region82: #{crowdnet_forward.1} parent=1 // pred_check
      _
    $region83: #{crowdnet_forward.1} parent=1 // pred_check_branch
      %218 = sbr.rel (0) target = $region85
    $region84: #{crowdnet_forward.1} parent=1 // pred_region
      %220 = dma.done [#allocation17], 16
    $region85: #{crowdnet_forward.1} parent=1 // pred_fallthru
      _
    // Predicated region
    $region86: #{crowdnet_forward.1} parent=1 // pred_check
      _
    $region87: #{crowdnet_forward.1} parent=1 // pred_check_branch
      %222 = sbr.rel (0) target = $region89
    $region88: #{crowdnet_forward.1} parent=1 // pred_region
      %224 = dma.done [#allocation17], 16
    $region89: #{crowdnet_forward.1} parent=1 // pred_fallthru
      _
    // Predicated region
    $region90: #{crowdnet_forward.1} parent=1 // pred_check
      _
    $region91: #{crowdnet_forward.1} parent=1 // pred_check_branch
      %226 = sbr.rel (0) target = $region93
    $region92: #{crowdnet_forward.1} parent=1 // pred_region
      %228 = dma.done [#allocation20], 16
    $region93: #{crowdnet_forward.1} parent=1 // pred_fallthru
      _
    // Predicated region
    $region94: #{crowdnet_forward.1} parent=1 // pred_check
      _
    $region95: #{crowdnet_forward.1} parent=1 // pred_check_branch
      %230 = sbr.rel (0) target = $region97
    $region96: #{crowdnet_forward.1} parent=1 // pred_region
      %232 = dma.done [#allocation20], 48
    $region97: #{crowdnet_forward.1} parent=1 // pred_fallthru
      _
    // Predicated region
    $region98: #{crowdnet_forward.1} parent=1 // pred_check
      _
    $region99: #{crowdnet_forward.1} parent=1 // pred_check_branch
      %234 = sbr.rel (0) target = $region101
    $region100: #{crowdnet_forward.1} parent=1 // pred_region
      %236 = dma.done [#allocation23], 48
    $region101: #{crowdnet_forward.1} parent=1 // pred_fallthru
      _
    // Predicated region
    $region102: #{crowdnet_forward.1} parent=1 // pred_check
      _
    $region103: #{crowdnet_forward.1} parent=1 // pred_check_branch
      %238 = sbr.rel (0) target = $region105
    $region104: #{crowdnet_forward.1} parent=1 // pred_region
      %240 = dma.done [#allocation23], 48
    $region105: #{crowdnet_forward.1} parent=1 // pred_fallthru
      _
    // Predicated region
    $region106: #{crowdnet_forward.1} parent=1 // pred_check
      _
    $region107: #{crowdnet_forward.1} parent=1 // pred_check_branch
      %242 = sbr.rel (0) target = $region109
    $region108: #{crowdnet_forward.1} parent=1 // pred_region
      %244 = dma.done [#allocation26], 32
    $region109: #{crowdnet_forward.1} parent=1 // pred_fallthru
      _
    // Predicated region
    $region110: #{crowdnet_forward.1} parent=1 // pred_check
      _
    $region111: #{crowdnet_forward.1} parent=1 // pred_check_branch
      %246 = sbr.rel (0) target = $region113
    $region112: #{crowdnet_forward.1} parent=1 // pred_region
      %248 = dma.done [#allocation26], 512
    $region113: #{crowdnet_forward.1} parent=1 // pred_fallthru
      _
    // Predicated region
    $region114: #{crowdnet_forward.1} parent=1 // pred_check
      _
    $region115: #{crowdnet_forward.1} parent=1 // pred_check_branch
      %250 = sbr.rel (0) target = $region117
    $region116: #{crowdnet_forward.1} parent=1 // pred_region
      %252 = dma.done [#allocation29], 16
    $region117: #{crowdnet_forward.1} parent=1 // pred_fallthru
      _
    // Predicated region
    $region118: #{crowdnet_forward.1} parent=1 // pred_check
      _
    $region119: #{crowdnet_forward.1} parent=1 // pred_check_branch
      %255 = sbr.rel target = $region121
    $region120: #{crowdnet_forward.1} parent=1 // pred_region
      %256 = sst [smem:[#allocation32]] [#allocation31]
      %257 = sst [smem:[#allocation33]] [#allocation30]
    $region121: #{crowdnet_forward.1} parent=1 // pred_fallthru
      _
    %259 = shalt.err (0)
    %s261 = sshll.u32 %s15, 4
    %s262 = int_to_ptr.hbm [resolvable:$true] %s261
    %s263 = sshll.u32 [#allocation2], 4
    %s264 = int_to_ptr.vmem [resolvable:$true] %s263
    %266 = dma.hbm_to_vmem [thread:$0]  %s262, 36864, %s264, [#allocation7]
    %s267 = scalar_lea.sflag [#allocation7], 1
    // Predicated region
    $region122: #{crowdnet_forward.1} parent=1 // pred_check
      _
    $region123: #{crowdnet_forward.1} parent=1 // pred_check_branch
      %269 = sbr.rel target = $region125
    $region124: #{crowdnet_forward.1} parent=1 // pred_region
      %270 = sst [smem:[#allocation32]] [#allocation35]
      %271 = sst [smem:[#allocation33]] [#allocation34]
    $region125: #{crowdnet_forward.1} parent=1 // pred_fallthru
      _
    %273 = shalt.err (0)
    %s275 = sshll.u32 %s16, 4
    %s276 = int_to_ptr.hbm [resolvable:$true] %s275
    %s277 = sshll.u32 [#allocation3], 4
    %s278 = int_to_ptr.vmem [resolvable:$true] %s277
    %280 = dma.hbm_to_vmem [thread:$0]  %s276, 9216, %s278, %s267
    %s281 = scalar_lea.sflag [#allocation7], 2
    // Predicated region
    $region126: #{crowdnet_forward.1} parent=1 // pred_check
      _
    $region127: #{crowdnet_forward.1} parent=1 // pred_check_branch
      %283 = sbr.rel target = $region129
    $region128: #{crowdnet_forward.1} parent=1 // pred_region
      %284 = sst [smem:[#allocation32]] [#allocation37]
      %285 = sst [smem:[#allocation33]] [#allocation36]
    $region129: #{crowdnet_forward.1} parent=1 // pred_fallthru
      _
    %287 = shalt.err (0)
    %s289 = sshll.u32 %s17, 4
    %s290 = int_to_ptr.hbm [resolvable:$true] %s289
    %s291 = sshll.u32 [#allocation4], 4
    %s292 = int_to_ptr.vmem [resolvable:$true] %s291
    %294 = dma.hbm_to_vmem [thread:$0]  %s290, 36864, %s292, %s281
    %s295 = scalar_lea.sflag [#allocation7], 3
    // Predicated region
    $region130: #{crowdnet_forward.1} parent=1 // pred_check
      _
    $region131: #{crowdnet_forward.1} parent=1 // pred_check_branch
      %297 = sbr.rel (0) target = $region133
    $region132: #{crowdnet_forward.1} parent=1 // pred_region
      loop: start=0, step=1, limit=1
      $region134: #{crowdnet_forward.1} parent=132 // loop_pre_header
        _
      $region135: #{crowdnet_forward.1} parent=132 // loop_header
        %s299 = sphi 0, %s303
        %p300 = scmp.ge.s32.totalorder %s299, 1
        %s304 = sphi %s18, %s18
        %s305 = sphi [#allocation5], [#allocation5]
      $region136: #{crowdnet_forward.1} parent=132 // loop_header_branch
        %302 = sbr.rel (%p300) target = $region140
      $region137: #{crowdnet_forward.1} parent=132 // loop_body
        %v306 = vld [vmem:[%s304] sm:$0xff]
        %307 = vst [vmem:[%s305] sm:$0xff] %v306
        %v308 = vld [vmem:[%s304 + $0x8] sm:$0xff]
        %309 = vst [vmem:[%s305 + $0x8] sm:$0xff] %v308
        %v310 = vld [vmem:[%s304 + $0x10] sm:$0xff]
        %311 = vst [vmem:[%s305 + $0x10] sm:$0xff] %v310
        %v312 = vld [vmem:[%s304 + $0x18] sm:$0xff]
        %313 = vst [vmem:[%s305 + $0x18] sm:$0xff] %v312
        %v314 = vld [vmem:[%s304 + $0x20] sm:$0xff]
        %315 = vst [vmem:[%s305 + $0x20] sm:$0xff] %v314
        %v316 = vld [vmem:[%s304 + $0x28] sm:$0xff]
        %317 = vst [vmem:[%s305 + $0x28] sm:$0xff] %v316
        %v318 = vld [vmem:[%s304 + $0x30] sm:$0xff]
        %319 = vst [vmem:[%s305 + $0x30] sm:$0xff] %v318
        %v320 = vld [vmem:[%s304 + $0x38] sm:$0xff]
        %321 = vst [vmem:[%s305 + $0x38] sm:$0xff] %v320
        %v322 = vld [vmem:[%s304 + $0x40] sm:$0xff]
        %323 = vst [vmem:[%s305 + $0x40] sm:$0xff] %v322
        %v324 = vld [vmem:[%s304 + $0x48] sm:$0xff]
        %325 = vst [vmem:[%s305 + $0x48] sm:$0xff] %v324
        %v326 = vld [vmem:[%s304 + $0x50] sm:$0xff]
        %327 = vst [vmem:[%s305 + $0x50] sm:$0xff] %v326
        %v328 = vld [vmem:[%s304 + $0x58] sm:$0xff]
        %329 = vst [vmem:[%s305 + $0x58] sm:$0xff] %v328
        %v330 = vld [vmem:[%s304 + $0x60] sm:$0xff]
        %331 = vst [vmem:[%s305 + $0x60] sm:$0xff] %v330
        %v332 = vld [vmem:[%s304 + $0x68] sm:$0xff]
        %333 = vst [vmem:[%s305 + $0x68] sm:$0xff] %v332
        %v334 = vld [vmem:[%s304 + $0x70] sm:$0xff]
        %335 = vst [vmem:[%s305 + $0x70] sm:$0xff] %v334
        %v336 = vld [vmem:[%s304 + $0x78] sm:$0xff]
        %337 = vst [vmem:[%s305 + $0x78] sm:$0xff] %v336
        %v338 = vld [vmem:[%s304 + $0x80] sm:$0xff]
        %339 = vst [vmem:[%s305 + $0x80] sm:$0xff] %v338
        %v340 = vld [vmem:[%s304 + $0x88] sm:$0xff]
        %341 = vst [vmem:[%s305 + $0x88] sm:$0xff] %v340
        %v342 = vld [vmem:[%s304 + $0x90] sm:$0xff]
        %343 = vst [vmem:[%s305 + $0x90] sm:$0xff] %v342
        %v344 = vld [vmem:[%s304 + $0x98] sm:$0xff]
        %345 = vst [vmem:[%s305 + $0x98] sm:$0xff] %v344
        %v346 = vld [vmem:[%s304 + $0xa0] sm:$0xff]
        %347 = vst [vmem:[%s305 + $0xa0] sm:$0xff] %v346
        %v348 = vld [vmem:[%s304 + $0xa8] sm:$0xff]
        %349 = vst [vmem:[%s305 + $0xa8] sm:$0xff] %v348
        %v350 = vld [vmem:[%s304 + $0xb0] sm:$0xff]
        %351 = vst [vmem:[%s305 + $0xb0] sm:$0xff] %v350
        %v352 = vld [vmem:[%s304 + $0xb8] sm:$0xff]
        %353 = vst [vmem:[%s305 + $0xb8] sm:$0xff] %v352
        %v354 = vld [vmem:[%s304 + $0xc0] sm:$0xff]
        %355 = vst [vmem:[%s305 + $0xc0] sm:$0xff] %v354
        %v356 = vld [vmem:[%s304 + $0xc8] sm:$0xff]
        %357 = vst [vmem:[%s305 + $0xc8] sm:$0xff] %v356
        %v358 = vld [vmem:[%s304 + $0xd0] sm:$0xff]
        %359 = vst [vmem:[%s305 + $0xd0] sm:$0xff] %v358
        %v360 = vld [vmem:[%s304 + $0xd8] sm:$0xff]
        %361 = vst [vmem:[%s305 + $0xd8] sm:$0xff] %v360
        %v362 = vld [vmem:[%s304 + $0xe0] sm:$0xff]
        %363 = vst [vmem:[%s305 + $0xe0] sm:$0xff] %v362
        %v364 = vld [vmem:[%s304 + $0xe8] sm:$0xff]
        %365 = vst [vmem:[%s305 + $0xe8] sm:$0xff] %v364
        %v366 = vld [vmem:[%s304 + $0xf0] sm:$0xff]
        %367 = vst [vmem:[%s305 + $0xf0] sm:$0xff] %v366
        %v368 = vld [vmem:[%s304 + $0xf8] sm:$0xff]
        %369 = vst [vmem:[%s305 + $0xf8] sm:$0xff] %v368
        %v370 = vld [vmem:[%s304 + $0x100] sm:$0xff]
        %371 = vst [vmem:[%s305 + $0x100] sm:$0xff] %v370
        %v372 = vld [vmem:[%s304 + $0x108] sm:$0xff]
        %373 = vst [vmem:[%s305 + $0x108] sm:$0xff] %v372
        %v374 = vld [vmem:[%s304 + $0x110] sm:$0xff]
        %375 = vst [vmem:[%s305 + $0x110] sm:$0xff] %v374
        %v376 = vld [vmem:[%s304 + $0x118] sm:$0xff]
        %377 = vst [vmem:[%s305 + $0x118] sm:$0xff] %v376
        %v378 = vld [vmem:[%s304 + $0x120] sm:$0xff]
        %379 = vst [vmem:[%s305 + $0x120] sm:$0xff] %v378
        %v380 = vld [vmem:[%s304 + $0x128] sm:$0xff]
        %381 = vst [vmem:[%s305 + $0x128] sm:$0xff] %v380
        %v382 = vld [vmem:[%s304 + $0x130] sm:$0xff]
        %383 = vst [vmem:[%s305 + $0x130] sm:$0xff] %v382
        %v384 = vld [vmem:[%s304 + $0x138] sm:$0xff]
        %385 = vst [vmem:[%s305 + $0x138] sm:$0xff] %v384
        %v386 = vld [vmem:[%s304 + $0x140] sm:$0xff]
        %387 = vst [vmem:[%s305 + $0x140] sm:$0xff] %v386
        %v388 = vld [vmem:[%s304 + $0x148] sm:$0xff]
        %389 = vst [vmem:[%s305 + $0x148] sm:$0xff] %v388
        %v390 = vld [vmem:[%s304 + $0x150] sm:$0xff]
        %391 = vst [vmem:[%s305 + $0x150] sm:$0xff] %v390
        %v392 = vld [vmem:[%s304 + $0x158] sm:$0xff]
        %393 = vst [vmem:[%s305 + $0x158] sm:$0xff] %v392
        %v394 = vld [vmem:[%s304 + $0x160] sm:$0xff]
        %395 = vst [vmem:[%s305 + $0x160] sm:$0xff] %v394
        %v396 = vld [vmem:[%s304 + $0x168] sm:$0xff]
        %397 = vst [vmem:[%s305 + $0x168] sm:$0xff] %v396
        %v398 = vld [vmem:[%s304 + $0x170] sm:$0xff]
        %399 = vst [vmem:[%s305 + $0x170] sm:$0xff] %v398
        %v400 = vld [vmem:[%s304 + $0x178] sm:$0xff]
        %401 = vst [vmem:[%s305 + $0x178] sm:$0xff] %v400
      $region138: #{crowdnet_forward.1} parent=132 // loop_footer
        %s303 = sadd.s32 1, %s299
      $region139: #{crowdnet_forward.1} parent=132 // loop_footer_branch
        %298 = sbr.rel target = $region135
      $region140: #{crowdnet_forward.1} parent=132 // loop_exit
        _
    $region133: #{crowdnet_forward.1} parent=1 // pred_fallthru
      _
    // Predicated region
    $region141: #{crowdnet_forward.1} parent=1 // pred_check
      _
    $region142: #{crowdnet_forward.1} parent=1 // pred_check_branch
      %403 = sbr.rel target = $region144
    $region143: #{crowdnet_forward.1} parent=1 // pred_region
      _
    $region144: #{crowdnet_forward.1} parent=1 // pred_fallthru
      _
    // Predicated region
    $region145: #{crowdnet_forward.1} parent=1 // pred_check
      _
    $region146: #{crowdnet_forward.1} parent=1 // pred_check_branch
      %406 = sbr.rel (0) target = $region148
    $region147: #{crowdnet_forward.1} parent=1 // pred_region
      %407 = vsyncadd %s295, 6144
    $region148: #{crowdnet_forward.1} parent=1 // pred_fallthru
      _
    %s408 = scalar_lea.sflag [#allocation7], 4
    // Predicated region
    $region149: #{crowdnet_forward.1} parent=1 // pred_check
      _
    $region150: #{crowdnet_forward.1} parent=1 // pred_check_branch
      %410 = sbr.rel target = $region152
    $region151: #{crowdnet_forward.1} parent=1 // pred_region
      %411 = sst [smem:[#allocation32]] [#allocation40]
      %412 = sst [smem:[#allocation33]] [#allocation39]
    $region152: #{crowdnet_forward.1} parent=1 // pred_fallthru
      _
    %414 = shalt.err (0)
    %s416 = sshll.u32 %s19, 4
    %s417 = int_to_ptr.hbm [resolvable:$true] %s416
    %s418 = sshll.u32 [#allocation6], 4
    %s419 = int_to_ptr.vmem [resolvable:$true] %s418
    %421 = dma.hbm_to_vmem [thread:$0]  %s417, 4096, %s419, %s408
    %v422 = vld [vmem:[%s0] sm:$0xff]
    %v423 = vld [vmem:[%s0 + $0x8] sm:$0xff]
    %v424 = vld [vmem:[%s0 + $0x10] sm:$0xff]
    %v425 = vld [vmem:[%s0 + $0x18] sm:$0xff]
    %v426 = vld [vmem:[#allocation8] sm:$0xff]
    %v427 = vld [vmem:[#allocation8 + $0x8] sm:$0xf]
    %v428 = vld [vmem:[#allocation8 + $0xc] sm:$0xff]
    %v429 = vld [vmem:[#allocation8 + $0x14] sm:$0xf]
    %v430 = vld [vmem:[#allocation8 + $0x18] sm:$0xff]
    %v431 = vld [vmem:[#allocation8 + $0x20] sm:$0xf]
    %v432 = vld [vmem:[#allocation8 + $0x24] sm:$0xff]
    %v433 = vld [vmem:[#allocation8 + $0x2c] sm:$0xf]
    %v434 = vld [vmem:[#allocation8 + $0x30] sm:$0xff]
    %v435 = vld [vmem:[#allocation8 + $0x38] sm:$0xf]
    %v436 = vld [vmem:[#allocation8 + $0x3c] sm:$0xff]
    %v437 = vld [vmem:[#allocation8 + $0x44] sm:$0xf]
    %v438 = vld [vmem:[#allocation8 + $0x48] sm:$0xff]
    %v439 = vld [vmem:[#allocation8 + $0x50] sm:$0xf]
    %v440 = vld [vmem:[#allocation8 + $0x54] sm:$0xff]
    %v441 = vld [vmem:[#allocation8 + $0x5c] sm:$0xf]
    %v442 = vld [vmem:[#allocation8 + $0x60] sm:$0xff]
    %v443 = vld [vmem:[#allocation8 + $0x68] sm:$0xf]
    %v444 = vld [vmem:[#allocation8 + $0x6c] sm:$0xff]
    %v445 = vld [vmem:[#allocation8 + $0x74] sm:$0xf]
    %v446 = vld [vmem:[#allocation8 + $0x78] sm:$0xff]
    %v447 = vld [vmem:[#allocation8 + $0x80] sm:$0xf]
    %v448 = vld [vmem:[#allocation8 + $0x84] sm:$0xff]
    %v449 = vld [vmem:[#allocation8 + $0x8c] sm:$0xf]
    %v450 = vld [vmem:[#allocation8 + $0x90] sm:$0xff]
    %v451 = vld [vmem:[#allocation8 + $0x98] sm:$0xf]
    %v452 = vld [vmem:[#allocation8 + $0x9c] sm:$0xff]
    %v453 = vld [vmem:[#allocation8 + $0xa4] sm:$0xf]
    %v454 = vld [vmem:[#allocation8 + $0xa8] sm:$0xff]
    %v455 = vld [vmem:[#allocation8 + $0xb0] sm:$0xf]
    %v456 = vld [vmem:[#allocation8 + $0xb4] sm:$0xff]
    %v457 = vld [vmem:[#allocation8 + $0xbc] sm:$0xf]
    %v458 = vld [vmem:[#allocation8 + $0xc0] sm:$0xff]
    %v459 = vld [vmem:[#allocation8 + $0xc8] sm:$0xf]
    %v460 = vld [vmem:[#allocation8 + $0xcc] sm:$0xff]
    %v461 = vld [vmem:[#allocation8 + $0xd4] sm:$0xf]
    %v462 = vld [vmem:[#allocation8 + $0xd8] sm:$0xff]
    %v463 = vld [vmem:[#allocation8 + $0xe0] sm:$0xf]
    %v464 = vld [vmem:[#allocation8 + $0xe4] sm:$0xff]
    %v465 = vld [vmem:[#allocation8 + $0xec] sm:$0xf]
    %v466 = vld [vmem:[#allocation8 + $0xf0] sm:$0xff]
    %v467 = vld [vmem:[#allocation8 + $0xf8] sm:$0xf]
    %v468 = vld [vmem:[#allocation8 + $0xfc] sm:$0xff]
    %v469 = vld [vmem:[#allocation8 + $0x104] sm:$0xf]
    %v470 = vld [vmem:[#allocation8 + $0x108] sm:$0xff]
    %v471 = vld [vmem:[#allocation8 + $0x110] sm:$0xf]
    %v472 = vld [vmem:[#allocation8 + $0x114] sm:$0xff]
    %v473 = vld [vmem:[#allocation8 + $0x11c] sm:$0xf]
    %v474 = vld [vmem:[#allocation10] sm:$0x7]
    %vm477 = vcmask 1045504
    %v478 = vrot.slane %v424, 2
    %v479 = vrot.slane %v425, 2
    %v480 = vsel %vm477, %v478, %v479
    %v484 = vsel %vm477, %v423, %v478
    %vm487 = vcmask 1046528
    %v488 = vrot.slane %v422, 1
    %v489 = vrot.slane %v423, 1
    %v490 = vsel %vm487, %v488, %v489
    %vm492 = vcmask 1044480
    %v493 = vrot.slane %v424, 3
    %v494 = vrot.slane %v425, 3
    %v495 = vsel %vm492, %v493, %v494
    %v497 = vsel %vm477, %v489, %v493
    %v498 = vrot.slane %v422, 2
    %v499 = vrot.slane %v423, 2
    %v500 = vsel %vm477, %v498, %v499
    %vm503 = vcmask 1043456
    %v504 = vrot.slane %v424, 4
    %v505 = vrot.slane %v425, 4
    %v506 = vsel %vm503, %v504, %v505
    %v510 = vsel %vm477, %v499, %v504
    %512 = vrot.lane.b32.xlu0 %v490, 64
    %v513 = vpop.permute.xlu0 %512
    %514 = vrot.lane.b32.xlu0 %v497, 64
    %v515 = vpop.permute.xlu0 %514
    %516 = vrot.lane.b32.xlu0 %v495, 64
    %v517 = vpop.permute.xlu0 %516
    %518 = vrot.lane.b32.xlu0 %v494, 64
    %v519 = vpop.permute.xlu0 %518
    %vm524 = vcmask 523264
    %v525 = vsel %vm524, %v422, %v513
    %v526 = vsel %vm524, %v484, %v515
    %v527 = vsel %vm524, %v480, %v517
    %v528 = vsel %vm524, %v479, %v519
    %v529 = vpack.c.bf16 %v526, %v525
    %v530 = vpack.c.bf16 %v510, %v500
    %v531 = vpack.c.bf16 %v528, %v527
    %v532 = vpack.c.bf16 %v505, %v506
    %v534 = vperm.slane %v474, 0
    %v535 = vperm.slane %v474, 1
    %v536 = vperm.slane %v474, 2
    %v588 = vunpack.c.l.b16 %v426
    %v589 = vunpack.c.h.b16 %v426
    %v590 = vunpack.c.l.b16 %v427
    %v591 = vunpack.c.l.b16 %v428
    %v592 = vunpack.c.h.b16 %v428
    %v593 = vunpack.c.l.b16 %v429
    %v594 = vunpack.c.l.b16 %v430
    %v595 = vunpack.c.h.b16 %v430
    %v596 = vunpack.c.l.b16 %v431
    %v597 = vunpack.c.l.b16 %v432
    %v598 = vunpack.c.h.b16 %v432
    %v599 = vunpack.c.l.b16 %v433
    %v600 = vunpack.c.l.b16 %v434
    %v601 = vunpack.c.h.b16 %v434
    %v602 = vunpack.c.l.b16 %v435
    %v603 = vunpack.c.l.b16 %v436
    %v604 = vunpack.c.h.b16 %v436
    %v605 = vunpack.c.l.b16 %v437
    %v606 = vunpack.c.l.b16 %v438
    %v607 = vunpack.c.h.b16 %v438
    %v608 = vunpack.c.l.b16 %v439
    %v609 = vunpack.c.l.b16 %v440
    %v610 = vunpack.c.h.b16 %v440
    %v611 = vunpack.c.l.b16 %v441
    %v612 = vunpack.c.l.b16 %v442
    %v613 = vunpack.c.h.b16 %v442
    %v614 = vunpack.c.l.b16 %v443
    %v615 = vunpack.c.l.b16 %v444
    %v616 = vunpack.c.h.b16 %v444
    %v617 = vunpack.c.l.b16 %v445
    %v618 = vunpack.c.l.b16 %v446
    %v619 = vunpack.c.h.b16 %v446
    %v620 = vunpack.c.l.b16 %v447
    %v621 = vunpack.c.l.b16 %v448
    %v622 = vunpack.c.h.b16 %v448
    %v623 = vunpack.c.l.b16 %v449
    %v624 = vunpack.c.l.b16 %v450
    %v625 = vunpack.c.h.b16 %v450
    %v626 = vunpack.c.l.b16 %v451
    %v627 = vunpack.c.l.b16 %v452
    %v628 = vunpack.c.h.b16 %v452
    %v629 = vunpack.c.l.b16 %v453
    %v630 = vunpack.c.l.b16 %v454
    %v631 = vunpack.c.h.b16 %v454
    %v632 = vunpack.c.l.b16 %v455
    %v633 = vunpack.c.l.b16 %v456
    %v634 = vunpack.c.h.b16 %v456
    %v635 = vunpack.c.l.b16 %v457
    %v636 = vunpack.c.l.b16 %v458
    %v637 = vunpack.c.h.b16 %v458
    %v638 = vunpack.c.l.b16 %v459
    %v639 = vunpack.c.l.b16 %v460
    %v640 = vunpack.c.h.b16 %v460
    %v641 = vunpack.c.l.b16 %v461
    %v642 = vunpack.c.l.b16 %v462
    %v643 = vunpack.c.h.b16 %v462
    %v644 = vunpack.c.l.b16 %v463
    %v645 = vunpack.c.l.b16 %v464
    %v646 = vunpack.c.h.b16 %v464
    %v647 = vunpack.c.l.b16 %v465
    %v648 = vunpack.c.l.b16 %v466
    %v649 = vunpack.c.h.b16 %v466
    %v650 = vunpack.c.l.b16 %v467
    %v651 = vunpack.c.l.b16 %v468
    %v652 = vunpack.c.h.b16 %v468
    %v653 = vunpack.c.l.b16 %v469
    %v654 = vunpack.c.l.b16 %v470
    %v655 = vunpack.c.h.b16 %v470
    %v656 = vunpack.c.l.b16 %v471
    %v657 = vunpack.c.l.b16 %v472
    %v658 = vunpack.c.h.b16 %v472
    %v659 = vunpack.c.l.b16 %v473
    %v660 = vpack.c.b16 %v591, %v588
    %v661 = vpack.c.b16 %v592, %v589
    %v662 = vpack.c.b16 %v593, %v590
    %v663 = vpack.c.b16 %v597, %v594
    %v664 = vpack.c.b16 %v598, %v595
    %v665 = vpack.c.b16 %v599, %v596
    %v666 = vpack.c.b16 %v603, %v600
    %v667 = vpack.c.b16 %v604, %v601
    %v668 = vpack.c.b16 %v605, %v602
    %v669 = vpack.c.b16 %v609, %v606
    %v670 = vpack.c.b16 %v610, %v607
    %v671 = vpack.c.b16 %v611, %v608
    %v672 = vpack.c.b16 %v615, %v612
    %v673 = vpack.c.b16 %v616, %v613
    %v674 = vpack.c.b16 %v617, %v614
    %v675 = vpack.c.b16 %v621, %v618
    %v676 = vpack.c.b16 %v622, %v619
    %v677 = vpack.c.b16 %v623, %v620
    %v678 = vpack.c.b16 %v627, %v624
    %v679 = vpack.c.b16 %v628, %v625
    %v680 = vpack.c.b16 %v629, %v626
    %v681 = vpack.c.b16 %v633, %v630
    %v682 = vpack.c.b16 %v634, %v631
    %v683 = vpack.c.b16 %v635, %v632
    %v684 = vpack.c.b16 %v639, %v636
    %v685 = vpack.c.b16 %v640, %v637
    %v686 = vpack.c.b16 %v641, %v638
    %v687 = vpack.c.b16 %v645, %v642
    %v688 = vpack.c.b16 %v646, %v643
    %v689 = vpack.c.b16 %v647, %v644
    %v690 = vpack.c.b16 %v651, %v648
    %v691 = vpack.c.b16 %v652, %v649
    %v692 = vpack.c.b16 %v653, %v650
    %v693 = vpack.c.b16 %v657, %v654
    %v694 = vpack.c.b16 %v658, %v655
    %v695 = vpack.c.b16 %v659, %v656
    %v733 = vsel %vm524, %v530, 0
    %v736 = vsel %vm524, %v532, 0
    %738 = vmatpush.bf16.msra.mxu0 %v681
    %739 = vmatpush.bf16.msra.mxu0 %v678
    %740 = vmatpush.bf16.msra.mxu0 %v675
    %741 = vmatpush.bf16.msra.mxu0 %v672
    %742 = vmatpush.bf16.msra.mxu0 %v669
    %743 = vmatpush.bf16.msra.mxu0 %v666
    %744 = vmatpush.bf16.msra.mxu0 %v663
    %745 = vmatpush.bf16.msra.mxu0 %v660
    %746 = vmatmul.bf16.gmra.mxu0 %v529
    %v747 = vpop.f32.mrf.mxu0
    %v748 = vadd.f32 %v534, %v747
    %v749 = vpop.f32.mrf.mxu0
    %v750 = vadd.f32 %v534, %v749
    %751 = vmatmul.bf16.gmra.mxu0 %v531
    %v752 = vpop.f32.mrf.mxu0
    %v753 = vadd.f32 %v534, %v752
    %v754 = vpop.f32.mrf.mxu0
    %v755 = vadd.f32 %v534, %v754
    %756 = vdwg.mxu0
    %757 = vmatpush.bf16.msra.mxu0 0
    %758 = vmatpush.bf16.msra.mxu0 0
    %759 = vmatpush.bf16.msra.mxu0 0
    %760 = vmatpush.bf16.msra.mxu0 0
    %761 = vmatpush.bf16.msra.mxu0 %v693
    %762 = vmatpush.bf16.msra.mxu0 %v690
    %763 = vmatpush.bf16.msra.mxu0 %v687
    %764 = vmatpush.bf16.msra.mxu0 %v684
    %765 = vmatmul.bf16.gmra.mxu0 %v733
    %v766 = vpop.f32.mrf.mxu0
    %v767 = vadd.f32 %v748, %v766
    %v768 = vpop.f32.mrf.mxu0
    %v769 = vadd.f32 %v750, %v768
    %770 = vmatmul.bf16.gmra.mxu0 %v736
    %v771 = vpop.f32.mrf.mxu0
    %v772 = vadd.f32 %v753, %v771
    %v773 = vpop.f32.mrf.mxu0
    %v774 = vadd.f32 %v755, %v773
    %775 = vdwg.mxu0
    %776 = vmatpush.bf16.msra.mxu0 %v682
    %777 = vmatpush.bf16.msra.mxu0 %v679
    %778 = vmatpush.bf16.msra.mxu0 %v676
    %779 = vmatpush.bf16.msra.mxu0 %v673
    %780 = vmatpush.bf16.msra.mxu0 %v670
    %781 = vmatpush.bf16.msra.mxu0 %v667
    %782 = vmatpush.bf16.msra.mxu0 %v664
    %783 = vmatpush.bf16.msra.mxu0 %v661
    %784 = vmatmul.bf16.gmra.mxu0 %v529
    %v785 = vpop.f32.mrf.mxu0
    %v786 = vadd.f32 %v535, %v785
    %v787 = vpop.f32.mrf.mxu0
    %v788 = vadd.f32 %v535, %v787
    %789 = vmatmul.bf16.gmra.mxu0 %v531
    %v790 = vpop.f32.mrf.mxu0
    %v791 = vadd.f32 %v535, %v790
    %v792 = vpop.f32.mrf.mxu0
    %v793 = vadd.f32 %v535, %v792
    %794 = vdwg.mxu0
    %795 = vmatpush.bf16.msra.mxu0 0
    %796 = vmatpush.bf16.msra.mxu0 0
    %797 = vmatpush.bf16.msra.mxu0 0
    %798 = vmatpush.bf16.msra.mxu0 0
    %799 = vmatpush.bf16.msra.mxu0 %v694
    %800 = vmatpush.bf16.msra.mxu0 %v691
    %801 = vmatpush.bf16.msra.mxu0 %v688
    %802 = vmatpush.bf16.msra.mxu0 %v685
    %803 = vmatmul.bf16.gmra.mxu0 %v733
    %v804 = vpop.f32.mrf.mxu0
    %v805 = vadd.f32 %v786, %v804
    %v806 = vpop.f32.mrf.mxu0
    %v807 = vadd.f32 %v788, %v806
    %808 = vmatmul.bf16.gmra.mxu0 %v736
    %v809 = vpop.f32.mrf.mxu0
    %v810 = vadd.f32 %v791, %v809
    %v811 = vpop.f32.mrf.mxu0
    %v812 = vadd.f32 %v793, %v811
    %813 = vdwg.mxu0
    %814 = vmatpush.bf16.msra.mxu0 %v683
    %815 = vmatpush.bf16.msra.mxu0 %v680
    %816 = vmatpush.bf16.msra.mxu0 %v677
    %817 = vmatpush.bf16.msra.mxu0 %v674
    %818 = vmatpush.bf16.msra.mxu0 %v671
    %819 = vmatpush.bf16.msra.mxu0 %v668
    %820 = vmatpush.bf16.msra.mxu0 %v665
    %821 = vmatpush.bf16.msra.mxu0 %v662
    %822 = vmatmul.bf16.gmra.mxu0 %v529
    %v823 = vpop.f32.mrf.mxu0
    %v824 = vadd.f32 %v536, %v823
    %v825 = vpop.f32.mrf.mxu0
    %v826 = vadd.f32 %v536, %v825
    %827 = vmatmul.bf16.gmra.mxu0 %v531
    %v828 = vpop.f32.mrf.mxu0
    %v829 = vadd.f32 %v536, %v828
    %v830 = vpop.f32.mrf.mxu0
    %v831 = vadd.f32 %v536, %v830
    %832 = vdwg.mxu0
    %833 = vmatpush.bf16.msra.mxu0 0
    %834 = vmatpush.bf16.msra.mxu0 0
    %835 = vmatpush.bf16.msra.mxu0 0
    %836 = vmatpush.bf16.msra.mxu0 0
    %837 = vmatpush.bf16.msra.mxu0 %v695
    %838 = vmatpush.bf16.msra.mxu0 %v692
    %839 = vmatpush.bf16.msra.mxu0 %v689
    %840 = vmatpush.bf16.msra.mxu0 %v686
    %841 = vmatmul.bf16.gmra.mxu0 %v733
    %v842 = vpop.f32.mrf.mxu0
    %v843 = vadd.f32 %v824, %v842
    %v844 = vpop.f32.mrf.mxu0
    %v845 = vadd.f32 %v826, %v844
    %846 = vmatmul.bf16.gmra.mxu0 %v736
    %v847 = vpop.f32.mrf.mxu0
    %v848 = vadd.f32 %v829, %v847
    %v849 = vpop.f32.mrf.mxu0
    %v850 = vadd.f32 %v831, %v849
    %851 = vdwg.mxu0
    %v852 = vsub.f32 0.0, %v805
    %v853 = vsub.f32 0.0, %v807
    %v854 = vsub.f32 0.0, %v810
    %v855 = vsub.f32 0.0, %v812
    %v856 = vmul.f32 %v852, 1.442695
    %v857 = vpow.pop %v856
    %v858 = vmul.f32 %v853, 1.442695
    %v859 = vpow.pop %v858
    %v860 = vmul.f32 %v854, 1.442695
    %v861 = vpow.pop %v860
    %v862 = vmul.f32 %v855, 1.442695
    %v863 = vpow.pop %v862
    %v864 = vadd.f32 %v857, 1.0
    %v865 = vadd.f32 %v859, 1.0
    %v866 = vadd.f32 %v861, 1.0
    %v867 = vadd.f32 %v863, 1.0
    %v868 = vrcp.pop %v864
    %v869 = vrcp.pop %v865
    %v870 = vrcp.pop %v866
    %v871 = vrcp.pop %v867
    %v872 = vadd.f32 %v767, %v868
    %v873 = vadd.f32 %v769, %v869
    %v874 = vadd.f32 %v772, %v870
    %v875 = vadd.f32 %v774, %v871
    %v876 = vadd.f32 %v872, %v843
    %v877 = vadd.f32 %v873, %v845
    %v878 = vadd.f32 %v874, %v848
    %v879 = vadd.f32 %v875, %v850
    %v880 = vmax.f32 %v876, 0.0
    %v881 = vmax.f32 %v877, 0.0
    %v882 = vmax.f32 %v878, 0.0
    %v883 = vmax.f32 %v879, 0.0
    %v884 = vld [vmem:[#allocation12] sm:$0xff]
    %v885 = vld [vmem:[#allocation12 + $0x8] sm:$0xff]
    %v886 = vld [vmem:[#allocation12 + $0x10] sm:$0xff]
    %v887 = vld [vmem:[#allocation12 + $0x18] sm:$0xff]
    %v888 = vld [vmem:[#allocation12 + $0x20] sm:$0xff]
    %v889 = vld [vmem:[#allocation12 + $0x28] sm:$0xff]
    %v890 = vld [vmem:[#allocation12 + $0x30] sm:$0xff]
    %v891 = vld [vmem:[#allocation12 + $0x38] sm:$0xff]
    %v892 = vld [vmem:[#allocation12 + $0x40] sm:$0xff]
    %v893 = vld [vmem:[#allocation12 + $0x48] sm:$0xff]
    %v894 = vld [vmem:[#allocation12 + $0x50] sm:$0xff]
    %v895 = vld [vmem:[#allocation12 + $0x58] sm:$0xff]
    %v896 = vld [vmem:[#allocation12 + $0x60] sm:$0xff]
    %v897 = vld [vmem:[#allocation12 + $0x68] sm:$0xff]
    %v898 = vld [vmem:[#allocation12 + $0x70] sm:$0xff]
    %v899 = vld [vmem:[#allocation12 + $0x78] sm:$0xff]
    %v900 = vld [vmem:[#allocation12 + $0x80] sm:$0xff]
    %v901 = vld [vmem:[#allocation12 + $0x88] sm:$0xff]
    %v902 = vld [vmem:[#allocation12 + $0x90] sm:$0xff]
    %v903 = vld [vmem:[#allocation12 + $0x98] sm:$0xff]
    %v904 = vld [vmem:[#allocation12 + $0xa0] sm:$0xff]
    %v905 = vld [vmem:[#allocation12 + $0xa8] sm:$0xff]
    %v906 = vld [vmem:[#allocation12 + $0xb0] sm:$0xff]
    %v907 = vld [vmem:[#allocation12 + $0xb8] sm:$0xff]
    %v908 = vld [vmem:[#allocation12 + $0xc0] sm:$0xff]
    %v909 = vld [vmem:[#allocation12 + $0xc8] sm:$0xff]
    %v910 = vld [vmem:[#allocation12 + $0xd0] sm:$0xff]
    %v911 = vld [vmem:[#allocation12 + $0xd8] sm:$0xff]
    %v912 = vld [vmem:[#allocation12 + $0xe0] sm:$0xff]
    %v913 = vld [vmem:[#allocation12 + $0xe8] sm:$0xff]
    %v914 = vld [vmem:[#allocation12 + $0xf0] sm:$0xff]
    %v915 = vld [vmem:[#allocation12 + $0xf8] sm:$0xff]
    %v916 = vpack.c.bf16 %v881, %v880
    %v917 = vpack.c.bf16 %v883, %v882
    %v950 = vunpack.c.l.b16 %v884
    %v951 = vunpack.c.h.b16 %v884
    %v952 = vunpack.c.l.b16 %v885
    %v953 = vunpack.c.h.b16 %v885
    %v954 = vunpack.c.l.b16 %v886
    %v955 = vunpack.c.h.b16 %v886
    %v956 = vunpack.c.l.b16 %v887
    %v957 = vunpack.c.h.b16 %v887
    %v958 = vunpack.c.l.b16 %v888
    %v959 = vunpack.c.h.b16 %v888
    %v960 = vunpack.c.l.b16 %v889
    %v961 = vunpack.c.h.b16 %v889
    %v962 = vunpack.c.l.b16 %v890
    %v963 = vunpack.c.h.b16 %v890
    %v964 = vunpack.c.l.b16 %v891
    %v965 = vunpack.c.h.b16 %v891
    %v966 = vunpack.c.l.b16 %v892
    %v967 = vunpack.c.h.b16 %v892
    %v968 = vunpack.c.l.b16 %v893
    %v969 = vunpack.c.h.b16 %v893
    %v970 = vunpack.c.l.b16 %v894
    %v971 = vunpack.c.h.b16 %v894
    %v972 = vunpack.c.l.b16 %v895
    %v973 = vunpack.c.h.b16 %v895
    %v974 = vunpack.c.l.b16 %v896
    %v975 = vunpack.c.h.b16 %v896
    %v976 = vunpack.c.l.b16 %v897
    %v977 = vunpack.c.h.b16 %v897
    %v978 = vunpack.c.l.b16 %v898
    %v979 = vunpack.c.h.b16 %v898
    %v980 = vunpack.c.l.b16 %v899
    %v981 = vunpack.c.h.b16 %v899
    %v982 = vunpack.c.l.b16 %v900
    %v983 = vunpack.c.h.b16 %v900
    %v984 = vunpack.c.l.b16 %v901
    %v985 = vunpack.c.h.b16 %v901
    %v986 = vunpack.c.l.b16 %v902
    %v987 = vunpack.c.h.b16 %v902
    %v988 = vunpack.c.l.b16 %v903
    %v989 = vunpack.c.h.b16 %v903
    %v990 = vunpack.c.l.b16 %v904
    %v991 = vunpack.c.h.b16 %v904
    %v992 = vunpack.c.l.b16 %v905
    %v993 = vunpack.c.h.b16 %v905
    %v994 = vunpack.c.l.b16 %v906
    %v995 = vunpack.c.h.b16 %v906
    %v996 = vunpack.c.l.b16 %v907
    %v997 = vunpack.c.h.b16 %v907
    %v998 = vunpack.c.l.b16 %v908
    %v999 = vunpack.c.h.b16 %v908
    %v1000 = vunpack.c.l.b16 %v909
    %v1001 = vunpack.c.h.b16 %v909
    %v1002 = vunpack.c.l.b16 %v910
    %v1003 = vunpack.c.h.b16 %v910
    %v1004 = vunpack.c.l.b16 %v911
    %v1005 = vunpack.c.h.b16 %v911
    %v1006 = vunpack.c.l.b16 %v912
    %v1007 = vunpack.c.h.b16 %v912
    %v1008 = vunpack.c.l.b16 %v913
    %v1009 = vunpack.c.h.b16 %v913
    %v1010 = vunpack.c.l.b16 %v914
    %v1011 = vunpack.c.h.b16 %v914
    %v1012 = vunpack.c.l.b16 %v915
    %v1013 = vunpack.c.h.b16 %v915
    %v1014 = vpack.c.b16 %v954, %v950
    %v1015 = vpack.c.b16 %v955, %v951
    %v1016 = vpack.c.b16 %v956, %v952
    %v1017 = vpack.c.b16 %v957, %v953
    %v1018 = vpack.c.b16 %v962, %v958
    %v1019 = vpack.c.b16 %v963, %v959
    %v1020 = vpack.c.b16 %v964, %v960
    %v1021 = vpack.c.b16 %v965, %v961
    %v1022 = vpack.c.b16 %v970, %v966
    %v1023 = vpack.c.b16 %v971, %v967
    %v1024 = vpack.c.b16 %v972, %v968
    %v1025 = vpack.c.b16 %v973, %v969
    %v1026 = vpack.c.b16 %v978, %v974
    %v1027 = vpack.c.b16 %v979, %v975
    %v1028 = vpack.c.b16 %v980, %v976
    %v1029 = vpack.c.b16 %v981, %v977
    %v1030 = vpack.c.b16 %v986, %v982
    %v1031 = vpack.c.b16 %v987, %v983
    %v1032 = vpack.c.b16 %v988, %v984
    %v1033 = vpack.c.b16 %v989, %v985
    %v1034 = vpack.c.b16 %v994, %v990
    %v1035 = vpack.c.b16 %v995, %v991
    %v1036 = vpack.c.b16 %v996, %v992
    %v1037 = vpack.c.b16 %v997, %v993
    %v1038 = vpack.c.b16 %v1002, %v998
    %v1039 = vpack.c.b16 %v1003, %v999
    %v1040 = vpack.c.b16 %v1004, %v1000
    %v1041 = vpack.c.b16 %v1005, %v1001
    %v1042 = vpack.c.b16 %v1010, %v1006
    %v1043 = vpack.c.b16 %v1011, %v1007
    %v1044 = vpack.c.b16 %v1012, %v1008
    %v1045 = vpack.c.b16 %v1013, %v1009
    %1078 = vmatpush.bf16.msra.mxu0 %v1042
    %1079 = vmatpush.bf16.msra.mxu0 %v1038
    %1080 = vmatpush.bf16.msra.mxu0 %v1034
    %1081 = vmatpush.bf16.msra.mxu0 %v1030
    %1082 = vmatpush.bf16.msra.mxu0 %v1026
    %1083 = vmatpush.bf16.msra.mxu0 %v1022
    %1084 = vmatpush.bf16.msra.mxu0 %v1018
    %1085 = vmatpush.bf16.msra.mxu0 %v1014
    %1086 = vmatmul.bf16.gmra.mxu0 %v916
    %v1087 = vpop.f32.mrf.mxu0
    %v1088 = vadd.f32 0.0, %v1087
    %v1089 = vpop.f32.mrf.mxu0
    %v1090 = vadd.f32 0.0, %v1089
    %1091 = vmatmul.bf16.gmra.mxu0 %v917
    %v1092 = vpop.f32.mrf.mxu0
    %v1093 = vadd.f32 0.0, %v1092
    %v1094 = vpop.f32.mrf.mxu0
    %v1095 = vadd.f32 0.0, %v1094
    %1096 = vdwg.mxu0
    %1097 = vmatpush.bf16.msra.mxu0 %v1043
    %1098 = vmatpush.bf16.msra.mxu0 %v1039
    %1099 = vmatpush.bf16.msra.mxu0 %v1035
    %1100 = vmatpush.bf16.msra.mxu0 %v1031
    %1101 = vmatpush.bf16.msra.mxu0 %v1027
    %1102 = vmatpush.bf16.msra.mxu0 %v1023
    %1103 = vmatpush.bf16.msra.mxu0 %v1019
    %1104 = vmatpush.bf16.msra.mxu0 %v1015
    %1105 = vmatmul.bf16.gmra.mxu0 %v916
    %v1106 = vpop.f32.mrf.mxu0
    %v1107 = vadd.f32 0.0, %v1106
    %v1108 = vpop.f32.mrf.mxu0
    %v1109 = vadd.f32 0.0, %v1108
    %1110 = vmatmul.bf16.gmra.mxu0 %v917
    %v1111 = vpop.f32.mrf.mxu0
    %v1112 = vadd.f32 0.0, %v1111
    %v1113 = vpop.f32.mrf.mxu0
    %v1114 = vadd.f32 0.0, %v1113
    %1115 = vdwg.mxu0
    %1116 = vmatpush.bf16.msra.mxu0 %v1044
    %1117 = vmatpush.bf16.msra.mxu0 %v1040
    %1118 = vmatpush.bf16.msra.mxu0 %v1036
    %1119 = vmatpush.bf16.msra.mxu0 %v1032
    %1120 = vmatpush.bf16.msra.mxu0 %v1028
    %1121 = vmatpush.bf16.msra.mxu0 %v1024
    %1122 = vmatpush.bf16.msra.mxu0 %v1020
    %1123 = vmatpush.bf16.msra.mxu0 %v1016
    %1124 = vmatmul.bf16.gmra.mxu0 %v916
    %v1125 = vpop.f32.mrf.mxu0
    %v1126 = vadd.f32 0.0, %v1125
    %v1127 = vpop.f32.mrf.mxu0
    %v1128 = vadd.f32 0.0, %v1127
    %1129 = vmatmul.bf16.gmra.mxu0 %v917
    %v1130 = vpop.f32.mrf.mxu0
    %v1131 = vadd.f32 0.0, %v1130
    %v1132 = vpop.f32.mrf.mxu0
    %v1133 = vadd.f32 0.0, %v1132
    %1134 = vdwg.mxu0
    %1135 = vmatpush.bf16.msra.mxu0 %v1045
    %1136 = vmatpush.bf16.msra.mxu0 %v1041
    %1137 = vmatpush.bf16.msra.mxu0 %v1037
    %1138 = vmatpush.bf16.msra.mxu0 %v1033
    %1139 = vmatpush.bf16.msra.mxu0 %v1029
    %1140 = vmatpush.bf16.msra.mxu0 %v1025
    %1141 = vmatpush.bf16.msra.mxu0 %v1021
    %1142 = vmatpush.bf16.msra.mxu0 %v1017
    %1143 = vmatmul.bf16.gmra.mxu0 %v916
    %v1144 = vpop.f32.mrf.mxu0
    %v1145 = vadd.f32 0.0, %v1144
    %v1146 = vpop.f32.mrf.mxu0
    %v1147 = vadd.f32 0.0, %v1146
    %1148 = vmatmul.bf16.gmra.mxu0 %v917
    %v1149 = vpop.f32.mrf.mxu0
    %v1150 = vadd.f32 0.0, %v1149
    %v1151 = vpop.f32.mrf.mxu0
    %v1152 = vadd.f32 0.0, %v1151
    %1153 = vdwg.mxu0
    %v1154 = vmax.f32 %v1088, 0.0
    %v1155 = vmax.f32 %v1107, 0.0
    %v1156 = vmax.f32 %v1126, 0.0
    %v1157 = vmax.f32 %v1145, 0.0
    %v1158 = vmax.f32 %v1090, 0.0
    %v1159 = vmax.f32 %v1109, 0.0
    %v1160 = vmax.f32 %v1128, 0.0
    %v1161 = vmax.f32 %v1147, 0.0
    %v1162 = vmax.f32 %v1093, 0.0
    %v1163 = vmax.f32 %v1112, 0.0
    %v1164 = vmax.f32 %v1131, 0.0
    %v1165 = vmax.f32 %v1150, 0.0
    %v1166 = vmax.f32 %v1095, 0.0
    %v1167 = vmax.f32 %v1114, 0.0
    %v1168 = vmax.f32 %v1133, 0.0
    %v1169 = vmax.f32 %v1152, 0.0
    %s1170 = smul.u32 4, 192
    %s1171 = smul.u32 %s1170, 3
    %s1172 = sshll.u32 %s1171, 4
    %1173 = dma.done [#allocation7], %s1172
    %v1174 = vld [vmem:[#allocation2] sm:$0xff]
    %v1175 = vld [vmem:[#allocation2 + $0x8] sm:$0xf]
    %v1176 = vld [vmem:[#allocation2 + $0xc] sm:$0xff]
    %v1177 = vld [vmem:[#allocation2 + $0x14] sm:$0xf]
    %v1178 = vld [vmem:[#allocation2 + $0x18] sm:$0xff]
    %v1179 = vld [vmem:[#allocation2 + $0x20] sm:$0xf]
    %v1180 = vld [vmem:[#allocation2 + $0x24] sm:$0xff]
    %v1181 = vld [vmem:[#allocation2 + $0x2c] sm:$0xf]
    %v1182 = vld [vmem:[#allocation2 + $0x30] sm:$0xff]
    %v1183 = vld [vmem:[#allocation2 + $0x38] sm:$0xf]
    %v1184 = vld [vmem:[#allocation2 + $0x3c] sm:$0xff]
    %v1185 = vld [vmem:[#allocation2 + $0x44] sm:$0xf]
    %v1186 = vld [vmem:[#allocation2 + $0x48] sm:$0xff]
    %v1187 = vld [vmem:[#allocation2 + $0x50] sm:$0xf]
    %v1188 = vld [vmem:[#allocation2 + $0x54] sm:$0xff]
    %v1189 = vld [vmem:[#allocation2 + $0x5c] sm:$0xf]
    %v1190 = vld [vmem:[#allocation2 + $0x60] sm:$0xff]
    %v1191 = vld [vmem:[#allocation2 + $0x68] sm:$0xf]
    %v1192 = vld [vmem:[#allocation2 + $0x6c] sm:$0xff]
    %v1193 = vld [vmem:[#allocation2 + $0x74] sm:$0xf]
    %v1194 = vld [vmem:[#allocation2 + $0x78] sm:$0xff]
    %v1195 = vld [vmem:[#allocation2 + $0x80] sm:$0xf]
    %v1196 = vld [vmem:[#allocation2 + $0x84] sm:$0xff]
    %v1197 = vld [vmem:[#allocation2 + $0x8c] sm:$0xf]
    %v1198 = vld [vmem:[#allocation2 + $0x90] sm:$0xff]
    %v1199 = vld [vmem:[#allocation2 + $0x98] sm:$0xf]
    %v1200 = vld [vmem:[#allocation2 + $0x9c] sm:$0xff]
    %v1201 = vld [vmem:[#allocation2 + $0xa4] sm:$0xf]
    %v1202 = vld [vmem:[#allocation2 + $0xa8] sm:$0xff]
    %v1203 = vld [vmem:[#allocation2 + $0xb0] sm:$0xf]
    %v1204 = vld [vmem:[#allocation2 + $0xb4] sm:$0xff]
    %v1205 = vld [vmem:[#allocation2 + $0xbc] sm:$0xf]
    %v1206 = vld [vmem:[#allocation2 + $0xc0] sm:$0xff]
    %v1207 = vld [vmem:[#allocation2 + $0xc8] sm:$0xf]
    %v1208 = vld [vmem:[#allocation2 + $0xcc] sm:$0xff]
    %v1209 = vld [vmem:[#allocation2 + $0xd4] sm:$0xf]
    %v1210 = vld [vmem:[#allocation2 + $0xd8] sm:$0xff]
    %v1211 = vld [vmem:[#allocation2 + $0xe0] sm:$0xf]
    %v1212 = vld [vmem:[#allocation2 + $0xe4] sm:$0xff]
    %v1213 = vld [vmem:[#allocation2 + $0xec] sm:$0xf]
    %v1214 = vld [vmem:[#allocation2 + $0xf0] sm:$0xff]
    %v1215 = vld [vmem:[#allocation2 + $0xf8] sm:$0xf]
    %v1216 = vld [vmem:[#allocation2 + $0xfc] sm:$0xff]
    %v1217 = vld [vmem:[#allocation2 + $0x104] sm:$0xf]
    %v1218 = vld [vmem:[#allocation2 + $0x108] sm:$0xff]
    %v1219 = vld [vmem:[#allocation2 + $0x110] sm:$0xf]
    %v1220 = vld [vmem:[#allocation2 + $0x114] sm:$0xff]
    %v1221 = vld [vmem:[#allocation2 + $0x11c] sm:$0xf]
    %v1222 = vld [vmem:[#allocation2 + $0x120] sm:$0xff]
    %v1223 = vld [vmem:[#allocation2 + $0x128] sm:$0xf]
    %v1224 = vld [vmem:[#allocation2 + $0x12c] sm:$0xff]
    %v1225 = vld [vmem:[#allocation2 + $0x134] sm:$0xf]
    %v1226 = vld [vmem:[#allocation2 + $0x138] sm:$0xff]
    %v1227 = vld [vmem:[#allocation2 + $0x140] sm:$0xf]
    %v1228 = vld [vmem:[#allocation2 + $0x144] sm:$0xff]
    %v1229 = vld [vmem:[#allocation2 + $0x14c] sm:$0xf]
    %v1230 = vld [vmem:[#allocation2 + $0x150] sm:$0xff]
    %v1231 = vld [vmem:[#allocation2 + $0x158] sm:$0xf]
    %v1232 = vld [vmem:[#allocation2 + $0x15c] sm:$0xff]
    %v1233 = vld [vmem:[#allocation2 + $0x164] sm:$0xf]
    %v1234 = vld [vmem:[#allocation2 + $0x168] sm:$0xff]
    %v1235 = vld [vmem:[#allocation2 + $0x170] sm:$0xf]
    %v1236 = vld [vmem:[#allocation2 + $0x174] sm:$0xff]
    %v1237 = vld [vmem:[#allocation2 + $0x17c] sm:$0xf]
    %v1238 = vld [vmem:[#allocation2 + $0x180] sm:$0xff]
    %v1239 = vld [vmem:[#allocation2 + $0x188] sm:$0xf]
    %v1240 = vld [vmem:[#allocation2 + $0x18c] sm:$0xff]
    %v1241 = vld [vmem:[#allocation2 + $0x194] sm:$0xf]
    %v1242 = vld [vmem:[#allocation2 + $0x198] sm:$0xff]
    %v1243 = vld [vmem:[#allocation2 + $0x1a0] sm:$0xf]
    %v1244 = vld [vmem:[#allocation2 + $0x1a4] sm:$0xff]
    %v1245 = vld [vmem:[#allocation2 + $0x1ac] sm:$0xf]
    %v1246 = vld [vmem:[#allocation2 + $0x1b0] sm:$0xff]
    %v1247 = vld [vmem:[#allocation2 + $0x1b8] sm:$0xf]
    %v1248 = vld [vmem:[#allocation2 + $0x1bc] sm:$0xff]
    %v1249 = vld [vmem:[#allocation2 + $0x1c4] sm:$0xf]
    %v1250 = vld [vmem:[#allocation2 + $0x1c8] sm:$0xff]
    %v1251 = vld [vmem:[#allocation2 + $0x1d0] sm:$0xf]
    %v1252 = vld [vmem:[#allocation2 + $0x1d4] sm:$0xff]
    %v1253 = vld [vmem:[#allocation2 + $0x1dc] sm:$0xf]
    %v1254 = vld [vmem:[#allocation2 + $0x1e0] sm:$0xff]
    %v1255 = vld [vmem:[#allocation2 + $0x1e8] sm:$0xf]
    %v1256 = vld [vmem:[#allocation2 + $0x1ec] sm:$0xff]
    %v1257 = vld [vmem:[#allocation2 + $0x1f4] sm:$0xf]
    %v1258 = vld [vmem:[#allocation2 + $0x1f8] sm:$0xff]
    %v1259 = vld [vmem:[#allocation2 + $0x200] sm:$0xf]
    %v1260 = vld [vmem:[#allocation2 + $0x204] sm:$0xff]
    %v1261 = vld [vmem:[#allocation2 + $0x20c] sm:$0xf]
    %v1262 = vld [vmem:[#allocation2 + $0x210] sm:$0xff]
    %v1263 = vld [vmem:[#allocation2 + $0x218] sm:$0xf]
    %v1264 = vld [vmem:[#allocation2 + $0x21c] sm:$0xff]
    %v1265 = vld [vmem:[#allocation2 + $0x224] sm:$0xf]
    %v1266 = vld [vmem:[#allocation2 + $0x228] sm:$0xff]
    %v1267 = vld [vmem:[#allocation2 + $0x230] sm:$0xf]
    %v1268 = vld [vmem:[#allocation2 + $0x234] sm:$0xff]
    %v1269 = vld [vmem:[#allocation2 + $0x23c] sm:$0xf]
    %v1270 = vld [vmem:[#allocation2 + $0x240] sm:$0xff]
    %v1271 = vld [vmem:[#allocation2 + $0x248] sm:$0xf]
    %v1272 = vld [vmem:[#allocation2 + $0x24c] sm:$0xff]
    %v1273 = vld [vmem:[#allocation2 + $0x254] sm:$0xf]
    %v1274 = vld [vmem:[#allocation2 + $0x258] sm:$0xff]
    %v1275 = vld [vmem:[#allocation2 + $0x260] sm:$0xf]
    %v1276 = vld [vmem:[#allocation2 + $0x264] sm:$0xff]
    %v1277 = vld [vmem:[#allocation2 + $0x26c] sm:$0xf]
    %v1278 = vld [vmem:[#allocation2 + $0x270] sm:$0xff]
    %v1279 = vld [vmem:[#allocation2 + $0x278] sm:$0xf]
    %v1280 = vld [vmem:[#allocation2 + $0x27c] sm:$0xff]
    %v1281 = vld [vmem:[#allocation2 + $0x284] sm:$0xf]
    %v1282 = vld [vmem:[#allocation2 + $0x288] sm:$0xff]
    %v1283 = vld [vmem:[#allocation2 + $0x290] sm:$0xf]
    %v1284 = vld [vmem:[#allocation2 + $0x294] sm:$0xff]
    %v1285 = vld [vmem:[#allocation2 + $0x29c] sm:$0xf]
    %v1286 = vld [vmem:[#allocation2 + $0x2a0] sm:$0xff]
    %v1287 = vld [vmem:[#allocation2 + $0x2a8] sm:$0xf]
    %v1288 = vld [vmem:[#allocation2 + $0x2ac] sm:$0xff]
    %v1289 = vld [vmem:[#allocation2 + $0x2b4] sm:$0xf]
    %v1290 = vld [vmem:[#allocation2 + $0x2b8] sm:$0xff]
    %v1291 = vld [vmem:[#allocation2 + $0x2c0] sm:$0xf]
    %v1292 = vld [vmem:[#allocation2 + $0x2c4] sm:$0xff]
    %v1293 = vld [vmem:[#allocation2 + $0x2cc] sm:$0xf]
    %v1294 = vld [vmem:[#allocation2 + $0x2d0] sm:$0xff]
    %v1295 = vld [vmem:[#allocation2 + $0x2d8] sm:$0xf]
    %v1296 = vld [vmem:[#allocation2 + $0x2dc] sm:$0xff]
    %v1297 = vld [vmem:[#allocation2 + $0x2e4] sm:$0xf]
    %v1298 = vld [vmem:[#allocation2 + $0x2e8] sm:$0xff]
    %v1299 = vld [vmem:[#allocation2 + $0x2f0] sm:$0xf]
    %v1300 = vld [vmem:[#allocation2 + $0x2f4] sm:$0xff]
    %v1301 = vld [vmem:[#allocation2 + $0x2fc] sm:$0xf]
    %v1302 = vld [vmem:[#allocation2 + $0x300] sm:$0xff]
    %v1303 = vld [vmem:[#allocation2 + $0x308] sm:$0xf]
    %v1304 = vld [vmem:[#allocation2 + $0x30c] sm:$0xff]
    %v1305 = vld [vmem:[#allocation2 + $0x314] sm:$0xf]
    %v1306 = vld [vmem:[#allocation2 + $0x318] sm:$0xff]
    %v1307 = vld [vmem:[#allocation2 + $0x320] sm:$0xf]
    %v1308 = vld [vmem:[#allocation2 + $0x324] sm:$0xff]
    %v1309 = vld [vmem:[#allocation2 + $0x32c] sm:$0xf]
    %v1310 = vld [vmem:[#allocation2 + $0x330] sm:$0xff]
    %v1311 = vld [vmem:[#allocation2 + $0x338] sm:$0xf]
    %v1312 = vld [vmem:[#allocation2 + $0x33c] sm:$0xff]
    %v1313 = vld [vmem:[#allocation2 + $0x344] sm:$0xf]
    %v1314 = vld [vmem:[#allocation2 + $0x348] sm:$0xff]
    %v1315 = vld [vmem:[#allocation2 + $0x350] sm:$0xf]
    %v1316 = vld [vmem:[#allocation2 + $0x354] sm:$0xff]
    %v1317 = vld [vmem:[#allocation2 + $0x35c] sm:$0xf]
    %v1318 = vld [vmem:[#allocation2 + $0x360] sm:$0xff]
    %v1319 = vld [vmem:[#allocation2 + $0x368] sm:$0xf]
    %v1320 = vld [vmem:[#allocation2 + $0x36c] sm:$0xff]
    %v1321 = vld [vmem:[#allocation2 + $0x374] sm:$0xf]
    %v1322 = vld [vmem:[#allocation2 + $0x378] sm:$0xff]
    %v1323 = vld [vmem:[#allocation2 + $0x380] sm:$0xf]
    %v1324 = vld [vmem:[#allocation2 + $0x384] sm:$0xff]
    %v1325 = vld [vmem:[#allocation2 + $0x38c] sm:$0xf]
    %v1326 = vld [vmem:[#allocation2 + $0x390] sm:$0xff]
    %v1327 = vld [vmem:[#allocation2 + $0x398] sm:$0xf]
    %v1328 = vld [vmem:[#allocation2 + $0x39c] sm:$0xff]
    %v1329 = vld [vmem:[#allocation2 + $0x3a4] sm:$0xf]
    %v1330 = vld [vmem:[#allocation2 + $0x3a8] sm:$0xff]
    %v1331 = vld [vmem:[#allocation2 + $0x3b0] sm:$0xf]
    %v1332 = vld [vmem:[#allocation2 + $0x3b4] sm:$0xff]
    %v1333 = vld [vmem:[#allocation2 + $0x3bc] sm:$0xf]
    %v1334 = vld [vmem:[#allocation2 + $0x3c0] sm:$0xff]
    %v1335 = vld [vmem:[#allocation2 + $0x3c8] sm:$0xf]
    %v1336 = vld [vmem:[#allocation2 + $0x3cc] sm:$0xff]
    %v1337 = vld [vmem:[#allocation2 + $0x3d4] sm:$0xf]
    %v1338 = vld [vmem:[#allocation2 + $0x3d8] sm:$0xff]
    %v1339 = vld [vmem:[#allocation2 + $0x3e0] sm:$0xf]
    %v1340 = vld [vmem:[#allocation2 + $0x3e4] sm:$0xff]
    %v1341 = vld [vmem:[#allocation2 + $0x3ec] sm:$0xf]
    %v1342 = vld [vmem:[#allocation2 + $0x3f0] sm:$0xff]
    %v1343 = vld [vmem:[#allocation2 + $0x3f8] sm:$0xf]
    %v1344 = vld [vmem:[#allocation2 + $0x3fc] sm:$0xff]
    %v1345 = vld [vmem:[#allocation2 + $0x404] sm:$0xf]
    %v1346 = vld [vmem:[#allocation2 + $0x408] sm:$0xff]
    %v1347 = vld [vmem:[#allocation2 + $0x410] sm:$0xf]
    %v1348 = vld [vmem:[#allocation2 + $0x414] sm:$0xff]
    %v1349 = vld [vmem:[#allocation2 + $0x41c] sm:$0xf]
    %v1350 = vld [vmem:[#allocation2 + $0x420] sm:$0xff]
    %v1351 = vld [vmem:[#allocation2 + $0x428] sm:$0xf]
    %v1352 = vld [vmem:[#allocation2 + $0x42c] sm:$0xff]
    %v1353 = vld [vmem:[#allocation2 + $0x434] sm:$0xf]
    %v1354 = vld [vmem:[#allocation2 + $0x438] sm:$0xff]
    %v1355 = vld [vmem:[#allocation2 + $0x440] sm:$0xf]
    %v1356 = vld [vmem:[#allocation2 + $0x444] sm:$0xff]
    %v1357 = vld [vmem:[#allocation2 + $0x44c] sm:$0xf]
    %v1358 = vld [vmem:[#allocation2 + $0x450] sm:$0xff]
    %v1359 = vld [vmem:[#allocation2 + $0x458] sm:$0xf]
    %v1360 = vld [vmem:[#allocation2 + $0x45c] sm:$0xff]
    %v1361 = vld [vmem:[#allocation2 + $0x464] sm:$0xf]
    %v1362 = vld [vmem:[#allocation2 + $0x468] sm:$0xff]
    %v1363 = vld [vmem:[#allocation2 + $0x470] sm:$0xf]
    %v1364 = vld [vmem:[#allocation2 + $0x474] sm:$0xff]
    %v1365 = vld [vmem:[#allocation2 + $0x47c] sm:$0xf]
    %v1366 = vld [vmem:[#allocation2 + $0x480] sm:$0xff]
    %v1367 = vld [vmem:[#allocation2 + $0x488] sm:$0xf]
    %v1368 = vld [vmem:[#allocation2 + $0x48c] sm:$0xff]
    %v1369 = vld [vmem:[#allocation2 + $0x494] sm:$0xf]
    %v1370 = vld [vmem:[#allocation2 + $0x498] sm:$0xff]
    %v1371 = vld [vmem:[#allocation2 + $0x4a0] sm:$0xf]
    %v1372 = vld [vmem:[#allocation2 + $0x4a4] sm:$0xff]
    %v1373 = vld [vmem:[#allocation2 + $0x4ac] sm:$0xf]
    %v1374 = vld [vmem:[#allocation2 + $0x4b0] sm:$0xff]
    %v1375 = vld [vmem:[#allocation2 + $0x4b8] sm:$0xf]
    %v1376 = vld [vmem:[#allocation2 + $0x4bc] sm:$0xff]
    %v1377 = vld [vmem:[#allocation2 + $0x4c4] sm:$0xf]
    %v1378 = vld [vmem:[#allocation2 + $0x4c8] sm:$0xff]
    %v1379 = vld [vmem:[#allocation2 + $0x4d0] sm:$0xf]
    %v1380 = vld [vmem:[#allocation2 + $0x4d4] sm:$0xff]
    %v1381 = vld [vmem:[#allocation2 + $0x4dc] sm:$0xf]
    %v1382 = vld [vmem:[#allocation2 + $0x4e0] sm:$0xff]
    %v1383 = vld [vmem:[#allocation2 + $0x4e8] sm:$0xf]
    %v1384 = vld [vmem:[#allocation2 + $0x4ec] sm:$0xff]
    %v1385 = vld [vmem:[#allocation2 + $0x4f4] sm:$0xf]
    %v1386 = vld [vmem:[#allocation2 + $0x4f8] sm:$0xff]
    %v1387 = vld [vmem:[#allocation2 + $0x500] sm:$0xf]
    %v1388 = vld [vmem:[#allocation2 + $0x504] sm:$0xff]
    %v1389 = vld [vmem:[#allocation2 + $0x50c] sm:$0xf]
    %v1390 = vld [vmem:[#allocation2 + $0x510] sm:$0xff]
    %v1391 = vld [vmem:[#allocation2 + $0x518] sm:$0xf]
    %v1392 = vld [vmem:[#allocation2 + $0x51c] sm:$0xff]
    %v1393 = vld [vmem:[#allocation2 + $0x524] sm:$0xf]
    %v1394 = vld [vmem:[#allocation2 + $0x528] sm:$0xff]
    %v1395 = vld [vmem:[#allocation2 + $0x530] sm:$0xf]
    %v1396 = vld [vmem:[#allocation2 + $0x534] sm:$0xff]
    %v1397 = vld [vmem:[#allocation2 + $0x53c] sm:$0xf]
    %v1398 = vld [vmem:[#allocation2 + $0x540] sm:$0xff]
    %v1399 = vld [vmem:[#allocation2 + $0x548] sm:$0xf]
    %v1400 = vld [vmem:[#allocation2 + $0x54c] sm:$0xff]
    %v1401 = vld [vmem:[#allocation2 + $0x554] sm:$0xf]
    %v1402 = vld [vmem:[#allocation2 + $0x558] sm:$0xff]
    %v1403 = vld [vmem:[#allocation2 + $0x560] sm:$0xf]
    %v1404 = vld [vmem:[#allocation2 + $0x564] sm:$0xff]
    %v1405 = vld [vmem:[#allocation2 + $0x56c] sm:$0xf]
    %v1406 = vld [vmem:[#allocation2 + $0x570] sm:$0xff]
    %v1407 = vld [vmem:[#allocation2 + $0x578] sm:$0xf]
    %v1408 = vld [vmem:[#allocation2 + $0x57c] sm:$0xff]
    %v1409 = vld [vmem:[#allocation2 + $0x584] sm:$0xf]
    %v1410 = vld [vmem:[#allocation2 + $0x588] sm:$0xff]
    %v1411 = vld [vmem:[#allocation2 + $0x590] sm:$0xf]
    %v1412 = vld [vmem:[#allocation2 + $0x594] sm:$0xff]
    %v1413 = vld [vmem:[#allocation2 + $0x59c] sm:$0xf]
    %v1414 = vld [vmem:[#allocation2 + $0x5a0] sm:$0xff]
    %v1415 = vld [vmem:[#allocation2 + $0x5a8] sm:$0xf]
    %v1416 = vld [vmem:[#allocation2 + $0x5ac] sm:$0xff]
    %v1417 = vld [vmem:[#allocation2 + $0x5b4] sm:$0xf]
    %v1418 = vld [vmem:[#allocation2 + $0x5b8] sm:$0xff]
    %v1419 = vld [vmem:[#allocation2 + $0x5c0] sm:$0xf]
    %v1420 = vld [vmem:[#allocation2 + $0x5c4] sm:$0xff]
    %v1421 = vld [vmem:[#allocation2 + $0x5cc] sm:$0xf]
    %v1422 = vld [vmem:[#allocation2 + $0x5d0] sm:$0xff]
    %v1423 = vld [vmem:[#allocation2 + $0x5d8] sm:$0xf]
    %v1424 = vld [vmem:[#allocation2 + $0x5dc] sm:$0xff]
    %v1425 = vld [vmem:[#allocation2 + $0x5e4] sm:$0xf]
    %v1426 = vld [vmem:[#allocation2 + $0x5e8] sm:$0xff]
    %v1427 = vld [vmem:[#allocation2 + $0x5f0] sm:$0xf]
    %v1428 = vld [vmem:[#allocation2 + $0x5f4] sm:$0xff]
    %v1429 = vld [vmem:[#allocation2 + $0x5fc] sm:$0xf]
    %v1430 = vld [vmem:[#allocation2 + $0x600] sm:$0xff]
    %v1431 = vld [vmem:[#allocation2 + $0x608] sm:$0xf]
    %v1432 = vld [vmem:[#allocation2 + $0x60c] sm:$0xff]
    %v1433 = vld [vmem:[#allocation2 + $0x614] sm:$0xf]
    %v1434 = vld [vmem:[#allocation2 + $0x618] sm:$0xff]
    %v1435 = vld [vmem:[#allocation2 + $0x620] sm:$0xf]
    %v1436 = vld [vmem:[#allocation2 + $0x624] sm:$0xff]
    %v1437 = vld [vmem:[#allocation2 + $0x62c] sm:$0xf]
    %v1438 = vld [vmem:[#allocation2 + $0x630] sm:$0xff]
    %v1439 = vld [vmem:[#allocation2 + $0x638] sm:$0xf]
    %v1440 = vld [vmem:[#allocation2 + $0x63c] sm:$0xff]
    %v1441 = vld [vmem:[#allocation2 + $0x644] sm:$0xf]
    %v1442 = vld [vmem:[#allocation2 + $0x648] sm:$0xff]
    %v1443 = vld [vmem:[#allocation2 + $0x650] sm:$0xf]
    %v1444 = vld [vmem:[#allocation2 + $0x654] sm:$0xff]
    %v1445 = vld [vmem:[#allocation2 + $0x65c] sm:$0xf]
    %v1446 = vld [vmem:[#allocation2 + $0x660] sm:$0xff]
    %v1447 = vld [vmem:[#allocation2 + $0x668] sm:$0xf]
    %v1448 = vld [vmem:[#allocation2 + $0x66c] sm:$0xff]
    %v1449 = vld [vmem:[#allocation2 + $0x674] sm:$0xf]
    %v1450 = vld [vmem:[#allocation2 + $0x678] sm:$0xff]
    %v1451 = vld [vmem:[#allocation2 + $0x680] sm:$0xf]
    %v1452 = vld [vmem:[#allocation2 + $0x684] sm:$0xff]
    %v1453 = vld [vmem:[#allocation2 + $0x68c] sm:$0xf]
    %v1454 = vld [vmem:[#allocation2 + $0x690] sm:$0xff]
    %v1455 = vld [vmem:[#allocation2 + $0x698] sm:$0xf]
    %v1456 = vld [vmem:[#allocation2 + $0x69c] sm:$0xff]
    %v1457 = vld [vmem:[#allocation2 + $0x6a4] sm:$0xf]
    %v1458 = vld [vmem:[#allocation2 + $0x6a8] sm:$0xff]
    %v1459 = vld [vmem:[#allocation2 + $0x6b0] sm:$0xf]
    %v1460 = vld [vmem:[#allocation2 + $0x6b4] sm:$0xff]
    %v1461 = vld [vmem:[#allocation2 + $0x6bc] sm:$0xf]
    %v1462 = vld [vmem:[#allocation2 + $0x6c0] sm:$0xff]
    %v1463 = vld [vmem:[#allocation2 + $0x6c8] sm:$0xf]
    %v1464 = vld [vmem:[#allocation2 + $0x6cc] sm:$0xff]
    %v1465 = vld [vmem:[#allocation2 + $0x6d4] sm:$0xf]
    %v1466 = vld [vmem:[#allocation2 + $0x6d8] sm:$0xff]
    %v1467 = vld [vmem:[#allocation2 + $0x6e0] sm:$0xf]
    %v1468 = vld [vmem:[#allocation2 + $0x6e4] sm:$0xff]
    %v1469 = vld [vmem:[#allocation2 + $0x6ec] sm:$0xf]
    %v1470 = vld [vmem:[#allocation2 + $0x6f0] sm:$0xff]
    %v1471 = vld [vmem:[#allocation2 + $0x6f8] sm:$0xf]
    %v1472 = vld [vmem:[#allocation2 + $0x6fc] sm:$0xff]
    %v1473 = vld [vmem:[#allocation2 + $0x704] sm:$0xf]
    %v1474 = vld [vmem:[#allocation2 + $0x708] sm:$0xff]
    %v1475 = vld [vmem:[#allocation2 + $0x710] sm:$0xf]
    %v1476 = vld [vmem:[#allocation2 + $0x714] sm:$0xff]
    %v1477 = vld [vmem:[#allocation2 + $0x71c] sm:$0xf]
    %v1478 = vld [vmem:[#allocation2 + $0x720] sm:$0xff]
    %v1479 = vld [vmem:[#allocation2 + $0x728] sm:$0xf]
    %v1480 = vld [vmem:[#allocation2 + $0x72c] sm:$0xff]
    %v1481 = vld [vmem:[#allocation2 + $0x734] sm:$0xf]
    %v1482 = vld [vmem:[#allocation2 + $0x738] sm:$0xff]
    %v1483 = vld [vmem:[#allocation2 + $0x740] sm:$0xf]
    %v1484 = vld [vmem:[#allocation2 + $0x744] sm:$0xff]
    %v1485 = vld [vmem:[#allocation2 + $0x74c] sm:$0xf]
    %v1486 = vld [vmem:[#allocation2 + $0x750] sm:$0xff]
    %v1487 = vld [vmem:[#allocation2 + $0x758] sm:$0xf]
    %v1488 = vld [vmem:[#allocation2 + $0x75c] sm:$0xff]
    %v1489 = vld [vmem:[#allocation2 + $0x764] sm:$0xf]
    %v1490 = vld [vmem:[#allocation2 + $0x768] sm:$0xff]
    %v1491 = vld [vmem:[#allocation2 + $0x770] sm:$0xf]
    %v1492 = vld [vmem:[#allocation2 + $0x774] sm:$0xff]
    %v1493 = vld [vmem:[#allocation2 + $0x77c] sm:$0xf]
    %v1494 = vld [vmem:[#allocation2 + $0x780] sm:$0xff]
    %v1495 = vld [vmem:[#allocation2 + $0x788] sm:$0xf]
    %v1496 = vld [vmem:[#allocation2 + $0x78c] sm:$0xff]
    %v1497 = vld [vmem:[#allocation2 + $0x794] sm:$0xf]
    %v1498 = vld [vmem:[#allocation2 + $0x798] sm:$0xff]
    %v1499 = vld [vmem:[#allocation2 + $0x7a0] sm:$0xf]
    %v1500 = vld [vmem:[#allocation2 + $0x7a4] sm:$0xff]
    %v1501 = vld [vmem:[#allocation2 + $0x7ac] sm:$0xf]
    %v1502 = vld [vmem:[#allocation2 + $0x7b0] sm:$0xff]
    %v1503 = vld [vmem:[#allocation2 + $0x7b8] sm:$0xf]
    %v1504 = vld [vmem:[#allocation2 + $0x7bc] sm:$0xff]
    %v1505 = vld [vmem:[#allocation2 + $0x7c4] sm:$0xf]
    %v1506 = vld [vmem:[#allocation2 + $0x7c8] sm:$0xff]
    %v1507 = vld [vmem:[#allocation2 + $0x7d0] sm:$0xf]
    %v1508 = vld [vmem:[#allocation2 + $0x7d4] sm:$0xff]
    %v1509 = vld [vmem:[#allocation2 + $0x7dc] sm:$0xf]
    %v1510 = vld [vmem:[#allocation2 + $0x7e0] sm:$0xff]
    %v1511 = vld [vmem:[#allocation2 + $0x7e8] sm:$0xf]
    %v1512 = vld [vmem:[#allocation2 + $0x7ec] sm:$0xff]
    %v1513 = vld [vmem:[#allocation2 + $0x7f4] sm:$0xf]
    %v1514 = vld [vmem:[#allocation2 + $0x7f8] sm:$0xff]
    %v1515 = vld [vmem:[#allocation2 + $0x800] sm:$0xf]
    %v1516 = vld [vmem:[#allocation2 + $0x804] sm:$0xff]
    %v1517 = vld [vmem:[#allocation2 + $0x80c] sm:$0xf]
    %v1518 = vld [vmem:[#allocation2 + $0x810] sm:$0xff]
    %v1519 = vld [vmem:[#allocation2 + $0x818] sm:$0xf]
    %v1520 = vld [vmem:[#allocation2 + $0x81c] sm:$0xff]
    %v1521 = vld [vmem:[#allocation2 + $0x824] sm:$0xf]
    %v1522 = vld [vmem:[#allocation2 + $0x828] sm:$0xff]
    %v1523 = vld [vmem:[#allocation2 + $0x830] sm:$0xf]
    %v1524 = vld [vmem:[#allocation2 + $0x834] sm:$0xff]
    %v1525 = vld [vmem:[#allocation2 + $0x83c] sm:$0xf]
    %v1526 = vld [vmem:[#allocation2 + $0x840] sm:$0xff]
    %v1527 = vld [vmem:[#allocation2 + $0x848] sm:$0xf]
    %v1528 = vld [vmem:[#allocation2 + $0x84c] sm:$0xff]
    %v1529 = vld [vmem:[#allocation2 + $0x854] sm:$0xf]
    %v1530 = vld [vmem:[#allocation2 + $0x858] sm:$0xff]
    %v1531 = vld [vmem:[#allocation2 + $0x860] sm:$0xf]
    %v1532 = vld [vmem:[#allocation2 + $0x864] sm:$0xff]
    %v1533 = vld [vmem:[#allocation2 + $0x86c] sm:$0xf]
    %v1534 = vld [vmem:[#allocation2 + $0x870] sm:$0xff]
    %v1535 = vld [vmem:[#allocation2 + $0x878] sm:$0xf]
    %v1536 = vld [vmem:[#allocation2 + $0x87c] sm:$0xff]
    %v1537 = vld [vmem:[#allocation2 + $0x884] sm:$0xf]
    %v1538 = vld [vmem:[#allocation2 + $0x888] sm:$0xff]
    %v1539 = vld [vmem:[#allocation2 + $0x890] sm:$0xf]
    %v1540 = vld [vmem:[#allocation2 + $0x894] sm:$0xff]
    %v1541 = vld [vmem:[#allocation2 + $0x89c] sm:$0xf]
    %v1542 = vld [vmem:[#allocation2 + $0x8a0] sm:$0xff]
    %v1543 = vld [vmem:[#allocation2 + $0x8a8] sm:$0xf]
    %v1544 = vld [vmem:[#allocation2 + $0x8ac] sm:$0xff]
    %v1545 = vld [vmem:[#allocation2 + $0x8b4] sm:$0xf]
    %v1546 = vld [vmem:[#allocation2 + $0x8b8] sm:$0xff]
    %v1547 = vld [vmem:[#allocation2 + $0x8c0] sm:$0xf]
    %v1548 = vld [vmem:[#allocation2 + $0x8c4] sm:$0xff]
    %v1549 = vld [vmem:[#allocation2 + $0x8cc] sm:$0xf]
    %v1550 = vld [vmem:[#allocation2 + $0x8d0] sm:$0xff]
    %v1551 = vld [vmem:[#allocation2 + $0x8d8] sm:$0xf]
    %v1552 = vld [vmem:[#allocation2 + $0x8dc] sm:$0xff]
    %v1553 = vld [vmem:[#allocation2 + $0x8e4] sm:$0xf]
    %v1554 = vld [vmem:[#allocation2 + $0x8e8] sm:$0xff]
    %v1555 = vld [vmem:[#allocation2 + $0x8f0] sm:$0xf]
    %v1556 = vld [vmem:[#allocation2 + $0x8f4] sm:$0xff]
    %v1557 = vld [vmem:[#allocation2 + $0x8fc] sm:$0xf]
    %v1558 = vld [vmem:[#allocation21] sm:$0x7]
    %v1571 = vrot.slane %v1158, 2
    %v1572 = vrot.slane %v1162, 2
    %v1573 = vsel %vm477, %v1571, %v1572
    %v1574 = vrot.slane %v1159, 2
    %v1575 = vrot.slane %v1163, 2
    %v1576 = vsel %vm477, %v1574, %v1575
    %v1577 = vrot.slane %v1160, 2
    %v1578 = vrot.slane %v1164, 2
    %v1579 = vsel %vm477, %v1577, %v1578
    %v1580 = vrot.slane %v1161, 2
    %v1581 = vrot.slane %v1165, 2
    %v1582 = vsel %vm477, %v1580, %v1581
    %v1583 = vrot.slane %v1166, 2
    %v1584 = vsel %vm477, %v1572, %v1583
    %v1585 = vrot.slane %v1167, 2
    %v1586 = vsel %vm477, %v1575, %v1585
    %v1587 = vrot.slane %v1168, 2
    %v1588 = vsel %vm477, %v1578, %v1587
    %v1589 = vrot.slane %v1169, 2
    %v1590 = vsel %vm477, %v1581, %v1589
    %v1599 = vsel %vm503, %v1158, %v1573
    %v1600 = vsel %vm503, %v1159, %v1576
    %v1601 = vsel %vm503, %v1160, %v1579
    %v1602 = vsel %vm503, %v1161, %v1582
    %v1607 = vrot.slane %v1154, 1
    %v1608 = vrot.slane %v1158, 1
    %v1609 = vsel %vm487, %v1607, %v1608
    %v1610 = vrot.slane %v1155, 1
    %v1611 = vrot.slane %v1159, 1
    %v1612 = vsel %vm487, %v1610, %v1611
    %v1613 = vrot.slane %v1156, 1
    %v1614 = vrot.slane %v1160, 1
    %v1615 = vsel %vm487, %v1613, %v1614
    %v1616 = vrot.slane %v1157, 1
    %v1617 = vrot.slane %v1161, 1
    %v1618 = vsel %vm487, %v1616, %v1617
    %v1627 = vrot.slane %v1158, 3
    %v1628 = vrot.slane %v1162, 3
    %v1629 = vsel %vm492, %v1627, %v1628
    %v1630 = vrot.slane %v1159, 3
    %v1631 = vrot.slane %v1163, 3
    %v1632 = vsel %vm492, %v1630, %v1631
    %v1633 = vrot.slane %v1160, 3
    %v1634 = vrot.slane %v1164, 3
    %v1635 = vsel %vm492, %v1633, %v1634
    %v1636 = vrot.slane %v1161, 3
    %v1637 = vrot.slane %v1165, 3
    %v1638 = vsel %vm492, %v1636, %v1637
    %v1639 = vrot.slane %v1166, 3
    %v1640 = vsel %vm492, %v1628, %v1639
    %v1641 = vrot.slane %v1167, 3
    %v1642 = vsel %vm492, %v1631, %v1641
    %v1643 = vrot.slane %v1168, 3
    %v1644 = vsel %vm492, %v1634, %v1643
    %v1645 = vrot.slane %v1169, 3
    %v1646 = vsel %vm492, %v1637, %v1645
    %v1655 = vsel %vm503, %v1608, %v1629
    %v1656 = vsel %vm503, %v1611, %v1632
    %v1657 = vsel %vm503, %v1614, %v1635
    %v1658 = vsel %vm503, %v1617, %v1638
    %v1659 = vrot.slane %v1154, 2
    %v1660 = vsel %vm477, %v1659, %v1571
    %v1661 = vrot.slane %v1155, 2
    %v1662 = vsel %vm477, %v1661, %v1574
    %v1663 = vrot.slane %v1156, 2
    %v1664 = vsel %vm477, %v1663, %v1577
    %v1665 = vrot.slane %v1157, 2
    %v1666 = vsel %vm477, %v1665, %v1580
    %v1675 = vrot.slane %v1162, 4
    %v1676 = vrot.slane %v1163, 4
    %v1677 = vrot.slane %v1164, 4
    %v1678 = vrot.slane %v1165, 4
    %v1679 = vrot.slane %v1166, 4
    %v1680 = vsel %vm503, %v1675, %v1679
    %v1681 = vrot.slane %v1167, 4
    %v1682 = vsel %vm503, %v1676, %v1681
    %v1683 = vrot.slane %v1168, 4
    %v1684 = vsel %vm503, %v1677, %v1683
    %v1685 = vrot.slane %v1169, 4
    %v1686 = vsel %vm503, %v1678, %v1685
    %v1695 = vsel %vm503, %v1571, %v1675
    %v1696 = vsel %vm503, %v1574, %v1676
    %v1697 = vsel %vm503, %v1577, %v1677
    %v1698 = vsel %vm503, %v1580, %v1678
    %v1699 = vpack.c.bf16 %v1599, %v1154
    %v1700 = vpack.c.bf16 %v1600, %v1155
    %v1701 = vpack.c.bf16 %v1601, %v1156
    %v1702 = vpack.c.bf16 %v1602, %v1157
    %v1703 = vpack.c.bf16 %v1655, %v1609
    %v1704 = vpack.c.bf16 %v1656, %v1612
    %v1705 = vpack.c.bf16 %v1657, %v1615
    %v1706 = vpack.c.bf16 %v1658, %v1618
    %v1707 = vpack.c.bf16 %v1695, %v1660
    %v1708 = vpack.c.bf16 %v1696, %v1662
    %v1709 = vpack.c.bf16 %v1697, %v1664
    %v1710 = vpack.c.bf16 %v1698, %v1666
    %v1711 = vpack.c.bf16 %v1584, %v1584
    %v1712 = vpack.c.bf16 %v1586, %v1586
    %v1713 = vpack.c.bf16 %v1588, %v1588
    %v1714 = vpack.c.bf16 %v1590, %v1590
    %v1715 = vpack.c.bf16 %v1640, %v1640
    %v1716 = vpack.c.bf16 %v1642, %v1642
    %v1717 = vpack.c.bf16 %v1644, %v1644
    %v1718 = vpack.c.bf16 %v1646, %v1646
    %v1719 = vpack.c.bf16 %v1680, %v1680
    %v1720 = vpack.c.bf16 %v1682, %v1682
    %v1721 = vpack.c.bf16 %v1684, %v1684
    %v1722 = vpack.c.bf16 %v1686, %v1686
    %v1724 = vperm.slane %v1558, 0
    %v1725 = vperm.slane %v1558, 1
    %v1726 = vperm.slane %v1558, 2
    %v2114 = vunpack.c.l.b16 %v1174
    %v2115 = vunpack.c.h.b16 %v1174
    %v2116 = vunpack.c.l.b16 %v1175
    %v2117 = vunpack.c.l.b16 %v1176
    %v2118 = vunpack.c.h.b16 %v1176
    %v2119 = vunpack.c.l.b16 %v1177
    %v2120 = vunpack.c.l.b16 %v1178
    %v2121 = vunpack.c.h.b16 %v1178
    %v2122 = vunpack.c.l.b16 %v1179
    %v2123 = vunpack.c.l.b16 %v1180
    %v2124 = vunpack.c.h.b16 %v1180
    %v2125 = vunpack.c.l.b16 %v1181
    %v2126 = vunpack.c.l.b16 %v1182
    %v2127 = vunpack.c.h.b16 %v1182
    %v2128 = vunpack.c.l.b16 %v1183
    %v2129 = vunpack.c.l.b16 %v1184
    %v2130 = vunpack.c.h.b16 %v1184
    %v2131 = vunpack.c.l.b16 %v1185
    %v2132 = vunpack.c.l.b16 %v1186
    %v2133 = vunpack.c.h.b16 %v1186
    %v2134 = vunpack.c.l.b16 %v1187
    %v2135 = vunpack.c.l.b16 %v1188
    %v2136 = vunpack.c.h.b16 %v1188
    %v2137 = vunpack.c.l.b16 %v1189
    %v2138 = vunpack.c.l.b16 %v1190
    %v2139 = vunpack.c.h.b16 %v1190
    %v2140 = vunpack.c.l.b16 %v1191
    %v2141 = vunpack.c.l.b16 %v1192
    %v2142 = vunpack.c.h.b16 %v1192
    %v2143 = vunpack.c.l.b16 %v1193
    %v2144 = vunpack.c.l.b16 %v1194
    %v2145 = vunpack.c.h.b16 %v1194
    %v2146 = vunpack.c.l.b16 %v1195
    %v2147 = vunpack.c.l.b16 %v1196
    %v2148 = vunpack.c.h.b16 %v1196
    %v2149 = vunpack.c.l.b16 %v1197
    %v2150 = vunpack.c.l.b16 %v1198
    %v2151 = vunpack.c.h.b16 %v1198
    %v2152 = vunpack.c.l.b16 %v1199
    %v2153 = vunpack.c.l.b16 %v1200
    %v2154 = vunpack.c.h.b16 %v1200
    %v2155 = vunpack.c.l.b16 %v1201
    %v2156 = vunpack.c.l.b16 %v1202
    %v2157 = vunpack.c.h.b16 %v1202
    %v2158 = vunpack.c.l.b16 %v1203
    %v2159 = vunpack.c.l.b16 %v1204
    %v2160 = vunpack.c.h.b16 %v1204
    %v2161 = vunpack.c.l.b16 %v1205
    %v2162 = vunpack.c.l.b16 %v1206
    %v2163 = vunpack.c.h.b16 %v1206
    %v2164 = vunpack.c.l.b16 %v1207
    %v2165 = vunpack.c.l.b16 %v1208
    %v2166 = vunpack.c.h.b16 %v1208
    %v2167 = vunpack.c.l.b16 %v1209
    %v2168 = vunpack.c.l.b16 %v1210
    %v2169 = vunpack.c.h.b16 %v1210
    %v2170 = vunpack.c.l.b16 %v1211
    %v2171 = vunpack.c.l.b16 %v1212
    %v2172 = vunpack.c.h.b16 %v1212
    %v2173 = vunpack.c.l.b16 %v1213
    %v2174 = vunpack.c.l.b16 %v1214
    %v2175 = vunpack.c.h.b16 %v1214
    %v2176 = vunpack.c.l.b16 %v1215
    %v2177 = vunpack.c.l.b16 %v1216
    %v2178 = vunpack.c.h.b16 %v1216
    %v2179 = vunpack.c.l.b16 %v1217
    %v2180 = vunpack.c.l.b16 %v1218
    %v2181 = vunpack.c.h.b16 %v1218
    %v2182 = vunpack.c.l.b16 %v1219
    %v2183 = vunpack.c.l.b16 %v1220
    %v2184 = vunpack.c.h.b16 %v1220
    %v2185 = vunpack.c.l.b16 %v1221
    %v2186 = vunpack.c.l.b16 %v1222
    %v2187 = vunpack.c.h.b16 %v1222
    %v2188 = vunpack.c.l.b16 %v1223
    %v2189 = vunpack.c.l.b16 %v1224
    %v2190 = vunpack.c.h.b16 %v1224
    %v2191 = vunpack.c.l.b16 %v1225
    %v2192 = vunpack.c.l.b16 %v1226
    %v2193 = vunpack.c.h.b16 %v1226
    %v2194 = vunpack.c.l.b16 %v1227
    %v2195 = vunpack.c.l.b16 %v1228
    %v2196 = vunpack.c.h.b16 %v1228
    %v2197 = vunpack.c.l.b16 %v1229
    %v2198 = vunpack.c.l.b16 %v1230
    %v2199 = vunpack.c.h.b16 %v1230
    %v2200 = vunpack.c.l.b16 %v1231
    %v2201 = vunpack.c.l.b16 %v1232
    %v2202 = vunpack.c.h.b16 %v1232
    %v2203 = vunpack.c.l.b16 %v1233
    %v2204 = vunpack.c.l.b16 %v1234
    %v2205 = vunpack.c.h.b16 %v1234
    %v2206 = vunpack.c.l.b16 %v1235
    %v2207 = vunpack.c.l.b16 %v1236
    %v2208 = vunpack.c.h.b16 %v1236
    %v2209 = vunpack.c.l.b16 %v1237
    %v2210 = vunpack.c.l.b16 %v1238
    %v2211 = vunpack.c.h.b16 %v1238
    %v2212 = vunpack.c.l.b16 %v1239
    %v2213 = vunpack.c.l.b16 %v1240
    %v2214 = vunpack.c.h.b16 %v1240
    %v2215 = vunpack.c.l.b16 %v1241
    %v2216 = vunpack.c.l.b16 %v1242
    %v2217 = vunpack.c.h.b16 %v1242
    %v2218 = vunpack.c.l.b16 %v1243
    %v2219 = vunpack.c.l.b16 %v1244
    %v2220 = vunpack.c.h.b16 %v1244
    %v2221 = vunpack.c.l.b16 %v1245
    %v2222 = vunpack.c.l.b16 %v1246
    %v2223 = vunpack.c.h.b16 %v1246
    %v2224 = vunpack.c.l.b16 %v1247
    %v2225 = vunpack.c.l.b16 %v1248
    %v2226 = vunpack.c.h.b16 %v1248
    %v2227 = vunpack.c.l.b16 %v1249
    %v2228 = vunpack.c.l.b16 %v1250
    %v2229 = vunpack.c.h.b16 %v1250
    %v2230 = vunpack.c.l.b16 %v1251
    %v2231 = vunpack.c.l.b16 %v1252
    %v2232 = vunpack.c.h.b16 %v1252
    %v2233 = vunpack.c.l.b16 %v1253
    %v2234 = vunpack.c.l.b16 %v1254
    %v2235 = vunpack.c.h.b16 %v1254
    %v2236 = vunpack.c.l.b16 %v1255
    %v2237 = vunpack.c.l.b16 %v1256
    %v2238 = vunpack.c.h.b16 %v1256
    %v2239 = vunpack.c.l.b16 %v1257
    %v2240 = vunpack.c.l.b16 %v1258
    %v2241 = vunpack.c.h.b16 %v1258
    %v2242 = vunpack.c.l.b16 %v1259
    %v2243 = vunpack.c.l.b16 %v1260
    %v2244 = vunpack.c.h.b16 %v1260
    %v2245 = vunpack.c.l.b16 %v1261
    %v2246 = vunpack.c.l.b16 %v1262
    %v2247 = vunpack.c.h.b16 %v1262
    %v2248 = vunpack.c.l.b16 %v1263
    %v2249 = vunpack.c.l.b16 %v1264
    %v2250 = vunpack.c.h.b16 %v1264
    %v2251 = vunpack.c.l.b16 %v1265
    %v2252 = vunpack.c.l.b16 %v1266
    %v2253 = vunpack.c.h.b16 %v1266
    %v2254 = vunpack.c.l.b16 %v1267
    %v2255 = vunpack.c.l.b16 %v1268
    %v2256 = vunpack.c.h.b16 %v1268
    %v2257 = vunpack.c.l.b16 %v1269
    %v2258 = vunpack.c.l.b16 %v1270
    %v2259 = vunpack.c.h.b16 %v1270
    %v2260 = vunpack.c.l.b16 %v1271
    %v2261 = vunpack.c.l.b16 %v1272
    %v2262 = vunpack.c.h.b16 %v1272
    %v2263 = vunpack.c.l.b16 %v1273
    %v2264 = vunpack.c.l.b16 %v1274
    %v2265 = vunpack.c.h.b16 %v1274
    %v2266 = vunpack.c.l.b16 %v1275
    %v2267 = vunpack.c.l.b16 %v1276
    %v2268 = vunpack.c.h.b16 %v1276
    %v2269 = vunpack.c.l.b16 %v1277
    %v2270 = vunpack.c.l.b16 %v1278
    %v2271 = vunpack.c.h.b16 %v1278
    %v2272 = vunpack.c.l.b16 %v1279
    %v2273 = vunpack.c.l.b16 %v1280
    %v2274 = vunpack.c.h.b16 %v1280
    %v2275 = vunpack.c.l.b16 %v1281
    %v2276 = vunpack.c.l.b16 %v1282
    %v2277 = vunpack.c.h.b16 %v1282
    %v2278 = vunpack.c.l.b16 %v1283
    %v2279 = vunpack.c.l.b16 %v1284
    %v2280 = vunpack.c.h.b16 %v1284
    %v2281 = vunpack.c.l.b16 %v1285
    %v2282 = vunpack.c.l.b16 %v1286
    %v2283 = vunpack.c.h.b16 %v1286
    %v2284 = vunpack.c.l.b16 %v1287
    %v2285 = vunpack.c.l.b16 %v1288
    %v2286 = vunpack.c.h.b16 %v1288
    %v2287 = vunpack.c.l.b16 %v1289
    %v2288 = vunpack.c.l.b16 %v1290
    %v2289 = vunpack.c.h.b16 %v1290
    %v2290 = vunpack.c.l.b16 %v1291
    %v2291 = vunpack.c.l.b16 %v1292
    %v2292 = vunpack.c.h.b16 %v1292
    %v2293 = vunpack.c.l.b16 %v1293
    %v2294 = vunpack.c.l.b16 %v1294
    %v2295 = vunpack.c.h.b16 %v1294
    %v2296 = vunpack.c.l.b16 %v1295
    %v2297 = vunpack.c.l.b16 %v1296
    %v2298 = vunpack.c.h.b16 %v1296
    %v2299 = vunpack.c.l.b16 %v1297
    %v2300 = vunpack.c.l.b16 %v1298
    %v2301 = vunpack.c.h.b16 %v1298
    %v2302 = vunpack.c.l.b16 %v1299
    %v2303 = vunpack.c.l.b16 %v1300
    %v2304 = vunpack.c.h.b16 %v1300
    %v2305 = vunpack.c.l.b16 %v1301
    %v2306 = vunpack.c.l.b16 %v1302
    %v2307 = vunpack.c.h.b16 %v1302
    %v2308 = vunpack.c.l.b16 %v1303
    %v2309 = vunpack.c.l.b16 %v1304
    %v2310 = vunpack.c.h.b16 %v1304
    %v2311 = vunpack.c.l.b16 %v1305
    %v2312 = vunpack.c.l.b16 %v1306
    %v2313 = vunpack.c.h.b16 %v1306
    %v2314 = vunpack.c.l.b16 %v1307
    %v2315 = vunpack.c.l.b16 %v1308
    %v2316 = vunpack.c.h.b16 %v1308
    %v2317 = vunpack.c.l.b16 %v1309
    %v2318 = vunpack.c.l.b16 %v1310
    %v2319 = vunpack.c.h.b16 %v1310
    %v2320 = vunpack.c.l.b16 %v1311
    %v2321 = vunpack.c.l.b16 %v1312
    %v2322 = vunpack.c.h.b16 %v1312
    %v2323 = vunpack.c.l.b16 %v1313
    %v2324 = vunpack.c.l.b16 %v1314
    %v2325 = vunpack.c.h.b16 %v1314
    %v2326 = vunpack.c.l.b16 %v1315
    %v2327 = vunpack.c.l.b16 %v1316
    %v2328 = vunpack.c.h.b16 %v1316
    %v2329 = vunpack.c.l.b16 %v1317
    %v2330 = vunpack.c.l.b16 %v1318
    %v2331 = vunpack.c.h.b16 %v1318
    %v2332 = vunpack.c.l.b16 %v1319
    %v2333 = vunpack.c.l.b16 %v1320
    %v2334 = vunpack.c.h.b16 %v1320
    %v2335 = vunpack.c.l.b16 %v1321
    %v2336 = vunpack.c.l.b16 %v1322
    %v2337 = vunpack.c.h.b16 %v1322
    %v2338 = vunpack.c.l.b16 %v1323
    %v2339 = vunpack.c.l.b16 %v1324
    %v2340 = vunpack.c.h.b16 %v1324
    %v2341 = vunpack.c.l.b16 %v1325
    %v2342 = vunpack.c.l.b16 %v1326
    %v2343 = vunpack.c.h.b16 %v1326
    %v2344 = vunpack.c.l.b16 %v1327
    %v2345 = vunpack.c.l.b16 %v1328
    %v2346 = vunpack.c.h.b16 %v1328
    %v2347 = vunpack.c.l.b16 %v1329
    %v2348 = vunpack.c.l.b16 %v1330
    %v2349 = vunpack.c.h.b16 %v1330
    %v2350 = vunpack.c.l.b16 %v1331
    %v2351 = vunpack.c.l.b16 %v1332
    %v2352 = vunpack.c.h.b16 %v1332
    %v2353 = vunpack.c.l.b16 %v1333
    %v2354 = vunpack.c.l.b16 %v1334
    %v2355 = vunpack.c.h.b16 %v1334
    %v2356 = vunpack.c.l.b16 %v1335
    %v2357 = vunpack.c.l.b16 %v1336
    %v2358 = vunpack.c.h.b16 %v1336
    %v2359 = vunpack.c.l.b16 %v1337
    %v2360 = vunpack.c.l.b16 %v1338
    %v2361 = vunpack.c.h.b16 %v1338
    %v2362 = vunpack.c.l.b16 %v1339
    %v2363 = vunpack.c.l.b16 %v1340
    %v2364 = vunpack.c.h.b16 %v1340
    %v2365 = vunpack.c.l.b16 %v1341
    %v2366 = vunpack.c.l.b16 %v1342
    %v2367 = vunpack.c.h.b16 %v1342
    %v2368 = vunpack.c.l.b16 %v1343
    %v2369 = vunpack.c.l.b16 %v1344
    %v2370 = vunpack.c.h.b16 %v1344
    %v2371 = vunpack.c.l.b16 %v1345
    %v2372 = vunpack.c.l.b16 %v1346
    %v2373 = vunpack.c.h.b16 %v1346
    %v2374 = vunpack.c.l.b16 %v1347
    %v2375 = vunpack.c.l.b16 %v1348
    %v2376 = vunpack.c.h.b16 %v1348
    %v2377 = vunpack.c.l.b16 %v1349
    %v2378 = vunpack.c.l.b16 %v1350
    %v2379 = vunpack.c.h.b16 %v1350
    %v2380 = vunpack.c.l.b16 %v1351
    %v2381 = vunpack.c.l.b16 %v1352
    %v2382 = vunpack.c.h.b16 %v1352
    %v2383 = vunpack.c.l.b16 %v1353
    %v2384 = vunpack.c.l.b16 %v1354
    %v2385 = vunpack.c.h.b16 %v1354
    %v2386 = vunpack.c.l.b16 %v1355
    %v2387 = vunpack.c.l.b16 %v1356
    %v2388 = vunpack.c.h.b16 %v1356
    %v2389 = vunpack.c.l.b16 %v1357
    %v2390 = vunpack.c.l.b16 %v1358
    %v2391 = vunpack.c.h.b16 %v1358
    %v2392 = vunpack.c.l.b16 %v1359
    %v2393 = vunpack.c.l.b16 %v1360
    %v2394 = vunpack.c.h.b16 %v1360
    %v2395 = vunpack.c.l.b16 %v1361
    %v2396 = vunpack.c.l.b16 %v1362
    %v2397 = vunpack.c.h.b16 %v1362
    %v2398 = vunpack.c.l.b16 %v1363
    %v2399 = vunpack.c.l.b16 %v1364
    %v2400 = vunpack.c.h.b16 %v1364
    %v2401 = vunpack.c.l.b16 %v1365
    %v2402 = vunpack.c.l.b16 %v1366
    %v2403 = vunpack.c.h.b16 %v1366
    %v2404 = vunpack.c.l.b16 %v1367
    %v2405 = vunpack.c.l.b16 %v1368
    %v2406 = vunpack.c.h.b16 %v1368
    %v2407 = vunpack.c.l.b16 %v1369
    %v2408 = vunpack.c.l.b16 %v1370
    %v2409 = vunpack.c.h.b16 %v1370
    %v2410 = vunpack.c.l.b16 %v1371
    %v2411 = vunpack.c.l.b16 %v1372
    %v2412 = vunpack.c.h.b16 %v1372
    %v2413 = vunpack.c.l.b16 %v1373
    %v2414 = vunpack.c.l.b16 %v1374
    %v2415 = vunpack.c.h.b16 %v1374
    %v2416 = vunpack.c.l.b16 %v1375
    %v2417 = vunpack.c.l.b16 %v1376
    %v2418 = vunpack.c.h.b16 %v1376
    %v2419 = vunpack.c.l.b16 %v1377
    %v2420 = vunpack.c.l.b16 %v1378
    %v2421 = vunpack.c.h.b16 %v1378
    %v2422 = vunpack.c.l.b16 %v1379
    %v2423 = vunpack.c.l.b16 %v1380
    %v2424 = vunpack.c.h.b16 %v1380
    %v2425 = vunpack.c.l.b16 %v1381
    %v2426 = vunpack.c.l.b16 %v1382
    %v2427 = vunpack.c.h.b16 %v1382
    %v2428 = vunpack.c.l.b16 %v1383
    %v2429 = vunpack.c.l.b16 %v1384
    %v2430 = vunpack.c.h.b16 %v1384
    %v2431 = vunpack.c.l.b16 %v1385
    %v2432 = vunpack.c.l.b16 %v1386
    %v2433 = vunpack.c.h.b16 %v1386
    %v2434 = vunpack.c.l.b16 %v1387
    %v2435 = vunpack.c.l.b16 %v1388
    %v2436 = vunpack.c.h.b16 %v1388
    %v2437 = vunpack.c.l.b16 %v1389
    %v2438 = vunpack.c.l.b16 %v1390
    %v2439 = vunpack.c.h.b16 %v1390
    %v2440 = vunpack.c.l.b16 %v1391
    %v2441 = vunpack.c.l.b16 %v1392
    %v2442 = vunpack.c.h.b16 %v1392
    %v2443 = vunpack.c.l.b16 %v1393
    %v2444 = vunpack.c.l.b16 %v1394
    %v2445 = vunpack.c.h.b16 %v1394
    %v2446 = vunpack.c.l.b16 %v1395
    %v2447 = vunpack.c.l.b16 %v1396
    %v2448 = vunpack.c.h.b16 %v1396
    %v2449 = vunpack.c.l.b16 %v1397
    %v2450 = vunpack.c.l.b16 %v1398
    %v2451 = vunpack.c.h.b16 %v1398
    %v2452 = vunpack.c.l.b16 %v1399
    %v2453 = vunpack.c.l.b16 %v1400
    %v2454 = vunpack.c.h.b16 %v1400
    %v2455 = vunpack.c.l.b16 %v1401
    %v2456 = vunpack.c.l.b16 %v1402
    %v2457 = vunpack.c.h.b16 %v1402
    %v2458 = vunpack.c.l.b16 %v1403
    %v2459 = vunpack.c.l.b16 %v1404
    %v2460 = vunpack.c.h.b16 %v1404
    %v2461 = vunpack.c.l.b16 %v1405
    %v2462 = vunpack.c.l.b16 %v1406
    %v2463 = vunpack.c.h.b16 %v1406
    %v2464 = vunpack.c.l.b16 %v1407
    %v2465 = vunpack.c.l.b16 %v1408
    %v2466 = vunpack.c.h.b16 %v1408
    %v2467 = vunpack.c.l.b16 %v1409
    %v2468 = vunpack.c.l.b16 %v1410
    %v2469 = vunpack.c.h.b16 %v1410
    %v2470 = vunpack.c.l.b16 %v1411
    %v2471 = vunpack.c.l.b16 %v1412
    %v2472 = vunpack.c.h.b16 %v1412
    %v2473 = vunpack.c.l.b16 %v1413
    %v2474 = vunpack.c.l.b16 %v1414
    %v2475 = vunpack.c.h.b16 %v1414
    %v2476 = vunpack.c.l.b16 %v1415
    %v2477 = vunpack.c.l.b16 %v1416
    %v2478 = vunpack.c.h.b16 %v1416
    %v2479 = vunpack.c.l.b16 %v1417
    %v2480 = vunpack.c.l.b16 %v1418
    %v2481 = vunpack.c.h.b16 %v1418
    %v2482 = vunpack.c.l.b16 %v1419
    %v2483 = vunpack.c.l.b16 %v1420
    %v2484 = vunpack.c.h.b16 %v1420
    %v2485 = vunpack.c.l.b16 %v1421
    %v2486 = vunpack.c.l.b16 %v1422
    %v2487 = vunpack.c.h.b16 %v1422
    %v2488 = vunpack.c.l.b16 %v1423
    %v2489 = vunpack.c.l.b16 %v1424
    %v2490 = vunpack.c.h.b16 %v1424
    %v2491 = vunpack.c.l.b16 %v1425
    %v2492 = vunpack.c.l.b16 %v1426
    %v2493 = vunpack.c.h.b16 %v1426
    %v2494 = vunpack.c.l.b16 %v1427
    %v2495 = vunpack.c.l.b16 %v1428
    %v2496 = vunpack.c.h.b16 %v1428
    %v2497 = vunpack.c.l.b16 %v1429
    %v2498 = vunpack.c.l.b16 %v1430
    %v2499 = vunpack.c.h.b16 %v1430
    %v2500 = vunpack.c.l.b16 %v1431
    %v2501 = vunpack.c.l.b16 %v1432
    %v2502 = vunpack.c.h.b16 %v1432
    %v2503 = vunpack.c.l.b16 %v1433
    %v2504 = vunpack.c.l.b16 %v1434
    %v2505 = vunpack.c.h.b16 %v1434
    %v2506 = vunpack.c.l.b16 %v1435
    %v2507 = vunpack.c.l.b16 %v1436
    %v2508 = vunpack.c.h.b16 %v1436
    %v2509 = vunpack.c.l.b16 %v1437
    %v2510 = vunpack.c.l.b16 %v1438
    %v2511 = vunpack.c.h.b16 %v1438
    %v2512 = vunpack.c.l.b16 %v1439
    %v2513 = vunpack.c.l.b16 %v1440
    %v2514 = vunpack.c.h.b16 %v1440
    %v2515 = vunpack.c.l.b16 %v1441
    %v2516 = vunpack.c.l.b16 %v1442
    %v2517 = vunpack.c.h.b16 %v1442
    %v2518 = vunpack.c.l.b16 %v1443
    %v2519 = vunpack.c.l.b16 %v1444
    %v2520 = vunpack.c.h.b16 %v1444
    %v2521 = vunpack.c.l.b16 %v1445
    %v2522 = vunpack.c.l.b16 %v1446
    %v2523 = vunpack.c.h.b16 %v1446
    %v2524 = vunpack.c.l.b16 %v1447
    %v2525 = vunpack.c.l.b16 %v1448
    %v2526 = vunpack.c.h.b16 %v1448
    %v2527 = vunpack.c.l.b16 %v1449
    %v2528 = vunpack.c.l.b16 %v1450
    %v2529 = vunpack.c.h.b16 %v1450
    %v2530 = vunpack.c.l.b16 %v1451
    %v2531 = vunpack.c.l.b16 %v1452
    %v2532 = vunpack.c.h.b16 %v1452
    %v2533 = vunpack.c.l.b16 %v1453
    %v2534 = vunpack.c.l.b16 %v1454
    %v2535 = vunpack.c.h.b16 %v1454
    %v2536 = vunpack.c.l.b16 %v1455
    %v2537 = vunpack.c.l.b16 %v1456
    %v2538 = vunpack.c.h.b16 %v1456
    %v2539 = vunpack.c.l.b16 %v1457
    %v2540 = vunpack.c.l.b16 %v1458
    %v2541 = vunpack.c.h.b16 %v1458
    %v2542 = vunpack.c.l.b16 %v1459
    %v2543 = vunpack.c.l.b16 %v1460
    %v2544 = vunpack.c.h.b16 %v1460
    %v2545 = vunpack.c.l.b16 %v1461
    %v2546 = vunpack.c.l.b16 %v1462
    %v2547 = vunpack.c.h.b16 %v1462
    %v2548 = vunpack.c.l.b16 %v1463
    %v2549 = vunpack.c.l.b16 %v1464
    %v2550 = vunpack.c.h.b16 %v1464
    %v2551 = vunpack.c.l.b16 %v1465
    %v2552 = vunpack.c.l.b16 %v1466
    %v2553 = vunpack.c.h.b16 %v1466
    %v2554 = vunpack.c.l.b16 %v1467
    %v2555 = vunpack.c.l.b16 %v1468
    %v2556 = vunpack.c.h.b16 %v1468
    %v2557 = vunpack.c.l.b16 %v1469
    %v2558 = vunpack.c.l.b16 %v1470
    %v2559 = vunpack.c.h.b16 %v1470
    %v2560 = vunpack.c.l.b16 %v1471
    %v2561 = vunpack.c.l.b16 %v1472
    %v2562 = vunpack.c.h.b16 %v1472
    %v2563 = vunpack.c.l.b16 %v1473
    %v2564 = vunpack.c.l.b16 %v1474
    %v2565 = vunpack.c.h.b16 %v1474
    %v2566 = vunpack.c.l.b16 %v1475
    %v2567 = vunpack.c.l.b16 %v1476
    %v2568 = vunpack.c.h.b16 %v1476
    %v2569 = vunpack.c.l.b16 %v1477
    %v2570 = vunpack.c.l.b16 %v1478
    %v2571 = vunpack.c.h.b16 %v1478
    %v2572 = vunpack.c.l.b16 %v1479
    %v2573 = vunpack.c.l.b16 %v1480
    %v2574 = vunpack.c.h.b16 %v1480
    %v2575 = vunpack.c.l.b16 %v1481
    %v2576 = vunpack.c.l.b16 %v1482
    %v2577 = vunpack.c.h.b16 %v1482
    %v2578 = vunpack.c.l.b16 %v1483
    %v2579 = vunpack.c.l.b16 %v1484
    %v2580 = vunpack.c.h.b16 %v1484
    %v2581 = vunpack.c.l.b16 %v1485
    %v2582 = vunpack.c.l.b16 %v1486
    %v2583 = vunpack.c.h.b16 %v1486
    %v2584 = vunpack.c.l.b16 %v1487
    %v2585 = vunpack.c.l.b16 %v1488
    %v2586 = vunpack.c.h.b16 %v1488
    %v2587 = vunpack.c.l.b16 %v1489
    %v2588 = vunpack.c.l.b16 %v1490
    %v2589 = vunpack.c.h.b16 %v1490
    %v2590 = vunpack.c.l.b16 %v1491
    %v2591 = vunpack.c.l.b16 %v1492
    %v2592 = vunpack.c.h.b16 %v1492
    %v2593 = vunpack.c.l.b16 %v1493
    %v2594 = vunpack.c.l.b16 %v1494
    %v2595 = vunpack.c.h.b16 %v1494
    %v2596 = vunpack.c.l.b16 %v1495
    %v2597 = vunpack.c.l.b16 %v1496
    %v2598 = vunpack.c.h.b16 %v1496
    %v2599 = vunpack.c.l.b16 %v1497
    %v2600 = vunpack.c.l.b16 %v1498
    %v2601 = vunpack.c.h.b16 %v1498
    %v2602 = vunpack.c.l.b16 %v1499
    %v2603 = vunpack.c.l.b16 %v1500
    %v2604 = vunpack.c.h.b16 %v1500
    %v2605 = vunpack.c.l.b16 %v1501
    %v2606 = vunpack.c.l.b16 %v1502
    %v2607 = vunpack.c.h.b16 %v1502
    %v2608 = vunpack.c.l.b16 %v1503
    %v2609 = vunpack.c.l.b16 %v1504
    %v2610 = vunpack.c.h.b16 %v1504
    %v2611 = vunpack.c.l.b16 %v1505
    %v2612 = vunpack.c.l.b16 %v1506
    %v2613 = vunpack.c.h.b16 %v1506
    %v2614 = vunpack.c.l.b16 %v1507
    %v2615 = vunpack.c.l.b16 %v1508
    %v2616 = vunpack.c.h.b16 %v1508
    %v2617 = vunpack.c.l.b16 %v1509
    %v2618 = vunpack.c.l.b16 %v1510
    %v2619 = vunpack.c.h.b16 %v1510
    %v2620 = vunpack.c.l.b16 %v1511
    %v2621 = vunpack.c.l.b16 %v1512
    %v2622 = vunpack.c.h.b16 %v1512
    %v2623 = vunpack.c.l.b16 %v1513
    %v2624 = vunpack.c.l.b16 %v1514
    %v2625 = vunpack.c.h.b16 %v1514
    %v2626 = vunpack.c.l.b16 %v1515
    %v2627 = vunpack.c.l.b16 %v1516
    %v2628 = vunpack.c.h.b16 %v1516
    %v2629 = vunpack.c.l.b16 %v1517
    %v2630 = vunpack.c.l.b16 %v1518
    %v2631 = vunpack.c.h.b16 %v1518
    %v2632 = vunpack.c.l.b16 %v1519
    %v2633 = vunpack.c.l.b16 %v1520
    %v2634 = vunpack.c.h.b16 %v1520
    %v2635 = vunpack.c.l.b16 %v1521
    %v2636 = vunpack.c.l.b16 %v1522
    %v2637 = vunpack.c.h.b16 %v1522
    %v2638 = vunpack.c.l.b16 %v1523
    %v2639 = vunpack.c.l.b16 %v1524
    %v2640 = vunpack.c.h.b16 %v1524
    %v2641 = vunpack.c.l.b16 %v1525
    %v2642 = vunpack.c.l.b16 %v1526
    %v2643 = vunpack.c.h.b16 %v1526
    %v2644 = vunpack.c.l.b16 %v1527
    %v2645 = vunpack.c.l.b16 %v1528
    %v2646 = vunpack.c.h.b16 %v1528
    %v2647 = vunpack.c.l.b16 %v1529
    %v2648 = vunpack.c.l.b16 %v1530
    %v2649 = vunpack.c.h.b16 %v1530
    %v2650 = vunpack.c.l.b16 %v1531
    %v2651 = vunpack.c.l.b16 %v1532
    %v2652 = vunpack.c.h.b16 %v1532
    %v2653 = vunpack.c.l.b16 %v1533
    %v2654 = vunpack.c.l.b16 %v1534
    %v2655 = vunpack.c.h.b16 %v1534
    %v2656 = vunpack.c.l.b16 %v1535
    %v2657 = vunpack.c.l.b16 %v1536
    %v2658 = vunpack.c.h.b16 %v1536
    %v2659 = vunpack.c.l.b16 %v1537
    %v2660 = vunpack.c.l.b16 %v1538
    %v2661 = vunpack.c.h.b16 %v1538
    %v2662 = vunpack.c.l.b16 %v1539
    %v2663 = vunpack.c.l.b16 %v1540
    %v2664 = vunpack.c.h.b16 %v1540
    %v2665 = vunpack.c.l.b16 %v1541
    %v2666 = vunpack.c.l.b16 %v1542
    %v2667 = vunpack.c.h.b16 %v1542
    %v2668 = vunpack.c.l.b16 %v1543
    %v2669 = vunpack.c.l.b16 %v1544
    %v2670 = vunpack.c.h.b16 %v1544
    %v2671 = vunpack.c.l.b16 %v1545
    %v2672 = vunpack.c.l.b16 %v1546
    %v2673 = vunpack.c.h.b16 %v1546
    %v2674 = vunpack.c.l.b16 %v1547
    %v2675 = vunpack.c.l.b16 %v1548
    %v2676 = vunpack.c.h.b16 %v1548
    %v2677 = vunpack.c.l.b16 %v1549
    %v2678 = vunpack.c.l.b16 %v1550
    %v2679 = vunpack.c.h.b16 %v1550
    %v2680 = vunpack.c.l.b16 %v1551
    %v2681 = vunpack.c.l.b16 %v1552
    %v2682 = vunpack.c.h.b16 %v1552
    %v2683 = vunpack.c.l.b16 %v1553
    %v2684 = vunpack.c.l.b16 %v1554
    %v2685 = vunpack.c.h.b16 %v1554
    %v2686 = vunpack.c.l.b16 %v1555
    %v2687 = vunpack.c.l.b16 %v1556
    %v2688 = vunpack.c.h.b16 %v1556
    %v2689 = vunpack.c.l.b16 %v1557
    %v2690 = vpack.c.b16 %v2117, %v2114
    %v2691 = vpack.c.b16 %v2118, %v2115
    %v2692 = vpack.c.b16 %v2119, %v2116
    %v2693 = vpack.c.b16 %v2123, %v2120
    %v2694 = vpack.c.b16 %v2124, %v2121
    %v2695 = vpack.c.b16 %v2125, %v2122
    %v2696 = vpack.c.b16 %v2129, %v2126
    %v2697 = vpack.c.b16 %v2130, %v2127
    %v2698 = vpack.c.b16 %v2131, %v2128
    %v2699 = vpack.c.b16 %v2135, %v2132
    %v2700 = vpack.c.b16 %v2136, %v2133
    %v2701 = vpack.c.b16 %v2137, %v2134
    %v2702 = vpack.c.b16 %v2141, %v2138
    %v2703 = vpack.c.b16 %v2142, %v2139
    %v2704 = vpack.c.b16 %v2143, %v2140
    %v2705 = vpack.c.b16 %v2147, %v2144
    %v2706 = vpack.c.b16 %v2148, %v2145
    %v2707 = vpack.c.b16 %v2149, %v2146
    %v2708 = vpack.c.b16 %v2153, %v2150
    %v2709 = vpack.c.b16 %v2154, %v2151
    %v2710 = vpack.c.b16 %v2155, %v2152
    %v2711 = vpack.c.b16 %v2159, %v2156
    %v2712 = vpack.c.b16 %v2160, %v2157
    %v2713 = vpack.c.b16 %v2161, %v2158
    %v2714 = vpack.c.b16 %v2165, %v2162
    %v2715 = vpack.c.b16 %v2166, %v2163
    %v2716 = vpack.c.b16 %v2167, %v2164
    %v2717 = vpack.c.b16 %v2171, %v2168
    %v2718 = vpack.c.b16 %v2172, %v2169
    %v2719 = vpack.c.b16 %v2173, %v2170
    %v2720 = vpack.c.b16 %v2177, %v2174
    %v2721 = vpack.c.b16 %v2178, %v2175
    %v2722 = vpack.c.b16 %v2179, %v2176
    %v2723 = vpack.c.b16 %v2183, %v2180
    %v2724 = vpack.c.b16 %v2184, %v2181
    %v2725 = vpack.c.b16 %v2185, %v2182
    %v2726 = vpack.c.b16 %v2189, %v2186
    %v2727 = vpack.c.b16 %v2190, %v2187
    %v2728 = vpack.c.b16 %v2191, %v2188
    %v2729 = vpack.c.b16 %v2195, %v2192
    %v2730 = vpack.c.b16 %v2196, %v2193
    %v2731 = vpack.c.b16 %v2197, %v2194
    %v2732 = vpack.c.b16 %v2201, %v2198
    %v2733 = vpack.c.b16 %v2202, %v2199
    %v2734 = vpack.c.b16 %v2203, %v2200
    %v2735 = vpack.c.b16 %v2207, %v2204
    %v2736 = vpack.c.b16 %v2208, %v2205
    %v2737 = vpack.c.b16 %v2209, %v2206
    %v2738 = vpack.c.b16 %v2213, %v2210
    %v2739 = vpack.c.b16 %v2214, %v2211
    %v2740 = vpack.c.b16 %v2215, %v2212
    %v2741 = vpack.c.b16 %v2219, %v2216
    %v2742 = vpack.c.b16 %v2220, %v2217
    %v2743 = vpack.c.b16 %v2221, %v2218
    %v2744 = vpack.c.b16 %v2225, %v2222
    %v2745 = vpack.c.b16 %v2226, %v2223
    %v2746 = vpack.c.b16 %v2227, %v2224
    %v2747 = vpack.c.b16 %v2231, %v2228
    %v2748 = vpack.c.b16 %v2232, %v2229
    %v2749 = vpack.c.b16 %v2233, %v2230
    %v2750 = vpack.c.b16 %v2237, %v2234
    %v2751 = vpack.c.b16 %v2238, %v2235
    %v2752 = vpack.c.b16 %v2239, %v2236
    %v2753 = vpack.c.b16 %v2243, %v2240
    %v2754 = vpack.c.b16 %v2244, %v2241
    %v2755 = vpack.c.b16 %v2245, %v2242
    %v2756 = vpack.c.b16 %v2249, %v2246
    %v2757 = vpack.c.b16 %v2250, %v2247
    %v2758 = vpack.c.b16 %v2251, %v2248
    %v2759 = vpack.c.b16 %v2255, %v2252
    %v2760 = vpack.c.b16 %v2256, %v2253
    %v2761 = vpack.c.b16 %v2257, %v2254
    %v2762 = vpack.c.b16 %v2261, %v2258
    %v2763 = vpack.c.b16 %v2262, %v2259
    %v2764 = vpack.c.b16 %v2263, %v2260
    %v2765 = vpack.c.b16 %v2267, %v2264
    %v2766 = vpack.c.b16 %v2268, %v2265
    %v2767 = vpack.c.b16 %v2269, %v2266
    %v2768 = vpack.c.b16 %v2273, %v2270
    %v2769 = vpack.c.b16 %v2274, %v2271
    %v2770 = vpack.c.b16 %v2275, %v2272
    %v2771 = vpack.c.b16 %v2279, %v2276
    %v2772 = vpack.c.b16 %v2280, %v2277
    %v2773 = vpack.c.b16 %v2281, %v2278
    %v2774 = vpack.c.b16 %v2285, %v2282
    %v2775 = vpack.c.b16 %v2286, %v2283
    %v2776 = vpack.c.b16 %v2287, %v2284
    %v2777 = vpack.c.b16 %v2291, %v2288
    %v2778 = vpack.c.b16 %v2292, %v2289
    %v2779 = vpack.c.b16 %v2293, %v2290
    %v2780 = vpack.c.b16 %v2297, %v2294
    %v2781 = vpack.c.b16 %v2298, %v2295
    %v2782 = vpack.c.b16 %v2299, %v2296
    %v2783 = vpack.c.b16 %v2303, %v2300
    %v2784 = vpack.c.b16 %v2304, %v2301
    %v2785 = vpack.c.b16 %v2305, %v2302
    %v2786 = vpack.c.b16 %v2309, %v2306
    %v2787 = vpack.c.b16 %v2310, %v2307
    %v2788 = vpack.c.b16 %v2311, %v2308
    %v2789 = vpack.c.b16 %v2315, %v2312
    %v2790 = vpack.c.b16 %v2316, %v2313
    %v2791 = vpack.c.b16 %v2317, %v2314
    %v2792 = vpack.c.b16 %v2321, %v2318
    %v2793 = vpack.c.b16 %v2322, %v2319
    %v2794 = vpack.c.b16 %v2323, %v2320
    %v2795 = vpack.c.b16 %v2327, %v2324
    %v2796 = vpack.c.b16 %v2328, %v2325
    %v2797 = vpack.c.b16 %v2329, %v2326
    %v2798 = vpack.c.b16 %v2333, %v2330
    %v2799 = vpack.c.b16 %v2334, %v2331
    %v2800 = vpack.c.b16 %v2335, %v2332
    %v2801 = vpack.c.b16 %v2339, %v2336
    %v2802 = vpack.c.b16 %v2340, %v2337
    %v2803 = vpack.c.b16 %v2341, %v2338
    %v2804 = vpack.c.b16 %v2345, %v2342
    %v2805 = vpack.c.b16 %v2346, %v2343
    %v2806 = vpack.c.b16 %v2347, %v2344
    %v2807 = vpack.c.b16 %v2351, %v2348
    %v2808 = vpack.c.b16 %v2352, %v2349
    %v2809 = vpack.c.b16 %v2353, %v2350
    %v2810 = vpack.c.b16 %v2357, %v2354
    %v2811 = vpack.c.b16 %v2358, %v2355
    %v2812 = vpack.c.b16 %v2359, %v2356
    %v2813 = vpack.c.b16 %v2363, %v2360
    %v2814 = vpack.c.b16 %v2364, %v2361
    %v2815 = vpack.c.b16 %v2365, %v2362
    %v2816 = vpack.c.b16 %v2369, %v2366
    %v2817 = vpack.c.b16 %v2370, %v2367
    %v2818 = vpack.c.b16 %v2371, %v2368
    %v2819 = vpack.c.b16 %v2375, %v2372
    %v2820 = vpack.c.b16 %v2376, %v2373
    %v2821 = vpack.c.b16 %v2377, %v2374
    %v2822 = vpack.c.b16 %v2381, %v2378
    %v2823 = vpack.c.b16 %v2382, %v2379
    %v2824 = vpack.c.b16 %v2383, %v2380
    %v2825 = vpack.c.b16 %v2387, %v2384
    %v2826 = vpack.c.b16 %v2388, %v2385
    %v2827 = vpack.c.b16 %v2389, %v2386
    %v2828 = vpack.c.b16 %v2393, %v2390
    %v2829 = vpack.c.b16 %v2394, %v2391
    %v2830 = vpack.c.b16 %v2395, %v2392
    %v2831 = vpack.c.b16 %v2399, %v2396
    %v2832 = vpack.c.b16 %v2400, %v2397
    %v2833 = vpack.c.b16 %v2401, %v2398
    %v2834 = vpack.c.b16 %v2405, %v2402
    %v2835 = vpack.c.b16 %v2406, %v2403
    %v2836 = vpack.c.b16 %v2407, %v2404
    %v2837 = vpack.c.b16 %v2411, %v2408
    %v2838 = vpack.c.b16 %v2412, %v2409
    %v2839 = vpack.c.b16 %v2413, %v2410
    %v2840 = vpack.c.b16 %v2417, %v2414
    %v2841 = vpack.c.b16 %v2418, %v2415
    %v2842 = vpack.c.b16 %v2419, %v2416
    %v2843 = vpack.c.b16 %v2423, %v2420
    %v2844 = vpack.c.b16 %v2424, %v2421
    %v2845 = vpack.c.b16 %v2425, %v2422
    %v2846 = vpack.c.b16 %v2429, %v2426
    %v2847 = vpack.c.b16 %v2430, %v2427
    %v2848 = vpack.c.b16 %v2431, %v2428
    %v2849 = vpack.c.b16 %v2435, %v2432
    %v2850 = vpack.c.b16 %v2436, %v2433
    %v2851 = vpack.c.b16 %v2437, %v2434
    %v2852 = vpack.c.b16 %v2441, %v2438
    %v2853 = vpack.c.b16 %v2442, %v2439
    %v2854 = vpack.c.b16 %v2443, %v2440
    %v2855 = vpack.c.b16 %v2447, %v2444
    %v2856 = vpack.c.b16 %v2448, %v2445
    %v2857 = vpack.c.b16 %v2449, %v2446
    %v2858 = vpack.c.b16 %v2453, %v2450
    %v2859 = vpack.c.b16 %v2454, %v2451
    %v2860 = vpack.c.b16 %v2455, %v2452
    %v2861 = vpack.c.b16 %v2459, %v2456
    %v2862 = vpack.c.b16 %v2460, %v2457
    %v2863 = vpack.c.b16 %v2461, %v2458
    %v2864 = vpack.c.b16 %v2465, %v2462
    %v2865 = vpack.c.b16 %v2466, %v2463
    %v2866 = vpack.c.b16 %v2467, %v2464
    %v2867 = vpack.c.b16 %v2471, %v2468
    %v2868 = vpack.c.b16 %v2472, %v2469
    %v2869 = vpack.c.b16 %v2473, %v2470
    %v2870 = vpack.c.b16 %v2477, %v2474
    %v2871 = vpack.c.b16 %v2478, %v2475
    %v2872 = vpack.c.b16 %v2479, %v2476
    %v2873 = vpack.c.b16 %v2483, %v2480
    %v2874 = vpack.c.b16 %v2484, %v2481
    %v2875 = vpack.c.b16 %v2485, %v2482
    %v2876 = vpack.c.b16 %v2489, %v2486
    %v2877 = vpack.c.b16 %v2490, %v2487
    %v2878 = vpack.c.b16 %v2491, %v2488
    %v2879 = vpack.c.b16 %v2495, %v2492
    %v2880 = vpack.c.b16 %v2496, %v2493
    %v2881 = vpack.c.b16 %v2497, %v2494
    %v2882 = vpack.c.b16 %v2501, %v2498
    %v2883 = vpack.c.b16 %v2502, %v2499
    %v2884 = vpack.c.b16 %v2503, %v2500
    %v2885 = vpack.c.b16 %v2507, %v2504
    %v2886 = vpack.c.b16 %v2508, %v2505
    %v2887 = vpack.c.b16 %v2509, %v2506
    %v2888 = vpack.c.b16 %v2513, %v2510
    %v2889 = vpack.c.b16 %v2514, %v2511
    %v2890 = vpack.c.b16 %v2515, %v2512
    %v2891 = vpack.c.b16 %v2519, %v2516
    %v2892 = vpack.c.b16 %v2520, %v2517
    %v2893 = vpack.c.b16 %v2521, %v2518
    %v2894 = vpack.c.b16 %v2525, %v2522
    %v2895 = vpack.c.b16 %v2526, %v2523
    %v2896 = vpack.c.b16 %v2527, %v2524
    %v2897 = vpack.c.b16 %v2531, %v2528
    %v2898 = vpack.c.b16 %v2532, %v2529
    %v2899 = vpack.c.b16 %v2533, %v2530
    %v2900 = vpack.c.b16 %v2537, %v2534
    %v2901 = vpack.c.b16 %v2538, %v2535
    %v2902 = vpack.c.b16 %v2539, %v2536
    %v2903 = vpack.c.b16 %v2543, %v2540
    %v2904 = vpack.c.b16 %v2544, %v2541
    %v2905 = vpack.c.b16 %v2545, %v2542
    %v2906 = vpack.c.b16 %v2549, %v2546
    %v2907 = vpack.c.b16 %v2550, %v2547
    %v2908 = vpack.c.b16 %v2551, %v2548
    %v2909 = vpack.c.b16 %v2555, %v2552
    %v2910 = vpack.c.b16 %v2556, %v2553
    %v2911 = vpack.c.b16 %v2557, %v2554
    %v2912 = vpack.c.b16 %v2561, %v2558
    %v2913 = vpack.c.b16 %v2562, %v2559
    %v2914 = vpack.c.b16 %v2563, %v2560
    %v2915 = vpack.c.b16 %v2567, %v2564
    %v2916 = vpack.c.b16 %v2568, %v2565
    %v2917 = vpack.c.b16 %v2569, %v2566
    %v2918 = vpack.c.b16 %v2573, %v2570
    %v2919 = vpack.c.b16 %v2574, %v2571
    %v2920 = vpack.c.b16 %v2575, %v2572
    %v2921 = vpack.c.b16 %v2579, %v2576
    %v2922 = vpack.c.b16 %v2580, %v2577
    %v2923 = vpack.c.b16 %v2581, %v2578
    %v2924 = vpack.c.b16 %v2585, %v2582
    %v2925 = vpack.c.b16 %v2586, %v2583
    %v2926 = vpack.c.b16 %v2587, %v2584
    %v2927 = vpack.c.b16 %v2591, %v2588
    %v2928 = vpack.c.b16 %v2592, %v2589
    %v2929 = vpack.c.b16 %v2593, %v2590
    %v2930 = vpack.c.b16 %v2597, %v2594
    %v2931 = vpack.c.b16 %v2598, %v2595
    %v2932 = vpack.c.b16 %v2599, %v2596
    %v2933 = vpack.c.b16 %v2603, %v2600
    %v2934 = vpack.c.b16 %v2604, %v2601
    %v2935 = vpack.c.b16 %v2605, %v2602
    %v2936 = vpack.c.b16 %v2609, %v2606
    %v2937 = vpack.c.b16 %v2610, %v2607
    %v2938 = vpack.c.b16 %v2611, %v2608
    %v2939 = vpack.c.b16 %v2615, %v2612
    %v2940 = vpack.c.b16 %v2616, %v2613
    %v2941 = vpack.c.b16 %v2617, %v2614
    %v2942 = vpack.c.b16 %v2621, %v2618
    %v2943 = vpack.c.b16 %v2622, %v2619
    %v2944 = vpack.c.b16 %v2623, %v2620
    %v2945 = vpack.c.b16 %v2627, %v2624
    %v2946 = vpack.c.b16 %v2628, %v2625
    %v2947 = vpack.c.b16 %v2629, %v2626
    %v2948 = vpack.c.b16 %v2633, %v2630
    %v2949 = vpack.c.b16 %v2634, %v2631
    %v2950 = vpack.c.b16 %v2635, %v2632
    %v2951 = vpack.c.b16 %v2639, %v2636
    %v2952 = vpack.c.b16 %v2640, %v2637
    %v2953 = vpack.c.b16 %v2641, %v2638
    %v2954 = vpack.c.b16 %v2645, %v2642
    %v2955 = vpack.c.b16 %v2646, %v2643
    %v2956 = vpack.c.b16 %v2647, %v2644
    %v2957 = vpack.c.b16 %v2651, %v2648
    %v2958 = vpack.c.b16 %v2652, %v2649
    %v2959 = vpack.c.b16 %v2653, %v2650
    %v2960 = vpack.c.b16 %v2657, %v2654
    %v2961 = vpack.c.b16 %v2658, %v2655
    %v2962 = vpack.c.b16 %v2659, %v2656
    %v2963 = vpack.c.b16 %v2663, %v2660
    %v2964 = vpack.c.b16 %v2664, %v2661
    %v2965 = vpack.c.b16 %v2665, %v2662
    %v2966 = vpack.c.b16 %v2669, %v2666
    %v2967 = vpack.c.b16 %v2670, %v2667
    %v2968 = vpack.c.b16 %v2671, %v2668
    %v2969 = vpack.c.b16 %v2675, %v2672
    %v2970 = vpack.c.b16 %v2676, %v2673
    %v2971 = vpack.c.b16 %v2677, %v2674
    %v2972 = vpack.c.b16 %v2681, %v2678
    %v2973 = vpack.c.b16 %v2682, %v2679
    %v2974 = vpack.c.b16 %v2683, %v2680
    %v2975 = vpack.c.b16 %v2687, %v2684
    %v2976 = vpack.c.b16 %v2688, %v2685
    %v2977 = vpack.c.b16 %v2689, %v2686
    %3266 = vmatpush.bf16.msra.mxu0 %v2711
    %3267 = vmatpush.bf16.msra.mxu0 %v2708
    %3268 = vmatpush.bf16.msra.mxu0 %v2705
    %3269 = vmatpush.bf16.msra.mxu0 %v2702
    %3270 = vmatpush.bf16.msra.mxu0 %v2699
    %3271 = vmatpush.bf16.msra.mxu0 %v2696
    %3272 = vmatpush.bf16.msra.mxu0 %v2693
    %3273 = vmatpush.bf16.msra.mxu0 %v2690
    %3274 = vmatmul.bf16.gmra.mxu0 %v1699
    %v3275 = vpop.f32.mrf.mxu0
    %v3276 = vadd.f32 %v1724, %v3275
    %v3277 = vpop.f32.mrf.mxu0
    %v3278 = vadd.f32 %v1724, %v3277
    %3279 = vmatmul.bf16.gmra.mxu0 %v1711
    %v3280 = vpop.f32.mrf.mxu0
    %v3281 = vadd.f32 %v1724, %v3280
    %v3282 = vpop.f32.mrf.mxu0
    %3283 = vdwg.mxu0
    %3284 = vmatpush.bf16.msra.mxu0 %v2735
    %3285 = vmatpush.bf16.msra.mxu0 %v2732
    %3286 = vmatpush.bf16.msra.mxu0 %v2729
    %3287 = vmatpush.bf16.msra.mxu0 %v2726
    %3288 = vmatpush.bf16.msra.mxu0 %v2723
    %3289 = vmatpush.bf16.msra.mxu0 %v2720
    %3290 = vmatpush.bf16.msra.mxu0 %v2717
    %3291 = vmatpush.bf16.msra.mxu0 %v2714
    %3292 = vmatmul.bf16.gmra.mxu0 %v1700
    %v3293 = vpop.f32.mrf.mxu0
    %v3294 = vadd.f32 %v3276, %v3293
    %v3295 = vpop.f32.mrf.mxu0
    %v3296 = vadd.f32 %v3278, %v3295
    %3297 = vmatmul.bf16.gmra.mxu0 %v1712
    %v3298 = vpop.f32.mrf.mxu0
    %v3299 = vadd.f32 %v3281, %v3298
    %v3300 = vpop.f32.mrf.mxu0
    %3301 = vdwg.mxu0
    %3302 = vmatpush.bf16.msra.mxu0 %v2759
    %3303 = vmatpush.bf16.msra.mxu0 %v2756
    %3304 = vmatpush.bf16.msra.mxu0 %v2753
    %3305 = vmatpush.bf16.msra.mxu0 %v2750
    %3306 = vmatpush.bf16.msra.mxu0 %v2747
    %3307 = vmatpush.bf16.msra.mxu0 %v2744
    %3308 = vmatpush.bf16.msra.mxu0 %v2741
    %3309 = vmatpush.bf16.msra.mxu0 %v2738
    %3310 = vmatmul.bf16.gmra.mxu0 %v1701
    %v3311 = vpop.f32.mrf.mxu0
    %v3312 = vadd.f32 %v3294, %v3311
    %v3313 = vpop.f32.mrf.mxu0
    %v3314 = vadd.f32 %v3296, %v3313
    %3315 = vmatmul.bf16.gmra.mxu0 %v1713
    %v3316 = vpop.f32.mrf.mxu0
    %v3317 = vadd.f32 %v3299, %v3316
    %v3318 = vpop.f32.mrf.mxu0
    %3319 = vdwg.mxu0
    %3320 = vmatpush.bf16.msra.mxu0 %v2783
    %3321 = vmatpush.bf16.msra.mxu0 %v2780
    %3322 = vmatpush.bf16.msra.mxu0 %v2777
    %3323 = vmatpush.bf16.msra.mxu0 %v2774
    %3324 = vmatpush.bf16.msra.mxu0 %v2771
    %3325 = vmatpush.bf16.msra.mxu0 %v2768
    %3326 = vmatpush.bf16.msra.mxu0 %v2765
    %3327 = vmatpush.bf16.msra.mxu0 %v2762
    %3328 = vmatmul.bf16.gmra.mxu0 %v1702
    %v3329 = vpop.f32.mrf.mxu0
    %v3330 = vadd.f32 %v3312, %v3329
    %v3331 = vpop.f32.mrf.mxu0
    %v3332 = vadd.f32 %v3314, %v3331
    %3333 = vmatmul.bf16.gmra.mxu0 %v1714
    %v3334 = vpop.f32.mrf.mxu0
    %v3335 = vadd.f32 %v3317, %v3334
    %v3336 = vpop.f32.mrf.mxu0
    %3337 = vdwg.mxu0
    %3338 = vmatpush.bf16.msra.mxu0 %v2807
    %3339 = vmatpush.bf16.msra.mxu0 %v2804
    %3340 = vmatpush.bf16.msra.mxu0 %v2801
    %3341 = vmatpush.bf16.msra.mxu0 %v2798
    %3342 = vmatpush.bf16.msra.mxu0 %v2795
    %3343 = vmatpush.bf16.msra.mxu0 %v2792
    %3344 = vmatpush.bf16.msra.mxu0 %v2789
    %3345 = vmatpush.bf16.msra.mxu0 %v2786
    %3346 = vmatmul.bf16.gmra.mxu0 %v1703
    %v3347 = vpop.f32.mrf.mxu0
    %v3348 = vadd.f32 %v3330, %v3347
    %v3349 = vpop.f32.mrf.mxu0
    %v3350 = vadd.f32 %v3332, %v3349
    %3351 = vmatmul.bf16.gmra.mxu0 %v1715
    %v3352 = vpop.f32.mrf.mxu0
    %v3353 = vadd.f32 %v3335, %v3352
    %v3354 = vpop.f32.mrf.mxu0
    %3355 = vdwg.mxu0
    %3356 = vmatpush.bf16.msra.mxu0 %v2831
    %3357 = vmatpush.bf16.msra.mxu0 %v2828
    %3358 = vmatpush.bf16.msra.mxu0 %v2825
    %3359 = vmatpush.bf16.msra.mxu0 %v2822
    %3360 = vmatpush.bf16.msra.mxu0 %v2819
    %3361 = vmatpush.bf16.msra.mxu0 %v2816
    %3362 = vmatpush.bf16.msra.mxu0 %v2813
    %3363 = vmatpush.bf16.msra.mxu0 %v2810
    %3364 = vmatmul.bf16.gmra.mxu0 %v1704
    %v3365 = vpop.f32.mrf.mxu0
    %v3366 = vadd.f32 %v3348, %v3365
    %v3367 = vpop.f32.mrf.mxu0
    %v3368 = vadd.f32 %v3350, %v3367
    %3369 = vmatmul.bf16.gmra.mxu0 %v1716
    %v3370 = vpop.f32.mrf.mxu0
    %v3371 = vadd.f32 %v3353, %v3370
    %v3372 = vpop.f32.mrf.mxu0
    %3373 = vdwg.mxu0
    %3374 = vmatpush.bf16.msra.mxu0 %v2855
    %3375 = vmatpush.bf16.msra.mxu0 %v2852
    %3376 = vmatpush.bf16.msra.mxu0 %v2849
    %3377 = vmatpush.bf16.msra.mxu0 %v2846
    %3378 = vmatpush.bf16.msra.mxu0 %v2843
    %3379 = vmatpush.bf16.msra.mxu0 %v2840
    %3380 = vmatpush.bf16.msra.mxu0 %v2837
    %3381 = vmatpush.bf16.msra.mxu0 %v2834
    %3382 = vmatmul.bf16.gmra.mxu0 %v1705
    %v3383 = vpop.f32.mrf.mxu0
    %v3384 = vadd.f32 %v3366, %v3383
    %v3385 = vpop.f32.mrf.mxu0
    %v3386 = vadd.f32 %v3368, %v3385
    %3387 = vmatmul.bf16.gmra.mxu0 %v1717
    %v3388 = vpop.f32.mrf.mxu0
    %v3389 = vadd.f32 %v3371, %v3388
    %v3390 = vpop.f32.mrf.mxu0
    %3391 = vdwg.mxu0
    %3392 = vmatpush.bf16.msra.mxu0 %v2879
    %3393 = vmatpush.bf16.msra.mxu0 %v2876
    %3394 = vmatpush.bf16.msra.mxu0 %v2873
    %3395 = vmatpush.bf16.msra.mxu0 %v2870
    %3396 = vmatpush.bf16.msra.mxu0 %v2867
    %3397 = vmatpush.bf16.msra.mxu0 %v2864
    %3398 = vmatpush.bf16.msra.mxu0 %v2861
    %3399 = vmatpush.bf16.msra.mxu0 %v2858
    %3400 = vmatmul.bf16.gmra.mxu0 %v1706
    %v3401 = vpop.f32.mrf.mxu0
    %v3402 = vadd.f32 %v3384, %v3401
    %v3403 = vpop.f32.mrf.mxu0
    %v3404 = vadd.f32 %v3386, %v3403
    %3405 = vmatmul.bf16.gmra.mxu0 %v1718
    %v3406 = vpop.f32.mrf.mxu0
    %v3407 = vadd.f32 %v3389, %v3406
    %v3408 = vpop.f32.mrf.mxu0
    %3409 = vdwg.mxu0
    %3410 = vmatpush.bf16.msra.mxu0 %v2903
    %3411 = vmatpush.bf16.msra.mxu0 %v2900
    %3412 = vmatpush.bf16.msra.mxu0 %v2897
    %3413 = vmatpush.bf16.msra.mxu0 %v2894
    %3414 = vmatpush.bf16.msra.mxu0 %v2891
    %3415 = vmatpush.bf16.msra.mxu0 %v2888
    %3416 = vmatpush.bf16.msra.mxu0 %v2885
    %3417 = vmatpush.bf16.msra.mxu0 %v2882
    %3418 = vmatmul.bf16.gmra.mxu0 %v1707
    %v3419 = vpop.f32.mrf.mxu0
    %v3420 = vadd.f32 %v3402, %v3419
    %v3421 = vpop.f32.mrf.mxu0
    %v3422 = vadd.f32 %v3404, %v3421
    %3423 = vmatmul.bf16.gmra.mxu0 %v1719
    %v3424 = vpop.f32.mrf.mxu0
    %v3425 = vadd.f32 %v3407, %v3424
    %v3426 = vpop.f32.mrf.mxu0
    %3427 = vdwg.mxu0
    %3428 = vmatpush.bf16.msra.mxu0 %v2927
    %3429 = vmatpush.bf16.msra.mxu0 %v2924
    %3430 = vmatpush.bf16.msra.mxu0 %v2921
    %3431 = vmatpush.bf16.msra.mxu0 %v2918
    %3432 = vmatpush.bf16.msra.mxu0 %v2915
    %3433 = vmatpush.bf16.msra.mxu0 %v2912
    %3434 = vmatpush.bf16.msra.mxu0 %v2909
    %3435 = vmatpush.bf16.msra.mxu0 %v2906
    %3436 = vmatmul.bf16.gmra.mxu0 %v1708
    %v3437 = vpop.f32.mrf.mxu0
    %v3438 = vadd.f32 %v3420, %v3437
    %v3439 = vpop.f32.mrf.mxu0
    %v3440 = vadd.f32 %v3422, %v3439
    %3441 = vmatmul.bf16.gmra.mxu0 %v1720
    %v3442 = vpop.f32.mrf.mxu0
    %v3443 = vadd.f32 %v3425, %v3442
    %v3444 = vpop.f32.mrf.mxu0
    %3445 = vdwg.mxu0
    %3446 = vmatpush.bf16.msra.mxu0 %v2951
    %3447 = vmatpush.bf16.msra.mxu0 %v2948
    %3448 = vmatpush.bf16.msra.mxu0 %v2945
    %3449 = vmatpush.bf16.msra.mxu0 %v2942
    %3450 = vmatpush.bf16.msra.mxu0 %v2939
    %3451 = vmatpush.bf16.msra.mxu0 %v2936
    %3452 = vmatpush.bf16.msra.mxu0 %v2933
    %3453 = vmatpush.bf16.msra.mxu0 %v2930
    %3454 = vmatmul.bf16.gmra.mxu0 %v1709
    %v3455 = vpop.f32.mrf.mxu0
    %v3456 = vadd.f32 %v3438, %v3455
    %v3457 = vpop.f32.mrf.mxu0
    %v3458 = vadd.f32 %v3440, %v3457
    %3459 = vmatmul.bf16.gmra.mxu0 %v1721
    %v3460 = vpop.f32.mrf.mxu0
    %v3461 = vadd.f32 %v3443, %v3460
    %v3462 = vpop.f32.mrf.mxu0
    %3463 = vdwg.mxu0
    %3464 = vmatpush.bf16.msra.mxu0 %v2975
    %3465 = vmatpush.bf16.msra.mxu0 %v2972
    %3466 = vmatpush.bf16.msra.mxu0 %v2969
    %3467 = vmatpush.bf16.msra.mxu0 %v2966
    %3468 = vmatpush.bf16.msra.mxu0 %v2963
    %3469 = vmatpush.bf16.msra.mxu0 %v2960
    %3470 = vmatpush.bf16.msra.mxu0 %v2957
    %3471 = vmatpush.bf16.msra.mxu0 %v2954
    %3472 = vmatmul.bf16.gmra.mxu0 %v1710
    %v3473 = vpop.f32.mrf.mxu0
    %v3474 = vadd.f32 %v3456, %v3473
    %v3475 = vpop.f32.mrf.mxu0
    %v3476 = vadd.f32 %v3458, %v3475
    %3477 = vmatmul.bf16.gmra.mxu0 %v1722
    %v3478 = vpop.f32.mrf.mxu0
    %v3479 = vadd.f32 %v3461, %v3478
    %v3480 = vpop.f32.mrf.mxu0
    %3481 = vdwg.mxu0
    %3482 = vmatpush.bf16.msra.mxu0 %v2712
    %3483 = vmatpush.bf16.msra.mxu0 %v2709
    %3484 = vmatpush.bf16.msra.mxu0 %v2706
    %3485 = vmatpush.bf16.msra.mxu0 %v2703
    %3486 = vmatpush.bf16.msra.mxu0 %v2700
    %3487 = vmatpush.bf16.msra.mxu0 %v2697
    %3488 = vmatpush.bf16.msra.mxu0 %v2694
    %3489 = vmatpush.bf16.msra.mxu0 %v2691
    %3490 = vmatmul.bf16.gmra.mxu0 %v1699
    %v3491 = vpop.f32.mrf.mxu0
    %v3492 = vadd.f32 %v1725, %v3491
    %v3493 = vpop.f32.mrf.mxu0
    %v3494 = vadd.f32 %v1725, %v3493
    %3495 = vmatmul.bf16.gmra.mxu0 %v1711
    %v3496 = vpop.f32.mrf.mxu0
    %v3497 = vadd.f32 %v1725, %v3496
    %v3498 = vpop.f32.mrf.mxu0
    %3499 = vdwg.mxu0
    %3500 = vmatpush.bf16.msra.mxu0 %v2736
    %3501 = vmatpush.bf16.msra.mxu0 %v2733
    %3502 = vmatpush.bf16.msra.mxu0 %v2730
    %3503 = vmatpush.bf16.msra.mxu0 %v2727
    %3504 = vmatpush.bf16.msra.mxu0 %v2724
    %3505 = vmatpush.bf16.msra.mxu0 %v2721
    %3506 = vmatpush.bf16.msra.mxu0 %v2718
    %3507 = vmatpush.bf16.msra.mxu0 %v2715
    %3508 = vmatmul.bf16.gmra.mxu0 %v1700
    %v3509 = vpop.f32.mrf.mxu0
    %v3510 = vadd.f32 %v3492, %v3509
    %v3511 = vpop.f32.mrf.mxu0
    %v3512 = vadd.f32 %v3494, %v3511
    %3513 = vmatmul.bf16.gmra.mxu0 %v1712
    %v3514 = vpop.f32.mrf.mxu0
    %v3515 = vadd.f32 %v3497, %v3514
    %v3516 = vpop.f32.mrf.mxu0
    %3517 = vdwg.mxu0
    %3518 = vmatpush.bf16.msra.mxu0 %v2760
    %3519 = vmatpush.bf16.msra.mxu0 %v2757
    %3520 = vmatpush.bf16.msra.mxu0 %v2754
    %3521 = vmatpush.bf16.msra.mxu0 %v2751
    %3522 = vmatpush.bf16.msra.mxu0 %v2748
    %3523 = vmatpush.bf16.msra.mxu0 %v2745
    %3524 = vmatpush.bf16.msra.mxu0 %v2742
    %3525 = vmatpush.bf16.msra.mxu0 %v2739
    %3526 = vmatmul.bf16.gmra.mxu0 %v1701
    %v3527 = vpop.f32.mrf.mxu0
    %v3528 = vadd.f32 %v3510, %v3527
    %v3529 = vpop.f32.mrf.mxu0
    %v3530 = vadd.f32 %v3512, %v3529
    %3531 = vmatmul.bf16.gmra.mxu0 %v1713
    %v3532 = vpop.f32.mrf.mxu0
    %v3533 = vadd.f32 %v3515, %v3532
    %v3534 = vpop.f32.mrf.mxu0
    %3535 = vdwg.mxu0
    %3536 = vmatpush.bf16.msra.mxu0 %v2784
    %3537 = vmatpush.bf16.msra.mxu0 %v2781
    %3538 = vmatpush.bf16.msra.mxu0 %v2778
    %3539 = vmatpush.bf16.msra.mxu0 %v2775
    %3540 = vmatpush.bf16.msra.mxu0 %v2772
    %3541 = vmatpush.bf16.msra.mxu0 %v2769
    %3542 = vmatpush.bf16.msra.mxu0 %v2766
    %3543 = vmatpush.bf16.msra.mxu0 %v2763
    %3544 = vmatmul.bf16.gmra.mxu0 %v1702
    %v3545 = vpop.f32.mrf.mxu0
    %v3546 = vadd.f32 %v3528, %v3545
    %v3547 = vpop.f32.mrf.mxu0
    %v3548 = vadd.f32 %v3530, %v3547
    %3549 = vmatmul.bf16.gmra.mxu0 %v1714
    %v3550 = vpop.f32.mrf.mxu0
    %v3551 = vadd.f32 %v3533, %v3550
    %v3552 = vpop.f32.mrf.mxu0
    %3553 = vdwg.mxu0
    %3554 = vmatpush.bf16.msra.mxu0 %v2808
    %3555 = vmatpush.bf16.msra.mxu0 %v2805
    %3556 = vmatpush.bf16.msra.mxu0 %v2802
    %3557 = vmatpush.bf16.msra.mxu0 %v2799
    %3558 = vmatpush.bf16.msra.mxu0 %v2796
    %3559 = vmatpush.bf16.msra.mxu0 %v2793
    %3560 = vmatpush.bf16.msra.mxu0 %v2790
    %3561 = vmatpush.bf16.msra.mxu0 %v2787
    %3562 = vmatmul.bf16.gmra.mxu0 %v1703
    %v3563 = vpop.f32.mrf.mxu0
    %v3564 = vadd.f32 %v3546, %v3563
    %v3565 = vpop.f32.mrf.mxu0
    %v3566 = vadd.f32 %v3548, %v3565
    %3567 = vmatmul.bf16.gmra.mxu0 %v1715
    %v3568 = vpop.f32.mrf.mxu0
    %v3569 = vadd.f32 %v3551, %v3568
    %v3570 = vpop.f32.mrf.mxu0
    %3571 = vdwg.mxu0
    %3572 = vmatpush.bf16.msra.mxu0 %v2832
    %3573 = vmatpush.bf16.msra.mxu0 %v2829
    %3574 = vmatpush.bf16.msra.mxu0 %v2826
    %3575 = vmatpush.bf16.msra.mxu0 %v2823
    %3576 = vmatpush.bf16.msra.mxu0 %v2820
    %3577 = vmatpush.bf16.msra.mxu0 %v2817
    %3578 = vmatpush.bf16.msra.mxu0 %v2814
    %3579 = vmatpush.bf16.msra.mxu0 %v2811
    %3580 = vmatmul.bf16.gmra.mxu0 %v1704
    %v3581 = vpop.f32.mrf.mxu0
    %v3582 = vadd.f32 %v3564, %v3581
    %v3583 = vpop.f32.mrf.mxu0
    %v3584 = vadd.f32 %v3566, %v3583
    %3585 = vmatmul.bf16.gmra.mxu0 %v1716
    %v3586 = vpop.f32.mrf.mxu0
    %v3587 = vadd.f32 %v3569, %v3586
    %v3588 = vpop.f32.mrf.mxu0
    %3589 = vdwg.mxu0
    %3590 = vmatpush.bf16.msra.mxu0 %v2856
    %3591 = vmatpush.bf16.msra.mxu0 %v2853
    %3592 = vmatpush.bf16.msra.mxu0 %v2850
    %3593 = vmatpush.bf16.msra.mxu0 %v2847
    %3594 = vmatpush.bf16.msra.mxu0 %v2844
    %3595 = vmatpush.bf16.msra.mxu0 %v2841
    %3596 = vmatpush.bf16.msra.mxu0 %v2838
    %3597 = vmatpush.bf16.msra.mxu0 %v2835
    %3598 = vmatmul.bf16.gmra.mxu0 %v1705
    %v3599 = vpop.f32.mrf.mxu0
    %v3600 = vadd.f32 %v3582, %v3599
    %v3601 = vpop.f32.mrf.mxu0
    %v3602 = vadd.f32 %v3584, %v3601
    %3603 = vmatmul.bf16.gmra.mxu0 %v1717
    %v3604 = vpop.f32.mrf.mxu0
    %v3605 = vadd.f32 %v3587, %v3604
    %v3606 = vpop.f32.mrf.mxu0
    %3607 = vdwg.mxu0
    %3608 = vmatpush.bf16.msra.mxu0 %v2880
    %3609 = vmatpush.bf16.msra.mxu0 %v2877
    %3610 = vmatpush.bf16.msra.mxu0 %v2874
    %3611 = vmatpush.bf16.msra.mxu0 %v2871
    %3612 = vmatpush.bf16.msra.mxu0 %v2868
    %3613 = vmatpush.bf16.msra.mxu0 %v2865
    %3614 = vmatpush.bf16.msra.mxu0 %v2862
    %3615 = vmatpush.bf16.msra.mxu0 %v2859
    %3616 = vmatmul.bf16.gmra.mxu0 %v1706
    %v3617 = vpop.f32.mrf.mxu0
    %v3618 = vadd.f32 %v3600, %v3617
    %v3619 = vpop.f32.mrf.mxu0
    %v3620 = vadd.f32 %v3602, %v3619
    %3621 = vmatmul.bf16.gmra.mxu0 %v1718
    %v3622 = vpop.f32.mrf.mxu0
    %v3623 = vadd.f32 %v3605, %v3622
    %v3624 = vpop.f32.mrf.mxu0
    %3625 = vdwg.mxu0
    %3626 = vmatpush.bf16.msra.mxu0 %v2904
    %3627 = vmatpush.bf16.msra.mxu0 %v2901
    %3628 = vmatpush.bf16.msra.mxu0 %v2898
    %3629 = vmatpush.bf16.msra.mxu0 %v2895
    %3630 = vmatpush.bf16.msra.mxu0 %v2892
    %3631 = vmatpush.bf16.msra.mxu0 %v2889
    %3632 = vmatpush.bf16.msra.mxu0 %v2886
    %3633 = vmatpush.bf16.msra.mxu0 %v2883
    %3634 = vmatmul.bf16.gmra.mxu0 %v1707
    %v3635 = vpop.f32.mrf.mxu0
    %v3636 = vadd.f32 %v3618, %v3635
    %v3637 = vpop.f32.mrf.mxu0
    %v3638 = vadd.f32 %v3620, %v3637
    %3639 = vmatmul.bf16.gmra.mxu0 %v1719
    %v3640 = vpop.f32.mrf.mxu0
    %v3641 = vadd.f32 %v3623, %v3640
    %v3642 = vpop.f32.mrf.mxu0
    %3643 = vdwg.mxu0
    %3644 = vmatpush.bf16.msra.mxu0 %v2928
    %3645 = vmatpush.bf16.msra.mxu0 %v2925
    %3646 = vmatpush.bf16.msra.mxu0 %v2922
    %3647 = vmatpush.bf16.msra.mxu0 %v2919
    %3648 = vmatpush.bf16.msra.mxu0 %v2916
    %3649 = vmatpush.bf16.msra.mxu0 %v2913
    %3650 = vmatpush.bf16.msra.mxu0 %v2910
    %3651 = vmatpush.bf16.msra.mxu0 %v2907
    %3652 = vmatmul.bf16.gmra.mxu0 %v1708
    %v3653 = vpop.f32.mrf.mxu0
    %v3654 = vadd.f32 %v3636, %v3653
    %v3655 = vpop.f32.mrf.mxu0
    %v3656 = vadd.f32 %v3638, %v3655
    %3657 = vmatmul.bf16.gmra.mxu0 %v1720
    %v3658 = vpop.f32.mrf.mxu0
    %v3659 = vadd.f32 %v3641, %v3658
    %v3660 = vpop.f32.mrf.mxu0
    %3661 = vdwg.mxu0
    %3662 = vmatpush.bf16.msra.mxu0 %v2952
    %3663 = vmatpush.bf16.msra.mxu0 %v2949
    %3664 = vmatpush.bf16.msra.mxu0 %v2946
    %3665 = vmatpush.bf16.msra.mxu0 %v2943
    %3666 = vmatpush.bf16.msra.mxu0 %v2940
    %3667 = vmatpush.bf16.msra.mxu0 %v2937
    %3668 = vmatpush.bf16.msra.mxu0 %v2934
    %3669 = vmatpush.bf16.msra.mxu0 %v2931
    %3670 = vmatmul.bf16.gmra.mxu0 %v1709
    %v3671 = vpop.f32.mrf.mxu0
    %v3672 = vadd.f32 %v3654, %v3671
    %v3673 = vpop.f32.mrf.mxu0
    %v3674 = vadd.f32 %v3656, %v3673
    %3675 = vmatmul.bf16.gmra.mxu0 %v1721
    %v3676 = vpop.f32.mrf.mxu0
    %v3677 = vadd.f32 %v3659, %v3676
    %v3678 = vpop.f32.mrf.mxu0
    %3679 = vdwg.mxu0
    %3680 = vmatpush.bf16.msra.mxu0 %v2976
    %3681 = vmatpush.bf16.msra.mxu0 %v2973
    %3682 = vmatpush.bf16.msra.mxu0 %v2970
    %3683 = vmatpush.bf16.msra.mxu0 %v2967
    %3684 = vmatpush.bf16.msra.mxu0 %v2964
    %3685 = vmatpush.bf16.msra.mxu0 %v2961
    %3686 = vmatpush.bf16.msra.mxu0 %v2958
    %3687 = vmatpush.bf16.msra.mxu0 %v2955
    %3688 = vmatmul.bf16.gmra.mxu0 %v1710
    %v3689 = vpop.f32.mrf.mxu0
    %v3690 = vadd.f32 %v3672, %v3689
    %v3691 = vpop.f32.mrf.mxu0
    %v3692 = vadd.f32 %v3674, %v3691
    %3693 = vmatmul.bf16.gmra.mxu0 %v1722
    %v3694 = vpop.f32.mrf.mxu0
    %v3695 = vadd.f32 %v3677, %v3694
    %v3696 = vpop.f32.mrf.mxu0
    %3697 = vdwg.mxu0
    %3698 = vmatpush.bf16.msra.mxu0 %v2713
    %3699 = vmatpush.bf16.msra.mxu0 %v2710
    %3700 = vmatpush.bf16.msra.mxu0 %v2707
    %3701 = vmatpush.bf16.msra.mxu0 %v2704
    %3702 = vmatpush.bf16.msra.mxu0 %v2701
    %3703 = vmatpush.bf16.msra.mxu0 %v2698
    %3704 = vmatpush.bf16.msra.mxu0 %v2695
    %3705 = vmatpush.bf16.msra.mxu0 %v2692
    %3706 = vmatmul.bf16.gmra.mxu0 %v1699
    %v3707 = vpop.f32.mrf.mxu0
    %v3708 = vadd.f32 %v1726, %v3707
    %v3709 = vpop.f32.mrf.mxu0
    %v3710 = vadd.f32 %v1726, %v3709
    %3711 = vmatmul.bf16.gmra.mxu0 %v1711
    %v3712 = vpop.f32.mrf.mxu0
    %v3713 = vadd.f32 %v1726, %v3712
    %v3714 = vpop.f32.mrf.mxu0
    %3715 = vdwg.mxu0
    %3716 = vmatpush.bf16.msra.mxu0 %v2737
    %3717 = vmatpush.bf16.msra.mxu0 %v2734
    %3718 = vmatpush.bf16.msra.mxu0 %v2731
    %3719 = vmatpush.bf16.msra.mxu0 %v2728
    %3720 = vmatpush.bf16.msra.mxu0 %v2725
    %3721 = vmatpush.bf16.msra.mxu0 %v2722
    %3722 = vmatpush.bf16.msra.mxu0 %v2719
    %3723 = vmatpush.bf16.msra.mxu0 %v2716
    %3724 = vmatmul.bf16.gmra.mxu0 %v1700
    %v3725 = vpop.f32.mrf.mxu0
    %v3726 = vadd.f32 %v3708, %v3725
    %v3727 = vpop.f32.mrf.mxu0
    %v3728 = vadd.f32 %v3710, %v3727
    %3729 = vmatmul.bf16.gmra.mxu0 %v1712
    %v3730 = vpop.f32.mrf.mxu0
    %v3731 = vadd.f32 %v3713, %v3730
    %v3732 = vpop.f32.mrf.mxu0
    %3733 = vdwg.mxu0
    %3734 = vmatpush.bf16.msra.mxu0 %v2761
    %3735 = vmatpush.bf16.msra.mxu0 %v2758
    %3736 = vmatpush.bf16.msra.mxu0 %v2755
    %3737 = vmatpush.bf16.msra.mxu0 %v2752
    %3738 = vmatpush.bf16.msra.mxu0 %v2749
    %3739 = vmatpush.bf16.msra.mxu0 %v2746
    %3740 = vmatpush.bf16.msra.mxu0 %v2743
    %3741 = vmatpush.bf16.msra.mxu0 %v2740
    %3742 = vmatmul.bf16.gmra.mxu0 %v1701
    %v3743 = vpop.f32.mrf.mxu0
    %v3744 = vadd.f32 %v3726, %v3743
    %v3745 = vpop.f32.mrf.mxu0
    %v3746 = vadd.f32 %v3728, %v3745
    %3747 = vmatmul.bf16.gmra.mxu0 %v1713
    %v3748 = vpop.f32.mrf.mxu0
    %v3749 = vadd.f32 %v3731, %v3748
    %v3750 = vpop.f32.mrf.mxu0
    %3751 = vdwg.mxu0
    %3752 = vmatpush.bf16.msra.mxu0 %v2785
    %3753 = vmatpush.bf16.msra.mxu0 %v2782
    %3754 = vmatpush.bf16.msra.mxu0 %v2779
    %3755 = vmatpush.bf16.msra.mxu0 %v2776
    %3756 = vmatpush.bf16.msra.mxu0 %v2773
    %3757 = vmatpush.bf16.msra.mxu0 %v2770
    %3758 = vmatpush.bf16.msra.mxu0 %v2767
    %3759 = vmatpush.bf16.msra.mxu0 %v2764
    %3760 = vmatmul.bf16.gmra.mxu0 %v1702
    %v3761 = vpop.f32.mrf.mxu0
    %v3762 = vadd.f32 %v3744, %v3761
    %v3763 = vpop.f32.mrf.mxu0
    %v3764 = vadd.f32 %v3746, %v3763
    %3765 = vmatmul.bf16.gmra.mxu0 %v1714
    %v3766 = vpop.f32.mrf.mxu0
    %v3767 = vadd.f32 %v3749, %v3766
    %v3768 = vpop.f32.mrf.mxu0
    %3769 = vdwg.mxu0
    %3770 = vmatpush.bf16.msra.mxu0 %v2809
    %3771 = vmatpush.bf16.msra.mxu0 %v2806
    %3772 = vmatpush.bf16.msra.mxu0 %v2803
    %3773 = vmatpush.bf16.msra.mxu0 %v2800
    %3774 = vmatpush.bf16.msra.mxu0 %v2797
    %3775 = vmatpush.bf16.msra.mxu0 %v2794
    %3776 = vmatpush.bf16.msra.mxu0 %v2791
    %3777 = vmatpush.bf16.msra.mxu0 %v2788
    %3778 = vmatmul.bf16.gmra.mxu0 %v1703
    %v3779 = vpop.f32.mrf.mxu0
    %v3780 = vadd.f32 %v3762, %v3779
    %v3781 = vpop.f32.mrf.mxu0
    %v3782 = vadd.f32 %v3764, %v3781
    %3783 = vmatmul.bf16.gmra.mxu0 %v1715
    %v3784 = vpop.f32.mrf.mxu0
    %v3785 = vadd.f32 %v3767, %v3784
    %v3786 = vpop.f32.mrf.mxu0
    %3787 = vdwg.mxu0
    %3788 = vmatpush.bf16.msra.mxu0 %v2833
    %3789 = vmatpush.bf16.msra.mxu0 %v2830
    %3790 = vmatpush.bf16.msra.mxu0 %v2827
    %3791 = vmatpush.bf16.msra.mxu0 %v2824
    %3792 = vmatpush.bf16.msra.mxu0 %v2821
    %3793 = vmatpush.bf16.msra.mxu0 %v2818
    %3794 = vmatpush.bf16.msra.mxu0 %v2815
    %3795 = vmatpush.bf16.msra.mxu0 %v2812
    %3796 = vmatmul.bf16.gmra.mxu0 %v1704
    %v3797 = vpop.f32.mrf.mxu0
    %v3798 = vadd.f32 %v3780, %v3797
    %v3799 = vpop.f32.mrf.mxu0
    %v3800 = vadd.f32 %v3782, %v3799
    %3801 = vmatmul.bf16.gmra.mxu0 %v1716
    %v3802 = vpop.f32.mrf.mxu0
    %v3803 = vadd.f32 %v3785, %v3802
    %v3804 = vpop.f32.mrf.mxu0
    %3805 = vdwg.mxu0
    %3806 = vmatpush.bf16.msra.mxu0 %v2857
    %3807 = vmatpush.bf16.msra.mxu0 %v2854
    %3808 = vmatpush.bf16.msra.mxu0 %v2851
    %3809 = vmatpush.bf16.msra.mxu0 %v2848
    %3810 = vmatpush.bf16.msra.mxu0 %v2845
    %3811 = vmatpush.bf16.msra.mxu0 %v2842
    %3812 = vmatpush.bf16.msra.mxu0 %v2839
    %3813 = vmatpush.bf16.msra.mxu0 %v2836
    %3814 = vmatmul.bf16.gmra.mxu0 %v1705
    %v3815 = vpop.f32.mrf.mxu0
    %v3816 = vadd.f32 %v3798, %v3815
    %v3817 = vpop.f32.mrf.mxu0
    %v3818 = vadd.f32 %v3800, %v3817
    %3819 = vmatmul.bf16.gmra.mxu0 %v1717
    %v3820 = vpop.f32.mrf.mxu0
    %v3821 = vadd.f32 %v3803, %v3820
    %v3822 = vpop.f32.mrf.mxu0
    %3823 = vdwg.mxu0
    %3824 = vmatpush.bf16.msra.mxu0 %v2881
    %3825 = vmatpush.bf16.msra.mxu0 %v2878
    %3826 = vmatpush.bf16.msra.mxu0 %v2875
    %3827 = vmatpush.bf16.msra.mxu0 %v2872
    %3828 = vmatpush.bf16.msra.mxu0 %v2869
    %3829 = vmatpush.bf16.msra.mxu0 %v2866
    %3830 = vmatpush.bf16.msra.mxu0 %v2863
    %3831 = vmatpush.bf16.msra.mxu0 %v2860
    %3832 = vmatmul.bf16.gmra.mxu0 %v1706
    %v3833 = vpop.f32.mrf.mxu0
    %v3834 = vadd.f32 %v3816, %v3833
    %v3835 = vpop.f32.mrf.mxu0
    %v3836 = vadd.f32 %v3818, %v3835
    %3837 = vmatmul.bf16.gmra.mxu0 %v1718
    %v3838 = vpop.f32.mrf.mxu0
    %v3839 = vadd.f32 %v3821, %v3838
    %v3840 = vpop.f32.mrf.mxu0
    %3841 = vdwg.mxu0
    %3842 = vmatpush.bf16.msra.mxu0 %v2905
    %3843 = vmatpush.bf16.msra.mxu0 %v2902
    %3844 = vmatpush.bf16.msra.mxu0 %v2899
    %3845 = vmatpush.bf16.msra.mxu0 %v2896
    %3846 = vmatpush.bf16.msra.mxu0 %v2893
    %3847 = vmatpush.bf16.msra.mxu0 %v2890
    %3848 = vmatpush.bf16.msra.mxu0 %v2887
    %3849 = vmatpush.bf16.msra.mxu0 %v2884
    %3850 = vmatmul.bf16.gmra.mxu0 %v1707
    %v3851 = vpop.f32.mrf.mxu0
    %v3852 = vadd.f32 %v3834, %v3851
    %v3853 = vpop.f32.mrf.mxu0
    %v3854 = vadd.f32 %v3836, %v3853
    %3855 = vmatmul.bf16.gmra.mxu0 %v1719
    %v3856 = vpop.f32.mrf.mxu0
    %v3857 = vadd.f32 %v3839, %v3856
    %v3858 = vpop.f32.mrf.mxu0
    %3859 = vdwg.mxu0
    %3860 = vmatpush.bf16.msra.mxu0 %v2929
    %3861 = vmatpush.bf16.msra.mxu0 %v2926
    %3862 = vmatpush.bf16.msra.mxu0 %v2923
    %3863 = vmatpush.bf16.msra.mxu0 %v2920
    %3864 = vmatpush.bf16.msra.mxu0 %v2917
    %3865 = vmatpush.bf16.msra.mxu0 %v2914
    %3866 = vmatpush.bf16.msra.mxu0 %v2911
    %3867 = vmatpush.bf16.msra.mxu0 %v2908
    %3868 = vmatmul.bf16.gmra.mxu0 %v1708
    %v3869 = vpop.f32.mrf.mxu0
    %v3870 = vadd.f32 %v3852, %v3869
    %v3871 = vpop.f32.mrf.mxu0
    %v3872 = vadd.f32 %v3854, %v3871
    %3873 = vmatmul.bf16.gmra.mxu0 %v1720
    %v3874 = vpop.f32.mrf.mxu0
    %v3875 = vadd.f32 %v3857, %v3874
    %v3876 = vpop.f32.mrf.mxu0
    %3877 = vdwg.mxu0
    %3878 = vmatpush.bf16.msra.mxu0 %v2953
    %3879 = vmatpush.bf16.msra.mxu0 %v2950
    %3880 = vmatpush.bf16.msra.mxu0 %v2947
    %3881 = vmatpush.bf16.msra.mxu0 %v2944
    %3882 = vmatpush.bf16.msra.mxu0 %v2941
    %3883 = vmatpush.bf16.msra.mxu0 %v2938
    %3884 = vmatpush.bf16.msra.mxu0 %v2935
    %3885 = vmatpush.bf16.msra.mxu0 %v2932
    %3886 = vmatmul.bf16.gmra.mxu0 %v1709
    %v3887 = vpop.f32.mrf.mxu0
    %v3888 = vadd.f32 %v3870, %v3887
    %v3889 = vpop.f32.mrf.mxu0
    %v3890 = vadd.f32 %v3872, %v3889
    %3891 = vmatmul.bf16.gmra.mxu0 %v1721
    %v3892 = vpop.f32.mrf.mxu0
    %v3893 = vadd.f32 %v3875, %v3892
    %v3894 = vpop.f32.mrf.mxu0
    %3895 = vdwg.mxu0
    %3896 = vmatpush.bf16.msra.mxu0 %v2977
    %3897 = vmatpush.bf16.msra.mxu0 %v2974
    %3898 = vmatpush.bf16.msra.mxu0 %v2971
    %3899 = vmatpush.bf16.msra.mxu0 %v2968
    %3900 = vmatpush.bf16.msra.mxu0 %v2965
    %3901 = vmatpush.bf16.msra.mxu0 %v2962
    %3902 = vmatpush.bf16.msra.mxu0 %v2959
    %3903 = vmatpush.bf16.msra.mxu0 %v2956
    %3904 = vmatmul.bf16.gmra.mxu0 %v1710
    %v3905 = vpop.f32.mrf.mxu0
    %v3906 = vadd.f32 %v3888, %v3905
    %v3907 = vpop.f32.mrf.mxu0
    %v3908 = vadd.f32 %v3890, %v3907
    %3909 = vmatmul.bf16.gmra.mxu0 %v1722
    %v3910 = vpop.f32.mrf.mxu0
    %v3911 = vadd.f32 %v3893, %v3910
    %v3912 = vpop.f32.mrf.mxu0
    %3913 = vdwg.mxu0
    %v3914 = vsub.f32 0.0, %v3690
    %v3915 = vsub.f32 0.0, %v3692
    %v3916 = vsub.f32 0.0, %v3695
    %v3917 = vmul.f32 %v3914, 1.442695
    %v3918 = vpow.pop %v3917
    %v3919 = vmul.f32 %v3915, 1.442695
    %v3920 = vpow.pop %v3919
    %v3921 = vmul.f32 %v3916, 1.442695
    %v3922 = vpow.pop %v3921
    %v3923 = vadd.f32 %v3918, 1.0
    %v3924 = vadd.f32 %v3920, 1.0
    %v3925 = vadd.f32 %v3922, 1.0
    %v3926 = vrcp.pop %v3923
    %v3927 = vrcp.pop %v3924
    %v3928 = vrcp.pop %v3925
    %v3929 = vadd.f32 %v3474, %v3926
    %v3930 = vadd.f32 %v3476, %v3927
    %v3931 = vadd.f32 %v3479, %v3928
    %v3932 = vadd.f32 %v3929, %v3906
    %v3933 = vadd.f32 %v3930, %v3908
    %v3934 = vadd.f32 %v3931, %v3911
    %v3935 = vmax.f32 %v3932, 0.0
    %v3936 = vmax.f32 %v3933, 0.0
    %v3937 = vmax.f32 %v3934, 0.0
    %v3938 = vld [vmem:[#allocation15] sm:$0x1]
    %v3939 = vld [vmem:[#allocation16] sm:$0x1]
    %v3940 = vadd.f32 %v3935, %v3936
    %v3941 = vadd.f32 %v3940, %v3937
    %v3942 = vrot.slane %v3941, 4
    %v3943 = vadd.f32 %v3941, %v3942
    %v3944 = vrot.slane %v3943, 2
    %v3945 = vadd.f32 %v3943, %v3944
    %v3946 = vrot.slane %v3945, 1
    %v3947 = vadd.f32 %v3945, %v3946
    %v3948 = vmul.f32 %v3935, %v3935
    %v3949 = vmul.f32 %v3936, %v3936
    %v3950 = vmul.f32 %v3937, %v3937
    %v3951 = vadd.f32 %v3948, %v3949
    %v3952 = vadd.f32 %v3951, %v3950
    %v3953 = vrot.slane %v3952, 4
    %v3954 = vadd.f32 %v3952, %v3953
    %v3955 = vrot.slane %v3954, 2
    %v3956 = vadd.f32 %v3954, %v3955
    %v3957 = vrot.slane %v3956, 1
    %v3958 = vadd.f32 %v3956, %v3957
    %vm3959 = vcmask 1040384
    %v3960 = vsel %vm3959, %v3947, %v3958
    %v3961 = vld [vmem:[#allocation13] sm:$0xff]
    %v3962 = vld [vmem:[#allocation13 + $0x8] sm:$0xff]
    %v3963 = vld [vmem:[#allocation13 + $0x10] sm:$0xff]
    %v3964 = vld [vmem:[#allocation13 + $0x18] sm:$0xff]
    %v3965 = vld [vmem:[#allocation13 + $0x20] sm:$0xff]
    %v3966 = vld [vmem:[#allocation13 + $0x28] sm:$0xff]
    %v3967 = vld [vmem:[#allocation13 + $0x30] sm:$0xff]
    %v3968 = vld [vmem:[#allocation13 + $0x38] sm:$0xff]
    %v3969 = vld [vmem:[#allocation13 + $0x40] sm:$0xff]
    %v3970 = vld [vmem:[#allocation13 + $0x48] sm:$0xff]
    %v3971 = vld [vmem:[#allocation13 + $0x50] sm:$0xff]
    %v3972 = vld [vmem:[#allocation13 + $0x58] sm:$0xff]
    %v3973 = vld [vmem:[#allocation13 + $0x60] sm:$0xff]
    %v3974 = vld [vmem:[#allocation13 + $0x68] sm:$0xff]
    %v3975 = vld [vmem:[#allocation13 + $0x70] sm:$0xff]
    %v3976 = vld [vmem:[#allocation13 + $0x78] sm:$0xff]
    %3977 = vmatpush.msra.mxu0 %v3976
    %3978 = vmatpush.msra.mxu0 %v3975
    %3979 = vmatpush.msra.mxu0 %v3974
    %3980 = vmatpush.msra.mxu0 %v3973
    %3981 = vmatpush.msra.mxu0 %v3972
    %3982 = vmatpush.msra.mxu0 %v3971
    %3983 = vmatpush.msra.mxu0 %v3970
    %3984 = vmatpush.msra.mxu0 %v3969
    %3985 = vmatpush.msra.mxu0 %v3968
    %3986 = vmatpush.msra.mxu0 %v3967
    %3987 = vmatpush.msra.mxu0 %v3966
    %3988 = vmatpush.msra.mxu0 %v3965
    %3989 = vmatpush.msra.mxu0 %v3964
    %3990 = vmatpush.msra.mxu0 %v3963
    %3991 = vmatpush.msra.mxu0 %v3962
    %3992 = vmatpush.msra.mxu0 %v3961
    %3993 = vmatmul.f32.gmra.mxu0 %v3960
    %v3994 = vpop.f32.mrf.mxu0
    %v3995 = vadd.f32 0.0, %v3994
    %3996 = vdwg.mxu0
    %v3997 = vmul.f32 %v3995, 0.0026041667
    %v3998 = vmul.f32 %v3997, %v3997
    %v4000 = vrot.slane %v3998, 7
    %v4002 = vsub.f32 %v3997, %v4000
    %v4003 = vadd.f32 %v4002, 1e-05
    %v4004 = vrsqrt.pop %v4003
    %v4005 = vmul.f32 %v4004, %v4003
    %v4006 = vmul.f32 %v4005, %v4004
    %v4007 = vmul.f32 0.5, %v4006
    %v4008 = vsub.f32 1.5, %v4007
    %v4009 = vmul.f32 %v4004, %v4008
    %vm4010 = vweird.f32 %v4003
    %vm4011 = vweird.f32 %v4004
    %vm4012 = vmor %vm4010, %vm4011
    %v4013 = vsel %vm4012, %v4004, %v4009
    %v4014 = vperm.slane %v3997, 0
    %v4015 = vsub.f32 %v3935, %v4014
    %v4016 = vsub.f32 %v3936, %v4014
    %v4017 = vsub.f32 %v3937, %v4014
    %v4018 = vperm.slane %v4013, 1
    %v4019 = vmul.f32 %v4015, %v4018
    %v4020 = vmul.f32 %v4016, %v4018
    %v4021 = vmul.f32 %v4017, %v4018
    %v4023 = vperm.slane %v3938, 0
    %v4025 = vmul.f32 %v4019, %v4023
    %v4026 = vmul.f32 %v4020, %v4023
    %v4027 = vmul.f32 %v4021, %v4023
    %v4029 = vperm.slane %v3939, 0
    %v4031 = vadd.f32 %v4025, %v4029
    %v4032 = vadd.f32 %v4026, %v4029
    %v4033 = vadd.f32 %v4027, %v4029
    %s4034 = smul.u32 4, 48
    %s4035 = smul.u32 %s4034, 3
    %s4036 = sshll.u32 %s4035, 4
    %4037 = dma.done %s267, %s4036
    %v4038 = vld [vmem:[#allocation3] sm:$0xff]
    %v4039 = vld [vmem:[#allocation3 + $0x8] sm:$0xf]
    %v4040 = vld [vmem:[#allocation3 + $0xc] sm:$0xff]
    %v4041 = vld [vmem:[#allocation3 + $0x14] sm:$0xf]
    %v4042 = vld [vmem:[#allocation3 + $0x18] sm:$0xff]
    %v4043 = vld [vmem:[#allocation3 + $0x20] sm:$0xf]
    %v4044 = vld [vmem:[#allocation3 + $0x24] sm:$0xff]
    %v4045 = vld [vmem:[#allocation3 + $0x2c] sm:$0xf]
    %v4046 = vld [vmem:[#allocation3 + $0x30] sm:$0xff]
    %v4047 = vld [vmem:[#allocation3 + $0x38] sm:$0xf]
    %v4048 = vld [vmem:[#allocation3 + $0x3c] sm:$0xff]
    %v4049 = vld [vmem:[#allocation3 + $0x44] sm:$0xf]
    %v4050 = vld [vmem:[#allocation3 + $0x48] sm:$0xff]
    %v4051 = vld [vmem:[#allocation3 + $0x50] sm:$0xf]
    %v4052 = vld [vmem:[#allocation3 + $0x54] sm:$0xff]
    %v4053 = vld [vmem:[#allocation3 + $0x5c] sm:$0xf]
    %v4054 = vld [vmem:[#allocation3 + $0x60] sm:$0xff]
    %v4055 = vld [vmem:[#allocation3 + $0x68] sm:$0xf]
    %v4056 = vld [vmem:[#allocation3 + $0x6c] sm:$0xff]
    %v4057 = vld [vmem:[#allocation3 + $0x74] sm:$0xf]
    %v4058 = vld [vmem:[#allocation3 + $0x78] sm:$0xff]
    %v4059 = vld [vmem:[#allocation3 + $0x80] sm:$0xf]
    %v4060 = vld [vmem:[#allocation3 + $0x84] sm:$0xff]
    %v4061 = vld [vmem:[#allocation3 + $0x8c] sm:$0xf]
    %v4062 = vld [vmem:[#allocation3 + $0x90] sm:$0xff]
    %v4063 = vld [vmem:[#allocation3 + $0x98] sm:$0xf]
    %v4064 = vld [vmem:[#allocation3 + $0x9c] sm:$0xff]
    %v4065 = vld [vmem:[#allocation3 + $0xa4] sm:$0xf]
    %v4066 = vld [vmem:[#allocation3 + $0xa8] sm:$0xff]
    %v4067 = vld [vmem:[#allocation3 + $0xb0] sm:$0xf]
    %v4068 = vld [vmem:[#allocation3 + $0xb4] sm:$0xff]
    %v4069 = vld [vmem:[#allocation3 + $0xbc] sm:$0xf]
    %v4070 = vld [vmem:[#allocation3 + $0xc0] sm:$0xff]
    %v4071 = vld [vmem:[#allocation3 + $0xc8] sm:$0xf]
    %v4072 = vld [vmem:[#allocation3 + $0xcc] sm:$0xff]
    %v4073 = vld [vmem:[#allocation3 + $0xd4] sm:$0xf]
    %v4074 = vld [vmem:[#allocation3 + $0xd8] sm:$0xff]
    %v4075 = vld [vmem:[#allocation3 + $0xe0] sm:$0xf]
    %v4076 = vld [vmem:[#allocation3 + $0xe4] sm:$0xff]
    %v4077 = vld [vmem:[#allocation3 + $0xec] sm:$0xf]
    %v4078 = vld [vmem:[#allocation3 + $0xf0] sm:$0xff]
    %v4079 = vld [vmem:[#allocation3 + $0xf8] sm:$0xf]
    %v4080 = vld [vmem:[#allocation3 + $0xfc] sm:$0xff]
    %v4081 = vld [vmem:[#allocation3 + $0x104] sm:$0xf]
    %v4082 = vld [vmem:[#allocation3 + $0x108] sm:$0xff]
    %v4083 = vld [vmem:[#allocation3 + $0x110] sm:$0xf]
    %v4084 = vld [vmem:[#allocation3 + $0x114] sm:$0xff]
    %v4085 = vld [vmem:[#allocation3 + $0x11c] sm:$0xf]
    %v4086 = vld [vmem:[#allocation3 + $0x120] sm:$0xff]
    %v4087 = vld [vmem:[#allocation3 + $0x128] sm:$0xf]
    %v4088 = vld [vmem:[#allocation3 + $0x12c] sm:$0xff]
    %v4089 = vld [vmem:[#allocation3 + $0x134] sm:$0xf]
    %v4090 = vld [vmem:[#allocation3 + $0x138] sm:$0xff]
    %v4091 = vld [vmem:[#allocation3 + $0x140] sm:$0xf]
    %v4092 = vld [vmem:[#allocation3 + $0x144] sm:$0xff]
    %v4093 = vld [vmem:[#allocation3 + $0x14c] sm:$0xf]
    %v4094 = vld [vmem:[#allocation3 + $0x150] sm:$0xff]
    %v4095 = vld [vmem:[#allocation3 + $0x158] sm:$0xf]
    %v4096 = vld [vmem:[#allocation3 + $0x15c] sm:$0xff]
    %v4097 = vld [vmem:[#allocation3 + $0x164] sm:$0xf]
    %v4098 = vld [vmem:[#allocation3 + $0x168] sm:$0xff]
    %v4099 = vld [vmem:[#allocation3 + $0x170] sm:$0xf]
    %v4100 = vld [vmem:[#allocation3 + $0x174] sm:$0xff]
    %v4101 = vld [vmem:[#allocation3 + $0x17c] sm:$0xf]
    %v4102 = vld [vmem:[#allocation3 + $0x180] sm:$0xff]
    %v4103 = vld [vmem:[#allocation3 + $0x188] sm:$0xf]
    %v4104 = vld [vmem:[#allocation3 + $0x18c] sm:$0xff]
    %v4105 = vld [vmem:[#allocation3 + $0x194] sm:$0xf]
    %v4106 = vld [vmem:[#allocation3 + $0x198] sm:$0xff]
    %v4107 = vld [vmem:[#allocation3 + $0x1a0] sm:$0xf]
    %v4108 = vld [vmem:[#allocation3 + $0x1a4] sm:$0xff]
    %v4109 = vld [vmem:[#allocation3 + $0x1ac] sm:$0xf]
    %v4110 = vld [vmem:[#allocation3 + $0x1b0] sm:$0xff]
    %v4111 = vld [vmem:[#allocation3 + $0x1b8] sm:$0xf]
    %v4112 = vld [vmem:[#allocation3 + $0x1bc] sm:$0xff]
    %v4113 = vld [vmem:[#allocation3 + $0x1c4] sm:$0xf]
    %v4114 = vld [vmem:[#allocation3 + $0x1c8] sm:$0xff]
    %v4115 = vld [vmem:[#allocation3 + $0x1d0] sm:$0xf]
    %v4116 = vld [vmem:[#allocation3 + $0x1d4] sm:$0xff]
    %v4117 = vld [vmem:[#allocation3 + $0x1dc] sm:$0xf]
    %v4118 = vld [vmem:[#allocation3 + $0x1e0] sm:$0xff]
    %v4119 = vld [vmem:[#allocation3 + $0x1e8] sm:$0xf]
    %v4120 = vld [vmem:[#allocation3 + $0x1ec] sm:$0xff]
    %v4121 = vld [vmem:[#allocation3 + $0x1f4] sm:$0xf]
    %v4122 = vld [vmem:[#allocation3 + $0x1f8] sm:$0xff]
    %v4123 = vld [vmem:[#allocation3 + $0x200] sm:$0xf]
    %v4124 = vld [vmem:[#allocation3 + $0x204] sm:$0xff]
    %v4125 = vld [vmem:[#allocation3 + $0x20c] sm:$0xf]
    %v4126 = vld [vmem:[#allocation3 + $0x210] sm:$0xff]
    %v4127 = vld [vmem:[#allocation3 + $0x218] sm:$0xf]
    %v4128 = vld [vmem:[#allocation3 + $0x21c] sm:$0xff]
    %v4129 = vld [vmem:[#allocation3 + $0x224] sm:$0xf]
    %v4130 = vld [vmem:[#allocation3 + $0x228] sm:$0xff]
    %v4131 = vld [vmem:[#allocation3 + $0x230] sm:$0xf]
    %v4132 = vld [vmem:[#allocation3 + $0x234] sm:$0xff]
    %v4133 = vld [vmem:[#allocation3 + $0x23c] sm:$0xf]
    %v4134 = vld [vmem:[#allocation22] sm:$0x7]
    %v4137 = vrot.slane %v4032, 2
    %v4138 = vrot.slane %v4033, 2
    %v4139 = vsel %vm477, %v4137, %v4138
    %vm4142 = vcmask 1041408
    %v4143 = vsel %vm4142, %v4032, %v4139
    %v4145 = vrot.slane %v4031, 1
    %v4146 = vrot.slane %v4032, 1
    %v4147 = vsel %vm487, %v4145, %v4146
    %v4150 = vrot.slane %v4032, 3
    %v4151 = vrot.slane %v4033, 3
    %v4152 = vsel %vm492, %v4150, %v4151
    %v4155 = vsel %vm4142, %v4146, %v4152
    %v4156 = vrot.slane %v4031, 2
    %v4157 = vsel %vm477, %v4156, %v4137
    %v4160 = vrot.slane %v4032, 4
    %v4161 = vrot.slane %v4033, 4
    %v4162 = vsel %vm503, %v4160, %v4161
    %v4165 = vsel %vm4142, %v4137, %v4162
    %v4166 = vpack.c.bf16 %v4143, %v4031
    %v4167 = vpack.c.bf16 %v4155, %v4147
    %v4168 = vpack.c.bf16 %v4165, %v4157
    %v4169 = vpack.c.bf16 %v4138, %v4138
    %v4170 = vpack.c.bf16 %v4151, %v4151
    %v4171 = vpack.c.bf16 %v4161, %v4161
    %v4173 = vperm.slane %v4134, 0
    %v4174 = vperm.slane %v4134, 1
    %v4175 = vperm.slane %v4134, 2
    %v4275 = vunpack.c.l.b16 %v4038
    %v4276 = vunpack.c.h.b16 %v4038
    %v4277 = vunpack.c.l.b16 %v4039
    %v4278 = vunpack.c.l.b16 %v4040
    %v4279 = vunpack.c.h.b16 %v4040
    %v4280 = vunpack.c.l.b16 %v4041
    %v4281 = vunpack.c.l.b16 %v4042
    %v4282 = vunpack.c.h.b16 %v4042
    %v4283 = vunpack.c.l.b16 %v4043
    %v4284 = vunpack.c.l.b16 %v4044
    %v4285 = vunpack.c.h.b16 %v4044
    %v4286 = vunpack.c.l.b16 %v4045
    %v4287 = vunpack.c.l.b16 %v4046
    %v4288 = vunpack.c.h.b16 %v4046
    %v4289 = vunpack.c.l.b16 %v4047
    %v4290 = vunpack.c.l.b16 %v4048
    %v4291 = vunpack.c.h.b16 %v4048
    %v4292 = vunpack.c.l.b16 %v4049
    %v4293 = vunpack.c.l.b16 %v4050
    %v4294 = vunpack.c.h.b16 %v4050
    %v4295 = vunpack.c.l.b16 %v4051
    %v4296 = vunpack.c.l.b16 %v4052
    %v4297 = vunpack.c.h.b16 %v4052
    %v4298 = vunpack.c.l.b16 %v4053
    %v4299 = vunpack.c.l.b16 %v4054
    %v4300 = vunpack.c.h.b16 %v4054
    %v4301 = vunpack.c.l.b16 %v4055
    %v4302 = vunpack.c.l.b16 %v4056
    %v4303 = vunpack.c.h.b16 %v4056
    %v4304 = vunpack.c.l.b16 %v4057
    %v4305 = vunpack.c.l.b16 %v4058
    %v4306 = vunpack.c.h.b16 %v4058
    %v4307 = vunpack.c.l.b16 %v4059
    %v4308 = vunpack.c.l.b16 %v4060
    %v4309 = vunpack.c.h.b16 %v4060
    %v4310 = vunpack.c.l.b16 %v4061
    %v4311 = vunpack.c.l.b16 %v4062
    %v4312 = vunpack.c.h.b16 %v4062
    %v4313 = vunpack.c.l.b16 %v4063
    %v4314 = vunpack.c.l.b16 %v4064
    %v4315 = vunpack.c.h.b16 %v4064
    %v4316 = vunpack.c.l.b16 %v4065
    %v4317 = vunpack.c.l.b16 %v4066
    %v4318 = vunpack.c.h.b16 %v4066
    %v4319 = vunpack.c.l.b16 %v4067
    %v4320 = vunpack.c.l.b16 %v4068
    %v4321 = vunpack.c.h.b16 %v4068
    %v4322 = vunpack.c.l.b16 %v4069
    %v4323 = vunpack.c.l.b16 %v4070
    %v4324 = vunpack.c.h.b16 %v4070
    %v4325 = vunpack.c.l.b16 %v4071
    %v4326 = vunpack.c.l.b16 %v4072
    %v4327 = vunpack.c.h.b16 %v4072
    %v4328 = vunpack.c.l.b16 %v4073
    %v4329 = vunpack.c.l.b16 %v4074
    %v4330 = vunpack.c.h.b16 %v4074
    %v4331 = vunpack.c.l.b16 %v4075
    %v4332 = vunpack.c.l.b16 %v4076
    %v4333 = vunpack.c.h.b16 %v4076
    %v4334 = vunpack.c.l.b16 %v4077
    %v4335 = vunpack.c.l.b16 %v4078
    %v4336 = vunpack.c.h.b16 %v4078
    %v4337 = vunpack.c.l.b16 %v4079
    %v4338 = vunpack.c.l.b16 %v4080
    %v4339 = vunpack.c.h.b16 %v4080
    %v4340 = vunpack.c.l.b16 %v4081
    %v4341 = vunpack.c.l.b16 %v4082
    %v4342 = vunpack.c.h.b16 %v4082
    %v4343 = vunpack.c.l.b16 %v4083
    %v4344 = vunpack.c.l.b16 %v4084
    %v4345 = vunpack.c.h.b16 %v4084
    %v4346 = vunpack.c.l.b16 %v4085
    %v4347 = vunpack.c.l.b16 %v4086
    %v4348 = vunpack.c.h.b16 %v4086
    %v4349 = vunpack.c.l.b16 %v4087
    %v4350 = vunpack.c.l.b16 %v4088
    %v4351 = vunpack.c.h.b16 %v4088
    %v4352 = vunpack.c.l.b16 %v4089
    %v4353 = vunpack.c.l.b16 %v4090
    %v4354 = vunpack.c.h.b16 %v4090
    %v4355 = vunpack.c.l.b16 %v4091
    %v4356 = vunpack.c.l.b16 %v4092
    %v4357 = vunpack.c.h.b16 %v4092
    %v4358 = vunpack.c.l.b16 %v4093
    %v4359 = vunpack.c.l.b16 %v4094
    %v4360 = vunpack.c.h.b16 %v4094
    %v4361 = vunpack.c.l.b16 %v4095
    %v4362 = vunpack.c.l.b16 %v4096
    %v4363 = vunpack.c.h.b16 %v4096
    %v4364 = vunpack.c.l.b16 %v4097
    %v4365 = vunpack.c.l.b16 %v4098
    %v4366 = vunpack.c.h.b16 %v4098
    %v4367 = vunpack.c.l.b16 %v4099
    %v4368 = vunpack.c.l.b16 %v4100
    %v4369 = vunpack.c.h.b16 %v4100
    %v4370 = vunpack.c.l.b16 %v4101
    %v4371 = vunpack.c.l.b16 %v4102
    %v4372 = vunpack.c.h.b16 %v4102
    %v4373 = vunpack.c.l.b16 %v4103
    %v4374 = vunpack.c.l.b16 %v4104
    %v4375 = vunpack.c.h.b16 %v4104
    %v4376 = vunpack.c.l.b16 %v4105
    %v4377 = vunpack.c.l.b16 %v4106
    %v4378 = vunpack.c.h.b16 %v4106
    %v4379 = vunpack.c.l.b16 %v4107
    %v4380 = vunpack.c.l.b16 %v4108
    %v4381 = vunpack.c.h.b16 %v4108
    %v4382 = vunpack.c.l.b16 %v4109
    %v4383 = vunpack.c.l.b16 %v4110
    %v4384 = vunpack.c.h.b16 %v4110
    %v4385 = vunpack.c.l.b16 %v4111
    %v4386 = vunpack.c.l.b16 %v4112
    %v4387 = vunpack.c.h.b16 %v4112
    %v4388 = vunpack.c.l.b16 %v4113
    %v4389 = vunpack.c.l.b16 %v4114
    %v4390 = vunpack.c.h.b16 %v4114
    %v4391 = vunpack.c.l.b16 %v4115
    %v4392 = vunpack.c.l.b16 %v4116
    %v4393 = vunpack.c.h.b16 %v4116
    %v4394 = vunpack.c.l.b16 %v4117
    %v4395 = vunpack.c.l.b16 %v4118
    %v4396 = vunpack.c.h.b16 %v4118
    %v4397 = vunpack.c.l.b16 %v4119
    %v4398 = vunpack.c.l.b16 %v4120
    %v4399 = vunpack.c.h.b16 %v4120
    %v4400 = vunpack.c.l.b16 %v4121
    %v4401 = vunpack.c.l.b16 %v4122
    %v4402 = vunpack.c.h.b16 %v4122
    %v4403 = vunpack.c.l.b16 %v4123
    %v4404 = vunpack.c.l.b16 %v4124
    %v4405 = vunpack.c.h.b16 %v4124
    %v4406 = vunpack.c.l.b16 %v4125
    %v4407 = vunpack.c.l.b16 %v4126
    %v4408 = vunpack.c.h.b16 %v4126
    %v4409 = vunpack.c.l.b16 %v4127
    %v4410 = vunpack.c.l.b16 %v4128
    %v4411 = vunpack.c.h.b16 %v4128
    %v4412 = vunpack.c.l.b16 %v4129
    %v4413 = vunpack.c.l.b16 %v4130
    %v4414 = vunpack.c.h.b16 %v4130
    %v4415 = vunpack.c.l.b16 %v4131
    %v4416 = vunpack.c.l.b16 %v4132
    %v4417 = vunpack.c.h.b16 %v4132
    %v4418 = vunpack.c.l.b16 %v4133
    %v4419 = vpack.c.b16 %v4278, %v4275
    %v4420 = vpack.c.b16 %v4279, %v4276
    %v4421 = vpack.c.b16 %v4280, %v4277
    %v4422 = vpack.c.b16 %v4284, %v4281
    %v4423 = vpack.c.b16 %v4285, %v4282
    %v4424 = vpack.c.b16 %v4286, %v4283
    %v4425 = vpack.c.b16 %v4290, %v4287
    %v4426 = vpack.c.b16 %v4291, %v4288
    %v4427 = vpack.c.b16 %v4292, %v4289
    %v4428 = vpack.c.b16 %v4296, %v4293
    %v4429 = vpack.c.b16 %v4297, %v4294
    %v4430 = vpack.c.b16 %v4298, %v4295
    %v4431 = vpack.c.b16 %v4302, %v4299
    %v4432 = vpack.c.b16 %v4303, %v4300
    %v4433 = vpack.c.b16 %v4304, %v4301
    %v4434 = vpack.c.b16 %v4308, %v4305
    %v4435 = vpack.c.b16 %v4309, %v4306
    %v4436 = vpack.c.b16 %v4310, %v4307
    %v4437 = vpack.c.b16 %v4314, %v4311
    %v4438 = vpack.c.b16 %v4315, %v4312
    %v4439 = vpack.c.b16 %v4316, %v4313
    %v4440 = vpack.c.b16 %v4320, %v4317
    %v4441 = vpack.c.b16 %v4321, %v4318
    %v4442 = vpack.c.b16 %v4322, %v4319
    %v4443 = vpack.c.b16 %v4326, %v4323
    %v4444 = vpack.c.b16 %v4327, %v4324
    %v4445 = vpack.c.b16 %v4328, %v4325
    %v4446 = vpack.c.b16 %v4332, %v4329
    %v4447 = vpack.c.b16 %v4333, %v4330
    %v4448 = vpack.c.b16 %v4334, %v4331
    %v4449 = vpack.c.b16 %v4338, %v4335
    %v4450 = vpack.c.b16 %v4339, %v4336
    %v4451 = vpack.c.b16 %v4340, %v4337
    %v4452 = vpack.c.b16 %v4344, %v4341
    %v4453 = vpack.c.b16 %v4345, %v4342
    %v4454 = vpack.c.b16 %v4346, %v4343
    %v4455 = vpack.c.b16 %v4350, %v4347
    %v4456 = vpack.c.b16 %v4351, %v4348
    %v4457 = vpack.c.b16 %v4352, %v4349
    %v4458 = vpack.c.b16 %v4356, %v4353
    %v4459 = vpack.c.b16 %v4357, %v4354
    %v4460 = vpack.c.b16 %v4358, %v4355
    %v4461 = vpack.c.b16 %v4362, %v4359
    %v4462 = vpack.c.b16 %v4363, %v4360
    %v4463 = vpack.c.b16 %v4364, %v4361
    %v4464 = vpack.c.b16 %v4368, %v4365
    %v4465 = vpack.c.b16 %v4369, %v4366
    %v4466 = vpack.c.b16 %v4370, %v4367
    %v4467 = vpack.c.b16 %v4374, %v4371
    %v4468 = vpack.c.b16 %v4375, %v4372
    %v4469 = vpack.c.b16 %v4376, %v4373
    %v4470 = vpack.c.b16 %v4380, %v4377
    %v4471 = vpack.c.b16 %v4381, %v4378
    %v4472 = vpack.c.b16 %v4382, %v4379
    %v4473 = vpack.c.b16 %v4386, %v4383
    %v4474 = vpack.c.b16 %v4387, %v4384
    %v4475 = vpack.c.b16 %v4388, %v4385
    %v4476 = vpack.c.b16 %v4392, %v4389
    %v4477 = vpack.c.b16 %v4393, %v4390
    %v4478 = vpack.c.b16 %v4394, %v4391
    %v4479 = vpack.c.b16 %v4398, %v4395
    %v4480 = vpack.c.b16 %v4399, %v4396
    %v4481 = vpack.c.b16 %v4400, %v4397
    %v4482 = vpack.c.b16 %v4404, %v4401
    %v4483 = vpack.c.b16 %v4405, %v4402
    %v4484 = vpack.c.b16 %v4406, %v4403
    %v4485 = vpack.c.b16 %v4410, %v4407
    %v4486 = vpack.c.b16 %v4411, %v4408
    %v4487 = vpack.c.b16 %v4412, %v4409
    %v4488 = vpack.c.b16 %v4416, %v4413
    %v4489 = vpack.c.b16 %v4417, %v4414
    %v4490 = vpack.c.b16 %v4418, %v4415
    %4563 = vmatpush.bf16.msra.mxu0 %v4440
    %4564 = vmatpush.bf16.msra.mxu0 %v4437
    %4565 = vmatpush.bf16.msra.mxu0 %v4434
    %4566 = vmatpush.bf16.msra.mxu0 %v4431
    %4567 = vmatpush.bf16.msra.mxu0 %v4428
    %4568 = vmatpush.bf16.msra.mxu0 %v4425
    %4569 = vmatpush.bf16.msra.mxu0 %v4422
    %4570 = vmatpush.bf16.msra.mxu0 %v4419
    %4571 = vmatmul.bf16.gmra.mxu0 %v4166
    %v4572 = vpop.f32.mrf.mxu0
    %v4573 = vadd.f32 %v4173, %v4572
    %v4574 = vpop.f32.mrf.mxu0
    %v4575 = vadd.f32 %v4173, %v4574
    %4576 = vmatmul.bf16.gmra.mxu0 %v4169
    %v4577 = vpop.f32.mrf.mxu0
    %v4578 = vadd.f32 %v4173, %v4577
    %v4579 = vpop.f32.mrf.mxu0
    %4580 = vdwg.mxu0
    %4581 = vmatpush.bf16.msra.mxu0 %v4464
    %4582 = vmatpush.bf16.msra.mxu0 %v4461
    %4583 = vmatpush.bf16.msra.mxu0 %v4458
    %4584 = vmatpush.bf16.msra.mxu0 %v4455
    %4585 = vmatpush.bf16.msra.mxu0 %v4452
    %4586 = vmatpush.bf16.msra.mxu0 %v4449
    %4587 = vmatpush.bf16.msra.mxu0 %v4446
    %4588 = vmatpush.bf16.msra.mxu0 %v4443
    %4589 = vmatmul.bf16.gmra.mxu0 %v4167
    %v4590 = vpop.f32.mrf.mxu0
    %v4591 = vadd.f32 %v4573, %v4590
    %v4592 = vpop.f32.mrf.mxu0
    %v4593 = vadd.f32 %v4575, %v4592
    %4594 = vmatmul.bf16.gmra.mxu0 %v4170
    %v4595 = vpop.f32.mrf.mxu0
    %v4596 = vadd.f32 %v4578, %v4595
    %v4597 = vpop.f32.mrf.mxu0
    %4598 = vdwg.mxu0
    %4599 = vmatpush.bf16.msra.mxu0 %v4488
    %4600 = vmatpush.bf16.msra.mxu0 %v4485
    %4601 = vmatpush.bf16.msra.mxu0 %v4482
    %4602 = vmatpush.bf16.msra.mxu0 %v4479
    %4603 = vmatpush.bf16.msra.mxu0 %v4476
    %4604 = vmatpush.bf16.msra.mxu0 %v4473
    %4605 = vmatpush.bf16.msra.mxu0 %v4470
    %4606 = vmatpush.bf16.msra.mxu0 %v4467
    %4607 = vmatmul.bf16.gmra.mxu0 %v4168
    %v4608 = vpop.f32.mrf.mxu0
    %v4609 = vadd.f32 %v4591, %v4608
    %v4610 = vpop.f32.mrf.mxu0
    %v4611 = vadd.f32 %v4593, %v4610
    %4612 = vmatmul.bf16.gmra.mxu0 %v4171
    %v4613 = vpop.f32.mrf.mxu0
    %v4614 = vadd.f32 %v4596, %v4613
    %v4615 = vpop.f32.mrf.mxu0
    %4616 = vdwg.mxu0
    %4617 = vmatpush.bf16.msra.mxu0 %v4441
    %4618 = vmatpush.bf16.msra.mxu0 %v4438
    %4619 = vmatpush.bf16.msra.mxu0 %v4435
    %4620 = vmatpush.bf16.msra.mxu0 %v4432
    %4621 = vmatpush.bf16.msra.mxu0 %v4429
    %4622 = vmatpush.bf16.msra.mxu0 %v4426
    %4623 = vmatpush.bf16.msra.mxu0 %v4423
    %4624 = vmatpush.bf16.msra.mxu0 %v4420
    %4625 = vmatmul.bf16.gmra.mxu0 %v4166
    %v4626 = vpop.f32.mrf.mxu0
    %v4627 = vadd.f32 %v4174, %v4626
    %v4628 = vpop.f32.mrf.mxu0
    %v4629 = vadd.f32 %v4174, %v4628
    %4630 = vmatmul.bf16.gmra.mxu0 %v4169
    %v4631 = vpop.f32.mrf.mxu0
    %v4632 = vadd.f32 %v4174, %v4631
    %v4633 = vpop.f32.mrf.mxu0
    %4634 = vdwg.mxu0
    %4635 = vmatpush.bf16.msra.mxu0 %v4465
    %4636 = vmatpush.bf16.msra.mxu0 %v4462
    %4637 = vmatpush.bf16.msra.mxu0 %v4459
    %4638 = vmatpush.bf16.msra.mxu0 %v4456
    %4639 = vmatpush.bf16.msra.mxu0 %v4453
    %4640 = vmatpush.bf16.msra.mxu0 %v4450
    %4641 = vmatpush.bf16.msra.mxu0 %v4447
    %4642 = vmatpush.bf16.msra.mxu0 %v4444
    %4643 = vmatmul.bf16.gmra.mxu0 %v4167
    %v4644 = vpop.f32.mrf.mxu0
    %v4645 = vadd.f32 %v4627, %v4644
    %v4646 = vpop.f32.mrf.mxu0
    %v4647 = vadd.f32 %v4629, %v4646
    %4648 = vmatmul.bf16.gmra.mxu0 %v4170
    %v4649 = vpop.f32.mrf.mxu0
    %v4650 = vadd.f32 %v4632, %v4649
    %v4651 = vpop.f32.mrf.mxu0
    %4652 = vdwg.mxu0
    %4653 = vmatpush.bf16.msra.mxu0 %v4489
    %4654 = vmatpush.bf16.msra.mxu0 %v4486
    %4655 = vmatpush.bf16.msra.mxu0 %v4483
    %4656 = vmatpush.bf16.msra.mxu0 %v4480
    %4657 = vmatpush.bf16.msra.mxu0 %v4477
    %4658 = vmatpush.bf16.msra.mxu0 %v4474
    %4659 = vmatpush.bf16.msra.mxu0 %v4471
    %4660 = vmatpush.bf16.msra.mxu0 %v4468
    %4661 = vmatmul.bf16.gmra.mxu0 %v4168
    %v4662 = vpop.f32.mrf.mxu0
    %v4663 = vadd.f32 %v4645, %v4662
    %v4664 = vpop.f32.mrf.mxu0
    %v4665 = vadd.f32 %v4647, %v4664
    %4666 = vmatmul.bf16.gmra.mxu0 %v4171
    %v4667 = vpop.f32.mrf.mxu0
    %v4668 = vadd.f32 %v4650, %v4667
    %v4669 = vpop.f32.mrf.mxu0
    %4670 = vdwg.mxu0
    %4671 = vmatpush.bf16.msra.mxu0 %v4442
    %4672 = vmatpush.bf16.msra.mxu0 %v4439
    %4673 = vmatpush.bf16.msra.mxu0 %v4436
    %4674 = vmatpush.bf16.msra.mxu0 %v4433
    %4675 = vmatpush.bf16.msra.mxu0 %v4430
    %4676 = vmatpush.bf16.msra.mxu0 %v4427
    %4677 = vmatpush.bf16.msra.mxu0 %v4424
    %4678 = vmatpush.bf16.msra.mxu0 %v4421
    %4679 = vmatmul.bf16.gmra.mxu0 %v4166
    %v4680 = vpop.f32.mrf.mxu0
    %v4681 = vadd.f32 %v4175, %v4680
    %v4682 = vpop.f32.mrf.mxu0
    %v4683 = vadd.f32 %v4175, %v4682
    %4684 = vmatmul.bf16.gmra.mxu0 %v4169
    %v4685 = vpop.f32.mrf.mxu0
    %v4686 = vadd.f32 %v4175, %v4685
    %v4687 = vpop.f32.mrf.mxu0
    %4688 = vdwg.mxu0
    %4689 = vmatpush.bf16.msra.mxu0 %v4466
    %4690 = vmatpush.bf16.msra.mxu0 %v4463
    %4691 = vmatpush.bf16.msra.mxu0 %v4460
    %4692 = vmatpush.bf16.msra.mxu0 %v4457
    %4693 = vmatpush.bf16.msra.mxu0 %v4454
    %4694 = vmatpush.bf16.msra.mxu0 %v4451
    %4695 = vmatpush.bf16.msra.mxu0 %v4448
    %4696 = vmatpush.bf16.msra.mxu0 %v4445
    %4697 = vmatmul.bf16.gmra.mxu0 %v4167
    %v4698 = vpop.f32.mrf.mxu0
    %v4699 = vadd.f32 %v4681, %v4698
    %v4700 = vpop.f32.mrf.mxu0
    %v4701 = vadd.f32 %v4683, %v4700
    %4702 = vmatmul.bf16.gmra.mxu0 %v4170
    %v4703 = vpop.f32.mrf.mxu0
    %v4704 = vadd.f32 %v4686, %v4703
    %v4705 = vpop.f32.mrf.mxu0
    %4706 = vdwg.mxu0
    %4707 = vmatpush.bf16.msra.mxu0 %v4490
    %4708 = vmatpush.bf16.msra.mxu0 %v4487
    %4709 = vmatpush.bf16.msra.mxu0 %v4484
    %4710 = vmatpush.bf16.msra.mxu0 %v4481
    %4711 = vmatpush.bf16.msra.mxu0 %v4478
    %4712 = vmatpush.bf16.msra.mxu0 %v4475
    %4713 = vmatpush.bf16.msra.mxu0 %v4472
    %4714 = vmatpush.bf16.msra.mxu0 %v4469
    %4715 = vmatmul.bf16.gmra.mxu0 %v4168
    %v4716 = vpop.f32.mrf.mxu0
    %v4717 = vadd.f32 %v4699, %v4716
    %v4718 = vpop.f32.mrf.mxu0
    %v4719 = vadd.f32 %v4701, %v4718
    %4720 = vmatmul.bf16.gmra.mxu0 %v4171
    %v4721 = vpop.f32.mrf.mxu0
    %v4722 = vadd.f32 %v4704, %v4721
    %v4723 = vpop.f32.mrf.mxu0
    %4724 = vdwg.mxu0
    %v4725 = vsub.f32 0.0, %v4663
    %v4726 = vsub.f32 0.0, %v4665
    %v4727 = vsub.f32 0.0, %v4668
    %v4728 = vmul.f32 %v4725, 1.442695
    %v4729 = vpow.pop %v4728
    %v4730 = vmul.f32 %v4726, 1.442695
    %v4731 = vpow.pop %v4730
    %v4732 = vmul.f32 %v4727, 1.442695
    %v4733 = vpow.pop %v4732
    %v4734 = vadd.f32 %v4729, 1.0
    %v4735 = vadd.f32 %v4731, 1.0
    %v4736 = vadd.f32 %v4733, 1.0
    %v4737 = vrcp.pop %v4734
    %v4738 = vrcp.pop %v4735
    %v4739 = vrcp.pop %v4736
    %v4740 = vadd.f32 %v4609, %v4737
    %v4741 = vadd.f32 %v4611, %v4738
    %v4742 = vadd.f32 %v4614, %v4739
    %v4743 = vadd.f32 %v4740, %v4717
    %v4744 = vadd.f32 %v4741, %v4719
    %v4745 = vadd.f32 %v4742, %v4722
    %v4746 = vmax.f32 %v4743, 0.0
    %v4747 = vmax.f32 %v4744, 0.0
    %v4748 = vmax.f32 %v4745, 0.0
    %s4749 = smul.u32 4, 16
    %s4750 = smul.u32 %s4749, 4
    %s4751 = sshll.u32 %s4750, 4
    %4752 = dma.done %s408, %s4751
    %v4753 = vld [vmem:[#allocation6] sm:$0xff]
    %v4754 = vld [vmem:[#allocation6 + $0x8] sm:$0xff]
    %v4755 = vld [vmem:[#allocation6 + $0x10] sm:$0xff]
    %v4756 = vld [vmem:[#allocation6 + $0x18] sm:$0xff]
    %v4757 = vld [vmem:[#allocation6 + $0x20] sm:$0xff]
    %v4758 = vld [vmem:[#allocation6 + $0x28] sm:$0xff]
    %v4759 = vld [vmem:[#allocation6 + $0x30] sm:$0xff]
    %v4760 = vld [vmem:[#allocation6 + $0x38] sm:$0xff]
    %v4761 = vld [vmem:[#allocation6 + $0x40] sm:$0xff]
    %v4762 = vld [vmem:[#allocation6 + $0x48] sm:$0xff]
    %v4763 = vld [vmem:[#allocation6 + $0x50] sm:$0xff]
    %v4764 = vld [vmem:[#allocation6 + $0x58] sm:$0xff]
    %v4765 = vld [vmem:[#allocation6 + $0x60] sm:$0xff]
    %v4766 = vld [vmem:[#allocation6 + $0x68] sm:$0xff]
    %v4767 = vld [vmem:[#allocation6 + $0x70] sm:$0xff]
    %v4768 = vld [vmem:[#allocation6 + $0x78] sm:$0xff]
    %v4769 = vld [vmem:[#allocation6 + $0x80] sm:$0xff]
    %v4770 = vld [vmem:[#allocation6 + $0x88] sm:$0xff]
    %v4771 = vld [vmem:[#allocation6 + $0x90] sm:$0xff]
    %v4772 = vld [vmem:[#allocation6 + $0x98] sm:$0xff]
    %v4773 = vld [vmem:[#allocation6 + $0xa0] sm:$0xff]
    %v4774 = vld [vmem:[#allocation6 + $0xa8] sm:$0xff]
    %v4775 = vld [vmem:[#allocation6 + $0xb0] sm:$0xff]
    %v4776 = vld [vmem:[#allocation6 + $0xb8] sm:$0xff]
    %v4777 = vld [vmem:[#allocation6 + $0xc0] sm:$0xff]
    %v4778 = vld [vmem:[#allocation6 + $0xc8] sm:$0xff]
    %v4779 = vld [vmem:[#allocation6 + $0xd0] sm:$0xff]
    %v4780 = vld [vmem:[#allocation6 + $0xd8] sm:$0xff]
    %v4781 = vld [vmem:[#allocation6 + $0xe0] sm:$0xff]
    %v4782 = vld [vmem:[#allocation6 + $0xe8] sm:$0xff]
    %v4783 = vld [vmem:[#allocation6 + $0xf0] sm:$0xff]
    %v4784 = vld [vmem:[#allocation6 + $0xf8] sm:$0xff]
    %v4785 = vpack.c.bf16 %v4747, %v4746
    %v4786 = vpack.c.bf16 %v4748, %v4748
    %v4819 = vunpack.c.l.b16 %v4753
    %v4820 = vunpack.c.h.b16 %v4753
    %v4821 = vunpack.c.l.b16 %v4754
    %v4822 = vunpack.c.h.b16 %v4754
    %v4823 = vunpack.c.l.b16 %v4755
    %v4824 = vunpack.c.h.b16 %v4755
    %v4825 = vunpack.c.l.b16 %v4756
    %v4826 = vunpack.c.h.b16 %v4756
    %v4827 = vunpack.c.l.b16 %v4757
    %v4828 = vunpack.c.h.b16 %v4757
    %v4829 = vunpack.c.l.b16 %v4758
    %v4830 = vunpack.c.h.b16 %v4758
    %v4831 = vunpack.c.l.b16 %v4759
    %v4832 = vunpack.c.h.b16 %v4759
    %v4833 = vunpack.c.l.b16 %v4760
    %v4834 = vunpack.c.h.b16 %v4760
    %v4835 = vunpack.c.l.b16 %v4761
    %v4836 = vunpack.c.h.b16 %v4761
    %v4837 = vunpack.c.l.b16 %v4762
    %v4838 = vunpack.c.h.b16 %v4762
    %v4839 = vunpack.c.l.b16 %v4763
    %v4840 = vunpack.c.h.b16 %v4763
    %v4841 = vunpack.c.l.b16 %v4764
    %v4842 = vunpack.c.h.b16 %v4764
    %v4843 = vunpack.c.l.b16 %v4765
    %v4844 = vunpack.c.h.b16 %v4765
    %v4845 = vunpack.c.l.b16 %v4766
    %v4846 = vunpack.c.h.b16 %v4766
    %v4847 = vunpack.c.l.b16 %v4767
    %v4848 = vunpack.c.h.b16 %v4767
    %v4849 = vunpack.c.l.b16 %v4768
    %v4850 = vunpack.c.h.b16 %v4768
    %v4851 = vunpack.c.l.b16 %v4769
    %v4852 = vunpack.c.h.b16 %v4769
    %v4853 = vunpack.c.l.b16 %v4770
    %v4854 = vunpack.c.h.b16 %v4770
    %v4855 = vunpack.c.l.b16 %v4771
    %v4856 = vunpack.c.h.b16 %v4771
    %v4857 = vunpack.c.l.b16 %v4772
    %v4858 = vunpack.c.h.b16 %v4772
    %v4859 = vunpack.c.l.b16 %v4773
    %v4860 = vunpack.c.h.b16 %v4773
    %v4861 = vunpack.c.l.b16 %v4774
    %v4862 = vunpack.c.h.b16 %v4774
    %v4863 = vunpack.c.l.b16 %v4775
    %v4864 = vunpack.c.h.b16 %v4775
    %v4865 = vunpack.c.l.b16 %v4776
    %v4866 = vunpack.c.h.b16 %v4776
    %v4867 = vunpack.c.l.b16 %v4777
    %v4868 = vunpack.c.h.b16 %v4777
    %v4869 = vunpack.c.l.b16 %v4778
    %v4870 = vunpack.c.h.b16 %v4778
    %v4871 = vunpack.c.l.b16 %v4779
    %v4872 = vunpack.c.h.b16 %v4779
    %v4873 = vunpack.c.l.b16 %v4780
    %v4874 = vunpack.c.h.b16 %v4780
    %v4875 = vunpack.c.l.b16 %v4781
    %v4876 = vunpack.c.h.b16 %v4781
    %v4877 = vunpack.c.l.b16 %v4782
    %v4878 = vunpack.c.h.b16 %v4782
    %v4879 = vunpack.c.l.b16 %v4783
    %v4880 = vunpack.c.h.b16 %v4783
    %v4881 = vunpack.c.l.b16 %v4784
    %v4882 = vunpack.c.h.b16 %v4784
    %v4883 = vpack.c.b16 %v4823, %v4819
    %v4884 = vpack.c.b16 %v4824, %v4820
    %v4885 = vpack.c.b16 %v4825, %v4821
    %v4886 = vpack.c.b16 %v4826, %v4822
    %v4887 = vpack.c.b16 %v4831, %v4827
    %v4888 = vpack.c.b16 %v4832, %v4828
    %v4889 = vpack.c.b16 %v4833, %v4829
    %v4890 = vpack.c.b16 %v4834, %v4830
    %v4891 = vpack.c.b16 %v4839, %v4835
    %v4892 = vpack.c.b16 %v4840, %v4836
    %v4893 = vpack.c.b16 %v4841, %v4837
    %v4894 = vpack.c.b16 %v4842, %v4838
    %v4895 = vpack.c.b16 %v4847, %v4843
    %v4896 = vpack.c.b16 %v4848, %v4844
    %v4897 = vpack.c.b16 %v4849, %v4845
    %v4898 = vpack.c.b16 %v4850, %v4846
    %v4899 = vpack.c.b16 %v4855, %v4851
    %v4900 = vpack.c.b16 %v4856, %v4852
    %v4901 = vpack.c.b16 %v4857, %v4853
    %v4902 = vpack.c.b16 %v4858, %v4854
    %v4903 = vpack.c.b16 %v4863, %v4859
    %v4904 = vpack.c.b16 %v4864, %v4860
    %v4905 = vpack.c.b16 %v4865, %v4861
    %v4906 = vpack.c.b16 %v4866, %v4862
    %v4907 = vpack.c.b16 %v4871, %v4867
    %v4908 = vpack.c.b16 %v4872, %v4868
    %v4909 = vpack.c.b16 %v4873, %v4869
    %v4910 = vpack.c.b16 %v4874, %v4870
    %v4911 = vpack.c.b16 %v4879, %v4875
    %v4912 = vpack.c.b16 %v4880, %v4876
    %v4913 = vpack.c.b16 %v4881, %v4877
    %v4914 = vpack.c.b16 %v4882, %v4878
    %4947 = vmatpush.bf16.msra.mxu0 %v4911
    %4948 = vmatpush.bf16.msra.mxu0 %v4907
    %4949 = vmatpush.bf16.msra.mxu0 %v4903
    %4950 = vmatpush.bf16.msra.mxu0 %v4899
    %4951 = vmatpush.bf16.msra.mxu0 %v4895
    %4952 = vmatpush.bf16.msra.mxu0 %v4891
    %4953 = vmatpush.bf16.msra.mxu0 %v4887
    %4954 = vmatpush.bf16.msra.mxu0 %v4883
    %4955 = vmatmul.bf16.gmra.mxu0 %v4785
    %v4956 = vpop.f32.mrf.mxu0
    %v4957 = vadd.f32 0.0, %v4956
    %v4958 = vpop.f32.mrf.mxu0
    %v4959 = vadd.f32 0.0, %v4958
    %4960 = vmatmul.bf16.gmra.mxu0 %v4786
    %v4961 = vpop.f32.mrf.mxu0
    %v4962 = vadd.f32 0.0, %v4961
    %v4963 = vpop.f32.mrf.mxu0
    %4964 = vdwg.mxu0
    %4965 = vmatpush.bf16.msra.mxu0 %v4912
    %4966 = vmatpush.bf16.msra.mxu0 %v4908
    %4967 = vmatpush.bf16.msra.mxu0 %v4904
    %4968 = vmatpush.bf16.msra.mxu0 %v4900
    %4969 = vmatpush.bf16.msra.mxu0 %v4896
    %4970 = vmatpush.bf16.msra.mxu0 %v4892
    %4971 = vmatpush.bf16.msra.mxu0 %v4888
    %4972 = vmatpush.bf16.msra.mxu0 %v4884
    %4973 = vmatmul.bf16.gmra.mxu0 %v4785
    %v4974 = vpop.f32.mrf.mxu0
    %v4975 = vadd.f32 0.0, %v4974
    %v4976 = vpop.f32.mrf.mxu0
    %v4977 = vadd.f32 0.0, %v4976
    %4978 = vmatmul.bf16.gmra.mxu0 %v4786
    %v4979 = vpop.f32.mrf.mxu0
    %v4980 = vadd.f32 0.0, %v4979
    %v4981 = vpop.f32.mrf.mxu0
    %4982 = vdwg.mxu0
    %4983 = vmatpush.bf16.msra.mxu0 %v4913
    %4984 = vmatpush.bf16.msra.mxu0 %v4909
    %4985 = vmatpush.bf16.msra.mxu0 %v4905
    %4986 = vmatpush.bf16.msra.mxu0 %v4901
    %4987 = vmatpush.bf16.msra.mxu0 %v4897
    %4988 = vmatpush.bf16.msra.mxu0 %v4893
    %4989 = vmatpush.bf16.msra.mxu0 %v4889
    %4990 = vmatpush.bf16.msra.mxu0 %v4885
    %4991 = vmatmul.bf16.gmra.mxu0 %v4785
    %v4992 = vpop.f32.mrf.mxu0
    %v4993 = vadd.f32 0.0, %v4992
    %v4994 = vpop.f32.mrf.mxu0
    %v4995 = vadd.f32 0.0, %v4994
    %4996 = vmatmul.bf16.gmra.mxu0 %v4786
    %v4997 = vpop.f32.mrf.mxu0
    %v4998 = vadd.f32 0.0, %v4997
    %v4999 = vpop.f32.mrf.mxu0
    %5000 = vdwg.mxu0
    %5001 = vmatpush.bf16.msra.mxu0 %v4914
    %5002 = vmatpush.bf16.msra.mxu0 %v4910
    %5003 = vmatpush.bf16.msra.mxu0 %v4906
    %5004 = vmatpush.bf16.msra.mxu0 %v4902
    %5005 = vmatpush.bf16.msra.mxu0 %v4898
    %5006 = vmatpush.bf16.msra.mxu0 %v4894
    %5007 = vmatpush.bf16.msra.mxu0 %v4890
    %5008 = vmatpush.bf16.msra.mxu0 %v4886
    %5009 = vmatmul.bf16.gmra.mxu0 %v4785
    %v5010 = vpop.f32.mrf.mxu0
    %v5011 = vadd.f32 0.0, %v5010
    %v5012 = vpop.f32.mrf.mxu0
    %v5013 = vadd.f32 0.0, %v5012
    %5014 = vmatmul.bf16.gmra.mxu0 %v4786
    %v5015 = vpop.f32.mrf.mxu0
    %v5016 = vadd.f32 0.0, %v5015
    %v5017 = vpop.f32.mrf.mxu0
    %5018 = vdwg.mxu0
    %v5019 = vmax.f32 %v4957, 0.0
    %v5020 = vmax.f32 %v4975, 0.0
    %v5021 = vmax.f32 %v4993, 0.0
    %v5022 = vmax.f32 %v5011, 0.0
    %v5023 = vmax.f32 %v4959, 0.0
    %v5024 = vmax.f32 %v4977, 0.0
    %v5025 = vmax.f32 %v4995, 0.0
    %v5026 = vmax.f32 %v5013, 0.0
    %v5027 = vmax.f32 %v4962, 0.0
    %v5028 = vmax.f32 %v4980, 0.0
    %v5029 = vmax.f32 %v4998, 0.0
    %v5030 = vmax.f32 %v5016, 0.0
    %s5031 = sshll.u32 %s1171, 4
    %5032 = dma.done %s281, %s5031
    %v5033 = vld [vmem:[#allocation4] sm:$0xff]
    %v5034 = vld [vmem:[#allocation4 + $0x8] sm:$0xf]
    %v5035 = vld [vmem:[#allocation4 + $0xc] sm:$0xff]
    %v5036 = vld [vmem:[#allocation4 + $0x14] sm:$0xf]
    %v5037 = vld [vmem:[#allocation4 + $0x18] sm:$0xff]
    %v5038 = vld [vmem:[#allocation4 + $0x20] sm:$0xf]
    %v5039 = vld [vmem:[#allocation4 + $0x24] sm:$0xff]
    %v5040 = vld [vmem:[#allocation4 + $0x2c] sm:$0xf]
    %v5041 = vld [vmem:[#allocation4 + $0x30] sm:$0xff]
    %v5042 = vld [vmem:[#allocation4 + $0x38] sm:$0xf]
    %v5043 = vld [vmem:[#allocation4 + $0x3c] sm:$0xff]
    %v5044 = vld [vmem:[#allocation4 + $0x44] sm:$0xf]
    %v5045 = vld [vmem:[#allocation4 + $0x48] sm:$0xff]
    %v5046 = vld [vmem:[#allocation4 + $0x50] sm:$0xf]
    %v5047 = vld [vmem:[#allocation4 + $0x54] sm:$0xff]
    %v5048 = vld [vmem:[#allocation4 + $0x5c] sm:$0xf]
    %v5049 = vld [vmem:[#allocation4 + $0x60] sm:$0xff]
    %v5050 = vld [vmem:[#allocation4 + $0x68] sm:$0xf]
    %v5051 = vld [vmem:[#allocation4 + $0x6c] sm:$0xff]
    %v5052 = vld [vmem:[#allocation4 + $0x74] sm:$0xf]
    %v5053 = vld [vmem:[#allocation4 + $0x78] sm:$0xff]
    %v5054 = vld [vmem:[#allocation4 + $0x80] sm:$0xf]
    %v5055 = vld [vmem:[#allocation4 + $0x84] sm:$0xff]
    %v5056 = vld [vmem:[#allocation4 + $0x8c] sm:$0xf]
    %v5057 = vld [vmem:[#allocation4 + $0x90] sm:$0xff]
    %v5058 = vld [vmem:[#allocation4 + $0x98] sm:$0xf]
    %v5059 = vld [vmem:[#allocation4 + $0x9c] sm:$0xff]
    %v5060 = vld [vmem:[#allocation4 + $0xa4] sm:$0xf]
    %v5061 = vld [vmem:[#allocation4 + $0xa8] sm:$0xff]
    %v5062 = vld [vmem:[#allocation4 + $0xb0] sm:$0xf]
    %v5063 = vld [vmem:[#allocation4 + $0xb4] sm:$0xff]
    %v5064 = vld [vmem:[#allocation4 + $0xbc] sm:$0xf]
    %v5065 = vld [vmem:[#allocation4 + $0xc0] sm:$0xff]
    %v5066 = vld [vmem:[#allocation4 + $0xc8] sm:$0xf]
    %v5067 = vld [vmem:[#allocation4 + $0xcc] sm:$0xff]
    %v5068 = vld [vmem:[#allocation4 + $0xd4] sm:$0xf]
    %v5069 = vld [vmem:[#allocation4 + $0xd8] sm:$0xff]
    %v5070 = vld [vmem:[#allocation4 + $0xe0] sm:$0xf]
    %v5071 = vld [vmem:[#allocation4 + $0xe4] sm:$0xff]
    %v5072 = vld [vmem:[#allocation4 + $0xec] sm:$0xf]
    %v5073 = vld [vmem:[#allocation4 + $0xf0] sm:$0xff]
    %v5074 = vld [vmem:[#allocation4 + $0xf8] sm:$0xf]
    %v5075 = vld [vmem:[#allocation4 + $0xfc] sm:$0xff]
    %v5076 = vld [vmem:[#allocation4 + $0x104] sm:$0xf]
    %v5077 = vld [vmem:[#allocation4 + $0x108] sm:$0xff]
    %v5078 = vld [vmem:[#allocation4 + $0x110] sm:$0xf]
    %v5079 = vld [vmem:[#allocation4 + $0x114] sm:$0xff]
    %v5080 = vld [vmem:[#allocation4 + $0x11c] sm:$0xf]
    %v5081 = vld [vmem:[#allocation4 + $0x120] sm:$0xff]
    %v5082 = vld [vmem:[#allocation4 + $0x128] sm:$0xf]
    %v5083 = vld [vmem:[#allocation4 + $0x12c] sm:$0xff]
    %v5084 = vld [vmem:[#allocation4 + $0x134] sm:$0xf]
    %v5085 = vld [vmem:[#allocation4 + $0x138] sm:$0xff]
    %v5086 = vld [vmem:[#allocation4 + $0x140] sm:$0xf]
    %v5087 = vld [vmem:[#allocation4 + $0x144] sm:$0xff]
    %v5088 = vld [vmem:[#allocation4 + $0x14c] sm:$0xf]
    %v5089 = vld [vmem:[#allocation4 + $0x150] sm:$0xff]
    %v5090 = vld [vmem:[#allocation4 + $0x158] sm:$0xf]
    %v5091 = vld [vmem:[#allocation4 + $0x15c] sm:$0xff]
    %v5092 = vld [vmem:[#allocation4 + $0x164] sm:$0xf]
    %v5093 = vld [vmem:[#allocation4 + $0x168] sm:$0xff]
    %v5094 = vld [vmem:[#allocation4 + $0x170] sm:$0xf]
    %v5095 = vld [vmem:[#allocation4 + $0x174] sm:$0xff]
    %v5096 = vld [vmem:[#allocation4 + $0x17c] sm:$0xf]
    %v5097 = vld [vmem:[#allocation4 + $0x180] sm:$0xff]
    %v5098 = vld [vmem:[#allocation4 + $0x188] sm:$0xf]
    %v5099 = vld [vmem:[#allocation4 + $0x18c] sm:$0xff]
    %v5100 = vld [vmem:[#allocation4 + $0x194] sm:$0xf]
    %v5101 = vld [vmem:[#allocation4 + $0x198] sm:$0xff]
    %v5102 = vld [vmem:[#allocation4 + $0x1a0] sm:$0xf]
    %v5103 = vld [vmem:[#allocation4 + $0x1a4] sm:$0xff]
    %v5104 = vld [vmem:[#allocation4 + $0x1ac] sm:$0xf]
    %v5105 = vld [vmem:[#allocation4 + $0x1b0] sm:$0xff]
    %v5106 = vld [vmem:[#allocation4 + $0x1b8] sm:$0xf]
    %v5107 = vld [vmem:[#allocation4 + $0x1bc] sm:$0xff]
    %v5108 = vld [vmem:[#allocation4 + $0x1c4] sm:$0xf]
    %v5109 = vld [vmem:[#allocation4 + $0x1c8] sm:$0xff]
    %v5110 = vld [vmem:[#allocation4 + $0x1d0] sm:$0xf]
    %v5111 = vld [vmem:[#allocation4 + $0x1d4] sm:$0xff]
    %v5112 = vld [vmem:[#allocation4 + $0x1dc] sm:$0xf]
    %v5113 = vld [vmem:[#allocation4 + $0x1e0] sm:$0xff]
    %v5114 = vld [vmem:[#allocation4 + $0x1e8] sm:$0xf]
    %v5115 = vld [vmem:[#allocation4 + $0x1ec] sm:$0xff]
    %v5116 = vld [vmem:[#allocation4 + $0x1f4] sm:$0xf]
    %v5117 = vld [vmem:[#allocation4 + $0x1f8] sm:$0xff]
    %v5118 = vld [vmem:[#allocation4 + $0x200] sm:$0xf]
    %v5119 = vld [vmem:[#allocation4 + $0x204] sm:$0xff]
    %v5120 = vld [vmem:[#allocation4 + $0x20c] sm:$0xf]
    %v5121 = vld [vmem:[#allocation4 + $0x210] sm:$0xff]
    %v5122 = vld [vmem:[#allocation4 + $0x218] sm:$0xf]
    %v5123 = vld [vmem:[#allocation4 + $0x21c] sm:$0xff]
    %v5124 = vld [vmem:[#allocation4 + $0x224] sm:$0xf]
    %v5125 = vld [vmem:[#allocation4 + $0x228] sm:$0xff]
    %v5126 = vld [vmem:[#allocation4 + $0x230] sm:$0xf]
    %v5127 = vld [vmem:[#allocation4 + $0x234] sm:$0xff]
    %v5128 = vld [vmem:[#allocation4 + $0x23c] sm:$0xf]
    %v5129 = vld [vmem:[#allocation4 + $0x240] sm:$0xff]
    %v5130 = vld [vmem:[#allocation4 + $0x248] sm:$0xf]
    %v5131 = vld [vmem:[#allocation4 + $0x24c] sm:$0xff]
    %v5132 = vld [vmem:[#allocation4 + $0x254] sm:$0xf]
    %v5133 = vld [vmem:[#allocation4 + $0x258] sm:$0xff]
    %v5134 = vld [vmem:[#allocation4 + $0x260] sm:$0xf]
    %v5135 = vld [vmem:[#allocation4 + $0x264] sm:$0xff]
    %v5136 = vld [vmem:[#allocation4 + $0x26c] sm:$0xf]
    %v5137 = vld [vmem:[#allocation4 + $0x270] sm:$0xff]
    %v5138 = vld [vmem:[#allocation4 + $0x278] sm:$0xf]
    %v5139 = vld [vmem:[#allocation4 + $0x27c] sm:$0xff]
    %v5140 = vld [vmem:[#allocation4 + $0x284] sm:$0xf]
    %v5141 = vld [vmem:[#allocation4 + $0x288] sm:$0xff]
    %v5142 = vld [vmem:[#allocation4 + $0x290] sm:$0xf]
    %v5143 = vld [vmem:[#allocation4 + $0x294] sm:$0xff]
    %v5144 = vld [vmem:[#allocation4 + $0x29c] sm:$0xf]
    %v5145 = vld [vmem:[#allocation4 + $0x2a0] sm:$0xff]
    %v5146 = vld [vmem:[#allocation4 + $0x2a8] sm:$0xf]
    %v5147 = vld [vmem:[#allocation4 + $0x2ac] sm:$0xff]
    %v5148 = vld [vmem:[#allocation4 + $0x2b4] sm:$0xf]
    %v5149 = vld [vmem:[#allocation4 + $0x2b8] sm:$0xff]
    %v5150 = vld [vmem:[#allocation4 + $0x2c0] sm:$0xf]
    %v5151 = vld [vmem:[#allocation4 + $0x2c4] sm:$0xff]
    %v5152 = vld [vmem:[#allocation4 + $0x2cc] sm:$0xf]
    %v5153 = vld [vmem:[#allocation4 + $0x2d0] sm:$0xff]
    %v5154 = vld [vmem:[#allocation4 + $0x2d8] sm:$0xf]
    %v5155 = vld [vmem:[#allocation4 + $0x2dc] sm:$0xff]
    %v5156 = vld [vmem:[#allocation4 + $0x2e4] sm:$0xf]
    %v5157 = vld [vmem:[#allocation4 + $0x2e8] sm:$0xff]
    %v5158 = vld [vmem:[#allocation4 + $0x2f0] sm:$0xf]
    %v5159 = vld [vmem:[#allocation4 + $0x2f4] sm:$0xff]
    %v5160 = vld [vmem:[#allocation4 + $0x2fc] sm:$0xf]
    %v5161 = vld [vmem:[#allocation4 + $0x300] sm:$0xff]
    %v5162 = vld [vmem:[#allocation4 + $0x308] sm:$0xf]
    %v5163 = vld [vmem:[#allocation4 + $0x30c] sm:$0xff]
    %v5164 = vld [vmem:[#allocation4 + $0x314] sm:$0xf]
    %v5165 = vld [vmem:[#allocation4 + $0x318] sm:$0xff]
    %v5166 = vld [vmem:[#allocation4 + $0x320] sm:$0xf]
    %v5167 = vld [vmem:[#allocation4 + $0x324] sm:$0xff]
    %v5168 = vld [vmem:[#allocation4 + $0x32c] sm:$0xf]
    %v5169 = vld [vmem:[#allocation4 + $0x330] sm:$0xff]
    %v5170 = vld [vmem:[#allocation4 + $0x338] sm:$0xf]
    %v5171 = vld [vmem:[#allocation4 + $0x33c] sm:$0xff]
    %v5172 = vld [vmem:[#allocation4 + $0x344] sm:$0xf]
    %v5173 = vld [vmem:[#allocation4 + $0x348] sm:$0xff]
    %v5174 = vld [vmem:[#allocation4 + $0x350] sm:$0xf]
    %v5175 = vld [vmem:[#allocation4 + $0x354] sm:$0xff]
    %v5176 = vld [vmem:[#allocation4 + $0x35c] sm:$0xf]
    %v5177 = vld [vmem:[#allocation4 + $0x360] sm:$0xff]
    %v5178 = vld [vmem:[#allocation4 + $0x368] sm:$0xf]
    %v5179 = vld [vmem:[#allocation4 + $0x36c] sm:$0xff]
    %v5180 = vld [vmem:[#allocation4 + $0x374] sm:$0xf]
    %v5181 = vld [vmem:[#allocation4 + $0x378] sm:$0xff]
    %v5182 = vld [vmem:[#allocation4 + $0x380] sm:$0xf]
    %v5183 = vld [vmem:[#allocation4 + $0x384] sm:$0xff]
    %v5184 = vld [vmem:[#allocation4 + $0x38c] sm:$0xf]
    %v5185 = vld [vmem:[#allocation4 + $0x390] sm:$0xff]
    %v5186 = vld [vmem:[#allocation4 + $0x398] sm:$0xf]
    %v5187 = vld [vmem:[#allocation4 + $0x39c] sm:$0xff]
    %v5188 = vld [vmem:[#allocation4 + $0x3a4] sm:$0xf]
    %v5189 = vld [vmem:[#allocation4 + $0x3a8] sm:$0xff]
    %v5190 = vld [vmem:[#allocation4 + $0x3b0] sm:$0xf]
    %v5191 = vld [vmem:[#allocation4 + $0x3b4] sm:$0xff]
    %v5192 = vld [vmem:[#allocation4 + $0x3bc] sm:$0xf]
    %v5193 = vld [vmem:[#allocation4 + $0x3c0] sm:$0xff]
    %v5194 = vld [vmem:[#allocation4 + $0x3c8] sm:$0xf]
    %v5195 = vld [vmem:[#allocation4 + $0x3cc] sm:$0xff]
    %v5196 = vld [vmem:[#allocation4 + $0x3d4] sm:$0xf]
    %v5197 = vld [vmem:[#allocation4 + $0x3d8] sm:$0xff]
    %v5198 = vld [vmem:[#allocation4 + $0x3e0] sm:$0xf]
    %v5199 = vld [vmem:[#allocation4 + $0x3e4] sm:$0xff]
    %v5200 = vld [vmem:[#allocation4 + $0x3ec] sm:$0xf]
    %v5201 = vld [vmem:[#allocation4 + $0x3f0] sm:$0xff]
    %v5202 = vld [vmem:[#allocation4 + $0x3f8] sm:$0xf]
    %v5203 = vld [vmem:[#allocation4 + $0x3fc] sm:$0xff]
    %v5204 = vld [vmem:[#allocation4 + $0x404] sm:$0xf]
    %v5205 = vld [vmem:[#allocation4 + $0x408] sm:$0xff]
    %v5206 = vld [vmem:[#allocation4 + $0x410] sm:$0xf]
    %v5207 = vld [vmem:[#allocation4 + $0x414] sm:$0xff]
    %v5208 = vld [vmem:[#allocation4 + $0x41c] sm:$0xf]
    %v5209 = vld [vmem:[#allocation4 + $0x420] sm:$0xff]
    %v5210 = vld [vmem:[#allocation4 + $0x428] sm:$0xf]
    %v5211 = vld [vmem:[#allocation4 + $0x42c] sm:$0xff]
    %v5212 = vld [vmem:[#allocation4 + $0x434] sm:$0xf]
    %v5213 = vld [vmem:[#allocation4 + $0x438] sm:$0xff]
    %v5214 = vld [vmem:[#allocation4 + $0x440] sm:$0xf]
    %v5215 = vld [vmem:[#allocation4 + $0x444] sm:$0xff]
    %v5216 = vld [vmem:[#allocation4 + $0x44c] sm:$0xf]
    %v5217 = vld [vmem:[#allocation4 + $0x450] sm:$0xff]
    %v5218 = vld [vmem:[#allocation4 + $0x458] sm:$0xf]
    %v5219 = vld [vmem:[#allocation4 + $0x45c] sm:$0xff]
    %v5220 = vld [vmem:[#allocation4 + $0x464] sm:$0xf]
    %v5221 = vld [vmem:[#allocation4 + $0x468] sm:$0xff]
    %v5222 = vld [vmem:[#allocation4 + $0x470] sm:$0xf]
    %v5223 = vld [vmem:[#allocation4 + $0x474] sm:$0xff]
    %v5224 = vld [vmem:[#allocation4 + $0x47c] sm:$0xf]
    %v5225 = vld [vmem:[#allocation4 + $0x480] sm:$0xff]
    %v5226 = vld [vmem:[#allocation4 + $0x488] sm:$0xf]
    %v5227 = vld [vmem:[#allocation4 + $0x48c] sm:$0xff]
    %v5228 = vld [vmem:[#allocation4 + $0x494] sm:$0xf]
    %v5229 = vld [vmem:[#allocation4 + $0x498] sm:$0xff]
    %v5230 = vld [vmem:[#allocation4 + $0x4a0] sm:$0xf]
    %v5231 = vld [vmem:[#allocation4 + $0x4a4] sm:$0xff]
    %v5232 = vld [vmem:[#allocation4 + $0x4ac] sm:$0xf]
    %v5233 = vld [vmem:[#allocation4 + $0x4b0] sm:$0xff]
    %v5234 = vld [vmem:[#allocation4 + $0x4b8] sm:$0xf]
    %v5235 = vld [vmem:[#allocation4 + $0x4bc] sm:$0xff]
    %v5236 = vld [vmem:[#allocation4 + $0x4c4] sm:$0xf]
    %v5237 = vld [vmem:[#allocation4 + $0x4c8] sm:$0xff]
    %v5238 = vld [vmem:[#allocation4 + $0x4d0] sm:$0xf]
    %v5239 = vld [vmem:[#allocation4 + $0x4d4] sm:$0xff]
    %v5240 = vld [vmem:[#allocation4 + $0x4dc] sm:$0xf]
    %v5241 = vld [vmem:[#allocation4 + $0x4e0] sm:$0xff]
    %v5242 = vld [vmem:[#allocation4 + $0x4e8] sm:$0xf]
    %v5243 = vld [vmem:[#allocation4 + $0x4ec] sm:$0xff]
    %v5244 = vld [vmem:[#allocation4 + $0x4f4] sm:$0xf]
    %v5245 = vld [vmem:[#allocation4 + $0x4f8] sm:$0xff]
    %v5246 = vld [vmem:[#allocation4 + $0x500] sm:$0xf]
    %v5247 = vld [vmem:[#allocation4 + $0x504] sm:$0xff]
    %v5248 = vld [vmem:[#allocation4 + $0x50c] sm:$0xf]
    %v5249 = vld [vmem:[#allocation4 + $0x510] sm:$0xff]
    %v5250 = vld [vmem:[#allocation4 + $0x518] sm:$0xf]
    %v5251 = vld [vmem:[#allocation4 + $0x51c] sm:$0xff]
    %v5252 = vld [vmem:[#allocation4 + $0x524] sm:$0xf]
    %v5253 = vld [vmem:[#allocation4 + $0x528] sm:$0xff]
    %v5254 = vld [vmem:[#allocation4 + $0x530] sm:$0xf]
    %v5255 = vld [vmem:[#allocation4 + $0x534] sm:$0xff]
    %v5256 = vld [vmem:[#allocation4 + $0x53c] sm:$0xf]
    %v5257 = vld [vmem:[#allocation4 + $0x540] sm:$0xff]
    %v5258 = vld [vmem:[#allocation4 + $0x548] sm:$0xf]
    %v5259 = vld [vmem:[#allocation4 + $0x54c] sm:$0xff]
    %v5260 = vld [vmem:[#allocation4 + $0x554] sm:$0xf]
    %v5261 = vld [vmem:[#allocation4 + $0x558] sm:$0xff]
    %v5262 = vld [vmem:[#allocation4 + $0x560] sm:$0xf]
    %v5263 = vld [vmem:[#allocation4 + $0x564] sm:$0xff]
    %v5264 = vld [vmem:[#allocation4 + $0x56c] sm:$0xf]
    %v5265 = vld [vmem:[#allocation4 + $0x570] sm:$0xff]
    %v5266 = vld [vmem:[#allocation4 + $0x578] sm:$0xf]
    %v5267 = vld [vmem:[#allocation4 + $0x57c] sm:$0xff]
    %v5268 = vld [vmem:[#allocation4 + $0x584] sm:$0xf]
    %v5269 = vld [vmem:[#allocation4 + $0x588] sm:$0xff]
    %v5270 = vld [vmem:[#allocation4 + $0x590] sm:$0xf]
    %v5271 = vld [vmem:[#allocation4 + $0x594] sm:$0xff]
    %v5272 = vld [vmem:[#allocation4 + $0x59c] sm:$0xf]
    %v5273 = vld [vmem:[#allocation4 + $0x5a0] sm:$0xff]
    %v5274 = vld [vmem:[#allocation4 + $0x5a8] sm:$0xf]
    %v5275 = vld [vmem:[#allocation4 + $0x5ac] sm:$0xff]
    %v5276 = vld [vmem:[#allocation4 + $0x5b4] sm:$0xf]
    %v5277 = vld [vmem:[#allocation4 + $0x5b8] sm:$0xff]
    %v5278 = vld [vmem:[#allocation4 + $0x5c0] sm:$0xf]
    %v5279 = vld [vmem:[#allocation4 + $0x5c4] sm:$0xff]
    %v5280 = vld [vmem:[#allocation4 + $0x5cc] sm:$0xf]
    %v5281 = vld [vmem:[#allocation4 + $0x5d0] sm:$0xff]
    %v5282 = vld [vmem:[#allocation4 + $0x5d8] sm:$0xf]
    %v5283 = vld [vmem:[#allocation4 + $0x5dc] sm:$0xff]
    %v5284 = vld [vmem:[#allocation4 + $0x5e4] sm:$0xf]
    %v5285 = vld [vmem:[#allocation4 + $0x5e8] sm:$0xff]
    %v5286 = vld [vmem:[#allocation4 + $0x5f0] sm:$0xf]
    %v5287 = vld [vmem:[#allocation4 + $0x5f4] sm:$0xff]
    %v5288 = vld [vmem:[#allocation4 + $0x5fc] sm:$0xf]
    %v5289 = vld [vmem:[#allocation4 + $0x600] sm:$0xff]
    %v5290 = vld [vmem:[#allocation4 + $0x608] sm:$0xf]
    %v5291 = vld [vmem:[#allocation4 + $0x60c] sm:$0xff]
    %v5292 = vld [vmem:[#allocation4 + $0x614] sm:$0xf]
    %v5293 = vld [vmem:[#allocation4 + $0x618] sm:$0xff]
    %v5294 = vld [vmem:[#allocation4 + $0x620] sm:$0xf]
    %v5295 = vld [vmem:[#allocation4 + $0x624] sm:$0xff]
    %v5296 = vld [vmem:[#allocation4 + $0x62c] sm:$0xf]
    %v5297 = vld [vmem:[#allocation4 + $0x630] sm:$0xff]
    %v5298 = vld [vmem:[#allocation4 + $0x638] sm:$0xf]
    %v5299 = vld [vmem:[#allocation4 + $0x63c] sm:$0xff]
    %v5300 = vld [vmem:[#allocation4 + $0x644] sm:$0xf]
    %v5301 = vld [vmem:[#allocation4 + $0x648] sm:$0xff]
    %v5302 = vld [vmem:[#allocation4 + $0x650] sm:$0xf]
    %v5303 = vld [vmem:[#allocation4 + $0x654] sm:$0xff]
    %v5304 = vld [vmem:[#allocation4 + $0x65c] sm:$0xf]
    %v5305 = vld [vmem:[#allocation4 + $0x660] sm:$0xff]
    %v5306 = vld [vmem:[#allocation4 + $0x668] sm:$0xf]
    %v5307 = vld [vmem:[#allocation4 + $0x66c] sm:$0xff]
    %v5308 = vld [vmem:[#allocation4 + $0x674] sm:$0xf]
    %v5309 = vld [vmem:[#allocation4 + $0x678] sm:$0xff]
    %v5310 = vld [vmem:[#allocation4 + $0x680] sm:$0xf]
    %v5311 = vld [vmem:[#allocation4 + $0x684] sm:$0xff]
    %v5312 = vld [vmem:[#allocation4 + $0x68c] sm:$0xf]
    %v5313 = vld [vmem:[#allocation4 + $0x690] sm:$0xff]
    %v5314 = vld [vmem:[#allocation4 + $0x698] sm:$0xf]
    %v5315 = vld [vmem:[#allocation4 + $0x69c] sm:$0xff]
    %v5316 = vld [vmem:[#allocation4 + $0x6a4] sm:$0xf]
    %v5317 = vld [vmem:[#allocation4 + $0x6a8] sm:$0xff]
    %v5318 = vld [vmem:[#allocation4 + $0x6b0] sm:$0xf]
    %v5319 = vld [vmem:[#allocation4 + $0x6b4] sm:$0xff]
    %v5320 = vld [vmem:[#allocation4 + $0x6bc] sm:$0xf]
    %v5321 = vld [vmem:[#allocation4 + $0x6c0] sm:$0xff]
    %v5322 = vld [vmem:[#allocation4 + $0x6c8] sm:$0xf]
    %v5323 = vld [vmem:[#allocation4 + $0x6cc] sm:$0xff]
    %v5324 = vld [vmem:[#allocation4 + $0x6d4] sm:$0xf]
    %v5325 = vld [vmem:[#allocation4 + $0x6d8] sm:$0xff]
    %v5326 = vld [vmem:[#allocation4 + $0x6e0] sm:$0xf]
    %v5327 = vld [vmem:[#allocation4 + $0x6e4] sm:$0xff]
    %v5328 = vld [vmem:[#allocation4 + $0x6ec] sm:$0xf]
    %v5329 = vld [vmem:[#allocation4 + $0x6f0] sm:$0xff]
    %v5330 = vld [vmem:[#allocation4 + $0x6f8] sm:$0xf]
    %v5331 = vld [vmem:[#allocation4 + $0x6fc] sm:$0xff]
    %v5332 = vld [vmem:[#allocation4 + $0x704] sm:$0xf]
    %v5333 = vld [vmem:[#allocation4 + $0x708] sm:$0xff]
    %v5334 = vld [vmem:[#allocation4 + $0x710] sm:$0xf]
    %v5335 = vld [vmem:[#allocation4 + $0x714] sm:$0xff]
    %v5336 = vld [vmem:[#allocation4 + $0x71c] sm:$0xf]
    %v5337 = vld [vmem:[#allocation4 + $0x720] sm:$0xff]
    %v5338 = vld [vmem:[#allocation4 + $0x728] sm:$0xf]
    %v5339 = vld [vmem:[#allocation4 + $0x72c] sm:$0xff]
    %v5340 = vld [vmem:[#allocation4 + $0x734] sm:$0xf]
    %v5341 = vld [vmem:[#allocation4 + $0x738] sm:$0xff]
    %v5342 = vld [vmem:[#allocation4 + $0x740] sm:$0xf]
    %v5343 = vld [vmem:[#allocation4 + $0x744] sm:$0xff]
    %v5344 = vld [vmem:[#allocation4 + $0x74c] sm:$0xf]
    %v5345 = vld [vmem:[#allocation4 + $0x750] sm:$0xff]
    %v5346 = vld [vmem:[#allocation4 + $0x758] sm:$0xf]
    %v5347 = vld [vmem:[#allocation4 + $0x75c] sm:$0xff]
    %v5348 = vld [vmem:[#allocation4 + $0x764] sm:$0xf]
    %v5349 = vld [vmem:[#allocation4 + $0x768] sm:$0xff]
    %v5350 = vld [vmem:[#allocation4 + $0x770] sm:$0xf]
    %v5351 = vld [vmem:[#allocation4 + $0x774] sm:$0xff]
    %v5352 = vld [vmem:[#allocation4 + $0x77c] sm:$0xf]
    %v5353 = vld [vmem:[#allocation4 + $0x780] sm:$0xff]
    %v5354 = vld [vmem:[#allocation4 + $0x788] sm:$0xf]
    %v5355 = vld [vmem:[#allocation4 + $0x78c] sm:$0xff]
    %v5356 = vld [vmem:[#allocation4 + $0x794] sm:$0xf]
    %v5357 = vld [vmem:[#allocation4 + $0x798] sm:$0xff]
    %v5358 = vld [vmem:[#allocation4 + $0x7a0] sm:$0xf]
    %v5359 = vld [vmem:[#allocation4 + $0x7a4] sm:$0xff]
    %v5360 = vld [vmem:[#allocation4 + $0x7ac] sm:$0xf]
    %v5361 = vld [vmem:[#allocation4 + $0x7b0] sm:$0xff]
    %v5362 = vld [vmem:[#allocation4 + $0x7b8] sm:$0xf]
    %v5363 = vld [vmem:[#allocation4 + $0x7bc] sm:$0xff]
    %v5364 = vld [vmem:[#allocation4 + $0x7c4] sm:$0xf]
    %v5365 = vld [vmem:[#allocation4 + $0x7c8] sm:$0xff]
    %v5366 = vld [vmem:[#allocation4 + $0x7d0] sm:$0xf]
    %v5367 = vld [vmem:[#allocation4 + $0x7d4] sm:$0xff]
    %v5368 = vld [vmem:[#allocation4 + $0x7dc] sm:$0xf]
    %v5369 = vld [vmem:[#allocation4 + $0x7e0] sm:$0xff]
    %v5370 = vld [vmem:[#allocation4 + $0x7e8] sm:$0xf]
    %v5371 = vld [vmem:[#allocation4 + $0x7ec] sm:$0xff]
    %v5372 = vld [vmem:[#allocation4 + $0x7f4] sm:$0xf]
    %v5373 = vld [vmem:[#allocation4 + $0x7f8] sm:$0xff]
    %v5374 = vld [vmem:[#allocation4 + $0x800] sm:$0xf]
    %v5375 = vld [vmem:[#allocation4 + $0x804] sm:$0xff]
    %v5376 = vld [vmem:[#allocation4 + $0x80c] sm:$0xf]
    %v5377 = vld [vmem:[#allocation4 + $0x810] sm:$0xff]
    %v5378 = vld [vmem:[#allocation4 + $0x818] sm:$0xf]
    %v5379 = vld [vmem:[#allocation4 + $0x81c] sm:$0xff]
    %v5380 = vld [vmem:[#allocation4 + $0x824] sm:$0xf]
    %v5381 = vld [vmem:[#allocation4 + $0x828] sm:$0xff]
    %v5382 = vld [vmem:[#allocation4 + $0x830] sm:$0xf]
    %v5383 = vld [vmem:[#allocation4 + $0x834] sm:$0xff]
    %v5384 = vld [vmem:[#allocation4 + $0x83c] sm:$0xf]
    %v5385 = vld [vmem:[#allocation4 + $0x840] sm:$0xff]
    %v5386 = vld [vmem:[#allocation4 + $0x848] sm:$0xf]
    %v5387 = vld [vmem:[#allocation4 + $0x84c] sm:$0xff]
    %v5388 = vld [vmem:[#allocation4 + $0x854] sm:$0xf]
    %v5389 = vld [vmem:[#allocation4 + $0x858] sm:$0xff]
    %v5390 = vld [vmem:[#allocation4 + $0x860] sm:$0xf]
    %v5391 = vld [vmem:[#allocation4 + $0x864] sm:$0xff]
    %v5392 = vld [vmem:[#allocation4 + $0x86c] sm:$0xf]
    %v5393 = vld [vmem:[#allocation4 + $0x870] sm:$0xff]
    %v5394 = vld [vmem:[#allocation4 + $0x878] sm:$0xf]
    %v5395 = vld [vmem:[#allocation4 + $0x87c] sm:$0xff]
    %v5396 = vld [vmem:[#allocation4 + $0x884] sm:$0xf]
    %v5397 = vld [vmem:[#allocation4 + $0x888] sm:$0xff]
    %v5398 = vld [vmem:[#allocation4 + $0x890] sm:$0xf]
    %v5399 = vld [vmem:[#allocation4 + $0x894] sm:$0xff]
    %v5400 = vld [vmem:[#allocation4 + $0x89c] sm:$0xf]
    %v5401 = vld [vmem:[#allocation4 + $0x8a0] sm:$0xff]
    %v5402 = vld [vmem:[#allocation4 + $0x8a8] sm:$0xf]
    %v5403 = vld [vmem:[#allocation4 + $0x8ac] sm:$0xff]
    %v5404 = vld [vmem:[#allocation4 + $0x8b4] sm:$0xf]
    %v5405 = vld [vmem:[#allocation4 + $0x8b8] sm:$0xff]
    %v5406 = vld [vmem:[#allocation4 + $0x8c0] sm:$0xf]
    %v5407 = vld [vmem:[#allocation4 + $0x8c4] sm:$0xff]
    %v5408 = vld [vmem:[#allocation4 + $0x8cc] sm:$0xf]
    %v5409 = vld [vmem:[#allocation4 + $0x8d0] sm:$0xff]
    %v5410 = vld [vmem:[#allocation4 + $0x8d8] sm:$0xf]
    %v5411 = vld [vmem:[#allocation4 + $0x8dc] sm:$0xff]
    %v5412 = vld [vmem:[#allocation4 + $0x8e4] sm:$0xf]
    %v5413 = vld [vmem:[#allocation4 + $0x8e8] sm:$0xff]
    %v5414 = vld [vmem:[#allocation4 + $0x8f0] sm:$0xf]
    %v5415 = vld [vmem:[#allocation4 + $0x8f4] sm:$0xff]
    %v5416 = vld [vmem:[#allocation4 + $0x8fc] sm:$0xf]
    %v5417 = vld [vmem:[#allocation24] sm:$0x7]
    %v5426 = vrot.slane %v5023, 2
    %v5427 = vrot.slane %v5027, 2
    %v5428 = vsel %vm477, %v5426, %v5427
    %v5429 = vrot.slane %v5024, 2
    %v5430 = vrot.slane %v5028, 2
    %v5431 = vsel %vm477, %v5429, %v5430
    %v5432 = vrot.slane %v5025, 2
    %v5433 = vrot.slane %v5029, 2
    %v5434 = vsel %vm477, %v5432, %v5433
    %v5435 = vrot.slane %v5026, 2
    %v5436 = vrot.slane %v5030, 2
    %v5437 = vsel %vm477, %v5435, %v5436
    %v5446 = vrot.slane %v5019, 1
    %v5447 = vrot.slane %v5023, 1
    %v5448 = vsel %vm487, %v5446, %v5447
    %v5449 = vrot.slane %v5020, 1
    %v5450 = vrot.slane %v5024, 1
    %v5451 = vsel %vm487, %v5449, %v5450
    %v5452 = vrot.slane %v5021, 1
    %v5453 = vrot.slane %v5025, 1
    %v5454 = vsel %vm487, %v5452, %v5453
    %v5455 = vrot.slane %v5022, 1
    %v5456 = vrot.slane %v5026, 1
    %v5457 = vsel %vm487, %v5455, %v5456
    %v5462 = vrot.slane %v5023, 3
    %v5463 = vrot.slane %v5027, 3
    %v5464 = vsel %vm492, %v5462, %v5463
    %v5465 = vrot.slane %v5024, 3
    %v5466 = vrot.slane %v5028, 3
    %v5467 = vsel %vm492, %v5465, %v5466
    %v5468 = vrot.slane %v5025, 3
    %v5469 = vrot.slane %v5029, 3
    %v5470 = vsel %vm492, %v5468, %v5469
    %v5471 = vrot.slane %v5026, 3
    %v5472 = vrot.slane %v5030, 3
    %v5473 = vsel %vm492, %v5471, %v5472
    %v5478 = vrot.slane %v5019, 2
    %v5479 = vsel %vm477, %v5478, %v5426
    %v5480 = vrot.slane %v5020, 2
    %v5481 = vsel %vm477, %v5480, %v5429
    %v5482 = vrot.slane %v5021, 2
    %v5483 = vsel %vm477, %v5482, %v5432
    %v5484 = vrot.slane %v5022, 2
    %v5485 = vsel %vm477, %v5484, %v5435
    %v5490 = vrot.slane %v5023, 4
    %v5491 = vrot.slane %v5027, 4
    %v5492 = vsel %vm503, %v5490, %v5491
    %v5493 = vrot.slane %v5024, 4
    %v5494 = vrot.slane %v5028, 4
    %v5495 = vsel %vm503, %v5493, %v5494
    %v5496 = vrot.slane %v5025, 4
    %v5497 = vrot.slane %v5029, 4
    %v5498 = vsel %vm503, %v5496, %v5497
    %v5499 = vrot.slane %v5026, 4
    %v5500 = vrot.slane %v5030, 4
    %v5501 = vsel %vm503, %v5499, %v5500
    %v5506 = vpack.c.bf16 %v5428, %v5019
    %v5507 = vpack.c.bf16 %v5431, %v5020
    %v5508 = vpack.c.bf16 %v5434, %v5021
    %v5509 = vpack.c.bf16 %v5437, %v5022
    %v5510 = vpack.c.bf16 %v5464, %v5448
    %v5511 = vpack.c.bf16 %v5467, %v5451
    %v5512 = vpack.c.bf16 %v5470, %v5454
    %v5513 = vpack.c.bf16 %v5473, %v5457
    %v5514 = vpack.c.bf16 %v5492, %v5479
    %v5515 = vpack.c.bf16 %v5495, %v5481
    %v5516 = vpack.c.bf16 %v5498, %v5483
    %v5517 = vpack.c.bf16 %v5501, %v5485
    %v5519 = vperm.slane %v5417, 0
    %v5520 = vperm.slane %v5417, 1
    %v5521 = vperm.slane %v5417, 2
    %v5909 = vunpack.c.l.b16 %v5033
    %v5910 = vunpack.c.h.b16 %v5033
    %v5911 = vunpack.c.l.b16 %v5034
    %v5912 = vunpack.c.l.b16 %v5035
    %v5913 = vunpack.c.h.b16 %v5035
    %v5914 = vunpack.c.l.b16 %v5036
    %v5915 = vunpack.c.l.b16 %v5037
    %v5916 = vunpack.c.h.b16 %v5037
    %v5917 = vunpack.c.l.b16 %v5038
    %v5918 = vunpack.c.l.b16 %v5039
    %v5919 = vunpack.c.h.b16 %v5039
    %v5920 = vunpack.c.l.b16 %v5040
    %v5921 = vunpack.c.l.b16 %v5041
    %v5922 = vunpack.c.h.b16 %v5041
    %v5923 = vunpack.c.l.b16 %v5042
    %v5924 = vunpack.c.l.b16 %v5043
    %v5925 = vunpack.c.h.b16 %v5043
    %v5926 = vunpack.c.l.b16 %v5044
    %v5927 = vunpack.c.l.b16 %v5045
    %v5928 = vunpack.c.h.b16 %v5045
    %v5929 = vunpack.c.l.b16 %v5046
    %v5930 = vunpack.c.l.b16 %v5047
    %v5931 = vunpack.c.h.b16 %v5047
    %v5932 = vunpack.c.l.b16 %v5048
    %v5933 = vunpack.c.l.b16 %v5049
    %v5934 = vunpack.c.h.b16 %v5049
    %v5935 = vunpack.c.l.b16 %v5050
    %v5936 = vunpack.c.l.b16 %v5051
    %v5937 = vunpack.c.h.b16 %v5051
    %v5938 = vunpack.c.l.b16 %v5052
    %v5939 = vunpack.c.l.b16 %v5053
    %v5940 = vunpack.c.h.b16 %v5053
    %v5941 = vunpack.c.l.b16 %v5054
    %v5942 = vunpack.c.l.b16 %v5055
    %v5943 = vunpack.c.h.b16 %v5055
    %v5944 = vunpack.c.l.b16 %v5056
    %v5945 = vunpack.c.l.b16 %v5057
    %v5946 = vunpack.c.h.b16 %v5057
    %v5947 = vunpack.c.l.b16 %v5058
    %v5948 = vunpack.c.l.b16 %v5059
    %v5949 = vunpack.c.h.b16 %v5059
    %v5950 = vunpack.c.l.b16 %v5060
    %v5951 = vunpack.c.l.b16 %v5061
    %v5952 = vunpack.c.h.b16 %v5061
    %v5953 = vunpack.c.l.b16 %v5062
    %v5954 = vunpack.c.l.b16 %v5063
    %v5955 = vunpack.c.h.b16 %v5063
    %v5956 = vunpack.c.l.b16 %v5064
    %v5957 = vunpack.c.l.b16 %v5065
    %v5958 = vunpack.c.h.b16 %v5065
    %v5959 = vunpack.c.l.b16 %v5066
    %v5960 = vunpack.c.l.b16 %v5067
    %v5961 = vunpack.c.h.b16 %v5067
    %v5962 = vunpack.c.l.b16 %v5068
    %v5963 = vunpack.c.l.b16 %v5069
    %v5964 = vunpack.c.h.b16 %v5069
    %v5965 = vunpack.c.l.b16 %v5070
    %v5966 = vunpack.c.l.b16 %v5071
    %v5967 = vunpack.c.h.b16 %v5071
    %v5968 = vunpack.c.l.b16 %v5072
    %v5969 = vunpack.c.l.b16 %v5073
    %v5970 = vunpack.c.h.b16 %v5073
    %v5971 = vunpack.c.l.b16 %v5074
    %v5972 = vunpack.c.l.b16 %v5075
    %v5973 = vunpack.c.h.b16 %v5075
    %v5974 = vunpack.c.l.b16 %v5076
    %v5975 = vunpack.c.l.b16 %v5077
    %v5976 = vunpack.c.h.b16 %v5077
    %v5977 = vunpack.c.l.b16 %v5078
    %v5978 = vunpack.c.l.b16 %v5079
    %v5979 = vunpack.c.h.b16 %v5079
    %v5980 = vunpack.c.l.b16 %v5080
    %v5981 = vunpack.c.l.b16 %v5081
    %v5982 = vunpack.c.h.b16 %v5081
    %v5983 = vunpack.c.l.b16 %v5082
    %v5984 = vunpack.c.l.b16 %v5083
    %v5985 = vunpack.c.h.b16 %v5083
    %v5986 = vunpack.c.l.b16 %v5084
    %v5987 = vunpack.c.l.b16 %v5085
    %v5988 = vunpack.c.h.b16 %v5085
    %v5989 = vunpack.c.l.b16 %v5086
    %v5990 = vunpack.c.l.b16 %v5087
    %v5991 = vunpack.c.h.b16 %v5087
    %v5992 = vunpack.c.l.b16 %v5088
    %v5993 = vunpack.c.l.b16 %v5089
    %v5994 = vunpack.c.h.b16 %v5089
    %v5995 = vunpack.c.l.b16 %v5090
    %v5996 = vunpack.c.l.b16 %v5091
    %v5997 = vunpack.c.h.b16 %v5091
    %v5998 = vunpack.c.l.b16 %v5092
    %v5999 = vunpack.c.l.b16 %v5093
    %v6000 = vunpack.c.h.b16 %v5093
    %v6001 = vunpack.c.l.b16 %v5094
    %v6002 = vunpack.c.l.b16 %v5095
    %v6003 = vunpack.c.h.b16 %v5095
    %v6004 = vunpack.c.l.b16 %v5096
    %v6005 = vunpack.c.l.b16 %v5097
    %v6006 = vunpack.c.h.b16 %v5097
    %v6007 = vunpack.c.l.b16 %v5098
    %v6008 = vunpack.c.l.b16 %v5099
    %v6009 = vunpack.c.h.b16 %v5099
    %v6010 = vunpack.c.l.b16 %v5100
    %v6011 = vunpack.c.l.b16 %v5101
    %v6012 = vunpack.c.h.b16 %v5101
    %v6013 = vunpack.c.l.b16 %v5102
    %v6014 = vunpack.c.l.b16 %v5103
    %v6015 = vunpack.c.h.b16 %v5103
    %v6016 = vunpack.c.l.b16 %v5104
    %v6017 = vunpack.c.l.b16 %v5105
    %v6018 = vunpack.c.h.b16 %v5105
    %v6019 = vunpack.c.l.b16 %v5106
    %v6020 = vunpack.c.l.b16 %v5107
    %v6021 = vunpack.c.h.b16 %v5107
    %v6022 = vunpack.c.l.b16 %v5108
    %v6023 = vunpack.c.l.b16 %v5109
    %v6024 = vunpack.c.h.b16 %v5109
    %v6025 = vunpack.c.l.b16 %v5110
    %v6026 = vunpack.c.l.b16 %v5111
    %v6027 = vunpack.c.h.b16 %v5111
    %v6028 = vunpack.c.l.b16 %v5112
    %v6029 = vunpack.c.l.b16 %v5113
    %v6030 = vunpack.c.h.b16 %v5113
    %v6031 = vunpack.c.l.b16 %v5114
    %v6032 = vunpack.c.l.b16 %v5115
    %v6033 = vunpack.c.h.b16 %v5115
    %v6034 = vunpack.c.l.b16 %v5116
    %v6035 = vunpack.c.l.b16 %v5117
    %v6036 = vunpack.c.h.b16 %v5117
    %v6037 = vunpack.c.l.b16 %v5118
    %v6038 = vunpack.c.l.b16 %v5119
    %v6039 = vunpack.c.h.b16 %v5119
    %v6040 = vunpack.c.l.b16 %v5120
    %v6041 = vunpack.c.l.b16 %v5121
    %v6042 = vunpack.c.h.b16 %v5121
    %v6043 = vunpack.c.l.b16 %v5122
    %v6044 = vunpack.c.l.b16 %v5123
    %v6045 = vunpack.c.h.b16 %v5123
    %v6046 = vunpack.c.l.b16 %v5124
    %v6047 = vunpack.c.l.b16 %v5125
    %v6048 = vunpack.c.h.b16 %v5125
    %v6049 = vunpack.c.l.b16 %v5126
    %v6050 = vunpack.c.l.b16 %v5127
    %v6051 = vunpack.c.h.b16 %v5127
    %v6052 = vunpack.c.l.b16 %v5128
    %v6053 = vunpack.c.l.b16 %v5129
    %v6054 = vunpack.c.h.b16 %v5129
    %v6055 = vunpack.c.l.b16 %v5130
    %v6056 = vunpack.c.l.b16 %v5131
    %v6057 = vunpack.c.h.b16 %v5131
    %v6058 = vunpack.c.l.b16 %v5132
    %v6059 = vunpack.c.l.b16 %v5133
    %v6060 = vunpack.c.h.b16 %v5133
    %v6061 = vunpack.c.l.b16 %v5134
    %v6062 = vunpack.c.l.b16 %v5135
    %v6063 = vunpack.c.h.b16 %v5135
    %v6064 = vunpack.c.l.b16 %v5136
    %v6065 = vunpack.c.l.b16 %v5137
    %v6066 = vunpack.c.h.b16 %v5137
    %v6067 = vunpack.c.l.b16 %v5138
    %v6068 = vunpack.c.l.b16 %v5139
    %v6069 = vunpack.c.h.b16 %v5139
    %v6070 = vunpack.c.l.b16 %v5140
    %v6071 = vunpack.c.l.b16 %v5141
    %v6072 = vunpack.c.h.b16 %v5141
    %v6073 = vunpack.c.l.b16 %v5142
    %v6074 = vunpack.c.l.b16 %v5143
    %v6075 = vunpack.c.h.b16 %v5143
    %v6076 = vunpack.c.l.b16 %v5144
    %v6077 = vunpack.c.l.b16 %v5145
    %v6078 = vunpack.c.h.b16 %v5145
    %v6079 = vunpack.c.l.b16 %v5146
    %v6080 = vunpack.c.l.b16 %v5147
    %v6081 = vunpack.c.h.b16 %v5147
    %v6082 = vunpack.c.l.b16 %v5148
    %v6083 = vunpack.c.l.b16 %v5149
    %v6084 = vunpack.c.h.b16 %v5149
    %v6085 = vunpack.c.l.b16 %v5150
    %v6086 = vunpack.c.l.b16 %v5151
    %v6087 = vunpack.c.h.b16 %v5151
    %v6088 = vunpack.c.l.b16 %v5152
    %v6089 = vunpack.c.l.b16 %v5153
    %v6090 = vunpack.c.h.b16 %v5153
    %v6091 = vunpack.c.l.b16 %v5154
    %v6092 = vunpack.c.l.b16 %v5155
    %v6093 = vunpack.c.h.b16 %v5155
    %v6094 = vunpack.c.l.b16 %v5156
    %v6095 = vunpack.c.l.b16 %v5157
    %v6096 = vunpack.c.h.b16 %v5157
    %v6097 = vunpack.c.l.b16 %v5158
    %v6098 = vunpack.c.l.b16 %v5159
    %v6099 = vunpack.c.h.b16 %v5159
    %v6100 = vunpack.c.l.b16 %v5160
    %v6101 = vunpack.c.l.b16 %v5161
    %v6102 = vunpack.c.h.b16 %v5161
    %v6103 = vunpack.c.l.b16 %v5162
    %v6104 = vunpack.c.l.b16 %v5163
    %v6105 = vunpack.c.h.b16 %v5163
    %v6106 = vunpack.c.l.b16 %v5164
    %v6107 = vunpack.c.l.b16 %v5165
    %v6108 = vunpack.c.h.b16 %v5165
    %v6109 = vunpack.c.l.b16 %v5166
    %v6110 = vunpack.c.l.b16 %v5167
    %v6111 = vunpack.c.h.b16 %v5167
    %v6112 = vunpack.c.l.b16 %v5168
    %v6113 = vunpack.c.l.b16 %v5169
    %v6114 = vunpack.c.h.b16 %v5169
    %v6115 = vunpack.c.l.b16 %v5170
    %v6116 = vunpack.c.l.b16 %v5171
    %v6117 = vunpack.c.h.b16 %v5171
    %v6118 = vunpack.c.l.b16 %v5172
    %v6119 = vunpack.c.l.b16 %v5173
    %v6120 = vunpack.c.h.b16 %v5173
    %v6121 = vunpack.c.l.b16 %v5174
    %v6122 = vunpack.c.l.b16 %v5175
    %v6123 = vunpack.c.h.b16 %v5175
    %v6124 = vunpack.c.l.b16 %v5176
    %v6125 = vunpack.c.l.b16 %v5177
    %v6126 = vunpack.c.h.b16 %v5177
    %v6127 = vunpack.c.l.b16 %v5178
    %v6128 = vunpack.c.l.b16 %v5179
    %v6129 = vunpack.c.h.b16 %v5179
    %v6130 = vunpack.c.l.b16 %v5180
    %v6131 = vunpack.c.l.b16 %v5181
    %v6132 = vunpack.c.h.b16 %v5181
    %v6133 = vunpack.c.l.b16 %v5182
    %v6134 = vunpack.c.l.b16 %v5183
    %v6135 = vunpack.c.h.b16 %v5183
    %v6136 = vunpack.c.l.b16 %v5184
    %v6137 = vunpack.c.l.b16 %v5185
    %v6138 = vunpack.c.h.b16 %v5185
    %v6139 = vunpack.c.l.b16 %v5186
    %v6140 = vunpack.c.l.b16 %v5187
    %v6141 = vunpack.c.h.b16 %v5187
    %v6142 = vunpack.c.l.b16 %v5188
    %v6143 = vunpack.c.l.b16 %v5189
    %v6144 = vunpack.c.h.b16 %v5189
    %v6145 = vunpack.c.l.b16 %v5190
    %v6146 = vunpack.c.l.b16 %v5191
    %v6147 = vunpack.c.h.b16 %v5191
    %v6148 = vunpack.c.l.b16 %v5192
    %v6149 = vunpack.c.l.b16 %v5193
    %v6150 = vunpack.c.h.b16 %v5193
    %v6151 = vunpack.c.l.b16 %v5194
    %v6152 = vunpack.c.l.b16 %v5195
    %v6153 = vunpack.c.h.b16 %v5195
    %v6154 = vunpack.c.l.b16 %v5196
    %v6155 = vunpack.c.l.b16 %v5197
    %v6156 = vunpack.c.h.b16 %v5197
    %v6157 = vunpack.c.l.b16 %v5198
    %v6158 = vunpack.c.l.b16 %v5199
    %v6159 = vunpack.c.h.b16 %v5199
    %v6160 = vunpack.c.l.b16 %v5200
    %v6161 = vunpack.c.l.b16 %v5201
    %v6162 = vunpack.c.h.b16 %v5201
    %v6163 = vunpack.c.l.b16 %v5202
    %v6164 = vunpack.c.l.b16 %v5203
    %v6165 = vunpack.c.h.b16 %v5203
    %v6166 = vunpack.c.l.b16 %v5204
    %v6167 = vunpack.c.l.b16 %v5205
    %v6168 = vunpack.c.h.b16 %v5205
    %v6169 = vunpack.c.l.b16 %v5206
    %v6170 = vunpack.c.l.b16 %v5207
    %v6171 = vunpack.c.h.b16 %v5207
    %v6172 = vunpack.c.l.b16 %v5208
    %v6173 = vunpack.c.l.b16 %v5209
    %v6174 = vunpack.c.h.b16 %v5209
    %v6175 = vunpack.c.l.b16 %v5210
    %v6176 = vunpack.c.l.b16 %v5211
    %v6177 = vunpack.c.h.b16 %v5211
    %v6178 = vunpack.c.l.b16 %v5212
    %v6179 = vunpack.c.l.b16 %v5213
    %v6180 = vunpack.c.h.b16 %v5213
    %v6181 = vunpack.c.l.b16 %v5214
    %v6182 = vunpack.c.l.b16 %v5215
    %v6183 = vunpack.c.h.b16 %v5215
    %v6184 = vunpack.c.l.b16 %v5216
    %v6185 = vunpack.c.l.b16 %v5217
    %v6186 = vunpack.c.h.b16 %v5217
    %v6187 = vunpack.c.l.b16 %v5218
    %v6188 = vunpack.c.l.b16 %v5219
    %v6189 = vunpack.c.h.b16 %v5219
    %v6190 = vunpack.c.l.b16 %v5220
    %v6191 = vunpack.c.l.b16 %v5221
    %v6192 = vunpack.c.h.b16 %v5221
    %v6193 = vunpack.c.l.b16 %v5222
    %v6194 = vunpack.c.l.b16 %v5223
    %v6195 = vunpack.c.h.b16 %v5223
    %v6196 = vunpack.c.l.b16 %v5224
    %v6197 = vunpack.c.l.b16 %v5225
    %v6198 = vunpack.c.h.b16 %v5225
    %v6199 = vunpack.c.l.b16 %v5226
    %v6200 = vunpack.c.l.b16 %v5227
    %v6201 = vunpack.c.h.b16 %v5227
    %v6202 = vunpack.c.l.b16 %v5228
    %v6203 = vunpack.c.l.b16 %v5229
    %v6204 = vunpack.c.h.b16 %v5229
    %v6205 = vunpack.c.l.b16 %v5230
    %v6206 = vunpack.c.l.b16 %v5231
    %v6207 = vunpack.c.h.b16 %v5231
    %v6208 = vunpack.c.l.b16 %v5232
    %v6209 = vunpack.c.l.b16 %v5233
    %v6210 = vunpack.c.h.b16 %v5233
    %v6211 = vunpack.c.l.b16 %v5234
    %v6212 = vunpack.c.l.b16 %v5235
    %v6213 = vunpack.c.h.b16 %v5235
    %v6214 = vunpack.c.l.b16 %v5236
    %v6215 = vunpack.c.l.b16 %v5237
    %v6216 = vunpack.c.h.b16 %v5237
    %v6217 = vunpack.c.l.b16 %v5238
    %v6218 = vunpack.c.l.b16 %v5239
    %v6219 = vunpack.c.h.b16 %v5239
    %v6220 = vunpack.c.l.b16 %v5240
    %v6221 = vunpack.c.l.b16 %v5241
    %v6222 = vunpack.c.h.b16 %v5241
    %v6223 = vunpack.c.l.b16 %v5242
    %v6224 = vunpack.c.l.b16 %v5243
    %v6225 = vunpack.c.h.b16 %v5243
    %v6226 = vunpack.c.l.b16 %v5244
    %v6227 = vunpack.c.l.b16 %v5245
    %v6228 = vunpack.c.h.b16 %v5245
    %v6229 = vunpack.c.l.b16 %v5246
    %v6230 = vunpack.c.l.b16 %v5247
    %v6231 = vunpack.c.h.b16 %v5247
    %v6232 = vunpack.c.l.b16 %v5248
    %v6233 = vunpack.c.l.b16 %v5249
    %v6234 = vunpack.c.h.b16 %v5249
    %v6235 = vunpack.c.l.b16 %v5250
    %v6236 = vunpack.c.l.b16 %v5251
    %v6237 = vunpack.c.h.b16 %v5251
    %v6238 = vunpack.c.l.b16 %v5252
    %v6239 = vunpack.c.l.b16 %v5253
    %v6240 = vunpack.c.h.b16 %v5253
    %v6241 = vunpack.c.l.b16 %v5254
    %v6242 = vunpack.c.l.b16 %v5255
    %v6243 = vunpack.c.h.b16 %v5255
    %v6244 = vunpack.c.l.b16 %v5256
    %v6245 = vunpack.c.l.b16 %v5257
    %v6246 = vunpack.c.h.b16 %v5257
    %v6247 = vunpack.c.l.b16 %v5258
    %v6248 = vunpack.c.l.b16 %v5259
    %v6249 = vunpack.c.h.b16 %v5259
    %v6250 = vunpack.c.l.b16 %v5260
    %v6251 = vunpack.c.l.b16 %v5261
    %v6252 = vunpack.c.h.b16 %v5261
    %v6253 = vunpack.c.l.b16 %v5262
    %v6254 = vunpack.c.l.b16 %v5263
    %v6255 = vunpack.c.h.b16 %v5263
    %v6256 = vunpack.c.l.b16 %v5264
    %v6257 = vunpack.c.l.b16 %v5265
    %v6258 = vunpack.c.h.b16 %v5265
    %v6259 = vunpack.c.l.b16 %v5266
    %v6260 = vunpack.c.l.b16 %v5267
    %v6261 = vunpack.c.h.b16 %v5267
    %v6262 = vunpack.c.l.b16 %v5268
    %v6263 = vunpack.c.l.b16 %v5269
    %v6264 = vunpack.c.h.b16 %v5269
    %v6265 = vunpack.c.l.b16 %v5270
    %v6266 = vunpack.c.l.b16 %v5271
    %v6267 = vunpack.c.h.b16 %v5271
    %v6268 = vunpack.c.l.b16 %v5272
    %v6269 = vunpack.c.l.b16 %v5273
    %v6270 = vunpack.c.h.b16 %v5273
    %v6271 = vunpack.c.l.b16 %v5274
    %v6272 = vunpack.c.l.b16 %v5275
    %v6273 = vunpack.c.h.b16 %v5275
    %v6274 = vunpack.c.l.b16 %v5276
    %v6275 = vunpack.c.l.b16 %v5277
    %v6276 = vunpack.c.h.b16 %v5277
    %v6277 = vunpack.c.l.b16 %v5278
    %v6278 = vunpack.c.l.b16 %v5279
    %v6279 = vunpack.c.h.b16 %v5279
    %v6280 = vunpack.c.l.b16 %v5280
    %v6281 = vunpack.c.l.b16 %v5281
    %v6282 = vunpack.c.h.b16 %v5281
    %v6283 = vunpack.c.l.b16 %v5282
    %v6284 = vunpack.c.l.b16 %v5283
    %v6285 = vunpack.c.h.b16 %v5283
    %v6286 = vunpack.c.l.b16 %v5284
    %v6287 = vunpack.c.l.b16 %v5285
    %v6288 = vunpack.c.h.b16 %v5285
    %v6289 = vunpack.c.l.b16 %v5286
    %v6290 = vunpack.c.l.b16 %v5287
    %v6291 = vunpack.c.h.b16 %v5287
    %v6292 = vunpack.c.l.b16 %v5288
    %v6293 = vunpack.c.l.b16 %v5289
    %v6294 = vunpack.c.h.b16 %v5289
    %v6295 = vunpack.c.l.b16 %v5290
    %v6296 = vunpack.c.l.b16 %v5291
    %v6297 = vunpack.c.h.b16 %v5291
    %v6298 = vunpack.c.l.b16 %v5292
    %v6299 = vunpack.c.l.b16 %v5293
    %v6300 = vunpack.c.h.b16 %v5293
    %v6301 = vunpack.c.l.b16 %v5294
    %v6302 = vunpack.c.l.b16 %v5295
    %v6303 = vunpack.c.h.b16 %v5295
    %v6304 = vunpack.c.l.b16 %v5296
    %v6305 = vunpack.c.l.b16 %v5297
    %v6306 = vunpack.c.h.b16 %v5297
    %v6307 = vunpack.c.l.b16 %v5298
    %v6308 = vunpack.c.l.b16 %v5299
    %v6309 = vunpack.c.h.b16 %v5299
    %v6310 = vunpack.c.l.b16 %v5300
    %v6311 = vunpack.c.l.b16 %v5301
    %v6312 = vunpack.c.h.b16 %v5301
    %v6313 = vunpack.c.l.b16 %v5302
    %v6314 = vunpack.c.l.b16 %v5303
    %v6315 = vunpack.c.h.b16 %v5303
    %v6316 = vunpack.c.l.b16 %v5304
    %v6317 = vunpack.c.l.b16 %v5305
    %v6318 = vunpack.c.h.b16 %v5305
    %v6319 = vunpack.c.l.b16 %v5306
    %v6320 = vunpack.c.l.b16 %v5307
    %v6321 = vunpack.c.h.b16 %v5307
    %v6322 = vunpack.c.l.b16 %v5308
    %v6323 = vunpack.c.l.b16 %v5309
    %v6324 = vunpack.c.h.b16 %v5309
    %v6325 = vunpack.c.l.b16 %v5310
    %v6326 = vunpack.c.l.b16 %v5311
    %v6327 = vunpack.c.h.b16 %v5311
    %v6328 = vunpack.c.l.b16 %v5312
    %v6329 = vunpack.c.l.b16 %v5313
    %v6330 = vunpack.c.h.b16 %v5313
    %v6331 = vunpack.c.l.b16 %v5314
    %v6332 = vunpack.c.l.b16 %v5315
    %v6333 = vunpack.c.h.b16 %v5315
    %v6334 = vunpack.c.l.b16 %v5316
    %v6335 = vunpack.c.l.b16 %v5317
    %v6336 = vunpack.c.h.b16 %v5317
    %v6337 = vunpack.c.l.b16 %v5318
    %v6338 = vunpack.c.l.b16 %v5319
    %v6339 = vunpack.c.h.b16 %v5319
    %v6340 = vunpack.c.l.b16 %v5320
    %v6341 = vunpack.c.l.b16 %v5321
    %v6342 = vunpack.c.h.b16 %v5321
    %v6343 = vunpack.c.l.b16 %v5322
    %v6344 = vunpack.c.l.b16 %v5323
    %v6345 = vunpack.c.h.b16 %v5323
    %v6346 = vunpack.c.l.b16 %v5324
    %v6347 = vunpack.c.l.b16 %v5325
    %v6348 = vunpack.c.h.b16 %v5325
    %v6349 = vunpack.c.l.b16 %v5326
    %v6350 = vunpack.c.l.b16 %v5327
    %v6351 = vunpack.c.h.b16 %v5327
    %v6352 = vunpack.c.l.b16 %v5328
    %v6353 = vunpack.c.l.b16 %v5329
    %v6354 = vunpack.c.h.b16 %v5329
    %v6355 = vunpack.c.l.b16 %v5330
    %v6356 = vunpack.c.l.b16 %v5331
    %v6357 = vunpack.c.h.b16 %v5331
    %v6358 = vunpack.c.l.b16 %v5332
    %v6359 = vunpack.c.l.b16 %v5333
    %v6360 = vunpack.c.h.b16 %v5333
    %v6361 = vunpack.c.l.b16 %v5334
    %v6362 = vunpack.c.l.b16 %v5335
    %v6363 = vunpack.c.h.b16 %v5335
    %v6364 = vunpack.c.l.b16 %v5336
    %v6365 = vunpack.c.l.b16 %v5337
    %v6366 = vunpack.c.h.b16 %v5337
    %v6367 = vunpack.c.l.b16 %v5338
    %v6368 = vunpack.c.l.b16 %v5339
    %v6369 = vunpack.c.h.b16 %v5339
    %v6370 = vunpack.c.l.b16 %v5340
    %v6371 = vunpack.c.l.b16 %v5341
    %v6372 = vunpack.c.h.b16 %v5341
    %v6373 = vunpack.c.l.b16 %v5342
    %v6374 = vunpack.c.l.b16 %v5343
    %v6375 = vunpack.c.h.b16 %v5343
    %v6376 = vunpack.c.l.b16 %v5344
    %v6377 = vunpack.c.l.b16 %v5345
    %v6378 = vunpack.c.h.b16 %v5345
    %v6379 = vunpack.c.l.b16 %v5346
    %v6380 = vunpack.c.l.b16 %v5347
    %v6381 = vunpack.c.h.b16 %v5347
    %v6382 = vunpack.c.l.b16 %v5348
    %v6383 = vunpack.c.l.b16 %v5349
    %v6384 = vunpack.c.h.b16 %v5349
    %v6385 = vunpack.c.l.b16 %v5350
    %v6386 = vunpack.c.l.b16 %v5351
    %v6387 = vunpack.c.h.b16 %v5351
    %v6388 = vunpack.c.l.b16 %v5352
    %v6389 = vunpack.c.l.b16 %v5353
    %v6390 = vunpack.c.h.b16 %v5353
    %v6391 = vunpack.c.l.b16 %v5354
    %v6392 = vunpack.c.l.b16 %v5355
    %v6393 = vunpack.c.h.b16 %v5355
    %v6394 = vunpack.c.l.b16 %v5356
    %v6395 = vunpack.c.l.b16 %v5357
    %v6396 = vunpack.c.h.b16 %v5357
    %v6397 = vunpack.c.l.b16 %v5358
    %v6398 = vunpack.c.l.b16 %v5359
    %v6399 = vunpack.c.h.b16 %v5359
    %v6400 = vunpack.c.l.b16 %v5360
    %v6401 = vunpack.c.l.b16 %v5361
    %v6402 = vunpack.c.h.b16 %v5361
    %v6403 = vunpack.c.l.b16 %v5362
    %v6404 = vunpack.c.l.b16 %v5363
    %v6405 = vunpack.c.h.b16 %v5363
    %v6406 = vunpack.c.l.b16 %v5364
    %v6407 = vunpack.c.l.b16 %v5365
    %v6408 = vunpack.c.h.b16 %v5365
    %v6409 = vunpack.c.l.b16 %v5366
    %v6410 = vunpack.c.l.b16 %v5367
    %v6411 = vunpack.c.h.b16 %v5367
    %v6412 = vunpack.c.l.b16 %v5368
    %v6413 = vunpack.c.l.b16 %v5369
    %v6414 = vunpack.c.h.b16 %v5369
    %v6415 = vunpack.c.l.b16 %v5370
    %v6416 = vunpack.c.l.b16 %v5371
    %v6417 = vunpack.c.h.b16 %v5371
    %v6418 = vunpack.c.l.b16 %v5372
    %v6419 = vunpack.c.l.b16 %v5373
    %v6420 = vunpack.c.h.b16 %v5373
    %v6421 = vunpack.c.l.b16 %v5374
    %v6422 = vunpack.c.l.b16 %v5375
    %v6423 = vunpack.c.h.b16 %v5375
    %v6424 = vunpack.c.l.b16 %v5376
    %v6425 = vunpack.c.l.b16 %v5377
    %v6426 = vunpack.c.h.b16 %v5377
    %v6427 = vunpack.c.l.b16 %v5378
    %v6428 = vunpack.c.l.b16 %v5379
    %v6429 = vunpack.c.h.b16 %v5379
    %v6430 = vunpack.c.l.b16 %v5380
    %v6431 = vunpack.c.l.b16 %v5381
    %v6432 = vunpack.c.h.b16 %v5381
    %v6433 = vunpack.c.l.b16 %v5382
    %v6434 = vunpack.c.l.b16 %v5383
    %v6435 = vunpack.c.h.b16 %v5383
    %v6436 = vunpack.c.l.b16 %v5384
    %v6437 = vunpack.c.l.b16 %v5385
    %v6438 = vunpack.c.h.b16 %v5385
    %v6439 = vunpack.c.l.b16 %v5386
    %v6440 = vunpack.c.l.b16 %v5387
    %v6441 = vunpack.c.h.b16 %v5387
    %v6442 = vunpack.c.l.b16 %v5388
    %v6443 = vunpack.c.l.b16 %v5389
    %v6444 = vunpack.c.h.b16 %v5389
    %v6445 = vunpack.c.l.b16 %v5390
    %v6446 = vunpack.c.l.b16 %v5391
    %v6447 = vunpack.c.h.b16 %v5391
    %v6448 = vunpack.c.l.b16 %v5392
    %v6449 = vunpack.c.l.b16 %v5393
    %v6450 = vunpack.c.h.b16 %v5393
    %v6451 = vunpack.c.l.b16 %v5394
    %v6452 = vunpack.c.l.b16 %v5395
    %v6453 = vunpack.c.h.b16 %v5395
    %v6454 = vunpack.c.l.b16 %v5396
    %v6455 = vunpack.c.l.b16 %v5397
    %v6456 = vunpack.c.h.b16 %v5397
    %v6457 = vunpack.c.l.b16 %v5398
    %v6458 = vunpack.c.l.b16 %v5399
    %v6459 = vunpack.c.h.b16 %v5399
    %v6460 = vunpack.c.l.b16 %v5400
    %v6461 = vunpack.c.l.b16 %v5401
    %v6462 = vunpack.c.h.b16 %v5401
    %v6463 = vunpack.c.l.b16 %v5402
    %v6464 = vunpack.c.l.b16 %v5403
    %v6465 = vunpack.c.h.b16 %v5403
    %v6466 = vunpack.c.l.b16 %v5404
    %v6467 = vunpack.c.l.b16 %v5405
    %v6468 = vunpack.c.h.b16 %v5405
    %v6469 = vunpack.c.l.b16 %v5406
    %v6470 = vunpack.c.l.b16 %v5407
    %v6471 = vunpack.c.h.b16 %v5407
    %v6472 = vunpack.c.l.b16 %v5408
    %v6473 = vunpack.c.l.b16 %v5409
    %v6474 = vunpack.c.h.b16 %v5409
    %v6475 = vunpack.c.l.b16 %v5410
    %v6476 = vunpack.c.l.b16 %v5411
    %v6477 = vunpack.c.h.b16 %v5411
    %v6478 = vunpack.c.l.b16 %v5412
    %v6479 = vunpack.c.l.b16 %v5413
    %v6480 = vunpack.c.h.b16 %v5413
    %v6481 = vunpack.c.l.b16 %v5414
    %v6482 = vunpack.c.l.b16 %v5415
    %v6483 = vunpack.c.h.b16 %v5415
    %v6484 = vunpack.c.l.b16 %v5416
    %v6485 = vpack.c.b16 %v5912, %v5909
    %v6486 = vpack.c.b16 %v5913, %v5910
    %v6487 = vpack.c.b16 %v5914, %v5911
    %v6488 = vpack.c.b16 %v5918, %v5915
    %v6489 = vpack.c.b16 %v5919, %v5916
    %v6490 = vpack.c.b16 %v5920, %v5917
    %v6491 = vpack.c.b16 %v5924, %v5921
    %v6492 = vpack.c.b16 %v5925, %v5922
    %v6493 = vpack.c.b16 %v5926, %v5923
    %v6494 = vpack.c.b16 %v5930, %v5927
    %v6495 = vpack.c.b16 %v5931, %v5928
    %v6496 = vpack.c.b16 %v5932, %v5929
    %v6497 = vpack.c.b16 %v5936, %v5933
    %v6498 = vpack.c.b16 %v5937, %v5934
    %v6499 = vpack.c.b16 %v5938, %v5935
    %v6500 = vpack.c.b16 %v5942, %v5939
    %v6501 = vpack.c.b16 %v5943, %v5940
    %v6502 = vpack.c.b16 %v5944, %v5941
    %v6503 = vpack.c.b16 %v5948, %v5945
    %v6504 = vpack.c.b16 %v5949, %v5946
    %v6505 = vpack.c.b16 %v5950, %v5947
    %v6506 = vpack.c.b16 %v5954, %v5951
    %v6507 = vpack.c.b16 %v5955, %v5952
    %v6508 = vpack.c.b16 %v5956, %v5953
    %v6509 = vpack.c.b16 %v5960, %v5957
    %v6510 = vpack.c.b16 %v5961, %v5958
    %v6511 = vpack.c.b16 %v5962, %v5959
    %v6512 = vpack.c.b16 %v5966, %v5963
    %v6513 = vpack.c.b16 %v5967, %v5964
    %v6514 = vpack.c.b16 %v5968, %v5965
    %v6515 = vpack.c.b16 %v5972, %v5969
    %v6516 = vpack.c.b16 %v5973, %v5970
    %v6517 = vpack.c.b16 %v5974, %v5971
    %v6518 = vpack.c.b16 %v5978, %v5975
    %v6519 = vpack.c.b16 %v5979, %v5976
    %v6520 = vpack.c.b16 %v5980, %v5977
    %v6521 = vpack.c.b16 %v5984, %v5981
    %v6522 = vpack.c.b16 %v5985, %v5982
    %v6523 = vpack.c.b16 %v5986, %v5983
    %v6524 = vpack.c.b16 %v5990, %v5987
    %v6525 = vpack.c.b16 %v5991, %v5988
    %v6526 = vpack.c.b16 %v5992, %v5989
    %v6527 = vpack.c.b16 %v5996, %v5993
    %v6528 = vpack.c.b16 %v5997, %v5994
    %v6529 = vpack.c.b16 %v5998, %v5995
    %v6530 = vpack.c.b16 %v6002, %v5999
    %v6531 = vpack.c.b16 %v6003, %v6000
    %v6532 = vpack.c.b16 %v6004, %v6001
    %v6533 = vpack.c.b16 %v6008, %v6005
    %v6534 = vpack.c.b16 %v6009, %v6006
    %v6535 = vpack.c.b16 %v6010, %v6007
    %v6536 = vpack.c.b16 %v6014, %v6011
    %v6537 = vpack.c.b16 %v6015, %v6012
    %v6538 = vpack.c.b16 %v6016, %v6013
    %v6539 = vpack.c.b16 %v6020, %v6017
    %v6540 = vpack.c.b16 %v6021, %v6018
    %v6541 = vpack.c.b16 %v6022, %v6019
    %v6542 = vpack.c.b16 %v6026, %v6023
    %v6543 = vpack.c.b16 %v6027, %v6024
    %v6544 = vpack.c.b16 %v6028, %v6025
    %v6545 = vpack.c.b16 %v6032, %v6029
    %v6546 = vpack.c.b16 %v6033, %v6030
    %v6547 = vpack.c.b16 %v6034, %v6031
    %v6548 = vpack.c.b16 %v6038, %v6035
    %v6549 = vpack.c.b16 %v6039, %v6036
    %v6550 = vpack.c.b16 %v6040, %v6037
    %v6551 = vpack.c.b16 %v6044, %v6041
    %v6552 = vpack.c.b16 %v6045, %v6042
    %v6553 = vpack.c.b16 %v6046, %v6043
    %v6554 = vpack.c.b16 %v6050, %v6047
    %v6555 = vpack.c.b16 %v6051, %v6048
    %v6556 = vpack.c.b16 %v6052, %v6049
    %v6557 = vpack.c.b16 %v6056, %v6053
    %v6558 = vpack.c.b16 %v6057, %v6054
    %v6559 = vpack.c.b16 %v6058, %v6055
    %v6560 = vpack.c.b16 %v6062, %v6059
    %v6561 = vpack.c.b16 %v6063, %v6060
    %v6562 = vpack.c.b16 %v6064, %v6061
    %v6563 = vpack.c.b16 %v6068, %v6065
    %v6564 = vpack.c.b16 %v6069, %v6066
    %v6565 = vpack.c.b16 %v6070, %v6067
    %v6566 = vpack.c.b16 %v6074, %v6071
    %v6567 = vpack.c.b16 %v6075, %v6072
    %v6568 = vpack.c.b16 %v6076, %v6073
    %v6569 = vpack.c.b16 %v6080, %v6077
    %v6570 = vpack.c.b16 %v6081, %v6078
    %v6571 = vpack.c.b16 %v6082, %v6079
    %v6572 = vpack.c.b16 %v6086, %v6083
    %v6573 = vpack.c.b16 %v6087, %v6084
    %v6574 = vpack.c.b16 %v6088, %v6085
    %v6575 = vpack.c.b16 %v6092, %v6089
    %v6576 = vpack.c.b16 %v6093, %v6090
    %v6577 = vpack.c.b16 %v6094, %v6091
    %v6578 = vpack.c.b16 %v6098, %v6095
    %v6579 = vpack.c.b16 %v6099, %v6096
    %v6580 = vpack.c.b16 %v6100, %v6097
    %v6581 = vpack.c.b16 %v6104, %v6101
    %v6582 = vpack.c.b16 %v6105, %v6102
    %v6583 = vpack.c.b16 %v6106, %v6103
    %v6584 = vpack.c.b16 %v6110, %v6107
    %v6585 = vpack.c.b16 %v6111, %v6108
    %v6586 = vpack.c.b16 %v6112, %v6109
    %v6587 = vpack.c.b16 %v6116, %v6113
    %v6588 = vpack.c.b16 %v6117, %v6114
    %v6589 = vpack.c.b16 %v6118, %v6115
    %v6590 = vpack.c.b16 %v6122, %v6119
    %v6591 = vpack.c.b16 %v6123, %v6120
    %v6592 = vpack.c.b16 %v6124, %v6121
    %v6593 = vpack.c.b16 %v6128, %v6125
    %v6594 = vpack.c.b16 %v6129, %v6126
    %v6595 = vpack.c.b16 %v6130, %v6127
    %v6596 = vpack.c.b16 %v6134, %v6131
    %v6597 = vpack.c.b16 %v6135, %v6132
    %v6598 = vpack.c.b16 %v6136, %v6133
    %v6599 = vpack.c.b16 %v6140, %v6137
    %v6600 = vpack.c.b16 %v6141, %v6138
    %v6601 = vpack.c.b16 %v6142, %v6139
    %v6602 = vpack.c.b16 %v6146, %v6143
    %v6603 = vpack.c.b16 %v6147, %v6144
    %v6604 = vpack.c.b16 %v6148, %v6145
    %v6605 = vpack.c.b16 %v6152, %v6149
    %v6606 = vpack.c.b16 %v6153, %v6150
    %v6607 = vpack.c.b16 %v6154, %v6151
    %v6608 = vpack.c.b16 %v6158, %v6155
    %v6609 = vpack.c.b16 %v6159, %v6156
    %v6610 = vpack.c.b16 %v6160, %v6157
    %v6611 = vpack.c.b16 %v6164, %v6161
    %v6612 = vpack.c.b16 %v6165, %v6162
    %v6613 = vpack.c.b16 %v6166, %v6163
    %v6614 = vpack.c.b16 %v6170, %v6167
    %v6615 = vpack.c.b16 %v6171, %v6168
    %v6616 = vpack.c.b16 %v6172, %v6169
    %v6617 = vpack.c.b16 %v6176, %v6173
    %v6618 = vpack.c.b16 %v6177, %v6174
    %v6619 = vpack.c.b16 %v6178, %v6175
    %v6620 = vpack.c.b16 %v6182, %v6179
    %v6621 = vpack.c.b16 %v6183, %v6180
    %v6622 = vpack.c.b16 %v6184, %v6181
    %v6623 = vpack.c.b16 %v6188, %v6185
    %v6624 = vpack.c.b16 %v6189, %v6186
    %v6625 = vpack.c.b16 %v6190, %v6187
    %v6626 = vpack.c.b16 %v6194, %v6191
    %v6627 = vpack.c.b16 %v6195, %v6192
    %v6628 = vpack.c.b16 %v6196, %v6193
    %v6629 = vpack.c.b16 %v6200, %v6197
    %v6630 = vpack.c.b16 %v6201, %v6198
    %v6631 = vpack.c.b16 %v6202, %v6199
    %v6632 = vpack.c.b16 %v6206, %v6203
    %v6633 = vpack.c.b16 %v6207, %v6204
    %v6634 = vpack.c.b16 %v6208, %v6205
    %v6635 = vpack.c.b16 %v6212, %v6209
    %v6636 = vpack.c.b16 %v6213, %v6210
    %v6637 = vpack.c.b16 %v6214, %v6211
    %v6638 = vpack.c.b16 %v6218, %v6215
    %v6639 = vpack.c.b16 %v6219, %v6216
    %v6640 = vpack.c.b16 %v6220, %v6217
    %v6641 = vpack.c.b16 %v6224, %v6221
    %v6642 = vpack.c.b16 %v6225, %v6222
    %v6643 = vpack.c.b16 %v6226, %v6223
    %v6644 = vpack.c.b16 %v6230, %v6227
    %v6645 = vpack.c.b16 %v6231, %v6228
    %v6646 = vpack.c.b16 %v6232, %v6229
    %v6647 = vpack.c.b16 %v6236, %v6233
    %v6648 = vpack.c.b16 %v6237, %v6234
    %v6649 = vpack.c.b16 %v6238, %v6235
    %v6650 = vpack.c.b16 %v6242, %v6239
    %v6651 = vpack.c.b16 %v6243, %v6240
    %v6652 = vpack.c.b16 %v6244, %v6241
    %v6653 = vpack.c.b16 %v6248, %v6245
    %v6654 = vpack.c.b16 %v6249, %v6246
    %v6655 = vpack.c.b16 %v6250, %v6247
    %v6656 = vpack.c.b16 %v6254, %v6251
    %v6657 = vpack.c.b16 %v6255, %v6252
    %v6658 = vpack.c.b16 %v6256, %v6253
    %v6659 = vpack.c.b16 %v6260, %v6257
    %v6660 = vpack.c.b16 %v6261, %v6258
    %v6661 = vpack.c.b16 %v6262, %v6259
    %v6662 = vpack.c.b16 %v6266, %v6263
    %v6663 = vpack.c.b16 %v6267, %v6264
    %v6664 = vpack.c.b16 %v6268, %v6265
    %v6665 = vpack.c.b16 %v6272, %v6269
    %v6666 = vpack.c.b16 %v6273, %v6270
    %v6667 = vpack.c.b16 %v6274, %v6271
    %v6668 = vpack.c.b16 %v6278, %v6275
    %v6669 = vpack.c.b16 %v6279, %v6276
    %v6670 = vpack.c.b16 %v6280, %v6277
    %v6671 = vpack.c.b16 %v6284, %v6281
    %v6672 = vpack.c.b16 %v6285, %v6282
    %v6673 = vpack.c.b16 %v6286, %v6283
    %v6674 = vpack.c.b16 %v6290, %v6287
    %v6675 = vpack.c.b16 %v6291, %v6288
    %v6676 = vpack.c.b16 %v6292, %v6289
    %v6677 = vpack.c.b16 %v6296, %v6293
    %v6678 = vpack.c.b16 %v6297, %v6294
    %v6679 = vpack.c.b16 %v6298, %v6295
    %v6680 = vpack.c.b16 %v6302, %v6299
    %v6681 = vpack.c.b16 %v6303, %v6300
    %v6682 = vpack.c.b16 %v6304, %v6301
    %v6683 = vpack.c.b16 %v6308, %v6305
    %v6684 = vpack.c.b16 %v6309, %v6306
    %v6685 = vpack.c.b16 %v6310, %v6307
    %v6686 = vpack.c.b16 %v6314, %v6311
    %v6687 = vpack.c.b16 %v6315, %v6312
    %v6688 = vpack.c.b16 %v6316, %v6313
    %v6689 = vpack.c.b16 %v6320, %v6317
    %v6690 = vpack.c.b16 %v6321, %v6318
    %v6691 = vpack.c.b16 %v6322, %v6319
    %v6692 = vpack.c.b16 %v6326, %v6323
    %v6693 = vpack.c.b16 %v6327, %v6324
    %v6694 = vpack.c.b16 %v6328, %v6325
    %v6695 = vpack.c.b16 %v6332, %v6329
    %v6696 = vpack.c.b16 %v6333, %v6330
    %v6697 = vpack.c.b16 %v6334, %v6331
    %v6698 = vpack.c.b16 %v6338, %v6335
    %v6699 = vpack.c.b16 %v6339, %v6336
    %v6700 = vpack.c.b16 %v6340, %v6337
    %v6701 = vpack.c.b16 %v6344, %v6341
    %v6702 = vpack.c.b16 %v6345, %v6342
    %v6703 = vpack.c.b16 %v6346, %v6343
    %v6704 = vpack.c.b16 %v6350, %v6347
    %v6705 = vpack.c.b16 %v6351, %v6348
    %v6706 = vpack.c.b16 %v6352, %v6349
    %v6707 = vpack.c.b16 %v6356, %v6353
    %v6708 = vpack.c.b16 %v6357, %v6354
    %v6709 = vpack.c.b16 %v6358, %v6355
    %v6710 = vpack.c.b16 %v6362, %v6359
    %v6711 = vpack.c.b16 %v6363, %v6360
    %v6712 = vpack.c.b16 %v6364, %v6361
    %v6713 = vpack.c.b16 %v6368, %v6365
    %v6714 = vpack.c.b16 %v6369, %v6366
    %v6715 = vpack.c.b16 %v6370, %v6367
    %v6716 = vpack.c.b16 %v6374, %v6371
    %v6717 = vpack.c.b16 %v6375, %v6372
    %v6718 = vpack.c.b16 %v6376, %v6373
    %v6719 = vpack.c.b16 %v6380, %v6377
    %v6720 = vpack.c.b16 %v6381, %v6378
    %v6721 = vpack.c.b16 %v6382, %v6379
    %v6722 = vpack.c.b16 %v6386, %v6383
    %v6723 = vpack.c.b16 %v6387, %v6384
    %v6724 = vpack.c.b16 %v6388, %v6385
    %v6725 = vpack.c.b16 %v6392, %v6389
    %v6726 = vpack.c.b16 %v6393, %v6390
    %v6727 = vpack.c.b16 %v6394, %v6391
    %v6728 = vpack.c.b16 %v6398, %v6395
    %v6729 = vpack.c.b16 %v6399, %v6396
    %v6730 = vpack.c.b16 %v6400, %v6397
    %v6731 = vpack.c.b16 %v6404, %v6401
    %v6732 = vpack.c.b16 %v6405, %v6402
    %v6733 = vpack.c.b16 %v6406, %v6403
    %v6734 = vpack.c.b16 %v6410, %v6407
    %v6735 = vpack.c.b16 %v6411, %v6408
    %v6736 = vpack.c.b16 %v6412, %v6409
    %v6737 = vpack.c.b16 %v6416, %v6413
    %v6738 = vpack.c.b16 %v6417, %v6414
    %v6739 = vpack.c.b16 %v6418, %v6415
    %v6740 = vpack.c.b16 %v6422, %v6419
    %v6741 = vpack.c.b16 %v6423, %v6420
    %v6742 = vpack.c.b16 %v6424, %v6421
    %v6743 = vpack.c.b16 %v6428, %v6425
    %v6744 = vpack.c.b16 %v6429, %v6426
    %v6745 = vpack.c.b16 %v6430, %v6427
    %v6746 = vpack.c.b16 %v6434, %v6431
    %v6747 = vpack.c.b16 %v6435, %v6432
    %v6748 = vpack.c.b16 %v6436, %v6433
    %v6749 = vpack.c.b16 %v6440, %v6437
    %v6750 = vpack.c.b16 %v6441, %v6438
    %v6751 = vpack.c.b16 %v6442, %v6439
    %v6752 = vpack.c.b16 %v6446, %v6443
    %v6753 = vpack.c.b16 %v6447, %v6444
    %v6754 = vpack.c.b16 %v6448, %v6445
    %v6755 = vpack.c.b16 %v6452, %v6449
    %v6756 = vpack.c.b16 %v6453, %v6450
    %v6757 = vpack.c.b16 %v6454, %v6451
    %v6758 = vpack.c.b16 %v6458, %v6455
    %v6759 = vpack.c.b16 %v6459, %v6456
    %v6760 = vpack.c.b16 %v6460, %v6457
    %v6761 = vpack.c.b16 %v6464, %v6461
    %v6762 = vpack.c.b16 %v6465, %v6462
    %v6763 = vpack.c.b16 %v6466, %v6463
    %v6764 = vpack.c.b16 %v6470, %v6467
    %v6765 = vpack.c.b16 %v6471, %v6468
    %v6766 = vpack.c.b16 %v6472, %v6469
    %v6767 = vpack.c.b16 %v6476, %v6473
    %v6768 = vpack.c.b16 %v6477, %v6474
    %v6769 = vpack.c.b16 %v6478, %v6475
    %v6770 = vpack.c.b16 %v6482, %v6479
    %v6771 = vpack.c.b16 %v6483, %v6480
    %v6772 = vpack.c.b16 %v6484, %v6481
    %7061 = vmatpush.bf16.msra.mxu0 %v6506
    %7062 = vmatpush.bf16.msra.mxu0 %v6503
    %7063 = vmatpush.bf16.msra.mxu0 %v6500
    %7064 = vmatpush.bf16.msra.mxu0 %v6497
    %7065 = vmatpush.bf16.msra.mxu0 %v6494
    %7066 = vmatpush.bf16.msra.mxu0 %v6491
    %7067 = vmatpush.bf16.msra.mxu0 %v6488
    %7068 = vmatpush.bf16.msra.mxu0 %v6485
    %7069 = vmatmul.bf16.gmra.mxu0 %v5506
    %v7070 = vpop.f32.mrf.mxu0
    %v7071 = vadd.f32 %v5519, %v7070
    %v7072 = vpop.f32.mrf.mxu0
    %v7073 = vadd.f32 %v5519, %v7072
    %7074 = vdwg.mxu0
    %7075 = vmatpush.bf16.msra.mxu0 %v6530
    %7076 = vmatpush.bf16.msra.mxu0 %v6527
    %7077 = vmatpush.bf16.msra.mxu0 %v6524
    %7078 = vmatpush.bf16.msra.mxu0 %v6521
    %7079 = vmatpush.bf16.msra.mxu0 %v6518
    %7080 = vmatpush.bf16.msra.mxu0 %v6515
    %7081 = vmatpush.bf16.msra.mxu0 %v6512
    %7082 = vmatpush.bf16.msra.mxu0 %v6509
    %7083 = vmatmul.bf16.gmra.mxu0 %v5507
    %v7084 = vpop.f32.mrf.mxu0
    %v7085 = vadd.f32 %v7071, %v7084
    %v7086 = vpop.f32.mrf.mxu0
    %v7087 = vadd.f32 %v7073, %v7086
    %7088 = vdwg.mxu0
    %7089 = vmatpush.bf16.msra.mxu0 %v6554
    %7090 = vmatpush.bf16.msra.mxu0 %v6551
    %7091 = vmatpush.bf16.msra.mxu0 %v6548
    %7092 = vmatpush.bf16.msra.mxu0 %v6545
    %7093 = vmatpush.bf16.msra.mxu0 %v6542
    %7094 = vmatpush.bf16.msra.mxu0 %v6539
    %7095 = vmatpush.bf16.msra.mxu0 %v6536
    %7096 = vmatpush.bf16.msra.mxu0 %v6533
    %7097 = vmatmul.bf16.gmra.mxu0 %v5508
    %v7098 = vpop.f32.mrf.mxu0
    %v7099 = vadd.f32 %v7085, %v7098
    %v7100 = vpop.f32.mrf.mxu0
    %v7101 = vadd.f32 %v7087, %v7100
    %7102 = vdwg.mxu0
    %7103 = vmatpush.bf16.msra.mxu0 %v6578
    %7104 = vmatpush.bf16.msra.mxu0 %v6575
    %7105 = vmatpush.bf16.msra.mxu0 %v6572
    %7106 = vmatpush.bf16.msra.mxu0 %v6569
    %7107 = vmatpush.bf16.msra.mxu0 %v6566
    %7108 = vmatpush.bf16.msra.mxu0 %v6563
    %7109 = vmatpush.bf16.msra.mxu0 %v6560
    %7110 = vmatpush.bf16.msra.mxu0 %v6557
    %7111 = vmatmul.bf16.gmra.mxu0 %v5509
    %v7112 = vpop.f32.mrf.mxu0
    %v7113 = vadd.f32 %v7099, %v7112
    %v7114 = vpop.f32.mrf.mxu0
    %v7115 = vadd.f32 %v7101, %v7114
    %7116 = vdwg.mxu0
    %7117 = vmatpush.bf16.msra.mxu0 %v6602
    %7118 = vmatpush.bf16.msra.mxu0 %v6599
    %7119 = vmatpush.bf16.msra.mxu0 %v6596
    %7120 = vmatpush.bf16.msra.mxu0 %v6593
    %7121 = vmatpush.bf16.msra.mxu0 %v6590
    %7122 = vmatpush.bf16.msra.mxu0 %v6587
    %7123 = vmatpush.bf16.msra.mxu0 %v6584
    %7124 = vmatpush.bf16.msra.mxu0 %v6581
    %7125 = vmatmul.bf16.gmra.mxu0 %v5510
    %v7126 = vpop.f32.mrf.mxu0
    %v7127 = vadd.f32 %v7113, %v7126
    %v7128 = vpop.f32.mrf.mxu0
    %v7129 = vadd.f32 %v7115, %v7128
    %7130 = vdwg.mxu0
    %7131 = vmatpush.bf16.msra.mxu0 %v6626
    %7132 = vmatpush.bf16.msra.mxu0 %v6623
    %7133 = vmatpush.bf16.msra.mxu0 %v6620
    %7134 = vmatpush.bf16.msra.mxu0 %v6617
    %7135 = vmatpush.bf16.msra.mxu0 %v6614
    %7136 = vmatpush.bf16.msra.mxu0 %v6611
    %7137 = vmatpush.bf16.msra.mxu0 %v6608
    %7138 = vmatpush.bf16.msra.mxu0 %v6605
    %7139 = vmatmul.bf16.gmra.mxu0 %v5511
    %v7140 = vpop.f32.mrf.mxu0
    %v7141 = vadd.f32 %v7127, %v7140
    %v7142 = vpop.f32.mrf.mxu0
    %v7143 = vadd.f32 %v7129, %v7142
    %7144 = vdwg.mxu0
    %7145 = vmatpush.bf16.msra.mxu0 %v6650
    %7146 = vmatpush.bf16.msra.mxu0 %v6647
    %7147 = vmatpush.bf16.msra.mxu0 %v6644
    %7148 = vmatpush.bf16.msra.mxu0 %v6641
    %7149 = vmatpush.bf16.msra.mxu0 %v6638
    %7150 = vmatpush.bf16.msra.mxu0 %v6635
    %7151 = vmatpush.bf16.msra.mxu0 %v6632
    %7152 = vmatpush.bf16.msra.mxu0 %v6629
    %7153 = vmatmul.bf16.gmra.mxu0 %v5512
    %v7154 = vpop.f32.mrf.mxu0
    %v7155 = vadd.f32 %v7141, %v7154
    %v7156 = vpop.f32.mrf.mxu0
    %v7157 = vadd.f32 %v7143, %v7156
    %7158 = vdwg.mxu0
    %7159 = vmatpush.bf16.msra.mxu0 %v6674
    %7160 = vmatpush.bf16.msra.mxu0 %v6671
    %7161 = vmatpush.bf16.msra.mxu0 %v6668
    %7162 = vmatpush.bf16.msra.mxu0 %v6665
    %7163 = vmatpush.bf16.msra.mxu0 %v6662
    %7164 = vmatpush.bf16.msra.mxu0 %v6659
    %7165 = vmatpush.bf16.msra.mxu0 %v6656
    %7166 = vmatpush.bf16.msra.mxu0 %v6653
    %7167 = vmatmul.bf16.gmra.mxu0 %v5513
    %v7168 = vpop.f32.mrf.mxu0
    %v7169 = vadd.f32 %v7155, %v7168
    %v7170 = vpop.f32.mrf.mxu0
    %v7171 = vadd.f32 %v7157, %v7170
    %7172 = vdwg.mxu0
    %7173 = vmatpush.bf16.msra.mxu0 %v6698
    %7174 = vmatpush.bf16.msra.mxu0 %v6695
    %7175 = vmatpush.bf16.msra.mxu0 %v6692
    %7176 = vmatpush.bf16.msra.mxu0 %v6689
    %7177 = vmatpush.bf16.msra.mxu0 %v6686
    %7178 = vmatpush.bf16.msra.mxu0 %v6683
    %7179 = vmatpush.bf16.msra.mxu0 %v6680
    %7180 = vmatpush.bf16.msra.mxu0 %v6677
    %7181 = vmatmul.bf16.gmra.mxu0 %v5514
    %v7182 = vpop.f32.mrf.mxu0
    %v7183 = vadd.f32 %v7169, %v7182
    %v7184 = vpop.f32.mrf.mxu0
    %v7185 = vadd.f32 %v7171, %v7184
    %7186 = vdwg.mxu0
    %7187 = vmatpush.bf16.msra.mxu0 %v6722
    %7188 = vmatpush.bf16.msra.mxu0 %v6719
    %7189 = vmatpush.bf16.msra.mxu0 %v6716
    %7190 = vmatpush.bf16.msra.mxu0 %v6713
    %7191 = vmatpush.bf16.msra.mxu0 %v6710
    %7192 = vmatpush.bf16.msra.mxu0 %v6707
    %7193 = vmatpush.bf16.msra.mxu0 %v6704
    %7194 = vmatpush.bf16.msra.mxu0 %v6701
    %7195 = vmatmul.bf16.gmra.mxu0 %v5515
    %v7196 = vpop.f32.mrf.mxu0
    %v7197 = vadd.f32 %v7183, %v7196
    %v7198 = vpop.f32.mrf.mxu0
    %v7199 = vadd.f32 %v7185, %v7198
    %7200 = vdwg.mxu0
    %7201 = vmatpush.bf16.msra.mxu0 %v6746
    %7202 = vmatpush.bf16.msra.mxu0 %v6743
    %7203 = vmatpush.bf16.msra.mxu0 %v6740
    %7204 = vmatpush.bf16.msra.mxu0 %v6737
    %7205 = vmatpush.bf16.msra.mxu0 %v6734
    %7206 = vmatpush.bf16.msra.mxu0 %v6731
    %7207 = vmatpush.bf16.msra.mxu0 %v6728
    %7208 = vmatpush.bf16.msra.mxu0 %v6725
    %7209 = vmatmul.bf16.gmra.mxu0 %v5516
    %v7210 = vpop.f32.mrf.mxu0
    %v7211 = vadd.f32 %v7197, %v7210
    %v7212 = vpop.f32.mrf.mxu0
    %v7213 = vadd.f32 %v7199, %v7212
    %7214 = vdwg.mxu0
    %7215 = vmatpush.bf16.msra.mxu0 %v6770
    %7216 = vmatpush.bf16.msra.mxu0 %v6767
    %7217 = vmatpush.bf16.msra.mxu0 %v6764
    %7218 = vmatpush.bf16.msra.mxu0 %v6761
    %7219 = vmatpush.bf16.msra.mxu0 %v6758
    %7220 = vmatpush.bf16.msra.mxu0 %v6755
    %7221 = vmatpush.bf16.msra.mxu0 %v6752
    %7222 = vmatpush.bf16.msra.mxu0 %v6749
    %7223 = vmatmul.bf16.gmra.mxu0 %v5517
    %v7224 = vpop.f32.mrf.mxu0
    %v7225 = vadd.f32 %v7211, %v7224
    %v7226 = vpop.f32.mrf.mxu0
    %v7227 = vadd.f32 %v7213, %v7226
    %7228 = vdwg.mxu0
    %7229 = vmatpush.bf16.msra.mxu0 %v6507
    %7230 = vmatpush.bf16.msra.mxu0 %v6504
    %7231 = vmatpush.bf16.msra.mxu0 %v6501
    %7232 = vmatpush.bf16.msra.mxu0 %v6498
    %7233 = vmatpush.bf16.msra.mxu0 %v6495
    %7234 = vmatpush.bf16.msra.mxu0 %v6492
    %7235 = vmatpush.bf16.msra.mxu0 %v6489
    %7236 = vmatpush.bf16.msra.mxu0 %v6486
    %7237 = vmatmul.bf16.gmra.mxu0 %v5506
    %v7238 = vpop.f32.mrf.mxu0
    %v7239 = vadd.f32 %v5520, %v7238
    %v7240 = vpop.f32.mrf.mxu0
    %v7241 = vadd.f32 %v5520, %v7240
    %7242 = vdwg.mxu0
    %7243 = vmatpush.bf16.msra.mxu0 %v6531
    %7244 = vmatpush.bf16.msra.mxu0 %v6528
    %7245 = vmatpush.bf16.msra.mxu0 %v6525
    %7246 = vmatpush.bf16.msra.mxu0 %v6522
    %7247 = vmatpush.bf16.msra.mxu0 %v6519
    %7248 = vmatpush.bf16.msra.mxu0 %v6516
    %7249 = vmatpush.bf16.msra.mxu0 %v6513
    %7250 = vmatpush.bf16.msra.mxu0 %v6510
    %7251 = vmatmul.bf16.gmra.mxu0 %v5507
    %v7252 = vpop.f32.mrf.mxu0
    %v7253 = vadd.f32 %v7239, %v7252
    %v7254 = vpop.f32.mrf.mxu0
    %v7255 = vadd.f32 %v7241, %v7254
    %7256 = vdwg.mxu0
    %7257 = vmatpush.bf16.msra.mxu0 %v6555
    %7258 = vmatpush.bf16.msra.mxu0 %v6552
    %7259 = vmatpush.bf16.msra.mxu0 %v6549
    %7260 = vmatpush.bf16.msra.mxu0 %v6546
    %7261 = vmatpush.bf16.msra.mxu0 %v6543
    %7262 = vmatpush.bf16.msra.mxu0 %v6540
    %7263 = vmatpush.bf16.msra.mxu0 %v6537
    %7264 = vmatpush.bf16.msra.mxu0 %v6534
    %7265 = vmatmul.bf16.gmra.mxu0 %v5508
    %v7266 = vpop.f32.mrf.mxu0
    %v7267 = vadd.f32 %v7253, %v7266
    %v7268 = vpop.f32.mrf.mxu0
    %v7269 = vadd.f32 %v7255, %v7268
    %7270 = vdwg.mxu0
    %7271 = vmatpush.bf16.msra.mxu0 %v6579
    %7272 = vmatpush.bf16.msra.mxu0 %v6576
    %7273 = vmatpush.bf16.msra.mxu0 %v6573
    %7274 = vmatpush.bf16.msra.mxu0 %v6570
    %7275 = vmatpush.bf16.msra.mxu0 %v6567
    %7276 = vmatpush.bf16.msra.mxu0 %v6564
    %7277 = vmatpush.bf16.msra.mxu0 %v6561
    %7278 = vmatpush.bf16.msra.mxu0 %v6558
    %7279 = vmatmul.bf16.gmra.mxu0 %v5509
    %v7280 = vpop.f32.mrf.mxu0
    %v7281 = vadd.f32 %v7267, %v7280
    %v7282 = vpop.f32.mrf.mxu0
    %v7283 = vadd.f32 %v7269, %v7282
    %7284 = vdwg.mxu0
    %7285 = vmatpush.bf16.msra.mxu0 %v6603
    %7286 = vmatpush.bf16.msra.mxu0 %v6600
    %7287 = vmatpush.bf16.msra.mxu0 %v6597
    %7288 = vmatpush.bf16.msra.mxu0 %v6594
    %7289 = vmatpush.bf16.msra.mxu0 %v6591
    %7290 = vmatpush.bf16.msra.mxu0 %v6588
    %7291 = vmatpush.bf16.msra.mxu0 %v6585
    %7292 = vmatpush.bf16.msra.mxu0 %v6582
    %7293 = vmatmul.bf16.gmra.mxu0 %v5510
    %v7294 = vpop.f32.mrf.mxu0
    %v7295 = vadd.f32 %v7281, %v7294
    %v7296 = vpop.f32.mrf.mxu0
    %v7297 = vadd.f32 %v7283, %v7296
    %7298 = vdwg.mxu0
    %7299 = vmatpush.bf16.msra.mxu0 %v6627
    %7300 = vmatpush.bf16.msra.mxu0 %v6624
    %7301 = vmatpush.bf16.msra.mxu0 %v6621
    %7302 = vmatpush.bf16.msra.mxu0 %v6618
    %7303 = vmatpush.bf16.msra.mxu0 %v6615
    %7304 = vmatpush.bf16.msra.mxu0 %v6612
    %7305 = vmatpush.bf16.msra.mxu0 %v6609
    %7306 = vmatpush.bf16.msra.mxu0 %v6606
    %7307 = vmatmul.bf16.gmra.mxu0 %v5511
    %v7308 = vpop.f32.mrf.mxu0
    %v7309 = vadd.f32 %v7295, %v7308
    %v7310 = vpop.f32.mrf.mxu0
    %v7311 = vadd.f32 %v7297, %v7310
    %7312 = vdwg.mxu0
    %7313 = vmatpush.bf16.msra.mxu0 %v6651
    %7314 = vmatpush.bf16.msra.mxu0 %v6648
    %7315 = vmatpush.bf16.msra.mxu0 %v6645
    %7316 = vmatpush.bf16.msra.mxu0 %v6642
    %7317 = vmatpush.bf16.msra.mxu0 %v6639
    %7318 = vmatpush.bf16.msra.mxu0 %v6636
    %7319 = vmatpush.bf16.msra.mxu0 %v6633
    %7320 = vmatpush.bf16.msra.mxu0 %v6630
    %7321 = vmatmul.bf16.gmra.mxu0 %v5512
    %v7322 = vpop.f32.mrf.mxu0
    %v7323 = vadd.f32 %v7309, %v7322
    %v7324 = vpop.f32.mrf.mxu0
    %v7325 = vadd.f32 %v7311, %v7324
    %7326 = vdwg.mxu0
    %7327 = vmatpush.bf16.msra.mxu0 %v6675
    %7328 = vmatpush.bf16.msra.mxu0 %v6672
    %7329 = vmatpush.bf16.msra.mxu0 %v6669
    %7330 = vmatpush.bf16.msra.mxu0 %v6666
    %7331 = vmatpush.bf16.msra.mxu0 %v6663
    %7332 = vmatpush.bf16.msra.mxu0 %v6660
    %7333 = vmatpush.bf16.msra.mxu0 %v6657
    %7334 = vmatpush.bf16.msra.mxu0 %v6654
    %7335 = vmatmul.bf16.gmra.mxu0 %v5513
    %v7336 = vpop.f32.mrf.mxu0
    %v7337 = vadd.f32 %v7323, %v7336
    %v7338 = vpop.f32.mrf.mxu0
    %v7339 = vadd.f32 %v7325, %v7338
    %7340 = vdwg.mxu0
    %7341 = vmatpush.bf16.msra.mxu0 %v6699
    %7342 = vmatpush.bf16.msra.mxu0 %v6696
    %7343 = vmatpush.bf16.msra.mxu0 %v6693
    %7344 = vmatpush.bf16.msra.mxu0 %v6690
    %7345 = vmatpush.bf16.msra.mxu0 %v6687
    %7346 = vmatpush.bf16.msra.mxu0 %v6684
    %7347 = vmatpush.bf16.msra.mxu0 %v6681
    %7348 = vmatpush.bf16.msra.mxu0 %v6678
    %7349 = vmatmul.bf16.gmra.mxu0 %v5514
    %v7350 = vpop.f32.mrf.mxu0
    %v7351 = vadd.f32 %v7337, %v7350
    %v7352 = vpop.f32.mrf.mxu0
    %v7353 = vadd.f32 %v7339, %v7352
    %7354 = vdwg.mxu0
    %7355 = vmatpush.bf16.msra.mxu0 %v6723
    %7356 = vmatpush.bf16.msra.mxu0 %v6720
    %7357 = vmatpush.bf16.msra.mxu0 %v6717
    %7358 = vmatpush.bf16.msra.mxu0 %v6714
    %7359 = vmatpush.bf16.msra.mxu0 %v6711
    %7360 = vmatpush.bf16.msra.mxu0 %v6708
    %7361 = vmatpush.bf16.msra.mxu0 %v6705
    %7362 = vmatpush.bf16.msra.mxu0 %v6702
    %7363 = vmatmul.bf16.gmra.mxu0 %v5515
    %v7364 = vpop.f32.mrf.mxu0
    %v7365 = vadd.f32 %v7351, %v7364
    %v7366 = vpop.f32.mrf.mxu0
    %v7367 = vadd.f32 %v7353, %v7366
    %7368 = vdwg.mxu0
    %7369 = vmatpush.bf16.msra.mxu0 %v6747
    %7370 = vmatpush.bf16.msra.mxu0 %v6744
    %7371 = vmatpush.bf16.msra.mxu0 %v6741
    %7372 = vmatpush.bf16.msra.mxu0 %v6738
    %7373 = vmatpush.bf16.msra.mxu0 %v6735
    %7374 = vmatpush.bf16.msra.mxu0 %v6732
    %7375 = vmatpush.bf16.msra.mxu0 %v6729
    %7376 = vmatpush.bf16.msra.mxu0 %v6726
    %7377 = vmatmul.bf16.gmra.mxu0 %v5516
    %v7378 = vpop.f32.mrf.mxu0
    %v7379 = vadd.f32 %v7365, %v7378
    %v7380 = vpop.f32.mrf.mxu0
    %v7381 = vadd.f32 %v7367, %v7380
    %7382 = vdwg.mxu0
    %7383 = vmatpush.bf16.msra.mxu0 %v6771
    %7384 = vmatpush.bf16.msra.mxu0 %v6768
    %7385 = vmatpush.bf16.msra.mxu0 %v6765
    %7386 = vmatpush.bf16.msra.mxu0 %v6762
    %7387 = vmatpush.bf16.msra.mxu0 %v6759
    %7388 = vmatpush.bf16.msra.mxu0 %v6756
    %7389 = vmatpush.bf16.msra.mxu0 %v6753
    %7390 = vmatpush.bf16.msra.mxu0 %v6750
    %7391 = vmatmul.bf16.gmra.mxu0 %v5517
    %v7392 = vpop.f32.mrf.mxu0
    %v7393 = vadd.f32 %v7379, %v7392
    %v7394 = vpop.f32.mrf.mxu0
    %v7395 = vadd.f32 %v7381, %v7394
    %7396 = vdwg.mxu0
    %7397 = vmatpush.bf16.msra.mxu0 %v6508
    %7398 = vmatpush.bf16.msra.mxu0 %v6505
    %7399 = vmatpush.bf16.msra.mxu0 %v6502
    %7400 = vmatpush.bf16.msra.mxu0 %v6499
    %7401 = vmatpush.bf16.msra.mxu0 %v6496
    %7402 = vmatpush.bf16.msra.mxu0 %v6493
    %7403 = vmatpush.bf16.msra.mxu0 %v6490
    %7404 = vmatpush.bf16.msra.mxu0 %v6487
    %7405 = vmatmul.bf16.gmra.mxu0 %v5506
    %v7406 = vpop.f32.mrf.mxu0
    %v7407 = vadd.f32 %v5521, %v7406
    %v7408 = vpop.f32.mrf.mxu0
    %v7409 = vadd.f32 %v5521, %v7408
    %7410 = vdwg.mxu0
    %7411 = vmatpush.bf16.msra.mxu0 %v6532
    %7412 = vmatpush.bf16.msra.mxu0 %v6529
    %7413 = vmatpush.bf16.msra.mxu0 %v6526
    %7414 = vmatpush.bf16.msra.mxu0 %v6523
    %7415 = vmatpush.bf16.msra.mxu0 %v6520
    %7416 = vmatpush.bf16.msra.mxu0 %v6517
    %7417 = vmatpush.bf16.msra.mxu0 %v6514
    %7418 = vmatpush.bf16.msra.mxu0 %v6511
    %7419 = vmatmul.bf16.gmra.mxu0 %v5507
    %v7420 = vpop.f32.mrf.mxu0
    %v7421 = vadd.f32 %v7407, %v7420
    %v7422 = vpop.f32.mrf.mxu0
    %v7423 = vadd.f32 %v7409, %v7422
    %7424 = vdwg.mxu0
    %7425 = vmatpush.bf16.msra.mxu0 %v6556
    %7426 = vmatpush.bf16.msra.mxu0 %v6553
    %7427 = vmatpush.bf16.msra.mxu0 %v6550
    %7428 = vmatpush.bf16.msra.mxu0 %v6547
    %7429 = vmatpush.bf16.msra.mxu0 %v6544
    %7430 = vmatpush.bf16.msra.mxu0 %v6541
    %7431 = vmatpush.bf16.msra.mxu0 %v6538
    %7432 = vmatpush.bf16.msra.mxu0 %v6535
    %7433 = vmatmul.bf16.gmra.mxu0 %v5508
    %v7434 = vpop.f32.mrf.mxu0
    %v7435 = vadd.f32 %v7421, %v7434
    %v7436 = vpop.f32.mrf.mxu0
    %v7437 = vadd.f32 %v7423, %v7436
    %7438 = vdwg.mxu0
    %7439 = vmatpush.bf16.msra.mxu0 %v6580
    %7440 = vmatpush.bf16.msra.mxu0 %v6577
    %7441 = vmatpush.bf16.msra.mxu0 %v6574
    %7442 = vmatpush.bf16.msra.mxu0 %v6571
    %7443 = vmatpush.bf16.msra.mxu0 %v6568
    %7444 = vmatpush.bf16.msra.mxu0 %v6565
    %7445 = vmatpush.bf16.msra.mxu0 %v6562
    %7446 = vmatpush.bf16.msra.mxu0 %v6559
    %7447 = vmatmul.bf16.gmra.mxu0 %v5509
    %v7448 = vpop.f32.mrf.mxu0
    %v7449 = vadd.f32 %v7435, %v7448
    %v7450 = vpop.f32.mrf.mxu0
    %v7451 = vadd.f32 %v7437, %v7450
    %7452 = vdwg.mxu0
    %7453 = vmatpush.bf16.msra.mxu0 %v6604
    %7454 = vmatpush.bf16.msra.mxu0 %v6601
    %7455 = vmatpush.bf16.msra.mxu0 %v6598
    %7456 = vmatpush.bf16.msra.mxu0 %v6595
    %7457 = vmatpush.bf16.msra.mxu0 %v6592
    %7458 = vmatpush.bf16.msra.mxu0 %v6589
    %7459 = vmatpush.bf16.msra.mxu0 %v6586
    %7460 = vmatpush.bf16.msra.mxu0 %v6583
    %7461 = vmatmul.bf16.gmra.mxu0 %v5510
    %v7462 = vpop.f32.mrf.mxu0
    %v7463 = vadd.f32 %v7449, %v7462
    %v7464 = vpop.f32.mrf.mxu0
    %v7465 = vadd.f32 %v7451, %v7464
    %7466 = vdwg.mxu0
    %7467 = vmatpush.bf16.msra.mxu0 %v6628
    %7468 = vmatpush.bf16.msra.mxu0 %v6625
    %7469 = vmatpush.bf16.msra.mxu0 %v6622
    %7470 = vmatpush.bf16.msra.mxu0 %v6619
    %7471 = vmatpush.bf16.msra.mxu0 %v6616
    %7472 = vmatpush.bf16.msra.mxu0 %v6613
    %7473 = vmatpush.bf16.msra.mxu0 %v6610
    %7474 = vmatpush.bf16.msra.mxu0 %v6607
    %7475 = vmatmul.bf16.gmra.mxu0 %v5511
    %v7476 = vpop.f32.mrf.mxu0
    %v7477 = vadd.f32 %v7463, %v7476
    %v7478 = vpop.f32.mrf.mxu0
    %v7479 = vadd.f32 %v7465, %v7478
    %7480 = vdwg.mxu0
    %7481 = vmatpush.bf16.msra.mxu0 %v6652
    %7482 = vmatpush.bf16.msra.mxu0 %v6649
    %7483 = vmatpush.bf16.msra.mxu0 %v6646
    %7484 = vmatpush.bf16.msra.mxu0 %v6643
    %7485 = vmatpush.bf16.msra.mxu0 %v6640
    %7486 = vmatpush.bf16.msra.mxu0 %v6637
    %7487 = vmatpush.bf16.msra.mxu0 %v6634
    %7488 = vmatpush.bf16.msra.mxu0 %v6631
    %7489 = vmatmul.bf16.gmra.mxu0 %v5512
    %v7490 = vpop.f32.mrf.mxu0
    %v7491 = vadd.f32 %v7477, %v7490
    %v7492 = vpop.f32.mrf.mxu0
    %v7493 = vadd.f32 %v7479, %v7492
    %7494 = vdwg.mxu0
    %7495 = vmatpush.bf16.msra.mxu0 %v6676
    %7496 = vmatpush.bf16.msra.mxu0 %v6673
    %7497 = vmatpush.bf16.msra.mxu0 %v6670
    %7498 = vmatpush.bf16.msra.mxu0 %v6667
    %7499 = vmatpush.bf16.msra.mxu0 %v6664
    %7500 = vmatpush.bf16.msra.mxu0 %v6661
    %7501 = vmatpush.bf16.msra.mxu0 %v6658
    %7502 = vmatpush.bf16.msra.mxu0 %v6655
    %7503 = vmatmul.bf16.gmra.mxu0 %v5513
    %v7504 = vpop.f32.mrf.mxu0
    %v7505 = vadd.f32 %v7491, %v7504
    %v7506 = vpop.f32.mrf.mxu0
    %v7507 = vadd.f32 %v7493, %v7506
    %7508 = vdwg.mxu0
    %7509 = vmatpush.bf16.msra.mxu0 %v6700
    %7510 = vmatpush.bf16.msra.mxu0 %v6697
    %7511 = vmatpush.bf16.msra.mxu0 %v6694
    %7512 = vmatpush.bf16.msra.mxu0 %v6691
    %7513 = vmatpush.bf16.msra.mxu0 %v6688
    %7514 = vmatpush.bf16.msra.mxu0 %v6685
    %7515 = vmatpush.bf16.msra.mxu0 %v6682
    %7516 = vmatpush.bf16.msra.mxu0 %v6679
    %7517 = vmatmul.bf16.gmra.mxu0 %v5514
    %v7518 = vpop.f32.mrf.mxu0
    %v7519 = vadd.f32 %v7505, %v7518
    %v7520 = vpop.f32.mrf.mxu0
    %v7521 = vadd.f32 %v7507, %v7520
    %7522 = vdwg.mxu0
    %7523 = vmatpush.bf16.msra.mxu0 %v6724
    %7524 = vmatpush.bf16.msra.mxu0 %v6721
    %7525 = vmatpush.bf16.msra.mxu0 %v6718
    %7526 = vmatpush.bf16.msra.mxu0 %v6715
    %7527 = vmatpush.bf16.msra.mxu0 %v6712
    %7528 = vmatpush.bf16.msra.mxu0 %v6709
    %7529 = vmatpush.bf16.msra.mxu0 %v6706
    %7530 = vmatpush.bf16.msra.mxu0 %v6703
    %7531 = vmatmul.bf16.gmra.mxu0 %v5515
    %v7532 = vpop.f32.mrf.mxu0
    %v7533 = vadd.f32 %v7519, %v7532
    %v7534 = vpop.f32.mrf.mxu0
    %v7535 = vadd.f32 %v7521, %v7534
    %7536 = vdwg.mxu0
    %7537 = vmatpush.bf16.msra.mxu0 %v6748
    %7538 = vmatpush.bf16.msra.mxu0 %v6745
    %7539 = vmatpush.bf16.msra.mxu0 %v6742
    %7540 = vmatpush.bf16.msra.mxu0 %v6739
    %7541 = vmatpush.bf16.msra.mxu0 %v6736
    %7542 = vmatpush.bf16.msra.mxu0 %v6733
    %7543 = vmatpush.bf16.msra.mxu0 %v6730
    %7544 = vmatpush.bf16.msra.mxu0 %v6727
    %7545 = vmatmul.bf16.gmra.mxu0 %v5516
    %v7546 = vpop.f32.mrf.mxu0
    %v7547 = vadd.f32 %v7533, %v7546
    %v7548 = vpop.f32.mrf.mxu0
    %v7549 = vadd.f32 %v7535, %v7548
    %7550 = vdwg.mxu0
    %7551 = vmatpush.bf16.msra.mxu0 %v6772
    %7552 = vmatpush.bf16.msra.mxu0 %v6769
    %7553 = vmatpush.bf16.msra.mxu0 %v6766
    %7554 = vmatpush.bf16.msra.mxu0 %v6763
    %7555 = vmatpush.bf16.msra.mxu0 %v6760
    %7556 = vmatpush.bf16.msra.mxu0 %v6757
    %7557 = vmatpush.bf16.msra.mxu0 %v6754
    %7558 = vmatpush.bf16.msra.mxu0 %v6751
    %7559 = vmatmul.bf16.gmra.mxu0 %v5517
    %v7560 = vpop.f32.mrf.mxu0
    %v7561 = vadd.f32 %v7547, %v7560
    %v7562 = vpop.f32.mrf.mxu0
    %v7563 = vadd.f32 %v7549, %v7562
    %7564 = vdwg.mxu0
    %v7565 = vsub.f32 0.0, %v7393
    %v7566 = vsub.f32 0.0, %v7395
    %v7567 = vmul.f32 %v7565, 1.442695
    %v7568 = vpow.pop %v7567
    %v7569 = vmul.f32 %v7566, 1.442695
    %v7570 = vpow.pop %v7569
    %v7571 = vadd.f32 %v7568, 1.0
    %v7572 = vadd.f32 %v7570, 1.0
    %v7573 = vrcp.pop %v7571
    %v7574 = vrcp.pop %v7572
    %v7575 = vadd.f32 %v7225, %v7573
    %v7576 = vadd.f32 %v7227, %v7574
    %v7577 = vadd.f32 %v7575, %v7561
    %v7578 = vadd.f32 %v7576, %v7563
    %v7579 = vmax.f32 %v7577, 0.0
    %v7580 = vmax.f32 %v7578, 0.0
    %v7581 = vld [vmem:[#allocation18] sm:$0x1]
    %v7582 = vld [vmem:[#allocation19] sm:$0x1]
    %v7583 = vadd.f32 %v7579, %v7580
    %v7584 = vrot.slane %v7583, 4
    %v7585 = vadd.f32 %v7583, %v7584
    %v7586 = vrot.slane %v7585, 2
    %v7587 = vadd.f32 %v7585, %v7586
    %v7588 = vrot.slane %v7587, 1
    %v7589 = vadd.f32 %v7587, %v7588
    %v7590 = vmul.f32 %v7579, %v7579
    %v7591 = vmul.f32 %v7580, %v7580
    %v7592 = vadd.f32 %v7590, %v7591
    %v7593 = vrot.slane %v7592, 4
    %v7594 = vadd.f32 %v7592, %v7593
    %v7595 = vrot.slane %v7594, 2
    %v7596 = vadd.f32 %v7594, %v7595
    %v7597 = vrot.slane %v7596, 1
    %v7598 = vadd.f32 %v7596, %v7597
    %v7599 = vsel %vm3959, %v7589, %v7598
    %v7600 = vld [vmem:[#allocation13] sm:$0xff]
    %v7601 = vld [vmem:[#allocation13 + $0x8] sm:$0xff]
    %v7602 = vld [vmem:[#allocation13 + $0x10] sm:$0xff]
    %v7603 = vld [vmem:[#allocation13 + $0x18] sm:$0xff]
    %v7604 = vld [vmem:[#allocation13 + $0x20] sm:$0xff]
    %v7605 = vld [vmem:[#allocation13 + $0x28] sm:$0xff]
    %v7606 = vld [vmem:[#allocation13 + $0x30] sm:$0xff]
    %v7607 = vld [vmem:[#allocation13 + $0x38] sm:$0xff]
    %v7608 = vld [vmem:[#allocation13 + $0x40] sm:$0xff]
    %v7609 = vld [vmem:[#allocation13 + $0x48] sm:$0xff]
    %v7610 = vld [vmem:[#allocation13 + $0x50] sm:$0xff]
    %v7611 = vld [vmem:[#allocation13 + $0x58] sm:$0xff]
    %v7612 = vld [vmem:[#allocation13 + $0x60] sm:$0xff]
    %v7613 = vld [vmem:[#allocation13 + $0x68] sm:$0xff]
    %v7614 = vld [vmem:[#allocation13 + $0x70] sm:$0xff]
    %v7615 = vld [vmem:[#allocation13 + $0x78] sm:$0xff]
    %7616 = vmatpush.msra.mxu0 %v7615
    %7617 = vmatpush.msra.mxu0 %v7614
    %7618 = vmatpush.msra.mxu0 %v7613
    %7619 = vmatpush.msra.mxu0 %v7612
    %7620 = vmatpush.msra.mxu0 %v7611
    %7621 = vmatpush.msra.mxu0 %v7610
    %7622 = vmatpush.msra.mxu0 %v7609
    %7623 = vmatpush.msra.mxu0 %v7608
    %7624 = vmatpush.msra.mxu0 %v7607
    %7625 = vmatpush.msra.mxu0 %v7606
    %7626 = vmatpush.msra.mxu0 %v7605
    %7627 = vmatpush.msra.mxu0 %v7604
    %7628 = vmatpush.msra.mxu0 %v7603
    %7629 = vmatpush.msra.mxu0 %v7602
    %7630 = vmatpush.msra.mxu0 %v7601
    %7631 = vmatpush.msra.mxu0 %v7600
    %7632 = vmatmul.f32.gmra.mxu0 %v7599
    %v7633 = vpop.f32.mrf.mxu0
    %v7634 = vadd.f32 0.0, %v7633
    %7635 = vdwg.mxu0
    %v7636 = vmul.f32 %v7634, 0.00390625
    %v7637 = vmul.f32 %v7636, %v7636
    %v7639 = vrot.slane %v7637, 7
    %v7641 = vsub.f32 %v7636, %v7639
    %v7642 = vadd.f32 %v7641, 1e-05
    %v7643 = vrsqrt.pop %v7642
    %v7644 = vmul.f32 %v7643, %v7642
    %v7645 = vmul.f32 %v7644, %v7643
    %v7646 = vmul.f32 0.5, %v7645
    %v7647 = vsub.f32 1.5, %v7646
    %v7648 = vmul.f32 %v7643, %v7647
    %vm7649 = vweird.f32 %v7642
    %vm7650 = vweird.f32 %v7643
    %vm7651 = vmor %vm7649, %vm7650
    %v7652 = vsel %vm7651, %v7643, %v7648
    %v7653 = vperm.slane %v7636, 0
    %v7654 = vsub.f32 %v7579, %v7653
    %v7655 = vsub.f32 %v7580, %v7653
    %v7656 = vperm.slane %v7652, 1
    %v7657 = vmul.f32 %v7654, %v7656
    %v7658 = vmul.f32 %v7655, %v7656
    %v7660 = vperm.slane %v7581, 0
    %v7662 = vmul.f32 %v7657, %v7660
    %v7663 = vmul.f32 %v7658, %v7660
    %v7665 = vperm.slane %v7582, 0
    %v7667 = vadd.f32 %v7662, %v7665
    %v7668 = vadd.f32 %v7663, %v7665
    %s7669 = smul.u32 %s4034, 2
    %s7670 = sshll.u32 %s7669, 4
    %7671 = dma.done %s295, %s7670
    %v7672 = vld [vmem:[#allocation5] sm:$0xff]
    %v7673 = vld [vmem:[#allocation5 + $0x8] sm:$0xff]
    %v7674 = vld [vmem:[#allocation5 + $0x10] sm:$0xff]
    %v7675 = vld [vmem:[#allocation5 + $0x18] sm:$0xff]
    %v7676 = vld [vmem:[#allocation5 + $0x20] sm:$0xff]
    %v7677 = vld [vmem:[#allocation5 + $0x28] sm:$0xff]
    %v7678 = vld [vmem:[#allocation5 + $0x30] sm:$0xff]
    %v7679 = vld [vmem:[#allocation5 + $0x38] sm:$0xff]
    %v7680 = vld [vmem:[#allocation5 + $0x40] sm:$0xff]
    %v7681 = vld [vmem:[#allocation5 + $0x48] sm:$0xff]
    %v7682 = vld [vmem:[#allocation5 + $0x50] sm:$0xff]
    %v7683 = vld [vmem:[#allocation5 + $0x58] sm:$0xff]
    %v7684 = vld [vmem:[#allocation5 + $0x60] sm:$0xff]
    %v7685 = vld [vmem:[#allocation5 + $0x68] sm:$0xff]
    %v7686 = vld [vmem:[#allocation5 + $0x70] sm:$0xff]
    %v7687 = vld [vmem:[#allocation5 + $0x78] sm:$0xff]
    %v7688 = vld [vmem:[#allocation5 + $0x80] sm:$0xff]
    %v7689 = vld [vmem:[#allocation5 + $0x88] sm:$0xff]
    %v7690 = vld [vmem:[#allocation5 + $0x90] sm:$0xff]
    %v7691 = vld [vmem:[#allocation5 + $0x98] sm:$0xff]
    %v7692 = vld [vmem:[#allocation5 + $0xa0] sm:$0xff]
    %v7693 = vld [vmem:[#allocation5 + $0xa8] sm:$0xff]
    %v7694 = vld [vmem:[#allocation5 + $0xb0] sm:$0xff]
    %v7695 = vld [vmem:[#allocation5 + $0xb8] sm:$0xff]
    %v7696 = vld [vmem:[#allocation5 + $0xc0] sm:$0xff]
    %v7697 = vld [vmem:[#allocation5 + $0xc8] sm:$0xff]
    %v7698 = vld [vmem:[#allocation5 + $0xd0] sm:$0xff]
    %v7699 = vld [vmem:[#allocation5 + $0xd8] sm:$0xff]
    %v7700 = vld [vmem:[#allocation5 + $0xe0] sm:$0xff]
    %v7701 = vld [vmem:[#allocation5 + $0xe8] sm:$0xff]
    %v7702 = vld [vmem:[#allocation5 + $0xf0] sm:$0xff]
    %v7703 = vld [vmem:[#allocation5 + $0xf8] sm:$0xff]
    %v7704 = vld [vmem:[#allocation5 + $0x100] sm:$0xff]
    %v7705 = vld [vmem:[#allocation5 + $0x108] sm:$0xff]
    %v7706 = vld [vmem:[#allocation5 + $0x110] sm:$0xff]
    %v7707 = vld [vmem:[#allocation5 + $0x118] sm:$0xff]
    %v7708 = vld [vmem:[#allocation5 + $0x120] sm:$0xff]
    %v7709 = vld [vmem:[#allocation5 + $0x128] sm:$0xff]
    %v7710 = vld [vmem:[#allocation5 + $0x130] sm:$0xff]
    %v7711 = vld [vmem:[#allocation5 + $0x138] sm:$0xff]
    %v7712 = vld [vmem:[#allocation5 + $0x140] sm:$0xff]
    %v7713 = vld [vmem:[#allocation5 + $0x148] sm:$0xff]
    %v7714 = vld [vmem:[#allocation5 + $0x150] sm:$0xff]
    %v7715 = vld [vmem:[#allocation5 + $0x158] sm:$0xff]
    %v7716 = vld [vmem:[#allocation5 + $0x160] sm:$0xff]
    %v7717 = vld [vmem:[#allocation5 + $0x168] sm:$0xff]
    %v7718 = vld [vmem:[#allocation5 + $0x170] sm:$0xff]
    %v7719 = vld [vmem:[#allocation5 + $0x178] sm:$0xff]
    %v7720 = vld [vmem:[#allocation25] sm:$0x3]
    %v7722 = vrot.slane %v7668, 2
    %v7724 = vsel %vm477, %v7667, %v7722
    %v7726 = vrot.slane %v7667, 1
    %v7728 = vrot.slane %v7668, 3
    %v7730 = vsel %vm477, %v7726, %v7728
    %v7731 = vrot.slane %v7667, 2
    %v7733 = vrot.slane %v7668, 4
    %v7735 = vsel %vm477, %v7731, %v7733
    %v7736 = vpack.c.bf16 %v7722, %v7724
    %v7737 = vpack.c.bf16 %v7728, %v7730
    %v7738 = vpack.c.bf16 %v7733, %v7735
    %v7740 = vperm.slane %v7720, 0
    %v7741 = vperm.slane %v7720, 1
    %v7792 = vunpack.c.l.b16 %v7672
    %v7793 = vunpack.c.h.b16 %v7672
    %v7794 = vunpack.c.l.b16 %v7673
    %v7795 = vunpack.c.h.b16 %v7673
    %v7796 = vunpack.c.l.b16 %v7674
    %v7797 = vunpack.c.h.b16 %v7674
    %v7798 = vunpack.c.l.b16 %v7675
    %v7799 = vunpack.c.h.b16 %v7675
    %v7800 = vunpack.c.l.b16 %v7676
    %v7801 = vunpack.c.h.b16 %v7676
    %v7802 = vunpack.c.l.b16 %v7677
    %v7803 = vunpack.c.h.b16 %v7677
    %v7804 = vunpack.c.l.b16 %v7678
    %v7805 = vunpack.c.h.b16 %v7678
    %v7806 = vunpack.c.l.b16 %v7679
    %v7807 = vunpack.c.h.b16 %v7679
    %v7808 = vunpack.c.l.b16 %v7680
    %v7809 = vunpack.c.h.b16 %v7680
    %v7810 = vunpack.c.l.b16 %v7681
    %v7811 = vunpack.c.h.b16 %v7681
    %v7812 = vunpack.c.l.b16 %v7682
    %v7813 = vunpack.c.h.b16 %v7682
    %v7814 = vunpack.c.l.b16 %v7683
    %v7815 = vunpack.c.h.b16 %v7683
    %v7816 = vunpack.c.l.b16 %v7684
    %v7817 = vunpack.c.h.b16 %v7684
    %v7818 = vunpack.c.l.b16 %v7685
    %v7819 = vunpack.c.h.b16 %v7685
    %v7820 = vunpack.c.l.b16 %v7686
    %v7821 = vunpack.c.h.b16 %v7686
    %v7822 = vunpack.c.l.b16 %v7687
    %v7823 = vunpack.c.h.b16 %v7687
    %v7824 = vunpack.c.l.b16 %v7688
    %v7825 = vunpack.c.h.b16 %v7688
    %v7826 = vunpack.c.l.b16 %v7689
    %v7827 = vunpack.c.h.b16 %v7689
    %v7828 = vunpack.c.l.b16 %v7690
    %v7829 = vunpack.c.h.b16 %v7690
    %v7830 = vunpack.c.l.b16 %v7691
    %v7831 = vunpack.c.h.b16 %v7691
    %v7832 = vunpack.c.l.b16 %v7692
    %v7833 = vunpack.c.h.b16 %v7692
    %v7834 = vunpack.c.l.b16 %v7693
    %v7835 = vunpack.c.h.b16 %v7693
    %v7836 = vunpack.c.l.b16 %v7694
    %v7837 = vunpack.c.h.b16 %v7694
    %v7838 = vunpack.c.l.b16 %v7695
    %v7839 = vunpack.c.h.b16 %v7695
    %v7840 = vunpack.c.l.b16 %v7696
    %v7841 = vunpack.c.h.b16 %v7696
    %v7842 = vunpack.c.l.b16 %v7697
    %v7843 = vunpack.c.h.b16 %v7697
    %v7844 = vunpack.c.l.b16 %v7698
    %v7845 = vunpack.c.h.b16 %v7698
    %v7846 = vunpack.c.l.b16 %v7699
    %v7847 = vunpack.c.h.b16 %v7699
    %v7848 = vunpack.c.l.b16 %v7700
    %v7849 = vunpack.c.h.b16 %v7700
    %v7850 = vunpack.c.l.b16 %v7701
    %v7851 = vunpack.c.h.b16 %v7701
    %v7852 = vunpack.c.l.b16 %v7702
    %v7853 = vunpack.c.h.b16 %v7702
    %v7854 = vunpack.c.l.b16 %v7703
    %v7855 = vunpack.c.h.b16 %v7703
    %v7856 = vunpack.c.l.b16 %v7704
    %v7857 = vunpack.c.h.b16 %v7704
    %v7858 = vunpack.c.l.b16 %v7705
    %v7859 = vunpack.c.h.b16 %v7705
    %v7860 = vunpack.c.l.b16 %v7706
    %v7861 = vunpack.c.h.b16 %v7706
    %v7862 = vunpack.c.l.b16 %v7707
    %v7863 = vunpack.c.h.b16 %v7707
    %v7864 = vunpack.c.l.b16 %v7708
    %v7865 = vunpack.c.h.b16 %v7708
    %v7866 = vunpack.c.l.b16 %v7709
    %v7867 = vunpack.c.h.b16 %v7709
    %v7868 = vunpack.c.l.b16 %v7710
    %v7869 = vunpack.c.h.b16 %v7710
    %v7870 = vunpack.c.l.b16 %v7711
    %v7871 = vunpack.c.h.b16 %v7711
    %v7872 = vunpack.c.l.b16 %v7712
    %v7873 = vunpack.c.h.b16 %v7712
    %v7874 = vunpack.c.l.b16 %v7713
    %v7875 = vunpack.c.h.b16 %v7713
    %v7876 = vunpack.c.l.b16 %v7714
    %v7877 = vunpack.c.h.b16 %v7714
    %v7878 = vunpack.c.l.b16 %v7715
    %v7879 = vunpack.c.h.b16 %v7715
    %v7880 = vunpack.c.l.b16 %v7716
    %v7881 = vunpack.c.h.b16 %v7716
    %v7882 = vunpack.c.l.b16 %v7717
    %v7883 = vunpack.c.h.b16 %v7717
    %v7884 = vunpack.c.l.b16 %v7718
    %v7885 = vunpack.c.h.b16 %v7718
    %v7886 = vunpack.c.l.b16 %v7719
    %v7887 = vunpack.c.h.b16 %v7719
    %v7888 = vpack.c.b16 %v7794, %v7792
    %v7889 = vpack.c.b16 %v7795, %v7793
    %v7890 = vpack.c.b16 %v7798, %v7796
    %v7891 = vpack.c.b16 %v7799, %v7797
    %v7892 = vpack.c.b16 %v7802, %v7800
    %v7893 = vpack.c.b16 %v7803, %v7801
    %v7894 = vpack.c.b16 %v7806, %v7804
    %v7895 = vpack.c.b16 %v7807, %v7805
    %v7896 = vpack.c.b16 %v7810, %v7808
    %v7897 = vpack.c.b16 %v7811, %v7809
    %v7898 = vpack.c.b16 %v7814, %v7812
    %v7899 = vpack.c.b16 %v7815, %v7813
    %v7900 = vpack.c.b16 %v7818, %v7816
    %v7901 = vpack.c.b16 %v7819, %v7817
    %v7902 = vpack.c.b16 %v7822, %v7820
    %v7903 = vpack.c.b16 %v7823, %v7821
    %v7904 = vpack.c.b16 %v7826, %v7824
    %v7905 = vpack.c.b16 %v7827, %v7825
    %v7906 = vpack.c.b16 %v7830, %v7828
    %v7907 = vpack.c.b16 %v7831, %v7829
    %v7908 = vpack.c.b16 %v7834, %v7832
    %v7909 = vpack.c.b16 %v7835, %v7833
    %v7910 = vpack.c.b16 %v7838, %v7836
    %v7911 = vpack.c.b16 %v7839, %v7837
    %v7912 = vpack.c.b16 %v7842, %v7840
    %v7913 = vpack.c.b16 %v7843, %v7841
    %v7914 = vpack.c.b16 %v7846, %v7844
    %v7915 = vpack.c.b16 %v7847, %v7845
    %v7916 = vpack.c.b16 %v7850, %v7848
    %v7917 = vpack.c.b16 %v7851, %v7849
    %v7918 = vpack.c.b16 %v7854, %v7852
    %v7919 = vpack.c.b16 %v7855, %v7853
    %v7920 = vpack.c.b16 %v7858, %v7856
    %v7921 = vpack.c.b16 %v7859, %v7857
    %v7922 = vpack.c.b16 %v7862, %v7860
    %v7923 = vpack.c.b16 %v7863, %v7861
    %v7924 = vpack.c.b16 %v7866, %v7864
    %v7925 = vpack.c.b16 %v7867, %v7865
    %v7926 = vpack.c.b16 %v7870, %v7868
    %v7927 = vpack.c.b16 %v7871, %v7869
    %v7928 = vpack.c.b16 %v7874, %v7872
    %v7929 = vpack.c.b16 %v7875, %v7873
    %v7930 = vpack.c.b16 %v7878, %v7876
    %v7931 = vpack.c.b16 %v7879, %v7877
    %v7932 = vpack.c.b16 %v7882, %v7880
    %v7933 = vpack.c.b16 %v7883, %v7881
    %v7934 = vpack.c.b16 %v7886, %v7884
    %v7935 = vpack.c.b16 %v7887, %v7885
    %7984 = vmatpush.bf16.msra.mxu0 %v7902
    %7985 = vmatpush.bf16.msra.mxu0 %v7900
    %7986 = vmatpush.bf16.msra.mxu0 %v7898
    %7987 = vmatpush.bf16.msra.mxu0 %v7896
    %7988 = vmatpush.bf16.msra.mxu0 %v7894
    %7989 = vmatpush.bf16.msra.mxu0 %v7892
    %7990 = vmatpush.bf16.msra.mxu0 %v7890
    %7991 = vmatpush.bf16.msra.mxu0 %v7888
    %7992 = vmatmul.bf16.gmra.mxu0 %v7736
    %v7993 = vpop.f32.mrf.mxu0
    %v7994 = vadd.f32 %v7740, %v7993
    %v7995 = vpop.f32.mrf.mxu0
    %v7996 = vadd.f32 %v7740, %v7995
    %7997 = vdwg.mxu0
    %7998 = vmatpush.bf16.msra.mxu0 %v7918
    %7999 = vmatpush.bf16.msra.mxu0 %v7916
    %8000 = vmatpush.bf16.msra.mxu0 %v7914
    %8001 = vmatpush.bf16.msra.mxu0 %v7912
    %8002 = vmatpush.bf16.msra.mxu0 %v7910
    %8003 = vmatpush.bf16.msra.mxu0 %v7908
    %8004 = vmatpush.bf16.msra.mxu0 %v7906
    %8005 = vmatpush.bf16.msra.mxu0 %v7904
    %8006 = vmatmul.bf16.gmra.mxu0 %v7737
    %v8007 = vpop.f32.mrf.mxu0
    %v8008 = vadd.f32 %v7994, %v8007
    %v8009 = vpop.f32.mrf.mxu0
    %v8010 = vadd.f32 %v7996, %v8009
    %8011 = vdwg.mxu0
    %8012 = vmatpush.bf16.msra.mxu0 %v7934
    %8013 = vmatpush.bf16.msra.mxu0 %v7932
    %8014 = vmatpush.bf16.msra.mxu0 %v7930
    %8015 = vmatpush.bf16.msra.mxu0 %v7928
    %8016 = vmatpush.bf16.msra.mxu0 %v7926
    %8017 = vmatpush.bf16.msra.mxu0 %v7924
    %8018 = vmatpush.bf16.msra.mxu0 %v7922
    %8019 = vmatpush.bf16.msra.mxu0 %v7920
    %8020 = vmatmul.bf16.gmra.mxu0 %v7738
    %v8021 = vpop.f32.mrf.mxu0
    %v8022 = vadd.f32 %v8008, %v8021
    %v8023 = vpop.f32.mrf.mxu0
    %v8024 = vadd.f32 %v8010, %v8023
    %8025 = vdwg.mxu0
    %8026 = vmatpush.bf16.msra.mxu0 %v7903
    %8027 = vmatpush.bf16.msra.mxu0 %v7901
    %8028 = vmatpush.bf16.msra.mxu0 %v7899
    %8029 = vmatpush.bf16.msra.mxu0 %v7897
    %8030 = vmatpush.bf16.msra.mxu0 %v7895
    %8031 = vmatpush.bf16.msra.mxu0 %v7893
    %8032 = vmatpush.bf16.msra.mxu0 %v7891
    %8033 = vmatpush.bf16.msra.mxu0 %v7889
    %8034 = vmatmul.bf16.gmra.mxu0 %v7736
    %v8035 = vpop.f32.mrf.mxu0
    %v8036 = vadd.f32 %v7741, %v8035
    %v8037 = vpop.f32.mrf.mxu0
    %v8038 = vadd.f32 %v7741, %v8037
    %8039 = vdwg.mxu0
    %8040 = vmatpush.bf16.msra.mxu0 %v7919
    %8041 = vmatpush.bf16.msra.mxu0 %v7917
    %8042 = vmatpush.bf16.msra.mxu0 %v7915
    %8043 = vmatpush.bf16.msra.mxu0 %v7913
    %8044 = vmatpush.bf16.msra.mxu0 %v7911
    %8045 = vmatpush.bf16.msra.mxu0 %v7909
    %8046 = vmatpush.bf16.msra.mxu0 %v7907
    %8047 = vmatpush.bf16.msra.mxu0 %v7905
    %8048 = vmatmul.bf16.gmra.mxu0 %v7737
    %v8049 = vpop.f32.mrf.mxu0
    %v8050 = vadd.f32 %v8036, %v8049
    %v8051 = vpop.f32.mrf.mxu0
    %v8052 = vadd.f32 %v8038, %v8051
    %8053 = vdwg.mxu0
    %8054 = vmatpush.bf16.msra.mxu0 %v7935
    %8055 = vmatpush.bf16.msra.mxu0 %v7933
    %8056 = vmatpush.bf16.msra.mxu0 %v7931
    %8057 = vmatpush.bf16.msra.mxu0 %v7929
    %8058 = vmatpush.bf16.msra.mxu0 %v7927
    %8059 = vmatpush.bf16.msra.mxu0 %v7925
    %8060 = vmatpush.bf16.msra.mxu0 %v7923
    %8061 = vmatpush.bf16.msra.mxu0 %v7921
    %8062 = vmatmul.bf16.gmra.mxu0 %v7738
    %v8063 = vpop.f32.mrf.mxu0
    %v8064 = vadd.f32 %v8050, %v8063
    %v8065 = vpop.f32.mrf.mxu0
    %v8066 = vadd.f32 %v8052, %v8065
    %8067 = vdwg.mxu0
    %v8068 = vsub.f32 0.0, %v8022
    %v8069 = vsub.f32 0.0, %v8024
    %v8070 = vmul.f32 %v8068, 1.442695
    %v8071 = vpow.pop %v8070
    %v8072 = vmul.f32 %v8069, 1.442695
    %v8073 = vpow.pop %v8072
    %v8074 = vadd.f32 %v8071, 1.0
    %v8075 = vadd.f32 %v8073, 1.0
    %v8076 = vrcp.pop %v8074
    %v8077 = vrcp.pop %v8075
    %8080 = vrot.lane.b32.xlu0 %v8076, 64
    %v8081 = vpop.permute.xlu0 %8080
    %8082 = vrot.lane.b32.xlu0 %v8077, 64
    %v8083 = vpop.permute.xlu0 %8082
    %v8086 = vadd.f32 %v8022, %v8081
    %v8087 = vadd.f32 %v8024, %v8083
    %v8088 = vadd.f32 %v8086, %v8064
    %v8089 = vadd.f32 %v8087, %v8066
    %v8090 = vmax.f32 %v8088, 0.0
    %v8091 = vmax.f32 %v8089, 0.0
    %v8092 = vld [vmem:[#allocation27] sm:$0xf]
    %v8093 = vld [vmem:[#allocation27 + $0x4] sm:$0xf]
    %v8094 = vld [vmem:[#allocation27 + $0x8] sm:$0xf]
    %v8095 = vld [vmem:[#allocation27 + $0xc] sm:$0xf]
    %v8096 = vld [vmem:[#allocation27 + $0x10] sm:$0xf]
    %v8097 = vld [vmem:[#allocation27 + $0x14] sm:$0xf]
    %v8098 = vld [vmem:[#allocation27 + $0x18] sm:$0xf]
    %v8099 = vld [vmem:[#allocation27 + $0x1c] sm:$0xf]
    %v8100 = vpack.c.bf16 %v8091, %v8090
    %v8101 = vld [vmem:[#allocation28] sm:$0x1]
    %v8103 = vperm.slane %v8101, 0
    %v8113 = vunpack.c.l.b16 %v8092
    %v8114 = vunpack.c.l.b16 %v8093
    %v8115 = vunpack.c.l.b16 %v8094
    %v8116 = vunpack.c.l.b16 %v8095
    %v8117 = vunpack.c.l.b16 %v8096
    %v8118 = vunpack.c.l.b16 %v8097
    %v8119 = vunpack.c.l.b16 %v8098
    %v8120 = vunpack.c.l.b16 %v8099
    %v8121 = vpack.c.b16 %v8114, %v8113
    %v8122 = vpack.c.b16 %v8116, %v8115
    %v8123 = vpack.c.b16 %v8118, %v8117
    %v8124 = vpack.c.b16 %v8120, %v8119
    %v8130 = vsel %vm524, %v8100, 0
    %8132 = vmatpush.bf16.msra.mxu0 0
    %8133 = vmatpush.bf16.msra.mxu0 0
    %8134 = vmatpush.bf16.msra.mxu0 0
    %8135 = vmatpush.bf16.msra.mxu0 0
    %8136 = vmatpush.bf16.msra.mxu0 %v8124
    %8137 = vmatpush.bf16.msra.mxu0 %v8123
    %8138 = vmatpush.bf16.msra.mxu0 %v8122
    %8139 = vmatpush.bf16.msra.mxu0 %v8121
    %8140 = vmatmul.bf16.gmra.mxu0 %v8130
    %v8141 = vpop.f32.mrf.mxu0
    %v8142 = vadd.f32 %v8103, %v8141
    %v8143 = vpop.f32.mrf.mxu0
    %v8144 = vadd.f32 %v8103, %v8143
    %8145 = vdwg.mxu0
    %8146 = vst.msk [vmem:[%s20] sm:$0xff] %vm524, %v8142
    %vm8147 = vcmask 519168
    %8148 = vst.msk [vmem:[%s20 + $0x8] sm:$0xf] %vm8147, %v8144
    // Predicated region
    $region153: #{crowdnet_forward.1} parent=1 // pred_check
      _
    $region154: #{crowdnet_forward.1} parent=1 // pred_check_branch
      %8150 = sbr.rel (0) target = $region156
    $region155: #{crowdnet_forward.1} parent=1 // pred_region
      _
    $region156: #{crowdnet_forward.1} parent=1 // pred_fallthru
      _
    // Predicated region
    $region157: #{crowdnet_forward.1} parent=1 // pred_check
      _
    $region158: #{crowdnet_forward.1} parent=1 // pred_check_branch
      %8152 = sbr.rel (0) target = $region160
    $region159: #{crowdnet_forward.1} parent=1 // pred_region
      _
    $region160: #{crowdnet_forward.1} parent=1 // pred_fallthru
      _
    %8153 = vsyncpa [#allocation9], 1
    %8154 = vsyncpa [#allocation11], 1
    %8155 = vsyncpa [#allocation14], 1
    %8156 = vsyncpa [#allocation17], 1
    %8157 = vsyncpa [#allocation20], 1
    %8158 = vsyncpa [#allocation23], 1
    %8159 = vsyncpa [#allocation26], 1
    %8160 = vsyncpa [#allocation29], 1
  %8161 = vsyncmov [#allocation7]
  %s8162 = vpop.sfrf %8161
  %p8163 = scmp.eq.s32.totalorder %s8162, 0
  %p8164 = pneg %p8163
  %8166 = shalt.err (%p8164)
  %s8167 = scalar_lea.sflag [#allocation7], 1
  %8168 = vsyncmov %s8167
  %s8169 = vpop.sfrf %8168
  %p8170 = scmp.eq.s32.totalorder %s8169, 0
  %p8171 = pneg %p8170
  %8173 = shalt.err (%p8171)
  %s8174 = scalar_lea.sflag [#allocation7], 2
  %8175 = vsyncmov %s8174
  %s8176 = vpop.sfrf %8175
  %p8177 = scmp.eq.s32.totalorder %s8176, 0
  %p8178 = pneg %p8177
  %8180 = shalt.err (%p8178)
  %s8181 = scalar_lea.sflag [#allocation7], 3
  %8182 = vsyncmov %s8181
  %s8183 = vpop.sfrf %8182
  %p8184 = scmp.eq.s32.totalorder %s8183, 0
  %p8185 = pneg %p8184
  %8187 = shalt.err (%p8185)
  %s8188 = scalar_lea.sflag [#allocation7], 4
  %8189 = vsyncmov %s8188
  %s8190 = vpop.sfrf %8189
  %p8191 = scmp.eq.s32.totalorder %s8190, 0
  %p8192 = pneg %p8191
  %8194 = shalt.err (%p8192)

</llo_original>
